<compile_context>
chip_gen: v7x
topology: tpu7x:2x2x1
jax: 0.10.0
libtpu: 0.0.40
codegen_flags: <defaults>
</compile_context>

<pallas_src>
import functools
import math

import jax
import jax.numpy as jnp
import numpy as np
from jax.experimental import pallas as pl
from jax.experimental.pallas import tpu as pltpu


def _erf_approx(x):
    # Abramowitz & Stegun 7.1.26, |err| < 1.5e-7 vs exact erf.
    # The divide is routed to the EUP via approx reciprocal (adds ~1e-4 rel err,
    # still far inside NN tolerance) so it does not consume VALU slots.
    t = pl.reciprocal(1.0 + 0.3275911 * jnp.abs(x), approx=True)
    poly = t * (0.254829592 + t * (-0.284496736 + t * (1.421413741
               + t * (-1.453152027 + t * 1.061405429))))
    y = 1.0 - poly * jnp.exp(-(x * x))
    return jnp.where(x >= 0.0, y, -y)


def _gelu_exact(x):
    # erf-based ("exact") GELU, matching torch nn.GELU().
    # TODO(synk): if downstream tolerates ~1e-3 deviation, switch to tanh-GELU
    # (single EUP tanh, ~2.5x fewer VALU ops) — largest remaining compute lever.
    return 0.5 * x * (1.0 + _erf_approx(x * 0.7071067811865476))


def _position_encoder_kernel(pos_ref, coef_ref, offs_ref,
                             w1t_ref, b1t_ref, w2t_ref, b2t_ref, out_ref):
    """Lane-dense compute (rows on the 128-lane axis), row-major store.

    pos_ref : (D, TM)        transposed positions tile
    coef_ref: (2F, 1)        |scale| * freq_j  (shared across position dims)
    offs_ref: (2F, 1)        0 for sin rows, pi/2 for cos rows
    w1t_ref : (D, feat, 2F)  per-position-dim blocks of W1^T
    b1t_ref : (feat, 1)
    w2t_ref : (feat, feat)   W2^T
    b2t_ref : (feat, 1)
    out_ref : (TM, feat)     row-major output tile (contiguous HBM writeback)
    """
    pos = pos_ref[...]                       # (D, TM)
    coef = coef_ref[...]                     # (2F, 1)
    offs = offs_ref[...]                     # (2F, 1)
    d_dim = pos.shape[0]
    hp = jax.lax.Precision.HIGHEST           # MXU is nearly idle -> f32 passes free

    # First Linear, accumulated per position dim: each encoding row depends on
    # exactly one position dim, so phases come from a (2F,1) coefficient vector
    # with the sin/cos phase offset folded in (no dense one-hot MAC, no extra add).
    acc = None
    for d in range(d_dim):
        enc_d = jnp.sin(coef * pos[d:d + 1, :] + offs)          # (2F, TM)
        part = jnp.dot(w1t_ref[d], enc_d,
                       preferred_element_type=jnp.float32, precision=hp)
        acc = part if acc is None else acc + part

    h = _gelu_exact(acc + b1t_ref[...])                         # (feat, TM)
    o = jnp.dot(w2t_ref[...], h,
                preferred_element_type=jnp.float32, precision=hp) + b2t_ref[...]

    # In-kernel transpose (XLU slot is otherwise idle) -> contiguous (TM, feat)
    # store; removes the wrapper-side full-output transpose pass over HBM.
    # TODO(synk): emit bf16 here if the consumer accepts it (halves writeback).
    out_ref[...] = o.T.astype(out_ref.dtype)


def _detect_num_tensorcores() -> int:
    # Best-effort: 1 on v5e/v6e (single TC per chip). Override via the
    # num_tensorcores static arg on v7x if the attribute is not exposed.
    try:
        dev = jax.devices()[0]
        for attr in ("num_cores", "core_count"):
            v = getattr(dev, attr, None)
            if isinstance(v, int) and v >= 1:
                return v
    except Exception:
        pass
    return 1


def _pick_row_tile(n_rows: int, tm_max: int, num_cores: int) -> int:
    """Row tile (multiple of 128, <= tm_max).

    1 TC (v5e/v6e): one maximal tile — the grid is a serial loop, so extra steps
    only add ~0.35 us/step overhead.  >1 TC (v7x): make the grid length a
    multiple of num_cores so dimension_semantics=("parallel",) load-balances.
    """
    n128 = ((n_rows + 127) // 128) * 128
    if num_cores <= 1:
        return max(128, min(n128, tm_max))
    groups = max(1, -(-n128 // (num_cores * tm_max)))
    steps = num_cores * groups
    tm = -(-n128 // steps)
    tm = ((tm + 127) // 128) * 128
    return max(128, min(tm, tm_max))


@functools.partial(jax.jit,
                   static_argnames=("num_freq_bands", "tm_max", "num_tensorcores"))
def position_encoder_forward(positions, scale, w1, b1, w2, b2,
                             *, num_freq_bands: int = 6, tm_max: int = 2048,
                             num_tensorcores=None):
    """positions: (B, H, W, position_dim) f32 -> (B, H, W, feat_dim) f32."""
    B, H, W, D = positions.shape
    F = num_freq_bands
    feat = w1.shape[1]
    N = B * H * W

    if num_tensorcores is None:
        num_tensorcores = _detect_num_tensorcores()
    tm = _pick_row_tile(N, tm_max, num_tensorcores)
    n_pad = pl.cdiv(N, tm) * tm

    # Row-transposed, lane-dense positions (D, n_pad).  Padded columns flow
    # through sin/GELU/matmul with zeroed positions (finite, harmless) and are
    # sliced off after the kernel — never reduce over the padded region.
    pos_t = positions.reshape(N, D).T.astype(jnp.float32)
    if n_pad != N:
        pos_t = jnp.pad(pos_t, ((0, 0), (0, n_pad - N)))

    # Encoding layout matches torch.cat([sin, cos], -1).flatten(-2):
    #   e = d*2F + j ;  j < F -> sin(2^j * |s| * pos_d),  j >= F -> cos(...)
    # The per-row coefficient / phase offset are identical for every d, so a
    # (2F, 1) vector suffices; cos(x) = sin(x + pi/2).
    freqs = np.tile((2.0 ** np.arange(F)).astype(np.float32), 2).reshape(2 * F, 1)
    offs_np = np.concatenate([np.zeros(F, np.float32),
                              np.full(F, np.pi / 2.0, np.float32)]).reshape(2 * F, 1)
    scale_abs = jnp.abs(jnp.asarray(scale, jnp.float32).reshape(-1)[0])
    coef = jnp.asarray(freqs) * scale_abs           # |scale| folded in
    offs = jnp.asarray(offs_np)

    # W1^T split into per-position-dim (feat, 2F) blocks: [d, n, j] = w1[d*2F+j, n].
    w1t_blocks = jnp.asarray(w1, jnp.float32).reshape(D, 2 * F, feat).transpose(0, 2, 1)
    b1t = jnp.asarray(b1, jnp.float32).reshape(feat, 1)
    w2t = jnp.asarray(w2, jnp.float32).T             # (feat, feat)
    b2t = jnp.asarray(b2, jnp.float32).reshape(feat, 1)

    out = pl.pallas_call(
        _position_encoder_kernel,
        out_shape=jax.ShapeDtypeStruct((n_pad, feat), jnp.float32),
        grid_spec=pltpu.PrefetchScalarGridSpec(
            num_scalar_prefetch=0,
            grid=(n_pad // tm,),
            in_specs=[
                pl.BlockSpec((D, tm), lambda i: (0, i)),            # positions (lane-dense)
                pl.BlockSpec((2 * F, 1), lambda i: (0, 0)),         # |scale|*freq
                pl.BlockSpec((2 * F, 1), lambda i: (0, 0)),         # sin/cos phase offsets
                pl.BlockSpec((D, feat, 2 * F), lambda i: (0, 0, 0)),  # W1^T blocks
                pl.BlockSpec((feat, 1), lambda i: (0, 0)),          # b1
                pl.BlockSpec((feat, feat), lambda i: (0, 0)),       # W2^T
                pl.BlockSpec((feat, 1), lambda i: (0, 0)),          # b2
            ],
            out_specs=pl.BlockSpec((tm, feat), lambda i: (i, 0)),   # row-major output
        ),
        compiler_params=pltpu.CompilerParams(dimension_semantics=("parallel",)),
    )(pos_t, coef, offs, w1t_blocks, b1t, w2t, b2t)

    # No transpose here: just drop padded rows and restore the (B, H, W, feat) view.
    return out[:N].reshape(B, H, W, feat)


def _reference(positions, scale, w1, b1, w2, b2, num_freq_bands=6):
    """Pure-JAX mirror of the PyTorch forward (for the correctness check)."""
    hp = jax.lax.Precision.HIGHEST
    freqs = 2.0 ** jnp.arange(num_freq_bands, dtype=jnp.float32)
    s = jnp.abs(jnp.asarray(scale, jnp.float32).reshape(-1)[0])
    p = positions[..., None] * freqs                                   # (B,H,W,D,F)
    enc = jnp.concatenate([jnp.sin(p * s), jnp.cos(p * s)], axis=-1)   # (B,H,W,D,2F)
    enc = enc.reshape(*positions.shape[:-1], -1)                       # (B,H,W,D*2F)
    h = jax.nn.gelu(jnp.dot(enc, w1, precision=hp) + b1, approximate=False)
    return jnp.dot(h, w2, precision=hp) + b2


if __name__ == "__main__":
    # Small shapes consistent with the module's forward: (B, H, W, position_dim)
    B, H, W = 2, 16, 16
    position_dim = 2
    feat_dim = 64
    num_freq_bands = 6
    enc_dim = position_dim * 2 * num_freq_bands  # 24

    key = jax.random.PRNGKey(0)
    k_pos, k_w1, k_b1, k_w2, k_b2 = jax.random.split(key, 5)

    positions = jax.random.uniform(k_pos, (B, H, W, position_dim), jnp.float32)

    # Deterministic synthetic parameters (PyTorch-Linear-like uniform init).
    lim1 = 1.0 / math.sqrt(enc_dim)
    lim2 = 1.0 / math.sqrt(feat_dim)
    w1 = jax.random.uniform(k_w1, (enc_dim, feat_dim), jnp.float32, -lim1, lim1)
    b1 = jax.random.uniform(k_b1, (feat_dim,), jnp.float32, -lim1, lim1)
    w2 = jax.random.uniform(k_w2, (feat_dim, feat_dim), jnp.float32, -lim2, lim2)
    b2 = jax.random.uniform(k_b2, (feat_dim,), jnp.float32, -lim2, lim2)
    scale = jnp.asarray(-0.75, dtype=jnp.float32)  # 0-d like nn.Parameter; .abs() in forward

    out = position_encoder_forward(positions, scale, w1, b1, w2, b2,
                                   num_freq_bands=num_freq_bands)
    out = jax.block_until_ready(out)
    assert out.shape == (B, H, W, feat_dim), out.shape

    ref = _reference(positions, scale, w1, b1, w2, b2, num_freq_bands)
    # Matmuls now run at HIGHEST precision on both sides; the remaining gap is
    # the approximate EUP reciprocal inside the A&S erf (~1e-4 rel) plus the
    # erf approximation itself (<1.5e-7), comfortably inside 2e-3.
    np.testing.assert_allclose(np.asarray(out), np.asarray(ref), rtol=2e-3, atol=2e-3)

    print("KERNEL_OK")
</pallas_src>

<mosaic_0001>
module attributes {stable_mosaic.version = 11 : i64} {
  func.func @_position_encoder_kernel(%arg0: i32, %arg1: memref<2x512xf32, #tpu.memory_space<vmem>>, %arg2: memref<12x1xf32, #tpu.memory_space<vmem>>, %arg3: memref<12x1xf32, #tpu.memory_space<vmem>>, %arg4: memref<2x64x12xf32, #tpu.memory_space<vmem>>, %arg5: memref<64x1xf32, #tpu.memory_space<vmem>>, %arg6: memref<64x64xf32, #tpu.memory_space<vmem>>, %arg7: memref<64x1xf32, #tpu.memory_space<vmem>>, %arg8: memref<512x64xf32, #tpu.memory_space<vmem>>) attributes {dimension_semantics = [#tpu.dimension_semantics<parallel>], iteration_bounds = array<i64: 1>, scalar_prefetch = 0 : i64, scratch_operands = 0 : i64, tpu.core_type = #tpu.core_type<tc>, window_params = [{transform_indices = @transform_0, window_bounds = array<i64: 2, 512>}, {pipeline_mode = #tpu.pipeline_mode<synchronous>, transform_indices = @transform_1, window_bounds = array<i64: 12, 1>}, {pipeline_mode = #tpu.pipeline_mode<synchronous>, transform_indices = @transform_2, window_bounds = array<i64: 12, 1>}, {pipeline_mode = #tpu.pipeline_mode<synchronous>, transform_indices = @transform_3, window_bounds = array<i64: 2, 64, 12>}, {pipeline_mode = #tpu.pipeline_mode<synchronous>, transform_indices = @transform_4, window_bounds = array<i64: 64, 1>}, {pipeline_mode = #tpu.pipeline_mode<synchronous>, transform_indices = @transform_5, window_bounds = array<i64: 64, 64>}, {pipeline_mode = #tpu.pipeline_mode<synchronous>, transform_indices = @transform_6, window_bounds = array<i64: 64, 1>}, {transform_indices = @transform_7, window_bounds = array<i64: 512, 64>}]} {
    %c0 = arith.constant 0 : index
    %c0_0 = arith.constant 0 : index
    %0 = vector.load %arg1[%c0, %c0_0] : memref<2x512xf32, #tpu.memory_space<vmem>>, vector<2x512xf32>
    %c0_1 = arith.constant 0 : index
    %c0_2 = arith.constant 0 : index
    %1 = vector.load %arg2[%c0_1, %c0_2] : memref<12x1xf32, #tpu.memory_space<vmem>>, vector<12x1xf32>
    %c0_3 = arith.constant 0 : index
    %c0_4 = arith.constant 0 : index
    %2 = vector.load %arg3[%c0_3, %c0_4] : memref<12x1xf32, #tpu.memory_space<vmem>>, vector<12x1xf32>
    %3 = vector.extract_strided_slice %0 {offsets = [0, 0], sizes = [1, 512], strides = [1, 1]} : vector<2x512xf32> to vector<1x512xf32>
    %4 = vector.broadcast %1 : vector<12x1xf32> to vector<12x512xf32>
    %5 = vector.broadcast %3 : vector<1x512xf32> to vector<12x512xf32>
    %6 = arith.mulf %4, %5 : vector<12x512xf32>
    %7 = vector.broadcast %2 : vector<12x1xf32> to vector<12x512xf32>
    %8 = arith.addf %6, %7 : vector<12x512xf32>
    %9 = math.sin %8 : vector<12x512xf32>
    %c0_5 = arith.constant 0 : index
    %c0_6 = arith.constant 0 : index
    %c0_7 = arith.constant 0 : index
    %10 = vector.load %arg4[%c0_5, %c0_6, %c0_7] : memref<2x64x12xf32, #tpu.memory_space<vmem>>, vector<1x64x12xf32>
    %11 = vector.shape_cast %10 : vector<1x64x12xf32> to vector<64x12xf32>
    %cst = arith.constant dense<0.000000e+00> : vector<64x512xf32>
    %12 = tpu.matmul %11, %9, %cst {dimension_numbers = #tpu.dot_dimension_numbers<[1], [0], [0], [1], [0, 0, 1, 1], [], []>, precision = #tpu.contract_precision<fp32>} : vector<64x12xf32>, vector<12x512xf32>, vector<64x512xf32> -> vector<64x512xf32>
    %13 = vector.extract_strided_slice %0 {offsets = [1, 0], sizes = [1, 512], strides = [1, 1]} : vector<2x512xf32> to vector<1x512xf32>
    %14 = vector.broadcast %1 : vector<12x1xf32> to vector<12x512xf32>
    %15 = vector.broadcast %13 : vector<1x512xf32> to vector<12x512xf32>
    %16 = arith.mulf %14, %15 : vector<12x512xf32>
    %17 = vector.broadcast %2 : vector<12x1xf32> to vector<12x512xf32>
    %18 = arith.addf %16, %17 : vector<12x512xf32>
    %19 = math.sin %18 : vector<12x512xf32>
    %c1 = arith.constant 1 : index
    %c0_8 = arith.constant 0 : index
    %c0_9 = arith.constant 0 : index
    %20 = vector.load %arg4[%c1, %c0_8, %c0_9] : memref<2x64x12xf32, #tpu.memory_space<vmem>>, vector<1x64x12xf32>
    %21 = vector.shape_cast %20 : vector<1x64x12xf32> to vector<64x12xf32>
    %cst_10 = arith.constant dense<0.000000e+00> : vector<64x512xf32>
    %22 = tpu.matmul %21, %19, %cst_10 {dimension_numbers = #tpu.dot_dimension_numbers<[1], [0], [0], [1], [0, 0, 1, 1], [], []>, precision = #tpu.contract_precision<fp32>} : vector<64x12xf32>, vector<12x512xf32>, vector<64x512xf32> -> vector<64x512xf32>
    %23 = arith.addf %12, %22 : vector<64x512xf32>
    %c0_11 = arith.constant 0 : index
    %c0_12 = arith.constant 0 : index
    %24 = vector.load %arg5[%c0_11, %c0_12] : memref<64x1xf32, #tpu.memory_space<vmem>>, vector<64x1xf32>
    %25 = vector.broadcast %24 : vector<64x1xf32> to vector<64x512xf32>
    %26 = arith.addf %23, %25 : vector<64x512xf32>
    %cst_13 = arith.constant 5.000000e-01 : f32
    %27 = vector.broadcast %cst_13 : f32 to vector<64x512xf32>
    %28 = arith.mulf %27, %26 : vector<64x512xf32>
    %cst_14 = arith.constant 0.707106769 : f32
    %29 = vector.broadcast %cst_14 : f32 to vector<64x512xf32>
    %30 = arith.mulf %26, %29 : vector<64x512xf32>
    %31 = math.absf %30 : vector<64x512xf32>
    %cst_15 = arith.constant 0.327591091 : f32
    %32 = vector.broadcast %cst_15 : f32 to vector<64x512xf32>
    %33 = arith.mulf %32, %31 : vector<64x512xf32>
    %cst_16 = arith.constant 1.000000e+00 : f32
    %34 = vector.broadcast %cst_16 : f32 to vector<64x512xf32>
    %35 = arith.addf %34, %33 : vector<64x512xf32>
    %36 = tpu.reciprocal %35 {approx = true} : vector<64x512xf32> -> vector<64x512xf32>
    %cst_17 = arith.constant 1.06140542 : f32
    %37 = vector.broadcast %cst_17 : f32 to vector<64x512xf32>
    %38 = arith.mulf %36, %37 : vector<64x512xf32>
    %cst_18 = arith.constant -1.45315206 : f32
    %39 = vector.broadcast %cst_18 : f32 to vector<64x512xf32>
    %40 = arith.addf %39, %38 : vector<64x512xf32>
    %41 = arith.mulf %36, %40 : vector<64x512xf32>
    %cst_19 = arith.constant 1.42141378 : f32
    %42 = vector.broadcast %cst_19 : f32 to vector<64x512xf32>
    %43 = arith.addf %42, %41 : vector<64x512xf32>
    %44 = arith.mulf %36, %43 : vector<64x512xf32>
    %cst_20 = arith.constant -0.284496725 : f32
    %45 = vector.broadcast %cst_20 : f32 to vector<64x512xf32>
    %46 = arith.addf %45, %44 : vector<64x512xf32>
    %47 = arith.mulf %36, %46 : vector<64x512xf32>
    %cst_21 = arith.constant 0.254829586 : f32
    %48 = vector.broadcast %cst_21 : f32 to vector<64x512xf32>
    %49 = arith.addf %48, %47 : vector<64x512xf32>
    %50 = arith.mulf %36, %49 : vector<64x512xf32>
    %51 = arith.mulf %30, %30 : vector<64x512xf32>
    %cst_22 = arith.constant 0.000000e+00 : f32
    %52 = vector.broadcast %cst_22 : f32 to vector<64x512xf32>
    %53 = arith.subf %52, %51 : vector<64x512xf32>
    %54 = math.exp %53 : vector<64x512xf32>
    %55 = arith.mulf %50, %54 : vector<64x512xf32>
    %cst_23 = arith.constant 1.000000e+00 : f32
    %56 = vector.broadcast %cst_23 : f32 to vector<64x512xf32>
    %57 = arith.subf %56, %55 : vector<64x512xf32>
    %cst_24 = arith.constant 0.000000e+00 : f32
    %58 = vector.broadcast %cst_24 : f32 to vector<64x512xf32>
    %59 = arith.cmpf oge, %30, %58 : vector<64x512xf32>
    %cst_25 = arith.constant 0.000000e+00 : f32
    %60 = vector.broadcast %cst_25 : f32 to vector<64x512xf32>
    %61 = arith.subf %60, %57 : vector<64x512xf32>
    %62 = arith.select %59, %57, %61 : vector<64x512xi1>, vector<64x512xf32>
    %cst_26 = arith.constant 1.000000e+00 : f32
    %63 = vector.broadcast %cst_26 : f32 to vector<64x512xf32>
    %64 = arith.addf %63, %62 : vector<64x512xf32>
    %65 = arith.mulf %28, %64 : vector<64x512xf32>
    %c0_27 = arith.constant 0 : index
    %c0_28 = arith.constant 0 : index
    %66 = vector.load %arg6[%c0_27, %c0_28] : memref<64x64xf32, #tpu.memory_space<vmem>>, vector<64x64xf32>
    %cst_29 = arith.constant dense<0.000000e+00> : vector<64x512xf32>
    %67 = tpu.matmul %66, %65, %cst_29 {dimension_numbers = #tpu.dot_dimension_numbers<[1], [0], [0], [1], [0, 0, 1, 1], [], []>, precision = #tpu.contract_precision<fp32>} : vector<64x64xf32>, vector<64x512xf32>, vector<64x512xf32> -> vector<64x512xf32>
    %c0_30 = arith.constant 0 : index
    %c0_31 = arith.constant 0 : index
    %68 = vector.load %arg7[%c0_30, %c0_31] : memref<64x1xf32, #tpu.memory_space<vmem>>, vector<64x1xf32>
    %69 = vector.broadcast %68 : vector<64x1xf32> to vector<64x512xf32>
    %70 = arith.addf %67, %69 : vector<64x512xf32>
    %71 = tpu.transpose %70, [1, 0] : vector<64x512xf32> -> vector<512x64xf32>
    %c0_32 = arith.constant 0 : index
    %c0_33 = arith.constant 0 : index
    %72 = vector.load %arg8[%c0_32, %c0_33] : memref<512x64xf32, #tpu.memory_space<vmem>>, vector<512x64xf32>
    tpu.vector_store %arg8[%c0_32, %c0_33], %71 {strides = array<i32>} : memref<512x64xf32, #tpu.memory_space<vmem>>, vector<512x64xf32>,
    return
  }
  func.func @transform_0(%arg0: i32) -> (i32, i32) {
    %c0_i32 = arith.constant 0 : i32
    %c0_i32_0 = arith.constant 0 : i32
    return %c0_i32, %arg0 : i32, i32
  }
  func.func @transform_1(%arg0: i32) -> (i32, i32) {
    %c0_i32 = arith.constant 0 : i32
    %c0_i32_0 = arith.constant 0 : i32
    %c0_i32_1 = arith.constant 0 : i32
    return %c0_i32, %c0_i32_0 : i32, i32
  }
  func.func @transform_2(%arg0: i32) -> (i32, i32) {
    %c0_i32 = arith.constant 0 : i32
    %c0_i32_0 = arith.constant 0 : i32
    %c0_i32_1 = arith.constant 0 : i32
    return %c0_i32, %c0_i32_0 : i32, i32
  }
  func.func @transform_3(%arg0: i32) -> (i32, i32, i32) {
    %c0_i32 = arith.constant 0 : i32
    %c0_i32_0 = arith.constant 0 : i32
    %c0_i32_1 = arith.constant 0 : i32
    %c0_i32_2 = arith.constant 0 : i32
    return %c0_i32, %c0_i32_0, %c0_i32_1 : i32, i32, i32
  }
  func.func @transform_4(%arg0: i32) -> (i32, i32) {
    %c0_i32 = arith.constant 0 : i32
    %c0_i32_0 = arith.constant 0 : i32
    %c0_i32_1 = arith.constant 0 : i32
    return %c0_i32, %c0_i32_0 : i32, i32
  }
  func.func @transform_5(%arg0: i32) -> (i32, i32) {
    %c0_i32 = arith.constant 0 : i32
    %c0_i32_0 = arith.constant 0 : i32
    %c0_i32_1 = arith.constant 0 : i32
    return %c0_i32, %c0_i32_0 : i32, i32
  }
  func.func @transform_6(%arg0: i32) -> (i32, i32) {
    %c0_i32 = arith.constant 0 : i32
    %c0_i32_0 = arith.constant 0 : i32
    %c0_i32_1 = arith.constant 0 : i32
    return %c0_i32, %c0_i32_0 : i32, i32
  }
  func.func @transform_7(%arg0: i32) -> (i32, i32) {
    %c0_i32 = arith.constant 0 : i32
    %c0_i32_0 = arith.constant 0 : i32
    return %arg0, %c0_i32 : i32, i32
  }
}

</mosaic_0001>

<llo_original>
// kernel: position_encoder_forward.1
$region0: #{position_encoder_forward.1}
  #allocation0 [shape = 'u32[]', space=smem, size = 0x4, offset = 0x4, fixed_abs, tag = 'smem constant byte address 0x4 - core index']
  #allocation1 [shape = 'u32[144,128]{1,0:T(1,128)}', space=vmem, size = 0x12000, scoped, tag = 'internal scratch']
  %s0 = inlined_call_operand.vmem [shape: f32[2,512], index: 0, kind: input, shape index: {}]
  %s1 = inlined_call_operand.vmem [shape: f32[12,1], index: 1, kind: input, shape index: {}]
  %s2 = inlined_call_operand.vmem [shape: f32[12,1], index: 2, kind: input, shape index: {}]
  %s3 = inlined_call_operand.vmem [shape: f32[2,64,12], index: 3, kind: input, shape index: {}]
  %s4 = inlined_call_operand.vmem [shape: f32[64,1], index: 4, kind: input, shape index: {}]
  %s5 = inlined_call_operand.vmem [shape: f32[64,64], index: 5, kind: input, shape index: {}]
  %s6 = inlined_call_operand.vmem [shape: f32[64,1], index: 6, kind: input, shape index: {}]
  %s7 = inlined_call_operand.hbm [shape: f32[512,64], index: 7, kind: output, shape index: {}]
  %s8 = sld [smem:[#allocation0]]
  $region38: #{position_encoder_forward.1} parent=0
    _
  %s10 = ssub.s32 1, %s8
  %s11 = scalar_select 0, %s10, %s8
  $region1: #{position_encoder_forward.1} parent=0
    #allocation2 [shape = 'u8[262144]{0}', space=vmem, size = 0x40000, scoped, tag = 'output window, operand 0, single buffered']
    #allocation3 [shape = 's32[1]{0}', space=sflag, size = 0x4, scoped, tag = 'scoped memory for position_encoder_forward.1']
    %12 = vsyncpa [#allocation3], 0
    // Predicated region
    $region2: #{position_encoder_forward.1} parent=1 // pred_check
      _
    $region3: #{position_encoder_forward.1} parent=1 // pred_check_branch
      %14 = sbr.rel (0) target = $region5
    $region4: #{position_encoder_forward.1} parent=1 // pred_region
      _
    $region5: #{position_encoder_forward.1} parent=1 // pred_fallthru
      _
    // Predicated region
    $region6: #{position_encoder_forward.1} parent=1 // pred_check
      _
    $region7: #{position_encoder_forward.1} parent=1 // pred_check_branch
      %16 = sbr.rel (0) target = $region9
    $region8: #{position_encoder_forward.1} parent=1 // pred_region
      _
    $region9: #{position_encoder_forward.1} parent=1 // pred_fallthru
      _
    // Predicated region
    $region10: #{position_encoder_forward.1} parent=1 // pred_check
      _
    $region11: #{position_encoder_forward.1} parent=1 // pred_check_branch
      %18 = sbr.rel (0) target = $region13
    $region12: #{position_encoder_forward.1} parent=1 // pred_region
      _
    $region13: #{position_encoder_forward.1} parent=1 // pred_fallthru
      _
    // Predicated region
    $region14: #{position_encoder_forward.1} parent=1 // pred_check
      _
    $region15: #{position_encoder_forward.1} parent=1 // pred_check_branch
      %20 = sbr.rel (0) target = $region17
    $region16: #{position_encoder_forward.1} parent=1 // pred_region
      _
    $region17: #{position_encoder_forward.1} parent=1 // pred_fallthru
      _
    // Predicated region
    $region18: #{position_encoder_forward.1} parent=1 // pred_check
      _
    $region19: #{position_encoder_forward.1} parent=1 // pred_check_branch
      %22 = sbr.rel (0) target = $region21
    $region20: #{position_encoder_forward.1} parent=1 // pred_region
      _
    $region21: #{position_encoder_forward.1} parent=1 // pred_fallthru
      _
    // Predicated region
    $region22: #{position_encoder_forward.1} parent=1 // pred_check
      _
    $region23: #{position_encoder_forward.1} parent=1 // pred_check_branch
      %24 = sbr.rel (0) target = $region25
    $region24: #{position_encoder_forward.1} parent=1 // pred_region
      _
    $region25: #{position_encoder_forward.1} parent=1 // pred_fallthru
      _
    // Predicated region
    $region26: #{position_encoder_forward.1} parent=1 // pred_check
      _
    $region27: #{position_encoder_forward.1} parent=1 // pred_check_branch
      %26 = sbr.rel (0) target = $region29
    $region28: #{position_encoder_forward.1} parent=1 // pred_region
      _
    $region29: #{position_encoder_forward.1} parent=1 // pred_fallthru
      _
    %v27 = vld [vmem:[%s0] sm:$0xff]
    %v28 = vld [vmem:[%s1] sm:$0xff]
    %v29 = vld [vmem:[%s1 + $0x8] sm:$0xf]
    %v30 = vld [vmem:[%s2] sm:$0xff]
    %v31 = vld [vmem:[%s2 + $0x8] sm:$0xf]
    %33 = vset.pattern.permute.xlu0 0
    %34 = vperm.xlu0 %33, %v28
    %v35 = vpop.permute.xlu0 %34
    %38 = vset.pattern.permute.xlu0 0
    %39 = vperm.xlu0 %38, %v29
    %v40 = vpop.permute.xlu0 %39
    %v43 = vlaneseq
    %v44 = vshrl.u32 %v43, 7
    %v45 = vsub.s32 0, %v44
    %v46 = vrot.slane %v27, %v45
    %v47 = vlaneseq
    %v48 = vshrl.u32 %v47, 7
    %v49 = vsub.s32 2, %v48
    %v50 = vrot.slane %v27, %v49
    %v51 = vlaneseq
    %v52 = vshrl.u32 %v51, 7
    %v53 = vsub.s32 4, %v52
    %v54 = vrot.slane %v27, %v53
    %v55 = vlaneseq
    %v56 = vshrl.u32 %v55, 7
    %v57 = vsub.s32 6, %v56
    %v58 = vrot.slane %v27, %v57
    %v63 = vlaneseq
    %v64 = vshrl.u32 %v63, 7
    %v65 = vsub.s32 0, %v64
    %v66 = vrot.slane %v46, %v65
    %v67 = vlaneseq
    %v68 = vshrl.u32 %v67, 7
    %v69 = vsub.s32 0, %v68
    %v70 = vrot.slane %v50, %v69
    %v71 = vlaneseq
    %v72 = vshrl.u32 %v71, 7
    %v73 = vsub.s32 0, %v72
    %v74 = vrot.slane %v54, %v73
    %v75 = vlaneseq
    %v76 = vshrl.u32 %v75, 7
    %v77 = vsub.s32 0, %v76
    %v78 = vrot.slane %v58, %v77
    %v79 = vmul.f32 %v35, %v66
    %v80 = vmul.f32 %v35, %v70
    %v81 = vmul.f32 %v35, %v74
    %v82 = vmul.f32 %v35, %v78
    %v83 = vmul.f32 %v40, %v66
    %v84 = vmul.f32 %v40, %v70
    %v85 = vmul.f32 %v40, %v74
    %v86 = vmul.f32 %v40, %v78
    %88 = vset.pattern.permute.xlu0 0
    %89 = vperm.xlu0 %88, %v30
    %v90 = vpop.permute.xlu0 %89
    %93 = vset.pattern.permute.xlu0 0
    %94 = vperm.xlu0 %93, %v31
    %v95 = vpop.permute.xlu0 %94
    %v97 = vadd.f32 %v79, %v90
    %v98 = vadd.f32 %v80, %v90
    %v99 = vadd.f32 %v81, %v90
    %v100 = vadd.f32 %v82, %v90
    %v101 = vadd.f32 %v83, %v95
    %v102 = vadd.f32 %v84, %v95
    %v103 = vadd.f32 %v85, %v95
    %v104 = vadd.f32 %v86, %v95
    %v105 = vand.u32 2147483647, %v97
    %vm106 = vcmp.le.f32.partialorder %v105, 0.7853982
    %vm107 = vcmp.lt.s32.totalorder %v97, 0
    %v108 = vand.u32 %v97, 2139095040
    %v109 = vshrl.u32 %v108, 23
    %v110 = vsub.s32 %v109, 127
    %v111 = vand.u32 2147483647, %v97
    %v112 = vand.u32 %v111, 8388607
    %v113 = vor.u32 %v112, 8388608
    %v114 = vsub.s32 0, %v113
    %v115 = vadd.s32 %v110, 1
    %vm116 = vcmp.gt.s32.totalorder %v115, 0
    %v117 = vsel %vm116, %v115, 0
    %v118 = vshrl.u32 %v117, 5
    %v119 = vand.u32 %v117, 31
    %v120 = vsub.s32 32, %v119
    %v121 = vshrl.u32 683565275, %v120
    %v122 = vshll.u32 683565275, %v119
    %v123 = vshrl.u32 2475754826, %v120
    %v124 = vor.u32 %v122, %v123
    %v125 = vshll.u32 2475754826, %v119
    %v126 = vshrl.u32 2131351028, %v120
    %v127 = vor.u32 %v125, %v126
    %v128 = vshll.u32 2131351028, %v119
    %v129 = vshrl.u32 2102212464, %v120
    %v130 = vor.u32 %v128, %v129
    %v131 = vshll.u32 2102212464, %v119
    %v132 = vshrl.u32 920167782, %v120
    %v133 = vor.u32 %v131, %v132
    %v134 = vshll.u32 920167782, %v119
    %v135 = vshrl.u32 1326507024, %v120
    %v136 = vor.u32 %v134, %v135
    %vm137 = vcmp.lt.s32.totalorder %v118, 1
    %vm138 = vcmp.lt.s32.totalorder %v118, 2
    %vm139 = vcmp.lt.s32.totalorder %v118, 3
    %vm140 = vcmp.lt.s32.totalorder %v118, 4
    %v141 = vsel %vm137, %v121, %v124
    %v142 = vsel %vm140, %v130, 2102212464
    %v143 = vsel %vm139, %v127, %v142
    %v144 = vsel %vm138, %v141, %v143
    %v145 = vsel %vm137, %v124, %v127
    %v146 = vsel %vm140, %v133, 920167782
    %v147 = vsel %vm139, %v130, %v146
    %v148 = vsel %vm138, %v145, %v147
    %v149 = vsel %vm137, %v127, %v130
    %v150 = vsel %vm140, %v136, 1326507024
    %v151 = vsel %vm139, %v133, %v150
    %v152 = vsel %vm138, %v149, %v151
    %v153 = vshll.u32 %v113, 8
    %v154 = vmul.u32.u64.compose %v153, %v152
    %v155 = vextract.low.u32 %v154
    %v156 = vextract.high.u32 %v154
    %v157 = vmul.u32.u64.compose %v153, %v148
    %v158 = vextract.low.u32 %v157
    %v159 = vextract.high.u32 %v157
    %v160 = vmul.u32 %v153, %v144
    %v161 = vadd.s32 %v156, %v158
    %vm162 = vc.u32 %v156, %v158
    %v163 = vadd.s32 %v159, 1
    %v164 = vsel %vm162, %v163, %v159
    %v165 = vadd.s32 %v160, %v164
    %v166 = vadd.s32 %v165, 536870912
    %v167 = vshrl.u32 %v166, 30
    %v168 = vshll.u32 %v167, 30
    %v169 = vsub.s32 %v165, %v168
    %vm170 = vcmp.lt.s32.totalorder %v169, 0
    %v171 = vsub.s32 0, %v169
    %v172 = vsel %vm170, %v171, %v169
    %v173 = vclz %v172
    %v174 = vsub.s32 %v173, 2
    %vm175 = vcmp.gt.s32.totalorder 0, %v174
    %v176 = vsel %vm175, 0, %v174
    %v177 = vsub.s32 32, %v176
    %v178 = vshll.u32 %v169, %v176
    %v179 = vshrl.u32 %v161, %v177
    %v180 = vor.u32 %v178, %v179
    %v181 = vsub.s32 4294967266, %v176
    %v182 = vadd.s32 %v181, 127
    %v183 = vshll.u32 %v182, 23
    %v184 = vor.u32 4788187, %v183
    %v185 = vand.u32 2147483647, %v184
    %v187 = vcvt.s32.f32 %v180
    %v188 = vmul.f32 %v187, %v185
    %v189 = vxor.u32 %v188, 2147483648
    %v190 = vsel %vm107, %v189, %v188
    %v191 = vsub.s32 4, %v167
    %v192 = vsel %vm107, %v191, %v167
    %v193 = vsel %vm106, %v97, %v190
    %v194 = vsel %vm106, 0, %v192
    %v195 = vcosq.f32.pop %v193
    %v196 = vsinq.f32.pop %v193
    %vm197 = vweird.f32 %v97
    %v198 = vadd.s32 %v194, 3
    %v199 = vand.u32 %v198, 3
    %vm200 = vcmp.lt.s32.totalorder %v199, 2
    %vm201 = vcmp.eq.s32.totalorder %v199, 0
    %v202 = vxor.u32 %v196, 2147483648
    %v203 = vsel %vm201, %v195, %v202
    %vm204 = vcmp.eq.s32.totalorder %v199, 2
    %v205 = vxor.u32 %v195, 2147483648
    %v206 = vsel %vm204, %v205, %v196
    %v207 = vsel %vm200, %v203, %v206
    %v208 = vsel %vm197, nan, %v207
    %v209 = vand.u32 2147483647, %v98
    %vm210 = vcmp.le.f32.partialorder %v209, 0.7853982
    %vm211 = vcmp.lt.s32.totalorder %v98, 0
    %v212 = vand.u32 %v98, 2139095040
    %v213 = vshrl.u32 %v212, 23
    %v214 = vsub.s32 %v213, 127
    %v215 = vand.u32 2147483647, %v98
    %v216 = vand.u32 %v215, 8388607
    %v217 = vor.u32 %v216, 8388608
    %v218 = vsub.s32 0, %v217
    %v219 = vadd.s32 %v214, 1
    %vm220 = vcmp.gt.s32.totalorder %v219, 0
    %v221 = vsel %vm220, %v219, 0
    %v222 = vshrl.u32 %v221, 5
    %v223 = vand.u32 %v221, 31
    %v224 = vsub.s32 32, %v223
    %v225 = vshrl.u32 683565275, %v224
    %v226 = vshll.u32 683565275, %v223
    %v227 = vshrl.u32 2475754826, %v224
    %v228 = vor.u32 %v226, %v227
    %v229 = vshll.u32 2475754826, %v223
    %v230 = vshrl.u32 2131351028, %v224
    %v231 = vor.u32 %v229, %v230
    %v232 = vshll.u32 2131351028, %v223
    %v233 = vshrl.u32 2102212464, %v224
    %v234 = vor.u32 %v232, %v233
    %v235 = vshll.u32 2102212464, %v223
    %v236 = vshrl.u32 920167782, %v224
    %v237 = vor.u32 %v235, %v236
    %v238 = vshll.u32 920167782, %v223
    %v239 = vshrl.u32 1326507024, %v224
    %v240 = vor.u32 %v238, %v239
    %vm241 = vcmp.lt.s32.totalorder %v222, 1
    %vm242 = vcmp.lt.s32.totalorder %v222, 2
    %vm243 = vcmp.lt.s32.totalorder %v222, 3
    %vm244 = vcmp.lt.s32.totalorder %v222, 4
    %v245 = vsel %vm241, %v225, %v228
    %v246 = vsel %vm244, %v234, 2102212464
    %v247 = vsel %vm243, %v231, %v246
    %v248 = vsel %vm242, %v245, %v247
    %v249 = vsel %vm241, %v228, %v231
    %v250 = vsel %vm244, %v237, 920167782
    %v251 = vsel %vm243, %v234, %v250
    %v252 = vsel %vm242, %v249, %v251
    %v253 = vsel %vm241, %v231, %v234
    %v254 = vsel %vm244, %v240, 1326507024
    %v255 = vsel %vm243, %v237, %v254
    %v256 = vsel %vm242, %v253, %v255
    %v257 = vshll.u32 %v217, 8
    %v258 = vmul.u32.u64.compose %v257, %v256
    %v259 = vextract.low.u32 %v258
    %v260 = vextract.high.u32 %v258
    %v261 = vmul.u32.u64.compose %v257, %v252
    %v262 = vextract.low.u32 %v261
    %v263 = vextract.high.u32 %v261
    %v264 = vmul.u32 %v257, %v248
    %v265 = vadd.s32 %v260, %v262
    %vm266 = vc.u32 %v260, %v262
    %v267 = vadd.s32 %v263, 1
    %v268 = vsel %vm266, %v267, %v263
    %v269 = vadd.s32 %v264, %v268
    %v270 = vadd.s32 %v269, 536870912
    %v271 = vshrl.u32 %v270, 30
    %v272 = vshll.u32 %v271, 30
    %v273 = vsub.s32 %v269, %v272
    %vm274 = vcmp.lt.s32.totalorder %v273, 0
    %v275 = vsub.s32 0, %v273
    %v276 = vsel %vm274, %v275, %v273
    %v277 = vclz %v276
    %v278 = vsub.s32 %v277, 2
    %vm279 = vcmp.gt.s32.totalorder 0, %v278
    %v280 = vsel %vm279, 0, %v278
    %v281 = vsub.s32 32, %v280
    %v282 = vshll.u32 %v273, %v280
    %v283 = vshrl.u32 %v265, %v281
    %v284 = vor.u32 %v282, %v283
    %v285 = vsub.s32 4294967266, %v280
    %v286 = vadd.s32 %v285, 127
    %v287 = vshll.u32 %v286, 23
    %v288 = vor.u32 4788187, %v287
    %v289 = vand.u32 2147483647, %v288
    %v291 = vcvt.s32.f32 %v284
    %v292 = vmul.f32 %v291, %v289
    %v293 = vxor.u32 %v292, 2147483648
    %v294 = vsel %vm211, %v293, %v292
    %v295 = vsub.s32 4, %v271
    %v296 = vsel %vm211, %v295, %v271
    %v297 = vsel %vm210, %v98, %v294
    %v298 = vsel %vm210, 0, %v296
    %v299 = vcosq.f32.pop %v297
    %v300 = vsinq.f32.pop %v297
    %vm301 = vweird.f32 %v98
    %v302 = vadd.s32 %v298, 3
    %v303 = vand.u32 %v302, 3
    %vm304 = vcmp.lt.s32.totalorder %v303, 2
    %vm305 = vcmp.eq.s32.totalorder %v303, 0
    %v306 = vxor.u32 %v300, 2147483648
    %v307 = vsel %vm305, %v299, %v306
    %vm308 = vcmp.eq.s32.totalorder %v303, 2
    %v309 = vxor.u32 %v299, 2147483648
    %v310 = vsel %vm308, %v309, %v300
    %v311 = vsel %vm304, %v307, %v310
    %v312 = vsel %vm301, nan, %v311
    %v313 = vand.u32 2147483647, %v99
    %vm314 = vcmp.le.f32.partialorder %v313, 0.7853982
    %vm315 = vcmp.lt.s32.totalorder %v99, 0
    %v316 = vand.u32 %v99, 2139095040
    %v317 = vshrl.u32 %v316, 23
    %v318 = vsub.s32 %v317, 127
    %v319 = vand.u32 2147483647, %v99
    %v320 = vand.u32 %v319, 8388607
    %v321 = vor.u32 %v320, 8388608
    %v322 = vsub.s32 0, %v321
    %v323 = vadd.s32 %v318, 1
    %vm324 = vcmp.gt.s32.totalorder %v323, 0
    %v325 = vsel %vm324, %v323, 0
    %v326 = vshrl.u32 %v325, 5
    %v327 = vand.u32 %v325, 31
    %v328 = vsub.s32 32, %v327
    %v329 = vshrl.u32 683565275, %v328
    %v330 = vshll.u32 683565275, %v327
    %v331 = vshrl.u32 2475754826, %v328
    %v332 = vor.u32 %v330, %v331
    %v333 = vshll.u32 2475754826, %v327
    %v334 = vshrl.u32 2131351028, %v328
    %v335 = vor.u32 %v333, %v334
    %v336 = vshll.u32 2131351028, %v327
    %v337 = vshrl.u32 2102212464, %v328
    %v338 = vor.u32 %v336, %v337
    %v339 = vshll.u32 2102212464, %v327
    %v340 = vshrl.u32 920167782, %v328
    %v341 = vor.u32 %v339, %v340
    %v342 = vshll.u32 920167782, %v327
    %v343 = vshrl.u32 1326507024, %v328
    %v344 = vor.u32 %v342, %v343
    %vm345 = vcmp.lt.s32.totalorder %v326, 1
    %vm346 = vcmp.lt.s32.totalorder %v326, 2
    %vm347 = vcmp.lt.s32.totalorder %v326, 3
    %vm348 = vcmp.lt.s32.totalorder %v326, 4
    %v349 = vsel %vm345, %v329, %v332
    %v350 = vsel %vm348, %v338, 2102212464
    %v351 = vsel %vm347, %v335, %v350
    %v352 = vsel %vm346, %v349, %v351
    %v353 = vsel %vm345, %v332, %v335
    %v354 = vsel %vm348, %v341, 920167782
    %v355 = vsel %vm347, %v338, %v354
    %v356 = vsel %vm346, %v353, %v355
    %v357 = vsel %vm345, %v335, %v338
    %v358 = vsel %vm348, %v344, 1326507024
    %v359 = vsel %vm347, %v341, %v358
    %v360 = vsel %vm346, %v357, %v359
    %v361 = vshll.u32 %v321, 8
    %v362 = vmul.u32.u64.compose %v361, %v360
    %v363 = vextract.low.u32 %v362
    %v364 = vextract.high.u32 %v362
    %v365 = vmul.u32.u64.compose %v361, %v356
    %v366 = vextract.low.u32 %v365
    %v367 = vextract.high.u32 %v365
    %v368 = vmul.u32 %v361, %v352
    %v369 = vadd.s32 %v364, %v366
    %vm370 = vc.u32 %v364, %v366
    %v371 = vadd.s32 %v367, 1
    %v372 = vsel %vm370, %v371, %v367
    %v373 = vadd.s32 %v368, %v372
    %v374 = vadd.s32 %v373, 536870912
    %v375 = vshrl.u32 %v374, 30
    %v376 = vshll.u32 %v375, 30
    %v377 = vsub.s32 %v373, %v376
    %vm378 = vcmp.lt.s32.totalorder %v377, 0
    %v379 = vsub.s32 0, %v377
    %v380 = vsel %vm378, %v379, %v377
    %v381 = vclz %v380
    %v382 = vsub.s32 %v381, 2
    %vm383 = vcmp.gt.s32.totalorder 0, %v382
    %v384 = vsel %vm383, 0, %v382
    %v385 = vsub.s32 32, %v384
    %v386 = vshll.u32 %v377, %v384
    %v387 = vshrl.u32 %v369, %v385
    %v388 = vor.u32 %v386, %v387
    %v389 = vsub.s32 4294967266, %v384
    %v390 = vadd.s32 %v389, 127
    %v391 = vshll.u32 %v390, 23
    %v392 = vor.u32 4788187, %v391
    %v393 = vand.u32 2147483647, %v392
    %v395 = vcvt.s32.f32 %v388
    %v396 = vmul.f32 %v395, %v393
    %v397 = vxor.u32 %v396, 2147483648
    %v398 = vsel %vm315, %v397, %v396
    %v399 = vsub.s32 4, %v375
    %v400 = vsel %vm315, %v399, %v375
    %v401 = vsel %vm314, %v99, %v398
    %v402 = vsel %vm314, 0, %v400
    %v403 = vcosq.f32.pop %v401
    %v404 = vsinq.f32.pop %v401
    %vm405 = vweird.f32 %v99
    %v406 = vadd.s32 %v402, 3
    %v407 = vand.u32 %v406, 3
    %vm408 = vcmp.lt.s32.totalorder %v407, 2
    %vm409 = vcmp.eq.s32.totalorder %v407, 0
    %v410 = vxor.u32 %v404, 2147483648
    %v411 = vsel %vm409, %v403, %v410
    %vm412 = vcmp.eq.s32.totalorder %v407, 2
    %v413 = vxor.u32 %v403, 2147483648
    %v414 = vsel %vm412, %v413, %v404
    %v415 = vsel %vm408, %v411, %v414
    %v416 = vsel %vm405, nan, %v415
    %v417 = vand.u32 2147483647, %v100
    %vm418 = vcmp.le.f32.partialorder %v417, 0.7853982
    %vm419 = vcmp.lt.s32.totalorder %v100, 0
    %v420 = vand.u32 %v100, 2139095040
    %v421 = vshrl.u32 %v420, 23
    %v422 = vsub.s32 %v421, 127
    %v423 = vand.u32 2147483647, %v100
    %v424 = vand.u32 %v423, 8388607
    %v425 = vor.u32 %v424, 8388608
    %v426 = vsub.s32 0, %v425
    %v427 = vadd.s32 %v422, 1
    %vm428 = vcmp.gt.s32.totalorder %v427, 0
    %v429 = vsel %vm428, %v427, 0
    %v430 = vshrl.u32 %v429, 5
    %v431 = vand.u32 %v429, 31
    %v432 = vsub.s32 32, %v431
    %v433 = vshrl.u32 683565275, %v432
    %v434 = vshll.u32 683565275, %v431
    %v435 = vshrl.u32 2475754826, %v432
    %v436 = vor.u32 %v434, %v435
    %v437 = vshll.u32 2475754826, %v431
    %v438 = vshrl.u32 2131351028, %v432
    %v439 = vor.u32 %v437, %v438
    %v440 = vshll.u32 2131351028, %v431
    %v441 = vshrl.u32 2102212464, %v432
    %v442 = vor.u32 %v440, %v441
    %v443 = vshll.u32 2102212464, %v431
    %v444 = vshrl.u32 920167782, %v432
    %v445 = vor.u32 %v443, %v444
    %v446 = vshll.u32 920167782, %v431
    %v447 = vshrl.u32 1326507024, %v432
    %v448 = vor.u32 %v446, %v447
    %vm449 = vcmp.lt.s32.totalorder %v430, 1
    %vm450 = vcmp.lt.s32.totalorder %v430, 2
    %vm451 = vcmp.lt.s32.totalorder %v430, 3
    %vm452 = vcmp.lt.s32.totalorder %v430, 4
    %v453 = vsel %vm449, %v433, %v436
    %v454 = vsel %vm452, %v442, 2102212464
    %v455 = vsel %vm451, %v439, %v454
    %v456 = vsel %vm450, %v453, %v455
    %v457 = vsel %vm449, %v436, %v439
    %v458 = vsel %vm452, %v445, 920167782
    %v459 = vsel %vm451, %v442, %v458
    %v460 = vsel %vm450, %v457, %v459
    %v461 = vsel %vm449, %v439, %v442
    %v462 = vsel %vm452, %v448, 1326507024
    %v463 = vsel %vm451, %v445, %v462
    %v464 = vsel %vm450, %v461, %v463
    %v465 = vshll.u32 %v425, 8
    %v466 = vmul.u32.u64.compose %v465, %v464
    %v467 = vextract.low.u32 %v466
    %v468 = vextract.high.u32 %v466
    %v469 = vmul.u32.u64.compose %v465, %v460
    %v470 = vextract.low.u32 %v469
    %v471 = vextract.high.u32 %v469
    %v472 = vmul.u32 %v465, %v456
    %v473 = vadd.s32 %v468, %v470
    %vm474 = vc.u32 %v468, %v470
    %v475 = vadd.s32 %v471, 1
    %v476 = vsel %vm474, %v475, %v471
    %v477 = vadd.s32 %v472, %v476
    %v478 = vadd.s32 %v477, 536870912
    %v479 = vshrl.u32 %v478, 30
    %v480 = vshll.u32 %v479, 30
    %v481 = vsub.s32 %v477, %v480
    %vm482 = vcmp.lt.s32.totalorder %v481, 0
    %v483 = vsub.s32 0, %v481
    %v484 = vsel %vm482, %v483, %v481
    %v485 = vclz %v484
    %v486 = vsub.s32 %v485, 2
    %vm487 = vcmp.gt.s32.totalorder 0, %v486
    %v488 = vsel %vm487, 0, %v486
    %v489 = vsub.s32 32, %v488
    %v490 = vshll.u32 %v481, %v488
    %v491 = vshrl.u32 %v473, %v489
    %v492 = vor.u32 %v490, %v491
    %v493 = vsub.s32 4294967266, %v488
    %v494 = vadd.s32 %v493, 127
    %v495 = vshll.u32 %v494, 23
    %v496 = vor.u32 4788187, %v495
    %v497 = vand.u32 2147483647, %v496
    %v499 = vcvt.s32.f32 %v492
    %v500 = vmul.f32 %v499, %v497
    %v501 = vxor.u32 %v500, 2147483648
    %v502 = vsel %vm419, %v501, %v500
    %v503 = vsub.s32 4, %v479
    %v504 = vsel %vm419, %v503, %v479
    %v505 = vsel %vm418, %v100, %v502
    %v506 = vsel %vm418, 0, %v504
    %v507 = vcosq.f32.pop %v505
    %v508 = vsinq.f32.pop %v505
    %vm509 = vweird.f32 %v100
    %v510 = vadd.s32 %v506, 3
    %v511 = vand.u32 %v510, 3
    %vm512 = vcmp.lt.s32.totalorder %v511, 2
    %vm513 = vcmp.eq.s32.totalorder %v511, 0
    %v514 = vxor.u32 %v508, 2147483648
    %v515 = vsel %vm513, %v507, %v514
    %vm516 = vcmp.eq.s32.totalorder %v511, 2
    %v517 = vxor.u32 %v507, 2147483648
    %v518 = vsel %vm516, %v517, %v508
    %v519 = vsel %vm512, %v515, %v518
    %v520 = vsel %vm509, nan, %v519
    %v521 = vand.u32 2147483647, %v101
    %vm522 = vcmp.le.f32.partialorder %v521, 0.7853982
    %vm523 = vcmp.lt.s32.totalorder %v101, 0
    %v524 = vand.u32 %v101, 2139095040
    %v525 = vshrl.u32 %v524, 23
    %v526 = vsub.s32 %v525, 127
    %v527 = vand.u32 2147483647, %v101
    %v528 = vand.u32 %v527, 8388607
    %v529 = vor.u32 %v528, 8388608
    %v530 = vsub.s32 0, %v529
    %v531 = vadd.s32 %v526, 1
    %vm532 = vcmp.gt.s32.totalorder %v531, 0
    %v533 = vsel %vm532, %v531, 0
    %v534 = vshrl.u32 %v533, 5
    %v535 = vand.u32 %v533, 31
    %v536 = vsub.s32 32, %v535
    %v537 = vshrl.u32 683565275, %v536
    %v538 = vshll.u32 683565275, %v535
    %v539 = vshrl.u32 2475754826, %v536
    %v540 = vor.u32 %v538, %v539
    %v541 = vshll.u32 2475754826, %v535
    %v542 = vshrl.u32 2131351028, %v536
    %v543 = vor.u32 %v541, %v542
    %v544 = vshll.u32 2131351028, %v535
    %v545 = vshrl.u32 2102212464, %v536
    %v546 = vor.u32 %v544, %v545
    %v547 = vshll.u32 2102212464, %v535
    %v548 = vshrl.u32 920167782, %v536
    %v549 = vor.u32 %v547, %v548
    %v550 = vshll.u32 920167782, %v535
    %v551 = vshrl.u32 1326507024, %v536
    %v552 = vor.u32 %v550, %v551
    %vm553 = vcmp.lt.s32.totalorder %v534, 1
    %vm554 = vcmp.lt.s32.totalorder %v534, 2
    %vm555 = vcmp.lt.s32.totalorder %v534, 3
    %vm556 = vcmp.lt.s32.totalorder %v534, 4
    %v557 = vsel %vm553, %v537, %v540
    %v558 = vsel %vm556, %v546, 2102212464
    %v559 = vsel %vm555, %v543, %v558
    %v560 = vsel %vm554, %v557, %v559
    %v561 = vsel %vm553, %v540, %v543
    %v562 = vsel %vm556, %v549, 920167782
    %v563 = vsel %vm555, %v546, %v562
    %v564 = vsel %vm554, %v561, %v563
    %v565 = vsel %vm553, %v543, %v546
    %v566 = vsel %vm556, %v552, 1326507024
    %v567 = vsel %vm555, %v549, %v566
    %v568 = vsel %vm554, %v565, %v567
    %v569 = vshll.u32 %v529, 8
    %v570 = vmul.u32.u64.compose %v569, %v568
    %v571 = vextract.low.u32 %v570
    %v572 = vextract.high.u32 %v570
    %v573 = vmul.u32.u64.compose %v569, %v564
    %v574 = vextract.low.u32 %v573
    %v575 = vextract.high.u32 %v573
    %v576 = vmul.u32 %v569, %v560
    %v577 = vadd.s32 %v572, %v574
    %vm578 = vc.u32 %v572, %v574
    %v579 = vadd.s32 %v575, 1
    %v580 = vsel %vm578, %v579, %v575
    %v581 = vadd.s32 %v576, %v580
    %v582 = vadd.s32 %v581, 536870912
    %v583 = vshrl.u32 %v582, 30
    %v584 = vshll.u32 %v583, 30
    %v585 = vsub.s32 %v581, %v584
    %vm586 = vcmp.lt.s32.totalorder %v585, 0
    %v587 = vsub.s32 0, %v585
    %v588 = vsel %vm586, %v587, %v585
    %v589 = vclz %v588
    %v590 = vsub.s32 %v589, 2
    %vm591 = vcmp.gt.s32.totalorder 0, %v590
    %v592 = vsel %vm591, 0, %v590
    %v593 = vsub.s32 32, %v592
    %v594 = vshll.u32 %v585, %v592
    %v595 = vshrl.u32 %v577, %v593
    %v596 = vor.u32 %v594, %v595
    %v597 = vsub.s32 4294967266, %v592
    %v598 = vadd.s32 %v597, 127
    %v599 = vshll.u32 %v598, 23
    %v600 = vor.u32 4788187, %v599
    %v601 = vand.u32 2147483647, %v600
    %v603 = vcvt.s32.f32 %v596
    %v604 = vmul.f32 %v603, %v601
    %v605 = vxor.u32 %v604, 2147483648
    %v606 = vsel %vm523, %v605, %v604
    %v607 = vsub.s32 4, %v583
    %v608 = vsel %vm523, %v607, %v583
    %v609 = vsel %vm522, %v101, %v606
    %v610 = vsel %vm522, 0, %v608
    %v611 = vcosq.f32.pop %v609
    %v612 = vsinq.f32.pop %v609
    %vm613 = vweird.f32 %v101
    %v614 = vadd.s32 %v610, 3
    %v615 = vand.u32 %v614, 3
    %vm616 = vcmp.lt.s32.totalorder %v615, 2
    %vm617 = vcmp.eq.s32.totalorder %v615, 0
    %v618 = vxor.u32 %v612, 2147483648
    %v619 = vsel %vm617, %v611, %v618
    %vm620 = vcmp.eq.s32.totalorder %v615, 2
    %v621 = vxor.u32 %v611, 2147483648
    %v622 = vsel %vm620, %v621, %v612
    %v623 = vsel %vm616, %v619, %v622
    %v624 = vsel %vm613, nan, %v623
    %v625 = vand.u32 2147483647, %v102
    %vm626 = vcmp.le.f32.partialorder %v625, 0.7853982
    %vm627 = vcmp.lt.s32.totalorder %v102, 0
    %v628 = vand.u32 %v102, 2139095040
    %v629 = vshrl.u32 %v628, 23
    %v630 = vsub.s32 %v629, 127
    %v631 = vand.u32 2147483647, %v102
    %v632 = vand.u32 %v631, 8388607
    %v633 = vor.u32 %v632, 8388608
    %v634 = vsub.s32 0, %v633
    %v635 = vadd.s32 %v630, 1
    %vm636 = vcmp.gt.s32.totalorder %v635, 0
    %v637 = vsel %vm636, %v635, 0
    %v638 = vshrl.u32 %v637, 5
    %v639 = vand.u32 %v637, 31
    %v640 = vsub.s32 32, %v639
    %v641 = vshrl.u32 683565275, %v640
    %v642 = vshll.u32 683565275, %v639
    %v643 = vshrl.u32 2475754826, %v640
    %v644 = vor.u32 %v642, %v643
    %v645 = vshll.u32 2475754826, %v639
    %v646 = vshrl.u32 2131351028, %v640
    %v647 = vor.u32 %v645, %v646
    %v648 = vshll.u32 2131351028, %v639
    %v649 = vshrl.u32 2102212464, %v640
    %v650 = vor.u32 %v648, %v649
    %v651 = vshll.u32 2102212464, %v639
    %v652 = vshrl.u32 920167782, %v640
    %v653 = vor.u32 %v651, %v652
    %v654 = vshll.u32 920167782, %v639
    %v655 = vshrl.u32 1326507024, %v640
    %v656 = vor.u32 %v654, %v655
    %vm657 = vcmp.lt.s32.totalorder %v638, 1
    %vm658 = vcmp.lt.s32.totalorder %v638, 2
    %vm659 = vcmp.lt.s32.totalorder %v638, 3
    %vm660 = vcmp.lt.s32.totalorder %v638, 4
    %v661 = vsel %vm657, %v641, %v644
    %v662 = vsel %vm660, %v650, 2102212464
    %v663 = vsel %vm659, %v647, %v662
    %v664 = vsel %vm658, %v661, %v663
    %v665 = vsel %vm657, %v644, %v647
    %v666 = vsel %vm660, %v653, 920167782
    %v667 = vsel %vm659, %v650, %v666
    %v668 = vsel %vm658, %v665, %v667
    %v669 = vsel %vm657, %v647, %v650
    %v670 = vsel %vm660, %v656, 1326507024
    %v671 = vsel %vm659, %v653, %v670
    %v672 = vsel %vm658, %v669, %v671
    %v673 = vshll.u32 %v633, 8
    %v674 = vmul.u32.u64.compose %v673, %v672
    %v675 = vextract.low.u32 %v674
    %v676 = vextract.high.u32 %v674
    %v677 = vmul.u32.u64.compose %v673, %v668
    %v678 = vextract.low.u32 %v677
    %v679 = vextract.high.u32 %v677
    %v680 = vmul.u32 %v673, %v664
    %v681 = vadd.s32 %v676, %v678
    %vm682 = vc.u32 %v676, %v678
    %v683 = vadd.s32 %v679, 1
    %v684 = vsel %vm682, %v683, %v679
    %v685 = vadd.s32 %v680, %v684
    %v686 = vadd.s32 %v685, 536870912
    %v687 = vshrl.u32 %v686, 30
    %v688 = vshll.u32 %v687, 30
    %v689 = vsub.s32 %v685, %v688
    %vm690 = vcmp.lt.s32.totalorder %v689, 0
    %v691 = vsub.s32 0, %v689
    %v692 = vsel %vm690, %v691, %v689
    %v693 = vclz %v692
    %v694 = vsub.s32 %v693, 2
    %vm695 = vcmp.gt.s32.totalorder 0, %v694
    %v696 = vsel %vm695, 0, %v694
    %v697 = vsub.s32 32, %v696
    %v698 = vshll.u32 %v689, %v696
    %v699 = vshrl.u32 %v681, %v697
    %v700 = vor.u32 %v698, %v699
    %v701 = vsub.s32 4294967266, %v696
    %v702 = vadd.s32 %v701, 127
    %v703 = vshll.u32 %v702, 23
    %v704 = vor.u32 4788187, %v703
    %v705 = vand.u32 2147483647, %v704
    %v707 = vcvt.s32.f32 %v700
    %v708 = vmul.f32 %v707, %v705
    %v709 = vxor.u32 %v708, 2147483648
    %v710 = vsel %vm627, %v709, %v708
    %v711 = vsub.s32 4, %v687
    %v712 = vsel %vm627, %v711, %v687
    %v713 = vsel %vm626, %v102, %v710
    %v714 = vsel %vm626, 0, %v712
    %v715 = vcosq.f32.pop %v713
    %v716 = vsinq.f32.pop %v713
    %vm717 = vweird.f32 %v102
    %v718 = vadd.s32 %v714, 3
    %v719 = vand.u32 %v718, 3
    %vm720 = vcmp.lt.s32.totalorder %v719, 2
    %vm721 = vcmp.eq.s32.totalorder %v719, 0
    %v722 = vxor.u32 %v716, 2147483648
    %v723 = vsel %vm721, %v715, %v722
    %vm724 = vcmp.eq.s32.totalorder %v719, 2
    %v725 = vxor.u32 %v715, 2147483648
    %v726 = vsel %vm724, %v725, %v716
    %v727 = vsel %vm720, %v723, %v726
    %v728 = vsel %vm717, nan, %v727
    %v729 = vand.u32 2147483647, %v103
    %vm730 = vcmp.le.f32.partialorder %v729, 0.7853982
    %vm731 = vcmp.lt.s32.totalorder %v103, 0
    %v732 = vand.u32 %v103, 2139095040
    %v733 = vshrl.u32 %v732, 23
    %v734 = vsub.s32 %v733, 127
    %v735 = vand.u32 2147483647, %v103
    %v736 = vand.u32 %v735, 8388607
    %v737 = vor.u32 %v736, 8388608
    %v738 = vsub.s32 0, %v737
    %v739 = vadd.s32 %v734, 1
    %vm740 = vcmp.gt.s32.totalorder %v739, 0
    %v741 = vsel %vm740, %v739, 0
    %v742 = vshrl.u32 %v741, 5
    %v743 = vand.u32 %v741, 31
    %v744 = vsub.s32 32, %v743
    %v745 = vshrl.u32 683565275, %v744
    %v746 = vshll.u32 683565275, %v743
    %v747 = vshrl.u32 2475754826, %v744
    %v748 = vor.u32 %v746, %v747
    %v749 = vshll.u32 2475754826, %v743
    %v750 = vshrl.u32 2131351028, %v744
    %v751 = vor.u32 %v749, %v750
    %v752 = vshll.u32 2131351028, %v743
    %v753 = vshrl.u32 2102212464, %v744
    %v754 = vor.u32 %v752, %v753
    %v755 = vshll.u32 2102212464, %v743
    %v756 = vshrl.u32 920167782, %v744
    %v757 = vor.u32 %v755, %v756
    %v758 = vshll.u32 920167782, %v743
    %v759 = vshrl.u32 1326507024, %v744
    %v760 = vor.u32 %v758, %v759
    %vm761 = vcmp.lt.s32.totalorder %v742, 1
    %vm762 = vcmp.lt.s32.totalorder %v742, 2
    %vm763 = vcmp.lt.s32.totalorder %v742, 3
    %vm764 = vcmp.lt.s32.totalorder %v742, 4
    %v765 = vsel %vm761, %v745, %v748
    %v766 = vsel %vm764, %v754, 2102212464
    %v767 = vsel %vm763, %v751, %v766
    %v768 = vsel %vm762, %v765, %v767
    %v769 = vsel %vm761, %v748, %v751
    %v770 = vsel %vm764, %v757, 920167782
    %v771 = vsel %vm763, %v754, %v770
    %v772 = vsel %vm762, %v769, %v771
    %v773 = vsel %vm761, %v751, %v754
    %v774 = vsel %vm764, %v760, 1326507024
    %v775 = vsel %vm763, %v757, %v774
    %v776 = vsel %vm762, %v773, %v775
    %v777 = vshll.u32 %v737, 8
    %v778 = vmul.u32.u64.compose %v777, %v776
    %v779 = vextract.low.u32 %v778
    %v780 = vextract.high.u32 %v778
    %v781 = vmul.u32.u64.compose %v777, %v772
    %v782 = vextract.low.u32 %v781
    %v783 = vextract.high.u32 %v781
    %v784 = vmul.u32 %v777, %v768
    %v785 = vadd.s32 %v780, %v782
    %vm786 = vc.u32 %v780, %v782
    %v787 = vadd.s32 %v783, 1
    %v788 = vsel %vm786, %v787, %v783
    %v789 = vadd.s32 %v784, %v788
    %v790 = vadd.s32 %v789, 536870912
    %v791 = vshrl.u32 %v790, 30
    %v792 = vshll.u32 %v791, 30
    %v793 = vsub.s32 %v789, %v792
    %vm794 = vcmp.lt.s32.totalorder %v793, 0
    %v795 = vsub.s32 0, %v793
    %v796 = vsel %vm794, %v795, %v793
    %v797 = vclz %v796
    %v798 = vsub.s32 %v797, 2
    %vm799 = vcmp.gt.s32.totalorder 0, %v798
    %v800 = vsel %vm799, 0, %v798
    %v801 = vsub.s32 32, %v800
    %v802 = vshll.u32 %v793, %v800
    %v803 = vshrl.u32 %v785, %v801
    %v804 = vor.u32 %v802, %v803
    %v805 = vsub.s32 4294967266, %v800
    %v806 = vadd.s32 %v805, 127
    %v807 = vshll.u32 %v806, 23
    %v808 = vor.u32 4788187, %v807
    %v809 = vand.u32 2147483647, %v808
    %v811 = vcvt.s32.f32 %v804
    %v812 = vmul.f32 %v811, %v809
    %v813 = vxor.u32 %v812, 2147483648
    %v814 = vsel %vm731, %v813, %v812
    %v815 = vsub.s32 4, %v791
    %v816 = vsel %vm731, %v815, %v791
    %v817 = vsel %vm730, %v103, %v814
    %v818 = vsel %vm730, 0, %v816
    %v819 = vcosq.f32.pop %v817
    %v820 = vsinq.f32.pop %v817
    %vm821 = vweird.f32 %v103
    %v822 = vadd.s32 %v818, 3
    %v823 = vand.u32 %v822, 3
    %vm824 = vcmp.lt.s32.totalorder %v823, 2
    %vm825 = vcmp.eq.s32.totalorder %v823, 0
    %v826 = vxor.u32 %v820, 2147483648
    %v827 = vsel %vm825, %v819, %v826
    %vm828 = vcmp.eq.s32.totalorder %v823, 2
    %v829 = vxor.u32 %v819, 2147483648
    %v830 = vsel %vm828, %v829, %v820
    %v831 = vsel %vm824, %v827, %v830
    %v832 = vsel %vm821, nan, %v831
    %v833 = vand.u32 2147483647, %v104
    %vm834 = vcmp.le.f32.partialorder %v833, 0.7853982
    %vm835 = vcmp.lt.s32.totalorder %v104, 0
    %v836 = vand.u32 %v104, 2139095040
    %v837 = vshrl.u32 %v836, 23
    %v838 = vsub.s32 %v837, 127
    %v839 = vand.u32 2147483647, %v104
    %v840 = vand.u32 %v839, 8388607
    %v841 = vor.u32 %v840, 8388608
    %v842 = vsub.s32 0, %v841
    %v843 = vadd.s32 %v838, 1
    %vm844 = vcmp.gt.s32.totalorder %v843, 0
    %v845 = vsel %vm844, %v843, 0
    %v846 = vshrl.u32 %v845, 5
    %v847 = vand.u32 %v845, 31
    %v848 = vsub.s32 32, %v847
    %v849 = vshrl.u32 683565275, %v848
    %v850 = vshll.u32 683565275, %v847
    %v851 = vshrl.u32 2475754826, %v848
    %v852 = vor.u32 %v850, %v851
    %v853 = vshll.u32 2475754826, %v847
    %v854 = vshrl.u32 2131351028, %v848
    %v855 = vor.u32 %v853, %v854
    %v856 = vshll.u32 2131351028, %v847
    %v857 = vshrl.u32 2102212464, %v848
    %v858 = vor.u32 %v856, %v857
    %v859 = vshll.u32 2102212464, %v847
    %v860 = vshrl.u32 920167782, %v848
    %v861 = vor.u32 %v859, %v860
    %v862 = vshll.u32 920167782, %v847
    %v863 = vshrl.u32 1326507024, %v848
    %v864 = vor.u32 %v862, %v863
    %vm865 = vcmp.lt.s32.totalorder %v846, 1
    %vm866 = vcmp.lt.s32.totalorder %v846, 2
    %vm867 = vcmp.lt.s32.totalorder %v846, 3
    %vm868 = vcmp.lt.s32.totalorder %v846, 4
    %v869 = vsel %vm865, %v849, %v852
    %v870 = vsel %vm868, %v858, 2102212464
    %v871 = vsel %vm867, %v855, %v870
    %v872 = vsel %vm866, %v869, %v871
    %v873 = vsel %vm865, %v852, %v855
    %v874 = vsel %vm868, %v861, 920167782
    %v875 = vsel %vm867, %v858, %v874
    %v876 = vsel %vm866, %v873, %v875
    %v877 = vsel %vm865, %v855, %v858
    %v878 = vsel %vm868, %v864, 1326507024
    %v879 = vsel %vm867, %v861, %v878
    %v880 = vsel %vm866, %v877, %v879
    %v881 = vshll.u32 %v841, 8
    %v882 = vmul.u32.u64.compose %v881, %v880
    %v883 = vextract.low.u32 %v882
    %v884 = vextract.high.u32 %v882
    %v885 = vmul.u32.u64.compose %v881, %v876
    %v886 = vextract.low.u32 %v885
    %v887 = vextract.high.u32 %v885
    %v888 = vmul.u32 %v881, %v872
    %v889 = vadd.s32 %v884, %v886
    %vm890 = vc.u32 %v884, %v886
    %v891 = vadd.s32 %v887, 1
    %v892 = vsel %vm890, %v891, %v887
    %v893 = vadd.s32 %v888, %v892
    %v894 = vadd.s32 %v893, 536870912
    %v895 = vshrl.u32 %v894, 30
    %v896 = vshll.u32 %v895, 30
    %v897 = vsub.s32 %v893, %v896
    %vm898 = vcmp.lt.s32.totalorder %v897, 0
    %v899 = vsub.s32 0, %v897
    %v900 = vsel %vm898, %v899, %v897
    %v901 = vclz %v900
    %v902 = vsub.s32 %v901, 2
    %vm903 = vcmp.gt.s32.totalorder 0, %v902
    %v904 = vsel %vm903, 0, %v902
    %v905 = vsub.s32 32, %v904
    %v906 = vshll.u32 %v897, %v904
    %v907 = vshrl.u32 %v889, %v905
    %v908 = vor.u32 %v906, %v907
    %v909 = vsub.s32 4294967266, %v904
    %v910 = vadd.s32 %v909, 127
    %v911 = vshll.u32 %v910, 23
    %v912 = vor.u32 4788187, %v911
    %v913 = vand.u32 2147483647, %v912
    %v915 = vcvt.s32.f32 %v908
    %v916 = vmul.f32 %v915, %v913
    %v917 = vxor.u32 %v916, 2147483648
    %v918 = vsel %vm835, %v917, %v916
    %v919 = vsub.s32 4, %v895
    %v920 = vsel %vm835, %v919, %v895
    %v921 = vsel %vm834, %v104, %v918
    %v922 = vsel %vm834, 0, %v920
    %v923 = vcosq.f32.pop %v921
    %v924 = vsinq.f32.pop %v921
    %vm925 = vweird.f32 %v104
    %v926 = vadd.s32 %v922, 3
    %v927 = vand.u32 %v926, 3
    %vm928 = vcmp.lt.s32.totalorder %v927, 2
    %vm929 = vcmp.eq.s32.totalorder %v927, 0
    %v930 = vxor.u32 %v924, 2147483648
    %v931 = vsel %vm929, %v923, %v930
    %vm932 = vcmp.eq.s32.totalorder %v927, 2
    %v933 = vxor.u32 %v923, 2147483648
    %v934 = vsel %vm932, %v933, %v924
    %v935 = vsel %vm928, %v931, %v934
    %v936 = vsel %vm925, nan, %v935
    %v937 = vld [vmem:[%s3] sm:$0xff]
    %v938 = vld [vmem:[%s3 + $0x8] sm:$0xff]
    %v939 = vld [vmem:[%s3 + $0x10] sm:$0xff]
    %v940 = vld [vmem:[%s3 + $0x18] sm:$0xff]
    %v941 = vld [vmem:[%s3 + $0x20] sm:$0xff]
    %v942 = vld [vmem:[%s3 + $0x28] sm:$0xff]
    %v943 = vld [vmem:[%s3 + $0x30] sm:$0xff]
    %v944 = vld [vmem:[%s3 + $0x38] sm:$0xff]
    %v945 = vlaneseq
    %v946 = vshrl.u32 %v945, 7
    %v947 = vsub.s32 1, %v946
    %v948 = vrot.slane %v27, %v947
    %v949 = vlaneseq
    %v950 = vshrl.u32 %v949, 7
    %v951 = vsub.s32 3, %v950
    %v952 = vrot.slane %v27, %v951
    %v953 = vlaneseq
    %v954 = vshrl.u32 %v953, 7
    %v955 = vsub.s32 5, %v954
    %v956 = vrot.slane %v27, %v955
    %v957 = vlaneseq
    %v958 = vshrl.u32 %v957, 7
    %v959 = vsub.s32 7, %v958
    %v960 = vrot.slane %v27, %v959
    %v965 = vlaneseq
    %v966 = vshrl.u32 %v965, 7
    %v967 = vsub.s32 1, %v966
    %v968 = vrot.slane %v948, %v967
    %v969 = vlaneseq
    %v970 = vshrl.u32 %v969, 7
    %v971 = vsub.s32 1, %v970
    %v972 = vrot.slane %v952, %v971
    %v973 = vlaneseq
    %v974 = vshrl.u32 %v973, 7
    %v975 = vsub.s32 1, %v974
    %v976 = vrot.slane %v956, %v975
    %v977 = vlaneseq
    %v978 = vshrl.u32 %v977, 7
    %v979 = vsub.s32 1, %v978
    %v980 = vrot.slane %v960, %v979
    %v981 = vmul.f32 %v35, %v968
    %v982 = vmul.f32 %v35, %v972
    %v983 = vmul.f32 %v35, %v976
    %v984 = vmul.f32 %v35, %v980
    %v985 = vmul.f32 %v40, %v968
    %v986 = vmul.f32 %v40, %v972
    %v987 = vmul.f32 %v40, %v976
    %v988 = vmul.f32 %v40, %v980
    %v989 = vadd.f32 %v981, %v90
    %v990 = vadd.f32 %v982, %v90
    %v991 = vadd.f32 %v983, %v90
    %v992 = vadd.f32 %v984, %v90
    %v993 = vadd.f32 %v985, %v95
    %v994 = vadd.f32 %v986, %v95
    %v995 = vadd.f32 %v987, %v95
    %v996 = vadd.f32 %v988, %v95
    %v997 = vand.u32 2147483647, %v989
    %vm998 = vcmp.le.f32.partialorder %v997, 0.7853982
    %vm999 = vcmp.lt.s32.totalorder %v989, 0
    %v1000 = vand.u32 %v989, 2139095040
    %v1001 = vshrl.u32 %v1000, 23
    %v1002 = vsub.s32 %v1001, 127
    %v1003 = vand.u32 2147483647, %v989
    %v1004 = vand.u32 %v1003, 8388607
    %v1005 = vor.u32 %v1004, 8388608
    %v1006 = vsub.s32 0, %v1005
    %v1007 = vadd.s32 %v1002, 1
    %vm1008 = vcmp.gt.s32.totalorder %v1007, 0
    %v1009 = vsel %vm1008, %v1007, 0
    %v1010 = vshrl.u32 %v1009, 5
    %v1011 = vand.u32 %v1009, 31
    %v1012 = vsub.s32 32, %v1011
    %v1013 = vshrl.u32 683565275, %v1012
    %v1014 = vshll.u32 683565275, %v1011
    %v1015 = vshrl.u32 2475754826, %v1012
    %v1016 = vor.u32 %v1014, %v1015
    %v1017 = vshll.u32 2475754826, %v1011
    %v1018 = vshrl.u32 2131351028, %v1012
    %v1019 = vor.u32 %v1017, %v1018
    %v1020 = vshll.u32 2131351028, %v1011
    %v1021 = vshrl.u32 2102212464, %v1012
    %v1022 = vor.u32 %v1020, %v1021
    %v1023 = vshll.u32 2102212464, %v1011
    %v1024 = vshrl.u32 920167782, %v1012
    %v1025 = vor.u32 %v1023, %v1024
    %v1026 = vshll.u32 920167782, %v1011
    %v1027 = vshrl.u32 1326507024, %v1012
    %v1028 = vor.u32 %v1026, %v1027
    %vm1029 = vcmp.lt.s32.totalorder %v1010, 1
    %vm1030 = vcmp.lt.s32.totalorder %v1010, 2
    %vm1031 = vcmp.lt.s32.totalorder %v1010, 3
    %vm1032 = vcmp.lt.s32.totalorder %v1010, 4
    %v1033 = vsel %vm1029, %v1013, %v1016
    %v1034 = vsel %vm1032, %v1022, 2102212464
    %v1035 = vsel %vm1031, %v1019, %v1034
    %v1036 = vsel %vm1030, %v1033, %v1035
    %v1037 = vsel %vm1029, %v1016, %v1019
    %v1038 = vsel %vm1032, %v1025, 920167782
    %v1039 = vsel %vm1031, %v1022, %v1038
    %v1040 = vsel %vm1030, %v1037, %v1039
    %v1041 = vsel %vm1029, %v1019, %v1022
    %v1042 = vsel %vm1032, %v1028, 1326507024
    %v1043 = vsel %vm1031, %v1025, %v1042
    %v1044 = vsel %vm1030, %v1041, %v1043
    %v1045 = vshll.u32 %v1005, 8
    %v1046 = vmul.u32.u64.compose %v1045, %v1044
    %v1047 = vextract.low.u32 %v1046
    %v1048 = vextract.high.u32 %v1046
    %v1049 = vmul.u32.u64.compose %v1045, %v1040
    %v1050 = vextract.low.u32 %v1049
    %v1051 = vextract.high.u32 %v1049
    %v1052 = vmul.u32 %v1045, %v1036
    %v1053 = vadd.s32 %v1048, %v1050
    %vm1054 = vc.u32 %v1048, %v1050
    %v1055 = vadd.s32 %v1051, 1
    %v1056 = vsel %vm1054, %v1055, %v1051
    %v1057 = vadd.s32 %v1052, %v1056
    %v1058 = vadd.s32 %v1057, 536870912
    %v1059 = vshrl.u32 %v1058, 30
    %v1060 = vshll.u32 %v1059, 30
    %v1061 = vsub.s32 %v1057, %v1060
    %vm1062 = vcmp.lt.s32.totalorder %v1061, 0
    %v1063 = vsub.s32 0, %v1061
    %v1064 = vsel %vm1062, %v1063, %v1061
    %v1065 = vclz %v1064
    %v1066 = vsub.s32 %v1065, 2
    %vm1067 = vcmp.gt.s32.totalorder 0, %v1066
    %v1068 = vsel %vm1067, 0, %v1066
    %v1069 = vsub.s32 32, %v1068
    %v1070 = vshll.u32 %v1061, %v1068
    %v1071 = vshrl.u32 %v1053, %v1069
    %v1072 = vor.u32 %v1070, %v1071
    %v1073 = vsub.s32 4294967266, %v1068
    %v1074 = vadd.s32 %v1073, 127
    %v1075 = vshll.u32 %v1074, 23
    %v1076 = vor.u32 4788187, %v1075
    %v1077 = vand.u32 2147483647, %v1076
    %v1079 = vcvt.s32.f32 %v1072
    %v1080 = vmul.f32 %v1079, %v1077
    %v1081 = vxor.u32 %v1080, 2147483648
    %v1082 = vsel %vm999, %v1081, %v1080
    %v1083 = vsub.s32 4, %v1059
    %v1084 = vsel %vm999, %v1083, %v1059
    %v1085 = vsel %vm998, %v989, %v1082
    %v1086 = vsel %vm998, 0, %v1084
    %v1087 = vcosq.f32.pop %v1085
    %v1088 = vsinq.f32.pop %v1085
    %vm1089 = vweird.f32 %v989
    %v1090 = vadd.s32 %v1086, 3
    %v1091 = vand.u32 %v1090, 3
    %vm1092 = vcmp.lt.s32.totalorder %v1091, 2
    %vm1093 = vcmp.eq.s32.totalorder %v1091, 0
    %v1094 = vxor.u32 %v1088, 2147483648
    %v1095 = vsel %vm1093, %v1087, %v1094
    %vm1096 = vcmp.eq.s32.totalorder %v1091, 2
    %v1097 = vxor.u32 %v1087, 2147483648
    %v1098 = vsel %vm1096, %v1097, %v1088
    %v1099 = vsel %vm1092, %v1095, %v1098
    %v1100 = vsel %vm1089, nan, %v1099
    %v1101 = vand.u32 2147483647, %v990
    %vm1102 = vcmp.le.f32.partialorder %v1101, 0.7853982
    %vm1103 = vcmp.lt.s32.totalorder %v990, 0
    %v1104 = vand.u32 %v990, 2139095040
    %v1105 = vshrl.u32 %v1104, 23
    %v1106 = vsub.s32 %v1105, 127
    %v1107 = vand.u32 2147483647, %v990
    %v1108 = vand.u32 %v1107, 8388607
    %v1109 = vor.u32 %v1108, 8388608
    %v1110 = vsub.s32 0, %v1109
    %v1111 = vadd.s32 %v1106, 1
    %vm1112 = vcmp.gt.s32.totalorder %v1111, 0
    %v1113 = vsel %vm1112, %v1111, 0
    %v1114 = vshrl.u32 %v1113, 5
    %v1115 = vand.u32 %v1113, 31
    %v1116 = vsub.s32 32, %v1115
    %v1117 = vshrl.u32 683565275, %v1116
    %v1118 = vshll.u32 683565275, %v1115
    %v1119 = vshrl.u32 2475754826, %v1116
    %v1120 = vor.u32 %v1118, %v1119
    %v1121 = vshll.u32 2475754826, %v1115
    %v1122 = vshrl.u32 2131351028, %v1116
    %v1123 = vor.u32 %v1121, %v1122
    %v1124 = vshll.u32 2131351028, %v1115
    %v1125 = vshrl.u32 2102212464, %v1116
    %v1126 = vor.u32 %v1124, %v1125
    %v1127 = vshll.u32 2102212464, %v1115
    %v1128 = vshrl.u32 920167782, %v1116
    %v1129 = vor.u32 %v1127, %v1128
    %v1130 = vshll.u32 920167782, %v1115
    %v1131 = vshrl.u32 1326507024, %v1116
    %v1132 = vor.u32 %v1130, %v1131
    %vm1133 = vcmp.lt.s32.totalorder %v1114, 1
    %vm1134 = vcmp.lt.s32.totalorder %v1114, 2
    %vm1135 = vcmp.lt.s32.totalorder %v1114, 3
    %vm1136 = vcmp.lt.s32.totalorder %v1114, 4
    %v1137 = vsel %vm1133, %v1117, %v1120
    %v1138 = vsel %vm1136, %v1126, 2102212464
    %v1139 = vsel %vm1135, %v1123, %v1138
    %v1140 = vsel %vm1134, %v1137, %v1139
    %v1141 = vsel %vm1133, %v1120, %v1123
    %v1142 = vsel %vm1136, %v1129, 920167782
    %v1143 = vsel %vm1135, %v1126, %v1142
    %v1144 = vsel %vm1134, %v1141, %v1143
    %v1145 = vsel %vm1133, %v1123, %v1126
    %v1146 = vsel %vm1136, %v1132, 1326507024
    %v1147 = vsel %vm1135, %v1129, %v1146
    %v1148 = vsel %vm1134, %v1145, %v1147
    %v1149 = vshll.u32 %v1109, 8
    %v1150 = vmul.u32.u64.compose %v1149, %v1148
    %v1151 = vextract.low.u32 %v1150
    %v1152 = vextract.high.u32 %v1150
    %v1153 = vmul.u32.u64.compose %v1149, %v1144
    %v1154 = vextract.low.u32 %v1153
    %v1155 = vextract.high.u32 %v1153
    %v1156 = vmul.u32 %v1149, %v1140
    %v1157 = vadd.s32 %v1152, %v1154
    %vm1158 = vc.u32 %v1152, %v1154
    %v1159 = vadd.s32 %v1155, 1
    %v1160 = vsel %vm1158, %v1159, %v1155
    %v1161 = vadd.s32 %v1156, %v1160
    %v1162 = vadd.s32 %v1161, 536870912
    %v1163 = vshrl.u32 %v1162, 30
    %v1164 = vshll.u32 %v1163, 30
    %v1165 = vsub.s32 %v1161, %v1164
    %vm1166 = vcmp.lt.s32.totalorder %v1165, 0
    %v1167 = vsub.s32 0, %v1165
    %v1168 = vsel %vm1166, %v1167, %v1165
    %v1169 = vclz %v1168
    %v1170 = vsub.s32 %v1169, 2
    %vm1171 = vcmp.gt.s32.totalorder 0, %v1170
    %v1172 = vsel %vm1171, 0, %v1170
    %v1173 = vsub.s32 32, %v1172
    %v1174 = vshll.u32 %v1165, %v1172
    %v1175 = vshrl.u32 %v1157, %v1173
    %v1176 = vor.u32 %v1174, %v1175
    %v1177 = vsub.s32 4294967266, %v1172
    %v1178 = vadd.s32 %v1177, 127
    %v1179 = vshll.u32 %v1178, 23
    %v1180 = vor.u32 4788187, %v1179
    %v1181 = vand.u32 2147483647, %v1180
    %v1183 = vcvt.s32.f32 %v1176
    %v1184 = vmul.f32 %v1183, %v1181
    %v1185 = vxor.u32 %v1184, 2147483648
    %v1186 = vsel %vm1103, %v1185, %v1184
    %v1187 = vsub.s32 4, %v1163
    %v1188 = vsel %vm1103, %v1187, %v1163
    %v1189 = vsel %vm1102, %v990, %v1186
    %v1190 = vsel %vm1102, 0, %v1188
    %v1191 = vcosq.f32.pop %v1189
    %v1192 = vsinq.f32.pop %v1189
    %vm1193 = vweird.f32 %v990
    %v1194 = vadd.s32 %v1190, 3
    %v1195 = vand.u32 %v1194, 3
    %vm1196 = vcmp.lt.s32.totalorder %v1195, 2
    %vm1197 = vcmp.eq.s32.totalorder %v1195, 0
    %v1198 = vxor.u32 %v1192, 2147483648
    %v1199 = vsel %vm1197, %v1191, %v1198
    %vm1200 = vcmp.eq.s32.totalorder %v1195, 2
    %v1201 = vxor.u32 %v1191, 2147483648
    %v1202 = vsel %vm1200, %v1201, %v1192
    %v1203 = vsel %vm1196, %v1199, %v1202
    %v1204 = vsel %vm1193, nan, %v1203
    %v1205 = vand.u32 2147483647, %v991
    %vm1206 = vcmp.le.f32.partialorder %v1205, 0.7853982
    %vm1207 = vcmp.lt.s32.totalorder %v991, 0
    %v1208 = vand.u32 %v991, 2139095040
    %v1209 = vshrl.u32 %v1208, 23
    %v1210 = vsub.s32 %v1209, 127
    %v1211 = vand.u32 2147483647, %v991
    %v1212 = vand.u32 %v1211, 8388607
    %v1213 = vor.u32 %v1212, 8388608
    %v1214 = vsub.s32 0, %v1213
    %v1215 = vadd.s32 %v1210, 1
    %vm1216 = vcmp.gt.s32.totalorder %v1215, 0
    %v1217 = vsel %vm1216, %v1215, 0
    %v1218 = vshrl.u32 %v1217, 5
    %v1219 = vand.u32 %v1217, 31
    %v1220 = vsub.s32 32, %v1219
    %v1221 = vshrl.u32 683565275, %v1220
    %v1222 = vshll.u32 683565275, %v1219
    %v1223 = vshrl.u32 2475754826, %v1220
    %v1224 = vor.u32 %v1222, %v1223
    %v1225 = vshll.u32 2475754826, %v1219
    %v1226 = vshrl.u32 2131351028, %v1220
    %v1227 = vor.u32 %v1225, %v1226
    %v1228 = vshll.u32 2131351028, %v1219
    %v1229 = vshrl.u32 2102212464, %v1220
    %v1230 = vor.u32 %v1228, %v1229
    %v1231 = vshll.u32 2102212464, %v1219
    %v1232 = vshrl.u32 920167782, %v1220
    %v1233 = vor.u32 %v1231, %v1232
    %v1234 = vshll.u32 920167782, %v1219
    %v1235 = vshrl.u32 1326507024, %v1220
    %v1236 = vor.u32 %v1234, %v1235
    %vm1237 = vcmp.lt.s32.totalorder %v1218, 1
    %vm1238 = vcmp.lt.s32.totalorder %v1218, 2
    %vm1239 = vcmp.lt.s32.totalorder %v1218, 3
    %vm1240 = vcmp.lt.s32.totalorder %v1218, 4
    %v1241 = vsel %vm1237, %v1221, %v1224
    %v1242 = vsel %vm1240, %v1230, 2102212464
    %v1243 = vsel %vm1239, %v1227, %v1242
    %v1244 = vsel %vm1238, %v1241, %v1243
    %v1245 = vsel %vm1237, %v1224, %v1227
    %v1246 = vsel %vm1240, %v1233, 920167782
    %v1247 = vsel %vm1239, %v1230, %v1246
    %v1248 = vsel %vm1238, %v1245, %v1247
    %v1249 = vsel %vm1237, %v1227, %v1230
    %v1250 = vsel %vm1240, %v1236, 1326507024
    %v1251 = vsel %vm1239, %v1233, %v1250
    %v1252 = vsel %vm1238, %v1249, %v1251
    %v1253 = vshll.u32 %v1213, 8
    %v1254 = vmul.u32.u64.compose %v1253, %v1252
    %v1255 = vextract.low.u32 %v1254
    %v1256 = vextract.high.u32 %v1254
    %v1257 = vmul.u32.u64.compose %v1253, %v1248
    %v1258 = vextract.low.u32 %v1257
    %v1259 = vextract.high.u32 %v1257
    %v1260 = vmul.u32 %v1253, %v1244
    %v1261 = vadd.s32 %v1256, %v1258
    %vm1262 = vc.u32 %v1256, %v1258
    %v1263 = vadd.s32 %v1259, 1
    %v1264 = vsel %vm1262, %v1263, %v1259
    %v1265 = vadd.s32 %v1260, %v1264
    %v1266 = vadd.s32 %v1265, 536870912
    %v1267 = vshrl.u32 %v1266, 30
    %v1268 = vshll.u32 %v1267, 30
    %v1269 = vsub.s32 %v1265, %v1268
    %vm1270 = vcmp.lt.s32.totalorder %v1269, 0
    %v1271 = vsub.s32 0, %v1269
    %v1272 = vsel %vm1270, %v1271, %v1269
    %v1273 = vclz %v1272
    %v1274 = vsub.s32 %v1273, 2
    %vm1275 = vcmp.gt.s32.totalorder 0, %v1274
    %v1276 = vsel %vm1275, 0, %v1274
    %v1277 = vsub.s32 32, %v1276
    %v1278 = vshll.u32 %v1269, %v1276
    %v1279 = vshrl.u32 %v1261, %v1277
    %v1280 = vor.u32 %v1278, %v1279
    %v1281 = vsub.s32 4294967266, %v1276
    %v1282 = vadd.s32 %v1281, 127
    %v1283 = vshll.u32 %v1282, 23
    %v1284 = vor.u32 4788187, %v1283
    %v1285 = vand.u32 2147483647, %v1284
    %v1287 = vcvt.s32.f32 %v1280
    %v1288 = vmul.f32 %v1287, %v1285
    %v1289 = vxor.u32 %v1288, 2147483648
    %v1290 = vsel %vm1207, %v1289, %v1288
    %v1291 = vsub.s32 4, %v1267
    %v1292 = vsel %vm1207, %v1291, %v1267
    %v1293 = vsel %vm1206, %v991, %v1290
    %v1294 = vsel %vm1206, 0, %v1292
    %v1295 = vcosq.f32.pop %v1293
    %v1296 = vsinq.f32.pop %v1293
    %vm1297 = vweird.f32 %v991
    %v1298 = vadd.s32 %v1294, 3
    %v1299 = vand.u32 %v1298, 3
    %vm1300 = vcmp.lt.s32.totalorder %v1299, 2
    %vm1301 = vcmp.eq.s32.totalorder %v1299, 0
    %v1302 = vxor.u32 %v1296, 2147483648
    %v1303 = vsel %vm1301, %v1295, %v1302
    %vm1304 = vcmp.eq.s32.totalorder %v1299, 2
    %v1305 = vxor.u32 %v1295, 2147483648
    %v1306 = vsel %vm1304, %v1305, %v1296
    %v1307 = vsel %vm1300, %v1303, %v1306
    %v1308 = vsel %vm1297, nan, %v1307
    %v1309 = vand.u32 2147483647, %v992
    %vm1310 = vcmp.le.f32.partialorder %v1309, 0.7853982
    %vm1311 = vcmp.lt.s32.totalorder %v992, 0
    %v1312 = vand.u32 %v992, 2139095040
    %v1313 = vshrl.u32 %v1312, 23
    %v1314 = vsub.s32 %v1313, 127
    %v1315 = vand.u32 2147483647, %v992
    %v1316 = vand.u32 %v1315, 8388607
    %v1317 = vor.u32 %v1316, 8388608
    %v1318 = vsub.s32 0, %v1317
    %v1319 = vadd.s32 %v1314, 1
    %vm1320 = vcmp.gt.s32.totalorder %v1319, 0
    %v1321 = vsel %vm1320, %v1319, 0
    %v1322 = vshrl.u32 %v1321, 5
    %v1323 = vand.u32 %v1321, 31
    %v1324 = vsub.s32 32, %v1323
    %v1325 = vshrl.u32 683565275, %v1324
    %v1326 = vshll.u32 683565275, %v1323
    %v1327 = vshrl.u32 2475754826, %v1324
    %v1328 = vor.u32 %v1326, %v1327
    %v1329 = vshll.u32 2475754826, %v1323
    %v1330 = vshrl.u32 2131351028, %v1324
    %v1331 = vor.u32 %v1329, %v1330
    %v1332 = vshll.u32 2131351028, %v1323
    %v1333 = vshrl.u32 2102212464, %v1324
    %v1334 = vor.u32 %v1332, %v1333
    %v1335 = vshll.u32 2102212464, %v1323
    %v1336 = vshrl.u32 920167782, %v1324
    %v1337 = vor.u32 %v1335, %v1336
    %v1338 = vshll.u32 920167782, %v1323
    %v1339 = vshrl.u32 1326507024, %v1324
    %v1340 = vor.u32 %v1338, %v1339
    %vm1341 = vcmp.lt.s32.totalorder %v1322, 1
    %vm1342 = vcmp.lt.s32.totalorder %v1322, 2
    %vm1343 = vcmp.lt.s32.totalorder %v1322, 3
    %vm1344 = vcmp.lt.s32.totalorder %v1322, 4
    %v1345 = vsel %vm1341, %v1325, %v1328
    %v1346 = vsel %vm1344, %v1334, 2102212464
    %v1347 = vsel %vm1343, %v1331, %v1346
    %v1348 = vsel %vm1342, %v1345, %v1347
    %v1349 = vsel %vm1341, %v1328, %v1331
    %v1350 = vsel %vm1344, %v1337, 920167782
    %v1351 = vsel %vm1343, %v1334, %v1350
    %v1352 = vsel %vm1342, %v1349, %v1351
    %v1353 = vsel %vm1341, %v1331, %v1334
    %v1354 = vsel %vm1344, %v1340, 1326507024
    %v1355 = vsel %vm1343, %v1337, %v1354
    %v1356 = vsel %vm1342, %v1353, %v1355
    %v1357 = vshll.u32 %v1317, 8
    %v1358 = vmul.u32.u64.compose %v1357, %v1356
    %v1359 = vextract.low.u32 %v1358
    %v1360 = vextract.high.u32 %v1358
    %v1361 = vmul.u32.u64.compose %v1357, %v1352
    %v1362 = vextract.low.u32 %v1361
    %v1363 = vextract.high.u32 %v1361
    %v1364 = vmul.u32 %v1357, %v1348
    %v1365 = vadd.s32 %v1360, %v1362
    %vm1366 = vc.u32 %v1360, %v1362
    %v1367 = vadd.s32 %v1363, 1
    %v1368 = vsel %vm1366, %v1367, %v1363
    %v1369 = vadd.s32 %v1364, %v1368
    %v1370 = vadd.s32 %v1369, 536870912
    %v1371 = vshrl.u32 %v1370, 30
    %v1372 = vshll.u32 %v1371, 30
    %v1373 = vsub.s32 %v1369, %v1372
    %vm1374 = vcmp.lt.s32.totalorder %v1373, 0
    %v1375 = vsub.s32 0, %v1373
    %v1376 = vsel %vm1374, %v1375, %v1373
    %v1377 = vclz %v1376
    %v1378 = vsub.s32 %v1377, 2
    %vm1379 = vcmp.gt.s32.totalorder 0, %v1378
    %v1380 = vsel %vm1379, 0, %v1378
    %v1381 = vsub.s32 32, %v1380
    %v1382 = vshll.u32 %v1373, %v1380
    %v1383 = vshrl.u32 %v1365, %v1381
    %v1384 = vor.u32 %v1382, %v1383
    %v1385 = vsub.s32 4294967266, %v1380
    %v1386 = vadd.s32 %v1385, 127
    %v1387 = vshll.u32 %v1386, 23
    %v1388 = vor.u32 4788187, %v1387
    %v1389 = vand.u32 2147483647, %v1388
    %v1391 = vcvt.s32.f32 %v1384
    %v1392 = vmul.f32 %v1391, %v1389
    %v1393 = vxor.u32 %v1392, 2147483648
    %v1394 = vsel %vm1311, %v1393, %v1392
    %v1395 = vsub.s32 4, %v1371
    %v1396 = vsel %vm1311, %v1395, %v1371
    %v1397 = vsel %vm1310, %v992, %v1394
    %v1398 = vsel %vm1310, 0, %v1396
    %v1399 = vcosq.f32.pop %v1397
    %v1400 = vsinq.f32.pop %v1397
    %vm1401 = vweird.f32 %v992
    %v1402 = vadd.s32 %v1398, 3
    %v1403 = vand.u32 %v1402, 3
    %vm1404 = vcmp.lt.s32.totalorder %v1403, 2
    %vm1405 = vcmp.eq.s32.totalorder %v1403, 0
    %v1406 = vxor.u32 %v1400, 2147483648
    %v1407 = vsel %vm1405, %v1399, %v1406
    %vm1408 = vcmp.eq.s32.totalorder %v1403, 2
    %v1409 = vxor.u32 %v1399, 2147483648
    %v1410 = vsel %vm1408, %v1409, %v1400
    %v1411 = vsel %vm1404, %v1407, %v1410
    %v1412 = vsel %vm1401, nan, %v1411
    %v1413 = vand.u32 2147483647, %v993
    %vm1414 = vcmp.le.f32.partialorder %v1413, 0.7853982
    %vm1415 = vcmp.lt.s32.totalorder %v993, 0
    %v1416 = vand.u32 %v993, 2139095040
    %v1417 = vshrl.u32 %v1416, 23
    %v1418 = vsub.s32 %v1417, 127
    %v1419 = vand.u32 2147483647, %v993
    %v1420 = vand.u32 %v1419, 8388607
    %v1421 = vor.u32 %v1420, 8388608
    %v1422 = vsub.s32 0, %v1421
    %v1423 = vadd.s32 %v1418, 1
    %vm1424 = vcmp.gt.s32.totalorder %v1423, 0
    %v1425 = vsel %vm1424, %v1423, 0
    %v1426 = vshrl.u32 %v1425, 5
    %v1427 = vand.u32 %v1425, 31
    %v1428 = vsub.s32 32, %v1427
    %v1429 = vshrl.u32 683565275, %v1428
    %v1430 = vshll.u32 683565275, %v1427
    %v1431 = vshrl.u32 2475754826, %v1428
    %v1432 = vor.u32 %v1430, %v1431
    %v1433 = vshll.u32 2475754826, %v1427
    %v1434 = vshrl.u32 2131351028, %v1428
    %v1435 = vor.u32 %v1433, %v1434
    %v1436 = vshll.u32 2131351028, %v1427
    %v1437 = vshrl.u32 2102212464, %v1428
    %v1438 = vor.u32 %v1436, %v1437
    %v1439 = vshll.u32 2102212464, %v1427
    %v1440 = vshrl.u32 920167782, %v1428
    %v1441 = vor.u32 %v1439, %v1440
    %v1442 = vshll.u32 920167782, %v1427
    %v1443 = vshrl.u32 1326507024, %v1428
    %v1444 = vor.u32 %v1442, %v1443
    %vm1445 = vcmp.lt.s32.totalorder %v1426, 1
    %vm1446 = vcmp.lt.s32.totalorder %v1426, 2
    %vm1447 = vcmp.lt.s32.totalorder %v1426, 3
    %vm1448 = vcmp.lt.s32.totalorder %v1426, 4
    %v1449 = vsel %vm1445, %v1429, %v1432
    %v1450 = vsel %vm1448, %v1438, 2102212464
    %v1451 = vsel %vm1447, %v1435, %v1450
    %v1452 = vsel %vm1446, %v1449, %v1451
    %v1453 = vsel %vm1445, %v1432, %v1435
    %v1454 = vsel %vm1448, %v1441, 920167782
    %v1455 = vsel %vm1447, %v1438, %v1454
    %v1456 = vsel %vm1446, %v1453, %v1455
    %v1457 = vsel %vm1445, %v1435, %v1438
    %v1458 = vsel %vm1448, %v1444, 1326507024
    %v1459 = vsel %vm1447, %v1441, %v1458
    %v1460 = vsel %vm1446, %v1457, %v1459
    %v1461 = vshll.u32 %v1421, 8
    %v1462 = vmul.u32.u64.compose %v1461, %v1460
    %v1463 = vextract.low.u32 %v1462
    %v1464 = vextract.high.u32 %v1462
    %v1465 = vmul.u32.u64.compose %v1461, %v1456
    %v1466 = vextract.low.u32 %v1465
    %v1467 = vextract.high.u32 %v1465
    %v1468 = vmul.u32 %v1461, %v1452
    %v1469 = vadd.s32 %v1464, %v1466
    %vm1470 = vc.u32 %v1464, %v1466
    %v1471 = vadd.s32 %v1467, 1
    %v1472 = vsel %vm1470, %v1471, %v1467
    %v1473 = vadd.s32 %v1468, %v1472
    %v1474 = vadd.s32 %v1473, 536870912
    %v1475 = vshrl.u32 %v1474, 30
    %v1476 = vshll.u32 %v1475, 30
    %v1477 = vsub.s32 %v1473, %v1476
    %vm1478 = vcmp.lt.s32.totalorder %v1477, 0
    %v1479 = vsub.s32 0, %v1477
    %v1480 = vsel %vm1478, %v1479, %v1477
    %v1481 = vclz %v1480
    %v1482 = vsub.s32 %v1481, 2
    %vm1483 = vcmp.gt.s32.totalorder 0, %v1482
    %v1484 = vsel %vm1483, 0, %v1482
    %v1485 = vsub.s32 32, %v1484
    %v1486 = vshll.u32 %v1477, %v1484
    %v1487 = vshrl.u32 %v1469, %v1485
    %v1488 = vor.u32 %v1486, %v1487
    %v1489 = vsub.s32 4294967266, %v1484
    %v1490 = vadd.s32 %v1489, 127
    %v1491 = vshll.u32 %v1490, 23
    %v1492 = vor.u32 4788187, %v1491
    %v1493 = vand.u32 2147483647, %v1492
    %v1495 = vcvt.s32.f32 %v1488
    %v1496 = vmul.f32 %v1495, %v1493
    %v1497 = vxor.u32 %v1496, 2147483648
    %v1498 = vsel %vm1415, %v1497, %v1496
    %v1499 = vsub.s32 4, %v1475
    %v1500 = vsel %vm1415, %v1499, %v1475
    %v1501 = vsel %vm1414, %v993, %v1498
    %v1502 = vsel %vm1414, 0, %v1500
    %v1503 = vcosq.f32.pop %v1501
    %v1504 = vsinq.f32.pop %v1501
    %vm1505 = vweird.f32 %v993
    %v1506 = vadd.s32 %v1502, 3
    %v1507 = vand.u32 %v1506, 3
    %vm1508 = vcmp.lt.s32.totalorder %v1507, 2
    %vm1509 = vcmp.eq.s32.totalorder %v1507, 0
    %v1510 = vxor.u32 %v1504, 2147483648
    %v1511 = vsel %vm1509, %v1503, %v1510
    %vm1512 = vcmp.eq.s32.totalorder %v1507, 2
    %v1513 = vxor.u32 %v1503, 2147483648
    %v1514 = vsel %vm1512, %v1513, %v1504
    %v1515 = vsel %vm1508, %v1511, %v1514
    %v1516 = vsel %vm1505, nan, %v1515
    %v1517 = vand.u32 2147483647, %v994
    %vm1518 = vcmp.le.f32.partialorder %v1517, 0.7853982
    %vm1519 = vcmp.lt.s32.totalorder %v994, 0
    %v1520 = vand.u32 %v994, 2139095040
    %v1521 = vshrl.u32 %v1520, 23
    %v1522 = vsub.s32 %v1521, 127
    %v1523 = vand.u32 2147483647, %v994
    %v1524 = vand.u32 %v1523, 8388607
    %v1525 = vor.u32 %v1524, 8388608
    %v1526 = vsub.s32 0, %v1525
    %v1527 = vadd.s32 %v1522, 1
    %vm1528 = vcmp.gt.s32.totalorder %v1527, 0
    %v1529 = vsel %vm1528, %v1527, 0
    %v1530 = vshrl.u32 %v1529, 5
    %v1531 = vand.u32 %v1529, 31
    %v1532 = vsub.s32 32, %v1531
    %v1533 = vshrl.u32 683565275, %v1532
    %v1534 = vshll.u32 683565275, %v1531
    %v1535 = vshrl.u32 2475754826, %v1532
    %v1536 = vor.u32 %v1534, %v1535
    %v1537 = vshll.u32 2475754826, %v1531
    %v1538 = vshrl.u32 2131351028, %v1532
    %v1539 = vor.u32 %v1537, %v1538
    %v1540 = vshll.u32 2131351028, %v1531
    %v1541 = vshrl.u32 2102212464, %v1532
    %v1542 = vor.u32 %v1540, %v1541
    %v1543 = vshll.u32 2102212464, %v1531
    %v1544 = vshrl.u32 920167782, %v1532
    %v1545 = vor.u32 %v1543, %v1544
    %v1546 = vshll.u32 920167782, %v1531
    %v1547 = vshrl.u32 1326507024, %v1532
    %v1548 = vor.u32 %v1546, %v1547
    %vm1549 = vcmp.lt.s32.totalorder %v1530, 1
    %vm1550 = vcmp.lt.s32.totalorder %v1530, 2
    %vm1551 = vcmp.lt.s32.totalorder %v1530, 3
    %vm1552 = vcmp.lt.s32.totalorder %v1530, 4
    %v1553 = vsel %vm1549, %v1533, %v1536
    %v1554 = vsel %vm1552, %v1542, 2102212464
    %v1555 = vsel %vm1551, %v1539, %v1554
    %v1556 = vsel %vm1550, %v1553, %v1555
    %v1557 = vsel %vm1549, %v1536, %v1539
    %v1558 = vsel %vm1552, %v1545, 920167782
    %v1559 = vsel %vm1551, %v1542, %v1558
    %v1560 = vsel %vm1550, %v1557, %v1559
    %v1561 = vsel %vm1549, %v1539, %v1542
    %v1562 = vsel %vm1552, %v1548, 1326507024
    %v1563 = vsel %vm1551, %v1545, %v1562
    %v1564 = vsel %vm1550, %v1561, %v1563
    %v1565 = vshll.u32 %v1525, 8
    %v1566 = vmul.u32.u64.compose %v1565, %v1564
    %v1567 = vextract.low.u32 %v1566
    %v1568 = vextract.high.u32 %v1566
    %v1569 = vmul.u32.u64.compose %v1565, %v1560
    %v1570 = vextract.low.u32 %v1569
    %v1571 = vextract.high.u32 %v1569
    %v1572 = vmul.u32 %v1565, %v1556
    %v1573 = vadd.s32 %v1568, %v1570
    %vm1574 = vc.u32 %v1568, %v1570
    %v1575 = vadd.s32 %v1571, 1
    %v1576 = vsel %vm1574, %v1575, %v1571
    %v1577 = vadd.s32 %v1572, %v1576
    %v1578 = vadd.s32 %v1577, 536870912
    %v1579 = vshrl.u32 %v1578, 30
    %v1580 = vshll.u32 %v1579, 30
    %v1581 = vsub.s32 %v1577, %v1580
    %vm1582 = vcmp.lt.s32.totalorder %v1581, 0
    %v1583 = vsub.s32 0, %v1581
    %v1584 = vsel %vm1582, %v1583, %v1581
    %v1585 = vclz %v1584
    %v1586 = vsub.s32 %v1585, 2
    %vm1587 = vcmp.gt.s32.totalorder 0, %v1586
    %v1588 = vsel %vm1587, 0, %v1586
    %v1589 = vsub.s32 32, %v1588
    %v1590 = vshll.u32 %v1581, %v1588
    %v1591 = vshrl.u32 %v1573, %v1589
    %v1592 = vor.u32 %v1590, %v1591
    %v1593 = vsub.s32 4294967266, %v1588
    %v1594 = vadd.s32 %v1593, 127
    %v1595 = vshll.u32 %v1594, 23
    %v1596 = vor.u32 4788187, %v1595
    %v1597 = vand.u32 2147483647, %v1596
    %v1599 = vcvt.s32.f32 %v1592
    %v1600 = vmul.f32 %v1599, %v1597
    %v1601 = vxor.u32 %v1600, 2147483648
    %v1602 = vsel %vm1519, %v1601, %v1600
    %v1603 = vsub.s32 4, %v1579
    %v1604 = vsel %vm1519, %v1603, %v1579
    %v1605 = vsel %vm1518, %v994, %v1602
    %v1606 = vsel %vm1518, 0, %v1604
    %v1607 = vcosq.f32.pop %v1605
    %v1608 = vsinq.f32.pop %v1605
    %vm1609 = vweird.f32 %v994
    %v1610 = vadd.s32 %v1606, 3
    %v1611 = vand.u32 %v1610, 3
    %vm1612 = vcmp.lt.s32.totalorder %v1611, 2
    %vm1613 = vcmp.eq.s32.totalorder %v1611, 0
    %v1614 = vxor.u32 %v1608, 2147483648
    %v1615 = vsel %vm1613, %v1607, %v1614
    %vm1616 = vcmp.eq.s32.totalorder %v1611, 2
    %v1617 = vxor.u32 %v1607, 2147483648
    %v1618 = vsel %vm1616, %v1617, %v1608
    %v1619 = vsel %vm1612, %v1615, %v1618
    %v1620 = vsel %vm1609, nan, %v1619
    %v1621 = vand.u32 2147483647, %v995
    %vm1622 = vcmp.le.f32.partialorder %v1621, 0.7853982
    %vm1623 = vcmp.lt.s32.totalorder %v995, 0
    %v1624 = vand.u32 %v995, 2139095040
    %v1625 = vshrl.u32 %v1624, 23
    %v1626 = vsub.s32 %v1625, 127
    %v1627 = vand.u32 2147483647, %v995
    %v1628 = vand.u32 %v1627, 8388607
    %v1629 = vor.u32 %v1628, 8388608
    %v1630 = vsub.s32 0, %v1629
    %v1631 = vadd.s32 %v1626, 1
    %vm1632 = vcmp.gt.s32.totalorder %v1631, 0
    %v1633 = vsel %vm1632, %v1631, 0
    %v1634 = vshrl.u32 %v1633, 5
    %v1635 = vand.u32 %v1633, 31
    %v1636 = vsub.s32 32, %v1635
    %v1637 = vshrl.u32 683565275, %v1636
    %v1638 = vshll.u32 683565275, %v1635
    %v1639 = vshrl.u32 2475754826, %v1636
    %v1640 = vor.u32 %v1638, %v1639
    %v1641 = vshll.u32 2475754826, %v1635
    %v1642 = vshrl.u32 2131351028, %v1636
    %v1643 = vor.u32 %v1641, %v1642
    %v1644 = vshll.u32 2131351028, %v1635
    %v1645 = vshrl.u32 2102212464, %v1636
    %v1646 = vor.u32 %v1644, %v1645
    %v1647 = vshll.u32 2102212464, %v1635
    %v1648 = vshrl.u32 920167782, %v1636
    %v1649 = vor.u32 %v1647, %v1648
    %v1650 = vshll.u32 920167782, %v1635
    %v1651 = vshrl.u32 1326507024, %v1636
    %v1652 = vor.u32 %v1650, %v1651
    %vm1653 = vcmp.lt.s32.totalorder %v1634, 1
    %vm1654 = vcmp.lt.s32.totalorder %v1634, 2
    %vm1655 = vcmp.lt.s32.totalorder %v1634, 3
    %vm1656 = vcmp.lt.s32.totalorder %v1634, 4
    %v1657 = vsel %vm1653, %v1637, %v1640
    %v1658 = vsel %vm1656, %v1646, 2102212464
    %v1659 = vsel %vm1655, %v1643, %v1658
    %v1660 = vsel %vm1654, %v1657, %v1659
    %v1661 = vsel %vm1653, %v1640, %v1643
    %v1662 = vsel %vm1656, %v1649, 920167782
    %v1663 = vsel %vm1655, %v1646, %v1662
    %v1664 = vsel %vm1654, %v1661, %v1663
    %v1665 = vsel %vm1653, %v1643, %v1646
    %v1666 = vsel %vm1656, %v1652, 1326507024
    %v1667 = vsel %vm1655, %v1649, %v1666
    %v1668 = vsel %vm1654, %v1665, %v1667
    %v1669 = vshll.u32 %v1629, 8
    %v1670 = vmul.u32.u64.compose %v1669, %v1668
    %v1671 = vextract.low.u32 %v1670
    %v1672 = vextract.high.u32 %v1670
    %v1673 = vmul.u32.u64.compose %v1669, %v1664
    %v1674 = vextract.low.u32 %v1673
    %v1675 = vextract.high.u32 %v1673
    %v1676 = vmul.u32 %v1669, %v1660
    %v1677 = vadd.s32 %v1672, %v1674
    %vm1678 = vc.u32 %v1672, %v1674
    %v1679 = vadd.s32 %v1675, 1
    %v1680 = vsel %vm1678, %v1679, %v1675
    %v1681 = vadd.s32 %v1676, %v1680
    %v1682 = vadd.s32 %v1681, 536870912
    %v1683 = vshrl.u32 %v1682, 30
    %v1684 = vshll.u32 %v1683, 30
    %v1685 = vsub.s32 %v1681, %v1684
    %vm1686 = vcmp.lt.s32.totalorder %v1685, 0
    %v1687 = vsub.s32 0, %v1685
    %v1688 = vsel %vm1686, %v1687, %v1685
    %v1689 = vclz %v1688
    %v1690 = vsub.s32 %v1689, 2
    %vm1691 = vcmp.gt.s32.totalorder 0, %v1690
    %v1692 = vsel %vm1691, 0, %v1690
    %v1693 = vsub.s32 32, %v1692
    %v1694 = vshll.u32 %v1685, %v1692
    %v1695 = vshrl.u32 %v1677, %v1693
    %v1696 = vor.u32 %v1694, %v1695
    %v1697 = vsub.s32 4294967266, %v1692
    %v1698 = vadd.s32 %v1697, 127
    %v1699 = vshll.u32 %v1698, 23
    %v1700 = vor.u32 4788187, %v1699
    %v1701 = vand.u32 2147483647, %v1700
    %v1703 = vcvt.s32.f32 %v1696
    %v1704 = vmul.f32 %v1703, %v1701
    %v1705 = vxor.u32 %v1704, 2147483648
    %v1706 = vsel %vm1623, %v1705, %v1704
    %v1707 = vsub.s32 4, %v1683
    %v1708 = vsel %vm1623, %v1707, %v1683
    %v1709 = vsel %vm1622, %v995, %v1706
    %v1710 = vsel %vm1622, 0, %v1708
    %v1711 = vcosq.f32.pop %v1709
    %v1712 = vsinq.f32.pop %v1709
    %vm1713 = vweird.f32 %v995
    %v1714 = vadd.s32 %v1710, 3
    %v1715 = vand.u32 %v1714, 3
    %vm1716 = vcmp.lt.s32.totalorder %v1715, 2
    %vm1717 = vcmp.eq.s32.totalorder %v1715, 0
    %v1718 = vxor.u32 %v1712, 2147483648
    %v1719 = vsel %vm1717, %v1711, %v1718
    %vm1720 = vcmp.eq.s32.totalorder %v1715, 2
    %v1721 = vxor.u32 %v1711, 2147483648
    %v1722 = vsel %vm1720, %v1721, %v1712
    %v1723 = vsel %vm1716, %v1719, %v1722
    %v1724 = vsel %vm1713, nan, %v1723
    %v1725 = vand.u32 2147483647, %v996
    %vm1726 = vcmp.le.f32.partialorder %v1725, 0.7853982
    %vm1727 = vcmp.lt.s32.totalorder %v996, 0
    %v1728 = vand.u32 %v996, 2139095040
    %v1729 = vshrl.u32 %v1728, 23
    %v1730 = vsub.s32 %v1729, 127
    %v1731 = vand.u32 2147483647, %v996
    %v1732 = vand.u32 %v1731, 8388607
    %v1733 = vor.u32 %v1732, 8388608
    %v1734 = vsub.s32 0, %v1733
    %v1735 = vadd.s32 %v1730, 1
    %vm1736 = vcmp.gt.s32.totalorder %v1735, 0
    %v1737 = vsel %vm1736, %v1735, 0
    %v1738 = vshrl.u32 %v1737, 5
    %v1739 = vand.u32 %v1737, 31
    %v1740 = vsub.s32 32, %v1739
    %v1741 = vshrl.u32 683565275, %v1740
    %v1742 = vshll.u32 683565275, %v1739
    %v1743 = vshrl.u32 2475754826, %v1740
    %v1744 = vor.u32 %v1742, %v1743
    %v1745 = vshll.u32 2475754826, %v1739
    %v1746 = vshrl.u32 2131351028, %v1740
    %v1747 = vor.u32 %v1745, %v1746
    %v1748 = vshll.u32 2131351028, %v1739
    %v1749 = vshrl.u32 2102212464, %v1740
    %v1750 = vor.u32 %v1748, %v1749
    %v1751 = vshll.u32 2102212464, %v1739
    %v1752 = vshrl.u32 920167782, %v1740
    %v1753 = vor.u32 %v1751, %v1752
    %v1754 = vshll.u32 920167782, %v1739
    %v1755 = vshrl.u32 1326507024, %v1740
    %v1756 = vor.u32 %v1754, %v1755
    %vm1757 = vcmp.lt.s32.totalorder %v1738, 1
    %vm1758 = vcmp.lt.s32.totalorder %v1738, 2
    %vm1759 = vcmp.lt.s32.totalorder %v1738, 3
    %vm1760 = vcmp.lt.s32.totalorder %v1738, 4
    %v1761 = vsel %vm1757, %v1741, %v1744
    %v1762 = vsel %vm1760, %v1750, 2102212464
    %v1763 = vsel %vm1759, %v1747, %v1762
    %v1764 = vsel %vm1758, %v1761, %v1763
    %v1765 = vsel %vm1757, %v1744, %v1747
    %v1766 = vsel %vm1760, %v1753, 920167782
    %v1767 = vsel %vm1759, %v1750, %v1766
    %v1768 = vsel %vm1758, %v1765, %v1767
    %v1769 = vsel %vm1757, %v1747, %v1750
    %v1770 = vsel %vm1760, %v1756, 1326507024
    %v1771 = vsel %vm1759, %v1753, %v1770
    %v1772 = vsel %vm1758, %v1769, %v1771
    %v1773 = vshll.u32 %v1733, 8
    %v1774 = vmul.u32.u64.compose %v1773, %v1772
    %v1775 = vextract.low.u32 %v1774
    %v1776 = vextract.high.u32 %v1774
    %v1777 = vmul.u32.u64.compose %v1773, %v1768
    %v1778 = vextract.low.u32 %v1777
    %v1779 = vextract.high.u32 %v1777
    %v1780 = vmul.u32 %v1773, %v1764
    %v1781 = vadd.s32 %v1776, %v1778
    %vm1782 = vc.u32 %v1776, %v1778
    %v1783 = vadd.s32 %v1779, 1
    %v1784 = vsel %vm1782, %v1783, %v1779
    %v1785 = vadd.s32 %v1780, %v1784
    %v1786 = vadd.s32 %v1785, 536870912
    %v1787 = vshrl.u32 %v1786, 30
    %v1788 = vshll.u32 %v1787, 30
    %v1789 = vsub.s32 %v1785, %v1788
    %vm1790 = vcmp.lt.s32.totalorder %v1789, 0
    %v1791 = vsub.s32 0, %v1789
    %v1792 = vsel %vm1790, %v1791, %v1789
    %v1793 = vclz %v1792
    %v1794 = vsub.s32 %v1793, 2
    %vm1795 = vcmp.gt.s32.totalorder 0, %v1794
    %v1796 = vsel %vm1795, 0, %v1794
    %v1797 = vsub.s32 32, %v1796
    %v1798 = vshll.u32 %v1789, %v1796
    %v1799 = vshrl.u32 %v1781, %v1797
    %v1800 = vor.u32 %v1798, %v1799
    %v1801 = vsub.s32 4294967266, %v1796
    %v1802 = vadd.s32 %v1801, 127
    %v1803 = vshll.u32 %v1802, 23
    %v1804 = vor.u32 4788187, %v1803
    %v1805 = vand.u32 2147483647, %v1804
    %v1807 = vcvt.s32.f32 %v1800
    %v1808 = vmul.f32 %v1807, %v1805
    %v1809 = vxor.u32 %v1808, 2147483648
    %v1810 = vsel %vm1727, %v1809, %v1808
    %v1811 = vsub.s32 4, %v1787
    %v1812 = vsel %vm1727, %v1811, %v1787
    %v1813 = vsel %vm1726, %v996, %v1810
    %v1814 = vsel %vm1726, 0, %v1812
    %v1815 = vcosq.f32.pop %v1813
    %v1816 = vsinq.f32.pop %v1813
    %vm1817 = vweird.f32 %v996
    %v1818 = vadd.s32 %v1814, 3
    %v1819 = vand.u32 %v1818, 3
    %vm1820 = vcmp.lt.s32.totalorder %v1819, 2
    %vm1821 = vcmp.eq.s32.totalorder %v1819, 0
    %v1822 = vxor.u32 %v1816, 2147483648
    %v1823 = vsel %vm1821, %v1815, %v1822
    %vm1824 = vcmp.eq.s32.totalorder %v1819, 2
    %v1825 = vxor.u32 %v1815, 2147483648
    %v1826 = vsel %vm1824, %v1825, %v1816
    %v1827 = vsel %vm1820, %v1823, %v1826
    %v1828 = vsel %vm1817, nan, %v1827
    %s1829 = scalar_lea.vmem %s3, 64
    %v1830 = vld [vmem:[%s1829] sm:$0xff]
    %v1831 = vld [vmem:[%s1829 + $0x8] sm:$0xff]
    %v1832 = vld [vmem:[%s1829 + $0x10] sm:$0xff]
    %v1833 = vld [vmem:[%s1829 + $0x18] sm:$0xff]
    %v1834 = vld [vmem:[%s1829 + $0x20] sm:$0xff]
    %v1835 = vld [vmem:[%s1829 + $0x28] sm:$0xff]
    %v1836 = vld [vmem:[%s1829 + $0x30] sm:$0xff]
    %v1837 = vld [vmem:[%s1829 + $0x38] sm:$0xff]
    %vm1838 = vcmask 97280
    %v1840 = vsel %vm1838, %v1830, 0
    %v1843 = vsel %vm1838, %v1831, 0
    %v1846 = vsel %vm1838, %v1832, 0
    %v1849 = vsel %vm1838, %v1833, 0
    %v1852 = vsel %vm1838, %v1834, 0
    %v1855 = vsel %vm1838, %v1835, 0
    %v1858 = vsel %vm1838, %v1836, 0
    %v1861 = vsel %vm1838, %v1837, 0
    %vm1863 = vcmask 1043456
    %v1865 = vsel %vm1863, %v1516, 0
    %v1868 = vsel %vm1863, %v1620, 0
    %v1871 = vsel %vm1863, %v1724, 0
    %v1874 = vsel %vm1863, %v1828, 0
    %v1876 = vand.u32 %v1204, 4294901760
    %1877 = vmatprep.subr.mxu0 %v1876
    %v1878 = vand.u32 %v1100, 4294901760
    %1879 = vmatpush1.msra.mxu0 %v1878
    %v1880 = vand.u32 %v1868, 4294901760
    %1881 = vmatprep.subr.mxu0 %v1880
    %v1882 = vand.u32 %v1865, 4294901760
    %1883 = vmatpush1.msra.mxu0 %v1882
    %1884 = vmatprep.subr.mxu0 0.0
    %1885 = vmatpush1.msra.mxu0 0.0
    %1886 = vmatprep.subr.mxu0 0.0
    %1887 = vmatpush1.msra.mxu0 0.0
    %1888 = vmatprep.subr.mxu0 0.0
    %1889 = vmatpush1.msra.mxu0 0.0
    %1890 = vmatprep.subr.mxu0 0.0
    %1891 = vmatpush1.msra.mxu0 0.0
    %1892 = vmatprep.subr.mxu0 0.0
    %1893 = vmatpush1.msra.mxu0 0.0
    %1894 = vmatprep.subr.mxu0 0.0
    %1895 = vmatpush1.msra.mxu0 0.0
    %1896 = vmatprep.subr.mxu0 0.0
    %1897 = vmatpush1.msra.mxu0 0.0
    %1898 = vmatprep.subr.mxu0 0.0
    %1899 = vmatpush1.msra.mxu0 0.0
    %1900 = vmatprep.subr.mxu0 0.0
    %1901 = vmatpush1.msra.mxu0 0.0
    %1902 = vmatprep.subr.mxu0 0.0
    %1903 = vmatpush1.msra.mxu0 0.0
    %1904 = vmatprep.subr.mxu0 0.0
    %1905 = vmatpush1.msra.mxu0 0.0
    %1906 = vmatprep.subr.mxu0 0.0
    %1907 = vmatpush1.msra.mxu0 0.0
    %1908 = vmatprep.subr.mxu0 0.0
    %1909 = vmatpush1.msra.mxu0 0.0
    %1910 = vmatprep.subr.mxu0 0.0
    %1911 = vmatpush1.msra.mxu0 0.0
    %1912 = vmatprep.subr.mxu0 0.0
    %1913 = vmatpush1.msra.mxu0 0.0
    %1914 = vmatprep.subr.mxu0 0.0
    %1915 = vmatpush1.msra.mxu0 0.0
    %1916 = vmatprep.subr.mxu0 0.0
    %1917 = vmatpush1.msra.mxu0 0.0
    %1918 = vmatprep.subr.mxu0 0.0
    %1919 = vmatpush1.msra.mxu0 0.0
    %1920 = vmatprep.subr.mxu0 0.0
    %1921 = vmatpush1.msra.mxu0 0.0
    %1922 = vmatprep.subr.mxu0 0.0
    %1923 = vmatpush1.msra.mxu0 0.0
    %1924 = vmatprep.subr.mxu0 0.0
    %1925 = vmatpush1.msra.mxu0 0.0
    %1926 = vmatprep.subr.mxu0 0.0
    %1927 = vmatpush1.msra.mxu0 0.0
    %1928 = vmatprep.subr.mxu0 0.0
    %1929 = vmatpush1.msra.mxu0 0.0
    %1930 = vmatprep.subr.mxu0 0.0
    %1931 = vmatpush1.msra.mxu0 0.0
    %1932 = vmatprep.subr.mxu0 0.0
    %1933 = vmatpush1.msra.mxu0 0.0
    %1934 = vmatprep.subr.mxu0 0.0
    %1935 = vmatpush1.msra.mxu0 0.0
    %1936 = vmatprep.subr.mxu0 0.0
    %1937 = vmatpush1.msra.mxu0 0.0
    %1938 = vmatprep.subr.mxu0 0.0
    %1939 = vmatpush1.msra.mxu0 0.0
    %1940 = vmatprep.subr.mxu0 0.0
    %1941 = vmatpush1.msra.mxu0 0.0
    %1942 = vmatprep.subr.mxu0 0.0
    %1943 = vmatpush1.msra.mxu0 0.0
    %1944 = vmatprep.mubr.f32.mxu0 0.0
    %v1945 = vand.u32 %v1840, 4294901760
    %v1946 = vsub.f32 %v1840, %v1945
    %v1947 = vand.u32 %v1946, 4294901760
    %v1948 = vsub.f32 %v1946, %v1947
    %v1949 = vand.u32 %v1948, 4294901760
    %1950 = vmatmul.mubr.f32.gmra.mrb[0].mxu0 %v1949
    %v1951 = vpop.f32.mrb[0].mxu0
    %v1952 = vadd.f32 0.0, %v1951
    %v1953 = vpop.f32.mrb[0].mxu0
    %v1954 = vadd.f32 0.0, %v1953
    %1955 = vmatprep.mubr.f32.mxu0 0.0
    %v1956 = vand.u32 %v1843, 4294901760
    %v1957 = vsub.f32 %v1843, %v1956
    %v1958 = vand.u32 %v1957, 4294901760
    %v1959 = vsub.f32 %v1957, %v1958
    %v1960 = vand.u32 %v1959, 4294901760
    %1961 = vmatmul.mubr.f32.gmra.mrb[0].mxu0 %v1960
    %v1962 = vpop.f32.mrb[0].mxu0
    %v1963 = vadd.f32 0.0, %v1962
    %v1964 = vpop.f32.mrb[0].mxu0
    %v1965 = vadd.f32 0.0, %v1964
    %1966 = vmatprep.mubr.f32.mxu0 0.0
    %v1967 = vand.u32 %v1846, 4294901760
    %v1968 = vsub.f32 %v1846, %v1967
    %v1969 = vand.u32 %v1968, 4294901760
    %v1970 = vsub.f32 %v1968, %v1969
    %v1971 = vand.u32 %v1970, 4294901760
    %1972 = vmatmul.mubr.f32.gmra.mrb[0].mxu0 %v1971
    %v1973 = vpop.f32.mrb[0].mxu0
    %v1974 = vadd.f32 0.0, %v1973
    %v1975 = vpop.f32.mrb[0].mxu0
    %v1976 = vadd.f32 0.0, %v1975
    %1977 = vmatprep.mubr.f32.mxu0 0.0
    %v1978 = vand.u32 %v1849, 4294901760
    %v1979 = vsub.f32 %v1849, %v1978
    %v1980 = vand.u32 %v1979, 4294901760
    %v1981 = vsub.f32 %v1979, %v1980
    %v1982 = vand.u32 %v1981, 4294901760
    %1983 = vmatmul.mubr.f32.gmra.mrb[0].mxu0 %v1982
    %v1984 = vpop.f32.mrb[0].mxu0
    %v1985 = vadd.f32 0.0, %v1984
    %v1986 = vpop.f32.mrb[0].mxu0
    %v1987 = vadd.f32 0.0, %v1986
    %1988 = vmatprep.mubr.f32.mxu0 0.0
    %v1989 = vand.u32 %v1852, 4294901760
    %v1990 = vsub.f32 %v1852, %v1989
    %v1991 = vand.u32 %v1990, 4294901760
    %v1992 = vsub.f32 %v1990, %v1991
    %v1993 = vand.u32 %v1992, 4294901760
    %1994 = vmatmul.mubr.f32.gmra.mrb[0].mxu0 %v1993
    %v1995 = vpop.f32.mrb[0].mxu0
    %v1996 = vadd.f32 0.0, %v1995
    %v1997 = vpop.f32.mrb[0].mxu0
    %v1998 = vadd.f32 0.0, %v1997
    %1999 = vmatprep.mubr.f32.mxu0 0.0
    %v2000 = vand.u32 %v1855, 4294901760
    %v2001 = vsub.f32 %v1855, %v2000
    %v2002 = vand.u32 %v2001, 4294901760
    %v2003 = vsub.f32 %v2001, %v2002
    %v2004 = vand.u32 %v2003, 4294901760
    %2005 = vmatmul.mubr.f32.gmra.mrb[0].mxu0 %v2004
    %v2006 = vpop.f32.mrb[0].mxu0
    %v2007 = vadd.f32 0.0, %v2006
    %v2008 = vpop.f32.mrb[0].mxu0
    %v2009 = vadd.f32 0.0, %v2008
    %2010 = vmatprep.mubr.f32.mxu0 0.0
    %v2011 = vand.u32 %v1858, 4294901760
    %v2012 = vsub.f32 %v1858, %v2011
    %v2013 = vand.u32 %v2012, 4294901760
    %v2014 = vsub.f32 %v2012, %v2013
    %v2015 = vand.u32 %v2014, 4294901760
    %2016 = vmatmul.mubr.f32.gmra.mrb[0].mxu0 %v2015
    %v2017 = vpop.f32.mrb[0].mxu0
    %v2018 = vadd.f32 0.0, %v2017
    %v2019 = vpop.f32.mrb[0].mxu0
    %v2020 = vadd.f32 0.0, %v2019
    %2021 = vmatprep.mubr.f32.mxu0 0.0
    %v2022 = vand.u32 %v1861, 4294901760
    %v2023 = vsub.f32 %v1861, %v2022
    %v2024 = vand.u32 %v2023, 4294901760
    %v2025 = vsub.f32 %v2023, %v2024
    %v2026 = vand.u32 %v2025, 4294901760
    %2027 = vmatmul.mubr.f32.gmra.mrb[0].mxu0 %v2026
    %v2028 = vpop.f32.mrb[0].mxu0
    %v2029 = vadd.f32 0.0, %v2028
    %v2030 = vpop.f32.mrb[0].mxu0
    %v2031 = vadd.f32 0.0, %v2030
    %2032 = vdwg.mxu0
    %v2033 = vand.u32 %v1204, 4294901760
    %v2034 = vsub.f32 %v1204, %v2033
    %v2035 = vand.u32 %v2034, 4294901760
    %v2036 = vsub.f32 %v2034, %v2035
    %v2037 = vand.u32 %v2036, 4294901760
    %2038 = vmatprep.subr.mxu0 %v2037
    %v2039 = vand.u32 %v1100, 4294901760
    %v2040 = vsub.f32 %v1100, %v2039
    %v2041 = vand.u32 %v2040, 4294901760
    %v2042 = vsub.f32 %v2040, %v2041
    %v2043 = vand.u32 %v2042, 4294901760
    %2044 = vmatpush1.msra.mxu0 %v2043
    %v2045 = vand.u32 %v1868, 4294901760
    %v2046 = vsub.f32 %v1868, %v2045
    %v2047 = vand.u32 %v2046, 4294901760
    %v2048 = vsub.f32 %v2046, %v2047
    %v2049 = vand.u32 %v2048, 4294901760
    %2050 = vmatprep.subr.mxu0 %v2049
    %v2051 = vand.u32 %v1865, 4294901760
    %v2052 = vsub.f32 %v1865, %v2051
    %v2053 = vand.u32 %v2052, 4294901760
    %v2054 = vsub.f32 %v2052, %v2053
    %v2055 = vand.u32 %v2054, 4294901760
    %2056 = vmatpush1.msra.mxu0 %v2055
    %2057 = vmatprep.subr.mxu0 0.0
    %2058 = vmatpush1.msra.mxu0 0.0
    %2059 = vmatprep.subr.mxu0 0.0
    %2060 = vmatpush1.msra.mxu0 0.0
    %2061 = vmatprep.subr.mxu0 0.0
    %2062 = vmatpush1.msra.mxu0 0.0
    %2063 = vmatprep.subr.mxu0 0.0
    %2064 = vmatpush1.msra.mxu0 0.0
    %2065 = vmatprep.subr.mxu0 0.0
    %2066 = vmatpush1.msra.mxu0 0.0
    %2067 = vmatprep.subr.mxu0 0.0
    %2068 = vmatpush1.msra.mxu0 0.0
    %2069 = vmatprep.subr.mxu0 0.0
    %2070 = vmatpush1.msra.mxu0 0.0
    %2071 = vmatprep.subr.mxu0 0.0
    %2072 = vmatpush1.msra.mxu0 0.0
    %2073 = vmatprep.subr.mxu0 0.0
    %2074 = vmatpush1.msra.mxu0 0.0
    %2075 = vmatprep.subr.mxu0 0.0
    %2076 = vmatpush1.msra.mxu0 0.0
    %2077 = vmatprep.subr.mxu0 0.0
    %2078 = vmatpush1.msra.mxu0 0.0
    %2079 = vmatprep.subr.mxu0 0.0
    %2080 = vmatpush1.msra.mxu0 0.0
    %2081 = vmatprep.subr.mxu0 0.0
    %2082 = vmatpush1.msra.mxu0 0.0
    %2083 = vmatprep.subr.mxu0 0.0
    %2084 = vmatpush1.msra.mxu0 0.0
    %2085 = vmatprep.subr.mxu0 0.0
    %2086 = vmatpush1.msra.mxu0 0.0
    %2087 = vmatprep.subr.mxu0 0.0
    %2088 = vmatpush1.msra.mxu0 0.0
    %2089 = vmatprep.subr.mxu0 0.0
    %2090 = vmatpush1.msra.mxu0 0.0
    %2091 = vmatprep.subr.mxu0 0.0
    %2092 = vmatpush1.msra.mxu0 0.0
    %2093 = vmatprep.subr.mxu0 0.0
    %2094 = vmatpush1.msra.mxu0 0.0
    %2095 = vmatprep.subr.mxu0 0.0
    %2096 = vmatpush1.msra.mxu0 0.0
    %2097 = vmatprep.subr.mxu0 0.0
    %2098 = vmatpush1.msra.mxu0 0.0
    %2099 = vmatprep.subr.mxu0 0.0
    %2100 = vmatpush1.msra.mxu0 0.0
    %2101 = vmatprep.subr.mxu0 0.0
    %2102 = vmatpush1.msra.mxu0 0.0
    %2103 = vmatprep.subr.mxu0 0.0
    %2104 = vmatpush1.msra.mxu0 0.0
    %2105 = vmatprep.subr.mxu0 0.0
    %2106 = vmatpush1.msra.mxu0 0.0
    %2107 = vmatprep.subr.mxu0 0.0
    %2108 = vmatpush1.msra.mxu0 0.0
    %2109 = vmatprep.subr.mxu0 0.0
    %2110 = vmatpush1.msra.mxu0 0.0
    %2111 = vmatprep.subr.mxu0 0.0
    %2112 = vmatpush1.msra.mxu0 0.0
    %2113 = vmatprep.subr.mxu0 0.0
    %2114 = vmatpush1.msra.mxu0 0.0
    %2115 = vmatprep.subr.mxu0 0.0
    %2116 = vmatpush1.msra.mxu0 0.0
    %2117 = vmatprep.mubr.f32.mxu0 0.0
    %v2118 = vand.u32 %v1840, 4294901760
    %2119 = vmatmul.mubr.f32.gmra.mrb[0].mxu0 %v2118
    %v2120 = vpop.f32.mrb[0].mxu0
    %v2121 = vadd.f32 %v1952, %v2120
    %v2122 = vpop.f32.mrb[0].mxu0
    %v2123 = vadd.f32 %v1954, %v2122
    %2124 = vmatprep.mubr.f32.mxu0 0.0
    %v2125 = vand.u32 %v1843, 4294901760
    %2126 = vmatmul.mubr.f32.gmra.mrb[0].mxu0 %v2125
    %v2127 = vpop.f32.mrb[0].mxu0
    %v2128 = vadd.f32 %v1963, %v2127
    %v2129 = vpop.f32.mrb[0].mxu0
    %v2130 = vadd.f32 %v1965, %v2129
    %2131 = vmatprep.mubr.f32.mxu0 0.0
    %v2132 = vand.u32 %v1846, 4294901760
    %2133 = vmatmul.mubr.f32.gmra.mrb[0].mxu0 %v2132
    %v2134 = vpop.f32.mrb[0].mxu0
    %v2135 = vadd.f32 %v1974, %v2134
    %v2136 = vpop.f32.mrb[0].mxu0
    %v2137 = vadd.f32 %v1976, %v2136
    %2138 = vmatprep.mubr.f32.mxu0 0.0
    %v2139 = vand.u32 %v1849, 4294901760
    %2140 = vmatmul.mubr.f32.gmra.mrb[0].mxu0 %v2139
    %v2141 = vpop.f32.mrb[0].mxu0
    %v2142 = vadd.f32 %v1985, %v2141
    %v2143 = vpop.f32.mrb[0].mxu0
    %v2144 = vadd.f32 %v1987, %v2143
    %2145 = vmatprep.mubr.f32.mxu0 0.0
    %v2146 = vand.u32 %v1852, 4294901760
    %2147 = vmatmul.mubr.f32.gmra.mrb[0].mxu0 %v2146
    %v2148 = vpop.f32.mrb[0].mxu0
    %v2149 = vadd.f32 %v1996, %v2148
    %v2150 = vpop.f32.mrb[0].mxu0
    %v2151 = vadd.f32 %v1998, %v2150
    %2152 = vmatprep.mubr.f32.mxu0 0.0
    %v2153 = vand.u32 %v1855, 4294901760
    %2154 = vmatmul.mubr.f32.gmra.mrb[0].mxu0 %v2153
    %v2155 = vpop.f32.mrb[0].mxu0
    %v2156 = vadd.f32 %v2007, %v2155
    %v2157 = vpop.f32.mrb[0].mxu0
    %v2158 = vadd.f32 %v2009, %v2157
    %2159 = vmatprep.mubr.f32.mxu0 0.0
    %v2160 = vand.u32 %v1858, 4294901760
    %2161 = vmatmul.mubr.f32.gmra.mrb[0].mxu0 %v2160
    %v2162 = vpop.f32.mrb[0].mxu0
    %v2163 = vadd.f32 %v2018, %v2162
    %v2164 = vpop.f32.mrb[0].mxu0
    %v2165 = vadd.f32 %v2020, %v2164
    %2166 = vmatprep.mubr.f32.mxu0 0.0
    %v2167 = vand.u32 %v1861, 4294901760
    %2168 = vmatmul.mubr.f32.gmra.mrb[0].mxu0 %v2167
    %v2169 = vpop.f32.mrb[0].mxu0
    %v2170 = vadd.f32 %v2029, %v2169
    %v2171 = vpop.f32.mrb[0].mxu0
    %v2172 = vadd.f32 %v2031, %v2171
    %2173 = vdwg.mxu0
    %v2174 = vand.u32 %v1204, 4294901760
    %v2175 = vsub.f32 %v1204, %v2174
    %2176 = vmatprep.subr.mxu0 %v2175
    %v2177 = vand.u32 %v1100, 4294901760
    %v2178 = vsub.f32 %v1100, %v2177
    %2179 = vmatpush1.msra.mxu0 %v2178
    %v2180 = vand.u32 %v1868, 4294901760
    %v2181 = vsub.f32 %v1868, %v2180
    %2182 = vmatprep.subr.mxu0 %v2181
    %v2183 = vand.u32 %v1865, 4294901760
    %v2184 = vsub.f32 %v1865, %v2183
    %2185 = vmatpush1.msra.mxu0 %v2184
    %2186 = vmatprep.subr.mxu0 0.0
    %2187 = vmatpush1.msra.mxu0 0.0
    %2188 = vmatprep.subr.mxu0 0.0
    %2189 = vmatpush1.msra.mxu0 0.0
    %2190 = vmatprep.subr.mxu0 0.0
    %2191 = vmatpush1.msra.mxu0 0.0
    %2192 = vmatprep.subr.mxu0 0.0
    %2193 = vmatpush1.msra.mxu0 0.0
    %2194 = vmatprep.subr.mxu0 0.0
    %2195 = vmatpush1.msra.mxu0 0.0
    %2196 = vmatprep.subr.mxu0 0.0
    %2197 = vmatpush1.msra.mxu0 0.0
    %2198 = vmatprep.subr.mxu0 0.0
    %2199 = vmatpush1.msra.mxu0 0.0
    %2200 = vmatprep.subr.mxu0 0.0
    %2201 = vmatpush1.msra.mxu0 0.0
    %2202 = vmatprep.subr.mxu0 0.0
    %2203 = vmatpush1.msra.mxu0 0.0
    %2204 = vmatprep.subr.mxu0 0.0
    %2205 = vmatpush1.msra.mxu0 0.0
    %2206 = vmatprep.subr.mxu0 0.0
    %2207 = vmatpush1.msra.mxu0 0.0
    %2208 = vmatprep.subr.mxu0 0.0
    %2209 = vmatpush1.msra.mxu0 0.0
    %2210 = vmatprep.subr.mxu0 0.0
    %2211 = vmatpush1.msra.mxu0 0.0
    %2212 = vmatprep.subr.mxu0 0.0
    %2213 = vmatpush1.msra.mxu0 0.0
    %2214 = vmatprep.subr.mxu0 0.0
    %2215 = vmatpush1.msra.mxu0 0.0
    %2216 = vmatprep.subr.mxu0 0.0
    %2217 = vmatpush1.msra.mxu0 0.0
    %2218 = vmatprep.subr.mxu0 0.0
    %2219 = vmatpush1.msra.mxu0 0.0
    %2220 = vmatprep.subr.mxu0 0.0
    %2221 = vmatpush1.msra.mxu0 0.0
    %2222 = vmatprep.subr.mxu0 0.0
    %2223 = vmatpush1.msra.mxu0 0.0
    %2224 = vmatprep.subr.mxu0 0.0
    %2225 = vmatpush1.msra.mxu0 0.0
    %2226 = vmatprep.subr.mxu0 0.0
    %2227 = vmatpush1.msra.mxu0 0.0
    %2228 = vmatprep.subr.mxu0 0.0
    %2229 = vmatpush1.msra.mxu0 0.0
    %2230 = vmatprep.subr.mxu0 0.0
    %2231 = vmatpush1.msra.mxu0 0.0
    %2232 = vmatprep.subr.mxu0 0.0
    %2233 = vmatpush1.msra.mxu0 0.0
    %2234 = vmatprep.subr.mxu0 0.0
    %2235 = vmatpush1.msra.mxu0 0.0
    %2236 = vmatprep.subr.mxu0 0.0
    %2237 = vmatpush1.msra.mxu0 0.0
    %2238 = vmatprep.subr.mxu0 0.0
    %2239 = vmatpush1.msra.mxu0 0.0
    %2240 = vmatprep.subr.mxu0 0.0
    %2241 = vmatpush1.msra.mxu0 0.0
    %2242 = vmatprep.subr.mxu0 0.0
    %2243 = vmatpush1.msra.mxu0 0.0
    %2244 = vmatprep.subr.mxu0 0.0
    %2245 = vmatpush1.msra.mxu0 0.0
    %2246 = vmatprep.mubr.f32.mxu0 0.0
    %v2247 = vand.u32 %v1840, 4294901760
    %v2248 = vsub.f32 %v1840, %v2247
    %2249 = vmatmul.mubr.f32.gmra.mrb[0].mxu0 %v2248
    %v2250 = vpop.f32.mrb[0].mxu0
    %v2251 = vadd.f32 %v2121, %v2250
    %v2252 = vpop.f32.mrb[0].mxu0
    %v2253 = vadd.f32 %v2123, %v2252
    %2254 = vmatprep.mubr.f32.mxu0 0.0
    %v2255 = vand.u32 %v1843, 4294901760
    %v2256 = vsub.f32 %v1843, %v2255
    %2257 = vmatmul.mubr.f32.gmra.mrb[0].mxu0 %v2256
    %v2258 = vpop.f32.mrb[0].mxu0
    %v2259 = vadd.f32 %v2128, %v2258
    %v2260 = vpop.f32.mrb[0].mxu0
    %v2261 = vadd.f32 %v2130, %v2260
    %2262 = vmatprep.mubr.f32.mxu0 0.0
    %v2263 = vand.u32 %v1846, 4294901760
    %v2264 = vsub.f32 %v1846, %v2263
    %2265 = vmatmul.mubr.f32.gmra.mrb[0].mxu0 %v2264
    %v2266 = vpop.f32.mrb[0].mxu0
    %v2267 = vadd.f32 %v2135, %v2266
    %v2268 = vpop.f32.mrb[0].mxu0
    %v2269 = vadd.f32 %v2137, %v2268
    %2270 = vmatprep.mubr.f32.mxu0 0.0
    %v2271 = vand.u32 %v1849, 4294901760
    %v2272 = vsub.f32 %v1849, %v2271
    %2273 = vmatmul.mubr.f32.gmra.mrb[0].mxu0 %v2272
    %v2274 = vpop.f32.mrb[0].mxu0
    %v2275 = vadd.f32 %v2142, %v2274
    %v2276 = vpop.f32.mrb[0].mxu0
    %v2277 = vadd.f32 %v2144, %v2276
    %2278 = vmatprep.mubr.f32.mxu0 0.0
    %v2279 = vand.u32 %v1852, 4294901760
    %v2280 = vsub.f32 %v1852, %v2279
    %2281 = vmatmul.mubr.f32.gmra.mrb[0].mxu0 %v2280
    %v2282 = vpop.f32.mrb[0].mxu0
    %v2283 = vadd.f32 %v2149, %v2282
    %v2284 = vpop.f32.mrb[0].mxu0
    %v2285 = vadd.f32 %v2151, %v2284
    %2286 = vmatprep.mubr.f32.mxu0 0.0
    %v2287 = vand.u32 %v1855, 4294901760
    %v2288 = vsub.f32 %v1855, %v2287
    %2289 = vmatmul.mubr.f32.gmra.mrb[0].mxu0 %v2288
    %v2290 = vpop.f32.mrb[0].mxu0
    %v2291 = vadd.f32 %v2156, %v2290
    %v2292 = vpop.f32.mrb[0].mxu0
    %v2293 = vadd.f32 %v2158, %v2292
    %2294 = vmatprep.mubr.f32.mxu0 0.0
    %v2295 = vand.u32 %v1858, 4294901760
    %v2296 = vsub.f32 %v1858, %v2295
    %2297 = vmatmul.mubr.f32.gmra.mrb[0].mxu0 %v2296
    %v2298 = vpop.f32.mrb[0].mxu0
    %v2299 = vadd.f32 %v2163, %v2298
    %v2300 = vpop.f32.mrb[0].mxu0
    %v2301 = vadd.f32 %v2165, %v2300
    %2302 = vmatprep.mubr.f32.mxu0 0.0
    %v2303 = vand.u32 %v1861, 4294901760
    %v2304 = vsub.f32 %v1861, %v2303
    %2305 = vmatmul.mubr.f32.gmra.mrb[0].mxu0 %v2304
    %v2306 = vpop.f32.mrb[0].mxu0
    %v2307 = vadd.f32 %v2170, %v2306
    %v2308 = vpop.f32.mrb[0].mxu0
    %v2309 = vadd.f32 %v2172, %v2308
    %2310 = vdwg.mxu0
    %v2311 = vand.u32 %v1204, 4294901760
    %2312 = vmatprep.subr.mxu0 %v2311
    %v2313 = vand.u32 %v1100, 4294901760
    %2314 = vmatpush1.msra.mxu0 %v2313
    %v2315 = vand.u32 %v1868, 4294901760
    %2316 = vmatprep.subr.mxu0 %v2315
    %v2317 = vand.u32 %v1865, 4294901760
    %2318 = vmatpush1.msra.mxu0 %v2317
    %2319 = vmatprep.subr.mxu0 0.0
    %2320 = vmatpush1.msra.mxu0 0.0
    %2321 = vmatprep.subr.mxu0 0.0
    %2322 = vmatpush1.msra.mxu0 0.0
    %2323 = vmatprep.subr.mxu0 0.0
    %2324 = vmatpush1.msra.mxu0 0.0
    %2325 = vmatprep.subr.mxu0 0.0
    %2326 = vmatpush1.msra.mxu0 0.0
    %2327 = vmatprep.subr.mxu0 0.0
    %2328 = vmatpush1.msra.mxu0 0.0
    %2329 = vmatprep.subr.mxu0 0.0
    %2330 = vmatpush1.msra.mxu0 0.0
    %2331 = vmatprep.subr.mxu0 0.0
    %2332 = vmatpush1.msra.mxu0 0.0
    %2333 = vmatprep.subr.mxu0 0.0
    %2334 = vmatpush1.msra.mxu0 0.0
    %2335 = vmatprep.subr.mxu0 0.0
    %2336 = vmatpush1.msra.mxu0 0.0
    %2337 = vmatprep.subr.mxu0 0.0
    %2338 = vmatpush1.msra.mxu0 0.0
    %2339 = vmatprep.subr.mxu0 0.0
    %2340 = vmatpush1.msra.mxu0 0.0
    %2341 = vmatprep.subr.mxu0 0.0
    %2342 = vmatpush1.msra.mxu0 0.0
    %2343 = vmatprep.subr.mxu0 0.0
    %2344 = vmatpush1.msra.mxu0 0.0
    %2345 = vmatprep.subr.mxu0 0.0
    %2346 = vmatpush1.msra.mxu0 0.0
    %2347 = vmatprep.subr.mxu0 0.0
    %2348 = vmatpush1.msra.mxu0 0.0
    %2349 = vmatprep.subr.mxu0 0.0
    %2350 = vmatpush1.msra.mxu0 0.0
    %2351 = vmatprep.subr.mxu0 0.0
    %2352 = vmatpush1.msra.mxu0 0.0
    %2353 = vmatprep.subr.mxu0 0.0
    %2354 = vmatpush1.msra.mxu0 0.0
    %2355 = vmatprep.subr.mxu0 0.0
    %2356 = vmatpush1.msra.mxu0 0.0
    %2357 = vmatprep.subr.mxu0 0.0
    %2358 = vmatpush1.msra.mxu0 0.0
    %2359 = vmatprep.subr.mxu0 0.0
    %2360 = vmatpush1.msra.mxu0 0.0
    %2361 = vmatprep.subr.mxu0 0.0
    %2362 = vmatpush1.msra.mxu0 0.0
    %2363 = vmatprep.subr.mxu0 0.0
    %2364 = vmatpush1.msra.mxu0 0.0
    %2365 = vmatprep.subr.mxu0 0.0
    %2366 = vmatpush1.msra.mxu0 0.0
    %2367 = vmatprep.subr.mxu0 0.0
    %2368 = vmatpush1.msra.mxu0 0.0
    %2369 = vmatprep.subr.mxu0 0.0
    %2370 = vmatpush1.msra.mxu0 0.0
    %2371 = vmatprep.subr.mxu0 0.0
    %2372 = vmatpush1.msra.mxu0 0.0
    %2373 = vmatprep.subr.mxu0 0.0
    %2374 = vmatpush1.msra.mxu0 0.0
    %2375 = vmatprep.subr.mxu0 0.0
    %2376 = vmatpush1.msra.mxu0 0.0
    %2377 = vmatprep.subr.mxu0 0.0
    %2378 = vmatpush1.msra.mxu0 0.0
    %2379 = vmatprep.mubr.f32.mxu0 0.0
    %v2380 = vand.u32 %v1840, 4294901760
    %v2381 = vsub.f32 %v1840, %v2380
    %v2382 = vand.u32 %v2381, 4294901760
    %2383 = vmatmul.mubr.f32.gmra.mrb[0].mxu0 %v2382
    %v2384 = vpop.f32.mrb[0].mxu0
    %v2385 = vadd.f32 %v2251, %v2384
    %v2386 = vpop.f32.mrb[0].mxu0
    %v2387 = vadd.f32 %v2253, %v2386
    %2388 = vmatprep.mubr.f32.mxu0 0.0
    %v2389 = vand.u32 %v1843, 4294901760
    %v2390 = vsub.f32 %v1843, %v2389
    %v2391 = vand.u32 %v2390, 4294901760
    %2392 = vmatmul.mubr.f32.gmra.mrb[0].mxu0 %v2391
    %v2393 = vpop.f32.mrb[0].mxu0
    %v2394 = vadd.f32 %v2259, %v2393
    %v2395 = vpop.f32.mrb[0].mxu0
    %v2396 = vadd.f32 %v2261, %v2395
    %2397 = vmatprep.mubr.f32.mxu0 0.0
    %v2398 = vand.u32 %v1846, 4294901760
    %v2399 = vsub.f32 %v1846, %v2398
    %v2400 = vand.u32 %v2399, 4294901760
    %2401 = vmatmul.mubr.f32.gmra.mrb[0].mxu0 %v2400
    %v2402 = vpop.f32.mrb[0].mxu0
    %v2403 = vadd.f32 %v2267, %v2402
    %v2404 = vpop.f32.mrb[0].mxu0
    %v2405 = vadd.f32 %v2269, %v2404
    %2406 = vmatprep.mubr.f32.mxu0 0.0
    %v2407 = vand.u32 %v1849, 4294901760
    %v2408 = vsub.f32 %v1849, %v2407
    %v2409 = vand.u32 %v2408, 4294901760
    %2410 = vmatmul.mubr.f32.gmra.mrb[0].mxu0 %v2409
    %v2411 = vpop.f32.mrb[0].mxu0
    %v2412 = vadd.f32 %v2275, %v2411
    %v2413 = vpop.f32.mrb[0].mxu0
    %v2414 = vadd.f32 %v2277, %v2413
    %2415 = vmatprep.mubr.f32.mxu0 0.0
    %v2416 = vand.u32 %v1852, 4294901760
    %v2417 = vsub.f32 %v1852, %v2416
    %v2418 = vand.u32 %v2417, 4294901760
    %2419 = vmatmul.mubr.f32.gmra.mrb[0].mxu0 %v2418
    %v2420 = vpop.f32.mrb[0].mxu0
    %v2421 = vadd.f32 %v2283, %v2420
    %v2422 = vpop.f32.mrb[0].mxu0
    %v2423 = vadd.f32 %v2285, %v2422
    %2424 = vmatprep.mubr.f32.mxu0 0.0
    %v2425 = vand.u32 %v1855, 4294901760
    %v2426 = vsub.f32 %v1855, %v2425
    %v2427 = vand.u32 %v2426, 4294901760
    %2428 = vmatmul.mubr.f32.gmra.mrb[0].mxu0 %v2427
    %v2429 = vpop.f32.mrb[0].mxu0
    %v2430 = vadd.f32 %v2291, %v2429
    %v2431 = vpop.f32.mrb[0].mxu0
    %v2432 = vadd.f32 %v2293, %v2431
    %2433 = vmatprep.mubr.f32.mxu0 0.0
    %v2434 = vand.u32 %v1858, 4294901760
    %v2435 = vsub.f32 %v1858, %v2434
    %v2436 = vand.u32 %v2435, 4294901760
    %2437 = vmatmul.mubr.f32.gmra.mrb[0].mxu0 %v2436
    %v2438 = vpop.f32.mrb[0].mxu0
    %v2439 = vadd.f32 %v2299, %v2438
    %v2440 = vpop.f32.mrb[0].mxu0
    %v2441 = vadd.f32 %v2301, %v2440
    %2442 = vmatprep.mubr.f32.mxu0 0.0
    %v2443 = vand.u32 %v1861, 4294901760
    %v2444 = vsub.f32 %v1861, %v2443
    %v2445 = vand.u32 %v2444, 4294901760
    %2446 = vmatmul.mubr.f32.gmra.mrb[0].mxu0 %v2445
    %v2447 = vpop.f32.mrb[0].mxu0
    %v2448 = vadd.f32 %v2307, %v2447
    %v2449 = vpop.f32.mrb[0].mxu0
    %v2450 = vadd.f32 %v2309, %v2449
    %2451 = vdwg.mxu0
    %v2452 = vand.u32 %v1204, 4294901760
    %v2453 = vsub.f32 %v1204, %v2452
    %v2454 = vand.u32 %v2453, 4294901760
    %2455 = vmatprep.subr.mxu0 %v2454
    %v2456 = vand.u32 %v1100, 4294901760
    %v2457 = vsub.f32 %v1100, %v2456
    %v2458 = vand.u32 %v2457, 4294901760
    %2459 = vmatpush1.msra.mxu0 %v2458
    %v2460 = vand.u32 %v1868, 4294901760
    %v2461 = vsub.f32 %v1868, %v2460
    %v2462 = vand.u32 %v2461, 4294901760
    %2463 = vmatprep.subr.mxu0 %v2462
    %v2464 = vand.u32 %v1865, 4294901760
    %v2465 = vsub.f32 %v1865, %v2464
    %v2466 = vand.u32 %v2465, 4294901760
    %2467 = vmatpush1.msra.mxu0 %v2466
    %2468 = vmatprep.subr.mxu0 0.0
    %2469 = vmatpush1.msra.mxu0 0.0
    %2470 = vmatprep.subr.mxu0 0.0
    %2471 = vmatpush1.msra.mxu0 0.0
    %2472 = vmatprep.subr.mxu0 0.0
    %2473 = vmatpush1.msra.mxu0 0.0
    %2474 = vmatprep.subr.mxu0 0.0
    %2475 = vmatpush1.msra.mxu0 0.0
    %2476 = vmatprep.subr.mxu0 0.0
    %2477 = vmatpush1.msra.mxu0 0.0
    %2478 = vmatprep.subr.mxu0 0.0
    %2479 = vmatpush1.msra.mxu0 0.0
    %2480 = vmatprep.subr.mxu0 0.0
    %2481 = vmatpush1.msra.mxu0 0.0
    %2482 = vmatprep.subr.mxu0 0.0
    %2483 = vmatpush1.msra.mxu0 0.0
    %2484 = vmatprep.subr.mxu0 0.0
    %2485 = vmatpush1.msra.mxu0 0.0
    %2486 = vmatprep.subr.mxu0 0.0
    %2487 = vmatpush1.msra.mxu0 0.0
    %2488 = vmatprep.subr.mxu0 0.0
    %2489 = vmatpush1.msra.mxu0 0.0
    %2490 = vmatprep.subr.mxu0 0.0
    %2491 = vmatpush1.msra.mxu0 0.0
    %2492 = vmatprep.subr.mxu0 0.0
    %2493 = vmatpush1.msra.mxu0 0.0
    %2494 = vmatprep.subr.mxu0 0.0
    %2495 = vmatpush1.msra.mxu0 0.0
    %2496 = vmatprep.subr.mxu0 0.0
    %2497 = vmatpush1.msra.mxu0 0.0
    %2498 = vmatprep.subr.mxu0 0.0
    %2499 = vmatpush1.msra.mxu0 0.0
    %2500 = vmatprep.subr.mxu0 0.0
    %2501 = vmatpush1.msra.mxu0 0.0
    %2502 = vmatprep.subr.mxu0 0.0
    %2503 = vmatpush1.msra.mxu0 0.0
    %2504 = vmatprep.subr.mxu0 0.0
    %2505 = vmatpush1.msra.mxu0 0.0
    %2506 = vmatprep.subr.mxu0 0.0
    %2507 = vmatpush1.msra.mxu0 0.0
    %2508 = vmatprep.subr.mxu0 0.0
    %2509 = vmatpush1.msra.mxu0 0.0
    %2510 = vmatprep.subr.mxu0 0.0
    %2511 = vmatpush1.msra.mxu0 0.0
    %2512 = vmatprep.subr.mxu0 0.0
    %2513 = vmatpush1.msra.mxu0 0.0
    %2514 = vmatprep.subr.mxu0 0.0
    %2515 = vmatpush1.msra.mxu0 0.0
    %2516 = vmatprep.subr.mxu0 0.0
    %2517 = vmatpush1.msra.mxu0 0.0
    %2518 = vmatprep.subr.mxu0 0.0
    %2519 = vmatpush1.msra.mxu0 0.0
    %2520 = vmatprep.subr.mxu0 0.0
    %2521 = vmatpush1.msra.mxu0 0.0
    %2522 = vmatprep.subr.mxu0 0.0
    %2523 = vmatpush1.msra.mxu0 0.0
    %2524 = vmatprep.subr.mxu0 0.0
    %2525 = vmatpush1.msra.mxu0 0.0
    %2526 = vmatprep.subr.mxu0 0.0
    %2527 = vmatpush1.msra.mxu0 0.0
    %2528 = vmatprep.mubr.f32.mxu0 0.0
    %v2529 = vand.u32 %v1840, 4294901760
    %2530 = vmatmul.mubr.f32.gmra.mrb[0].mxu0 %v2529
    %v2531 = vpop.f32.mrb[0].mxu0
    %v2532 = vadd.f32 %v2385, %v2531
    %v2533 = vpop.f32.mrb[0].mxu0
    %v2534 = vadd.f32 %v2387, %v2533
    %2535 = vmatprep.mubr.f32.mxu0 0.0
    %v2536 = vand.u32 %v1843, 4294901760
    %2537 = vmatmul.mubr.f32.gmra.mrb[0].mxu0 %v2536
    %v2538 = vpop.f32.mrb[0].mxu0
    %v2539 = vadd.f32 %v2394, %v2538
    %v2540 = vpop.f32.mrb[0].mxu0
    %v2541 = vadd.f32 %v2396, %v2540
    %2542 = vmatprep.mubr.f32.mxu0 0.0
    %v2543 = vand.u32 %v1846, 4294901760
    %2544 = vmatmul.mubr.f32.gmra.mrb[0].mxu0 %v2543
    %v2545 = vpop.f32.mrb[0].mxu0
    %v2546 = vadd.f32 %v2403, %v2545
    %v2547 = vpop.f32.mrb[0].mxu0
    %v2548 = vadd.f32 %v2405, %v2547
    %2549 = vmatprep.mubr.f32.mxu0 0.0
    %v2550 = vand.u32 %v1849, 4294901760
    %2551 = vmatmul.mubr.f32.gmra.mrb[0].mxu0 %v2550
    %v2552 = vpop.f32.mrb[0].mxu0
    %v2553 = vadd.f32 %v2412, %v2552
    %v2554 = vpop.f32.mrb[0].mxu0
    %v2555 = vadd.f32 %v2414, %v2554
    %2556 = vmatprep.mubr.f32.mxu0 0.0
    %v2557 = vand.u32 %v1852, 4294901760
    %2558 = vmatmul.mubr.f32.gmra.mrb[0].mxu0 %v2557
    %v2559 = vpop.f32.mrb[0].mxu0
    %v2560 = vadd.f32 %v2421, %v2559
    %v2561 = vpop.f32.mrb[0].mxu0
    %v2562 = vadd.f32 %v2423, %v2561
    %2563 = vmatprep.mubr.f32.mxu0 0.0
    %v2564 = vand.u32 %v1855, 4294901760
    %2565 = vmatmul.mubr.f32.gmra.mrb[0].mxu0 %v2564
    %v2566 = vpop.f32.mrb[0].mxu0
    %v2567 = vadd.f32 %v2430, %v2566
    %v2568 = vpop.f32.mrb[0].mxu0
    %v2569 = vadd.f32 %v2432, %v2568
    %2570 = vmatprep.mubr.f32.mxu0 0.0
    %v2571 = vand.u32 %v1858, 4294901760
    %2572 = vmatmul.mubr.f32.gmra.mrb[0].mxu0 %v2571
    %v2573 = vpop.f32.mrb[0].mxu0
    %v2574 = vadd.f32 %v2439, %v2573
    %v2575 = vpop.f32.mrb[0].mxu0
    %v2576 = vadd.f32 %v2441, %v2575
    %2577 = vmatprep.mubr.f32.mxu0 0.0
    %v2578 = vand.u32 %v1861, 4294901760
    %2579 = vmatmul.mubr.f32.gmra.mrb[0].mxu0 %v2578
    %v2580 = vpop.f32.mrb[0].mxu0
    %v2581 = vadd.f32 %v2448, %v2580
    %v2582 = vpop.f32.mrb[0].mxu0
    %v2583 = vadd.f32 %v2450, %v2582
    %2584 = vdwg.mxu0
    %v2585 = vand.u32 %v1204, 4294901760
    %2586 = vmatprep.subr.mxu0 %v2585
    %v2587 = vand.u32 %v1100, 4294901760
    %2588 = vmatpush1.msra.mxu0 %v2587
    %v2589 = vand.u32 %v1868, 4294901760
    %2590 = vmatprep.subr.mxu0 %v2589
    %v2591 = vand.u32 %v1865, 4294901760
    %2592 = vmatpush1.msra.mxu0 %v2591
    %2593 = vmatprep.subr.mxu0 0.0
    %2594 = vmatpush1.msra.mxu0 0.0
    %2595 = vmatprep.subr.mxu0 0.0
    %2596 = vmatpush1.msra.mxu0 0.0
    %2597 = vmatprep.subr.mxu0 0.0
    %2598 = vmatpush1.msra.mxu0 0.0
    %2599 = vmatprep.subr.mxu0 0.0
    %2600 = vmatpush1.msra.mxu0 0.0
    %2601 = vmatprep.subr.mxu0 0.0
    %2602 = vmatpush1.msra.mxu0 0.0
    %2603 = vmatprep.subr.mxu0 0.0
    %2604 = vmatpush1.msra.mxu0 0.0
    %2605 = vmatprep.subr.mxu0 0.0
    %2606 = vmatpush1.msra.mxu0 0.0
    %2607 = vmatprep.subr.mxu0 0.0
    %2608 = vmatpush1.msra.mxu0 0.0
    %2609 = vmatprep.subr.mxu0 0.0
    %2610 = vmatpush1.msra.mxu0 0.0
    %2611 = vmatprep.subr.mxu0 0.0
    %2612 = vmatpush1.msra.mxu0 0.0
    %2613 = vmatprep.subr.mxu0 0.0
    %2614 = vmatpush1.msra.mxu0 0.0
    %2615 = vmatprep.subr.mxu0 0.0
    %2616 = vmatpush1.msra.mxu0 0.0
    %2617 = vmatprep.subr.mxu0 0.0
    %2618 = vmatpush1.msra.mxu0 0.0
    %2619 = vmatprep.subr.mxu0 0.0
    %2620 = vmatpush1.msra.mxu0 0.0
    %2621 = vmatprep.subr.mxu0 0.0
    %2622 = vmatpush1.msra.mxu0 0.0
    %2623 = vmatprep.subr.mxu0 0.0
    %2624 = vmatpush1.msra.mxu0 0.0
    %2625 = vmatprep.subr.mxu0 0.0
    %2626 = vmatpush1.msra.mxu0 0.0
    %2627 = vmatprep.subr.mxu0 0.0
    %2628 = vmatpush1.msra.mxu0 0.0
    %2629 = vmatprep.subr.mxu0 0.0
    %2630 = vmatpush1.msra.mxu0 0.0
    %2631 = vmatprep.subr.mxu0 0.0
    %2632 = vmatpush1.msra.mxu0 0.0
    %2633 = vmatprep.subr.mxu0 0.0
    %2634 = vmatpush1.msra.mxu0 0.0
    %2635 = vmatprep.subr.mxu0 0.0
    %2636 = vmatpush1.msra.mxu0 0.0
    %2637 = vmatprep.subr.mxu0 0.0
    %2638 = vmatpush1.msra.mxu0 0.0
    %2639 = vmatprep.subr.mxu0 0.0
    %2640 = vmatpush1.msra.mxu0 0.0
    %2641 = vmatprep.subr.mxu0 0.0
    %2642 = vmatpush1.msra.mxu0 0.0
    %2643 = vmatprep.subr.mxu0 0.0
    %2644 = vmatpush1.msra.mxu0 0.0
    %2645 = vmatprep.subr.mxu0 0.0
    %2646 = vmatpush1.msra.mxu0 0.0
    %2647 = vmatprep.subr.mxu0 0.0
    %2648 = vmatpush1.msra.mxu0 0.0
    %2649 = vmatprep.subr.mxu0 0.0
    %2650 = vmatpush1.msra.mxu0 0.0
    %2651 = vmatprep.subr.mxu0 0.0
    %2652 = vmatpush1.msra.mxu0 0.0
    %2653 = vmatprep.mubr.f32.mxu0 0.0
    %v2654 = vand.u32 %v1840, 4294901760
    %2655 = vmatmul.mubr.f32.gmra.mrb[0].mxu0 %v2654
    %v2656 = vpop.f32.mrb[0].mxu0
    %v2657 = vadd.f32 %v2532, %v2656
    %v2658 = vpop.f32.mrb[0].mxu0
    %v2659 = vadd.f32 %v2534, %v2658
    %2660 = vmatprep.mubr.f32.mxu0 0.0
    %v2661 = vand.u32 %v1843, 4294901760
    %2662 = vmatmul.mubr.f32.gmra.mrb[0].mxu0 %v2661
    %v2663 = vpop.f32.mrb[0].mxu0
    %v2664 = vadd.f32 %v2539, %v2663
    %v2665 = vpop.f32.mrb[0].mxu0
    %v2666 = vadd.f32 %v2541, %v2665
    %2667 = vmatprep.mubr.f32.mxu0 0.0
    %v2668 = vand.u32 %v1846, 4294901760
    %2669 = vmatmul.mubr.f32.gmra.mrb[0].mxu0 %v2668
    %v2670 = vpop.f32.mrb[0].mxu0
    %v2671 = vadd.f32 %v2546, %v2670
    %v2672 = vpop.f32.mrb[0].mxu0
    %v2673 = vadd.f32 %v2548, %v2672
    %2674 = vmatprep.mubr.f32.mxu0 0.0
    %v2675 = vand.u32 %v1849, 4294901760
    %2676 = vmatmul.mubr.f32.gmra.mrb[0].mxu0 %v2675
    %v2677 = vpop.f32.mrb[0].mxu0
    %v2678 = vadd.f32 %v2553, %v2677
    %v2679 = vpop.f32.mrb[0].mxu0
    %v2680 = vadd.f32 %v2555, %v2679
    %2681 = vmatprep.mubr.f32.mxu0 0.0
    %v2682 = vand.u32 %v1852, 4294901760
    %2683 = vmatmul.mubr.f32.gmra.mrb[0].mxu0 %v2682
    %v2684 = vpop.f32.mrb[0].mxu0
    %v2685 = vadd.f32 %v2560, %v2684
    %v2686 = vpop.f32.mrb[0].mxu0
    %v2687 = vadd.f32 %v2562, %v2686
    %2688 = vmatprep.mubr.f32.mxu0 0.0
    %v2689 = vand.u32 %v1855, 4294901760
    %2690 = vmatmul.mubr.f32.gmra.mrb[0].mxu0 %v2689
    %v2691 = vpop.f32.mrb[0].mxu0
    %v2692 = vadd.f32 %v2567, %v2691
    %v2693 = vpop.f32.mrb[0].mxu0
    %v2694 = vadd.f32 %v2569, %v2693
    %2695 = vmatprep.mubr.f32.mxu0 0.0
    %v2696 = vand.u32 %v1858, 4294901760
    %2697 = vmatmul.mubr.f32.gmra.mrb[0].mxu0 %v2696
    %v2698 = vpop.f32.mrb[0].mxu0
    %v2699 = vadd.f32 %v2574, %v2698
    %v2700 = vpop.f32.mrb[0].mxu0
    %v2701 = vadd.f32 %v2576, %v2700
    %2702 = vmatprep.mubr.f32.mxu0 0.0
    %v2703 = vand.u32 %v1861, 4294901760
    %2704 = vmatmul.mubr.f32.gmra.mrb[0].mxu0 %v2703
    %v2705 = vpop.f32.mrb[0].mxu0
    %v2706 = vadd.f32 %v2581, %v2705
    %v2707 = vpop.f32.mrb[0].mxu0
    %v2708 = vadd.f32 %v2583, %v2707
    %2709 = vdwg.mxu0
    %v2710 = vand.u32 %v1412, 4294901760
    %2711 = vmatprep.subr.mxu0 %v2710
    %v2712 = vand.u32 %v1308, 4294901760
    %2713 = vmatpush1.msra.mxu0 %v2712
    %v2714 = vand.u32 %v1874, 4294901760
    %2715 = vmatprep.subr.mxu0 %v2714
    %v2716 = vand.u32 %v1871, 4294901760
    %2717 = vmatpush1.msra.mxu0 %v2716
    %2718 = vmatprep.subr.mxu0 0.0
    %2719 = vmatpush1.msra.mxu0 0.0
    %2720 = vmatprep.subr.mxu0 0.0
    %2721 = vmatpush1.msra.mxu0 0.0
    %2722 = vmatprep.subr.mxu0 0.0
    %2723 = vmatpush1.msra.mxu0 0.0
    %2724 = vmatprep.subr.mxu0 0.0
    %2725 = vmatpush1.msra.mxu0 0.0
    %2726 = vmatprep.subr.mxu0 0.0
    %2727 = vmatpush1.msra.mxu0 0.0
    %2728 = vmatprep.subr.mxu0 0.0
    %2729 = vmatpush1.msra.mxu0 0.0
    %2730 = vmatprep.subr.mxu0 0.0
    %2731 = vmatpush1.msra.mxu0 0.0
    %2732 = vmatprep.subr.mxu0 0.0
    %2733 = vmatpush1.msra.mxu0 0.0
    %2734 = vmatprep.subr.mxu0 0.0
    %2735 = vmatpush1.msra.mxu0 0.0
    %2736 = vmatprep.subr.mxu0 0.0
    %2737 = vmatpush1.msra.mxu0 0.0
    %2738 = vmatprep.subr.mxu0 0.0
    %2739 = vmatpush1.msra.mxu0 0.0
    %2740 = vmatprep.subr.mxu0 0.0
    %2741 = vmatpush1.msra.mxu0 0.0
    %2742 = vmatprep.subr.mxu0 0.0
    %2743 = vmatpush1.msra.mxu0 0.0
    %2744 = vmatprep.subr.mxu0 0.0
    %2745 = vmatpush1.msra.mxu0 0.0
    %2746 = vmatprep.subr.mxu0 0.0
    %2747 = vmatpush1.msra.mxu0 0.0
    %2748 = vmatprep.subr.mxu0 0.0
    %2749 = vmatpush1.msra.mxu0 0.0
    %2750 = vmatprep.subr.mxu0 0.0
    %2751 = vmatpush1.msra.mxu0 0.0
    %2752 = vmatprep.subr.mxu0 0.0
    %2753 = vmatpush1.msra.mxu0 0.0
    %2754 = vmatprep.subr.mxu0 0.0
    %2755 = vmatpush1.msra.mxu0 0.0
    %2756 = vmatprep.subr.mxu0 0.0
    %2757 = vmatpush1.msra.mxu0 0.0
    %2758 = vmatprep.subr.mxu0 0.0
    %2759 = vmatpush1.msra.mxu0 0.0
    %2760 = vmatprep.subr.mxu0 0.0
    %2761 = vmatpush1.msra.mxu0 0.0
    %2762 = vmatprep.subr.mxu0 0.0
    %2763 = vmatpush1.msra.mxu0 0.0
    %2764 = vmatprep.subr.mxu0 0.0
    %2765 = vmatpush1.msra.mxu0 0.0
    %2766 = vmatprep.subr.mxu0 0.0
    %2767 = vmatpush1.msra.mxu0 0.0
    %2768 = vmatprep.subr.mxu0 0.0
    %2769 = vmatpush1.msra.mxu0 0.0
    %2770 = vmatprep.subr.mxu0 0.0
    %2771 = vmatpush1.msra.mxu0 0.0
    %2772 = vmatprep.subr.mxu0 0.0
    %2773 = vmatpush1.msra.mxu0 0.0
    %2774 = vmatprep.subr.mxu0 0.0
    %2775 = vmatpush1.msra.mxu0 0.0
    %2776 = vmatprep.subr.mxu0 0.0
    %2777 = vmatpush1.msra.mxu0 0.0
    %2778 = vmatprep.mubr.f32.mxu0 0.0
    %v2779 = vand.u32 %v1840, 4294901760
    %v2780 = vsub.f32 %v1840, %v2779
    %v2781 = vand.u32 %v2780, 4294901760
    %v2782 = vsub.f32 %v2780, %v2781
    %v2783 = vand.u32 %v2782, 4294901760
    %2784 = vmatmul.mubr.f32.gmra.mrb[0].mxu0 %v2783
    %v2785 = vpop.f32.mrb[0].mxu0
    %v2786 = vadd.f32 0.0, %v2785
    %v2787 = vpop.f32.mrb[0].mxu0
    %v2788 = vadd.f32 0.0, %v2787
    %2789 = vmatprep.mubr.f32.mxu0 0.0
    %v2790 = vand.u32 %v1843, 4294901760
    %v2791 = vsub.f32 %v1843, %v2790
    %v2792 = vand.u32 %v2791, 4294901760
    %v2793 = vsub.f32 %v2791, %v2792
    %v2794 = vand.u32 %v2793, 4294901760
    %2795 = vmatmul.mubr.f32.gmra.mrb[0].mxu0 %v2794
    %v2796 = vpop.f32.mrb[0].mxu0
    %v2797 = vadd.f32 0.0, %v2796
    %v2798 = vpop.f32.mrb[0].mxu0
    %v2799 = vadd.f32 0.0, %v2798
    %2800 = vmatprep.mubr.f32.mxu0 0.0
    %v2801 = vand.u32 %v1846, 4294901760
    %v2802 = vsub.f32 %v1846, %v2801
    %v2803 = vand.u32 %v2802, 4294901760
    %v2804 = vsub.f32 %v2802, %v2803
    %v2805 = vand.u32 %v2804, 4294901760
    %2806 = vmatmul.mubr.f32.gmra.mrb[0].mxu0 %v2805
    %v2807 = vpop.f32.mrb[0].mxu0
    %v2808 = vadd.f32 0.0, %v2807
    %v2809 = vpop.f32.mrb[0].mxu0
    %v2810 = vadd.f32 0.0, %v2809
    %2811 = vmatprep.mubr.f32.mxu0 0.0
    %v2812 = vand.u32 %v1849, 4294901760
    %v2813 = vsub.f32 %v1849, %v2812
    %v2814 = vand.u32 %v2813, 4294901760
    %v2815 = vsub.f32 %v2813, %v2814
    %v2816 = vand.u32 %v2815, 4294901760
    %2817 = vmatmul.mubr.f32.gmra.mrb[0].mxu0 %v2816
    %v2818 = vpop.f32.mrb[0].mxu0
    %v2819 = vadd.f32 0.0, %v2818
    %v2820 = vpop.f32.mrb[0].mxu0
    %v2821 = vadd.f32 0.0, %v2820
    %2822 = vmatprep.mubr.f32.mxu0 0.0
    %v2823 = vand.u32 %v1852, 4294901760
    %v2824 = vsub.f32 %v1852, %v2823
    %v2825 = vand.u32 %v2824, 4294901760
    %v2826 = vsub.f32 %v2824, %v2825
    %v2827 = vand.u32 %v2826, 4294901760
    %2828 = vmatmul.mubr.f32.gmra.mrb[0].mxu0 %v2827
    %v2829 = vpop.f32.mrb[0].mxu0
    %v2830 = vadd.f32 0.0, %v2829
    %v2831 = vpop.f32.mrb[0].mxu0
    %v2832 = vadd.f32 0.0, %v2831
    %2833 = vmatprep.mubr.f32.mxu0 0.0
    %v2834 = vand.u32 %v1855, 4294901760
    %v2835 = vsub.f32 %v1855, %v2834
    %v2836 = vand.u32 %v2835, 4294901760
    %v2837 = vsub.f32 %v2835, %v2836
    %v2838 = vand.u32 %v2837, 4294901760
    %2839 = vmatmul.mubr.f32.gmra.mrb[0].mxu0 %v2838
    %v2840 = vpop.f32.mrb[0].mxu0
    %v2841 = vadd.f32 0.0, %v2840
    %v2842 = vpop.f32.mrb[0].mxu0
    %v2843 = vadd.f32 0.0, %v2842
    %2844 = vmatprep.mubr.f32.mxu0 0.0
    %v2845 = vand.u32 %v1858, 4294901760
    %v2846 = vsub.f32 %v1858, %v2845
    %v2847 = vand.u32 %v2846, 4294901760
    %v2848 = vsub.f32 %v2846, %v2847
    %v2849 = vand.u32 %v2848, 4294901760
    %2850 = vmatmul.mubr.f32.gmra.mrb[0].mxu0 %v2849
    %v2851 = vpop.f32.mrb[0].mxu0
    %v2852 = vadd.f32 0.0, %v2851
    %v2853 = vpop.f32.mrb[0].mxu0
    %v2854 = vadd.f32 0.0, %v2853
    %2855 = vmatprep.mubr.f32.mxu0 0.0
    %v2856 = vand.u32 %v1861, 4294901760
    %v2857 = vsub.f32 %v1861, %v2856
    %v2858 = vand.u32 %v2857, 4294901760
    %v2859 = vsub.f32 %v2857, %v2858
    %v2860 = vand.u32 %v2859, 4294901760
    %2861 = vmatmul.mubr.f32.gmra.mrb[0].mxu0 %v2860
    %v2862 = vpop.f32.mrb[0].mxu0
    %v2863 = vadd.f32 0.0, %v2862
    %v2864 = vpop.f32.mrb[0].mxu0
    %v2865 = vadd.f32 0.0, %v2864
    %2866 = vdwg.mxu0
    %v2867 = vand.u32 %v1412, 4294901760
    %v2868 = vsub.f32 %v1412, %v2867
    %v2869 = vand.u32 %v2868, 4294901760
    %v2870 = vsub.f32 %v2868, %v2869
    %v2871 = vand.u32 %v2870, 4294901760
    %2872 = vmatprep.subr.mxu0 %v2871
    %v2873 = vand.u32 %v1308, 4294901760
    %v2874 = vsub.f32 %v1308, %v2873
    %v2875 = vand.u32 %v2874, 4294901760
    %v2876 = vsub.f32 %v2874, %v2875
    %v2877 = vand.u32 %v2876, 4294901760
    %2878 = vmatpush1.msra.mxu0 %v2877
    %v2879 = vand.u32 %v1874, 4294901760
    %v2880 = vsub.f32 %v1874, %v2879
    %v2881 = vand.u32 %v2880, 4294901760
    %v2882 = vsub.f32 %v2880, %v2881
    %v2883 = vand.u32 %v2882, 4294901760
    %2884 = vmatprep.subr.mxu0 %v2883
    %v2885 = vand.u32 %v1871, 4294901760
    %v2886 = vsub.f32 %v1871, %v2885
    %v2887 = vand.u32 %v2886, 4294901760
    %v2888 = vsub.f32 %v2886, %v2887
    %v2889 = vand.u32 %v2888, 4294901760
    %2890 = vmatpush1.msra.mxu0 %v2889
    %2891 = vmatprep.subr.mxu0 0.0
    %2892 = vmatpush1.msra.mxu0 0.0
    %2893 = vmatprep.subr.mxu0 0.0
    %2894 = vmatpush1.msra.mxu0 0.0
    %2895 = vmatprep.subr.mxu0 0.0
    %2896 = vmatpush1.msra.mxu0 0.0
    %2897 = vmatprep.subr.mxu0 0.0
    %2898 = vmatpush1.msra.mxu0 0.0
    %2899 = vmatprep.subr.mxu0 0.0
    %2900 = vmatpush1.msra.mxu0 0.0
    %2901 = vmatprep.subr.mxu0 0.0
    %2902 = vmatpush1.msra.mxu0 0.0
    %2903 = vmatprep.subr.mxu0 0.0
    %2904 = vmatpush1.msra.mxu0 0.0
    %2905 = vmatprep.subr.mxu0 0.0
    %2906 = vmatpush1.msra.mxu0 0.0
    %2907 = vmatprep.subr.mxu0 0.0
    %2908 = vmatpush1.msra.mxu0 0.0
    %2909 = vmatprep.subr.mxu0 0.0
    %2910 = vmatpush1.msra.mxu0 0.0
    %2911 = vmatprep.subr.mxu0 0.0
    %2912 = vmatpush1.msra.mxu0 0.0
    %2913 = vmatprep.subr.mxu0 0.0
    %2914 = vmatpush1.msra.mxu0 0.0
    %2915 = vmatprep.subr.mxu0 0.0
    %2916 = vmatpush1.msra.mxu0 0.0
    %2917 = vmatprep.subr.mxu0 0.0
    %2918 = vmatpush1.msra.mxu0 0.0
    %2919 = vmatprep.subr.mxu0 0.0
    %2920 = vmatpush1.msra.mxu0 0.0
    %2921 = vmatprep.subr.mxu0 0.0
    %2922 = vmatpush1.msra.mxu0 0.0
    %2923 = vmatprep.subr.mxu0 0.0
    %2924 = vmatpush1.msra.mxu0 0.0
    %2925 = vmatprep.subr.mxu0 0.0
    %2926 = vmatpush1.msra.mxu0 0.0
    %2927 = vmatprep.subr.mxu0 0.0
    %2928 = vmatpush1.msra.mxu0 0.0
    %2929 = vmatprep.subr.mxu0 0.0
    %2930 = vmatpush1.msra.mxu0 0.0
    %2931 = vmatprep.subr.mxu0 0.0
    %2932 = vmatpush1.msra.mxu0 0.0
    %2933 = vmatprep.subr.mxu0 0.0
    %2934 = vmatpush1.msra.mxu0 0.0
    %2935 = vmatprep.subr.mxu0 0.0
    %2936 = vmatpush1.msra.mxu0 0.0
    %2937 = vmatprep.subr.mxu0 0.0
    %2938 = vmatpush1.msra.mxu0 0.0
    %2939 = vmatprep.subr.mxu0 0.0
    %2940 = vmatpush1.msra.mxu0 0.0
    %2941 = vmatprep.subr.mxu0 0.0
    %2942 = vmatpush1.msra.mxu0 0.0
    %2943 = vmatprep.subr.mxu0 0.0
    %2944 = vmatpush1.msra.mxu0 0.0
    %2945 = vmatprep.subr.mxu0 0.0
    %2946 = vmatpush1.msra.mxu0 0.0
    %2947 = vmatprep.subr.mxu0 0.0
    %2948 = vmatpush1.msra.mxu0 0.0
    %2949 = vmatprep.subr.mxu0 0.0
    %2950 = vmatpush1.msra.mxu0 0.0
    %2951 = vmatprep.mubr.f32.mxu0 0.0
    %v2952 = vand.u32 %v1840, 4294901760
    %2953 = vmatmul.mubr.f32.gmra.mrb[0].mxu0 %v2952
    %v2954 = vpop.f32.mrb[0].mxu0
    %v2955 = vadd.f32 %v2786, %v2954
    %v2956 = vpop.f32.mrb[0].mxu0
    %v2957 = vadd.f32 %v2788, %v2956
    %2958 = vmatprep.mubr.f32.mxu0 0.0
    %v2959 = vand.u32 %v1843, 4294901760
    %2960 = vmatmul.mubr.f32.gmra.mrb[0].mxu0 %v2959
    %v2961 = vpop.f32.mrb[0].mxu0
    %v2962 = vadd.f32 %v2797, %v2961
    %v2963 = vpop.f32.mrb[0].mxu0
    %v2964 = vadd.f32 %v2799, %v2963
    %2965 = vmatprep.mubr.f32.mxu0 0.0
    %v2966 = vand.u32 %v1846, 4294901760
    %2967 = vmatmul.mubr.f32.gmra.mrb[0].mxu0 %v2966
    %v2968 = vpop.f32.mrb[0].mxu0
    %v2969 = vadd.f32 %v2808, %v2968
    %v2970 = vpop.f32.mrb[0].mxu0
    %v2971 = vadd.f32 %v2810, %v2970
    %2972 = vmatprep.mubr.f32.mxu0 0.0
    %v2973 = vand.u32 %v1849, 4294901760
    %2974 = vmatmul.mubr.f32.gmra.mrb[0].mxu0 %v2973
    %v2975 = vpop.f32.mrb[0].mxu0
    %v2976 = vadd.f32 %v2819, %v2975
    %v2977 = vpop.f32.mrb[0].mxu0
    %v2978 = vadd.f32 %v2821, %v2977
    %2979 = vmatprep.mubr.f32.mxu0 0.0
    %v2980 = vand.u32 %v1852, 4294901760
    %2981 = vmatmul.mubr.f32.gmra.mrb[0].mxu0 %v2980
    %v2982 = vpop.f32.mrb[0].mxu0
    %v2983 = vadd.f32 %v2830, %v2982
    %v2984 = vpop.f32.mrb[0].mxu0
    %v2985 = vadd.f32 %v2832, %v2984
    %2986 = vmatprep.mubr.f32.mxu0 0.0
    %v2987 = vand.u32 %v1855, 4294901760
    %2988 = vmatmul.mubr.f32.gmra.mrb[0].mxu0 %v2987
    %v2989 = vpop.f32.mrb[0].mxu0
    %v2990 = vadd.f32 %v2841, %v2989
    %v2991 = vpop.f32.mrb[0].mxu0
    %v2992 = vadd.f32 %v2843, %v2991
    %2993 = vmatprep.mubr.f32.mxu0 0.0
    %v2994 = vand.u32 %v1858, 4294901760
    %2995 = vmatmul.mubr.f32.gmra.mrb[0].mxu0 %v2994
    %v2996 = vpop.f32.mrb[0].mxu0
    %v2997 = vadd.f32 %v2852, %v2996
    %v2998 = vpop.f32.mrb[0].mxu0
    %v2999 = vadd.f32 %v2854, %v2998
    %3000 = vmatprep.mubr.f32.mxu0 0.0
    %v3001 = vand.u32 %v1861, 4294901760
    %3002 = vmatmul.mubr.f32.gmra.mrb[0].mxu0 %v3001
    %v3003 = vpop.f32.mrb[0].mxu0
    %v3004 = vadd.f32 %v2863, %v3003
    %v3005 = vpop.f32.mrb[0].mxu0
    %v3006 = vadd.f32 %v2865, %v3005
    %3007 = vdwg.mxu0
    %v3008 = vand.u32 %v1412, 4294901760
    %v3009 = vsub.f32 %v1412, %v3008
    %3010 = vmatprep.subr.mxu0 %v3009
    %v3011 = vand.u32 %v1308, 4294901760
    %v3012 = vsub.f32 %v1308, %v3011
    %3013 = vmatpush1.msra.mxu0 %v3012
    %v3014 = vand.u32 %v1874, 4294901760
    %v3015 = vsub.f32 %v1874, %v3014
    %3016 = vmatprep.subr.mxu0 %v3015
    %v3017 = vand.u32 %v1871, 4294901760
    %v3018 = vsub.f32 %v1871, %v3017
    %3019 = vmatpush1.msra.mxu0 %v3018
    %3020 = vmatprep.subr.mxu0 0.0
    %3021 = vmatpush1.msra.mxu0 0.0
    %3022 = vmatprep.subr.mxu0 0.0
    %3023 = vmatpush1.msra.mxu0 0.0
    %3024 = vmatprep.subr.mxu0 0.0
    %3025 = vmatpush1.msra.mxu0 0.0
    %3026 = vmatprep.subr.mxu0 0.0
    %3027 = vmatpush1.msra.mxu0 0.0
    %3028 = vmatprep.subr.mxu0 0.0
    %3029 = vmatpush1.msra.mxu0 0.0
    %3030 = vmatprep.subr.mxu0 0.0
    %3031 = vmatpush1.msra.mxu0 0.0
    %3032 = vmatprep.subr.mxu0 0.0
    %3033 = vmatpush1.msra.mxu0 0.0
    %3034 = vmatprep.subr.mxu0 0.0
    %3035 = vmatpush1.msra.mxu0 0.0
    %3036 = vmatprep.subr.mxu0 0.0
    %3037 = vmatpush1.msra.mxu0 0.0
    %3038 = vmatprep.subr.mxu0 0.0
    %3039 = vmatpush1.msra.mxu0 0.0
    %3040 = vmatprep.subr.mxu0 0.0
    %3041 = vmatpush1.msra.mxu0 0.0
    %3042 = vmatprep.subr.mxu0 0.0
    %3043 = vmatpush1.msra.mxu0 0.0
    %3044 = vmatprep.subr.mxu0 0.0
    %3045 = vmatpush1.msra.mxu0 0.0
    %3046 = vmatprep.subr.mxu0 0.0
    %3047 = vmatpush1.msra.mxu0 0.0
    %3048 = vmatprep.subr.mxu0 0.0
    %3049 = vmatpush1.msra.mxu0 0.0
    %3050 = vmatprep.subr.mxu0 0.0
    %3051 = vmatpush1.msra.mxu0 0.0
    %3052 = vmatprep.subr.mxu0 0.0
    %3053 = vmatpush1.msra.mxu0 0.0
    %3054 = vmatprep.subr.mxu0 0.0
    %3055 = vmatpush1.msra.mxu0 0.0
    %3056 = vmatprep.subr.mxu0 0.0
    %3057 = vmatpush1.msra.mxu0 0.0
    %3058 = vmatprep.subr.mxu0 0.0
    %3059 = vmatpush1.msra.mxu0 0.0
    %3060 = vmatprep.subr.mxu0 0.0
    %3061 = vmatpush1.msra.mxu0 0.0
    %3062 = vmatprep.subr.mxu0 0.0
    %3063 = vmatpush1.msra.mxu0 0.0
    %3064 = vmatprep.subr.mxu0 0.0
    %3065 = vmatpush1.msra.mxu0 0.0
    %3066 = vmatprep.subr.mxu0 0.0
    %3067 = vmatpush1.msra.mxu0 0.0
    %3068 = vmatprep.subr.mxu0 0.0
    %3069 = vmatpush1.msra.mxu0 0.0
    %3070 = vmatprep.subr.mxu0 0.0
    %3071 = vmatpush1.msra.mxu0 0.0
    %3072 = vmatprep.subr.mxu0 0.0
    %3073 = vmatpush1.msra.mxu0 0.0
    %3074 = vmatprep.subr.mxu0 0.0
    %3075 = vmatpush1.msra.mxu0 0.0
    %3076 = vmatprep.subr.mxu0 0.0
    %3077 = vmatpush1.msra.mxu0 0.0
    %3078 = vmatprep.subr.mxu0 0.0
    %3079 = vmatpush1.msra.mxu0 0.0
    %3080 = vmatprep.mubr.f32.mxu0 0.0
    %v3081 = vand.u32 %v1840, 4294901760
    %v3082 = vsub.f32 %v1840, %v3081
    %3083 = vmatmul.mubr.f32.gmra.mrb[0].mxu0 %v3082
    %v3084 = vpop.f32.mrb[0].mxu0
    %v3085 = vadd.f32 %v2955, %v3084
    %v3086 = vpop.f32.mrb[0].mxu0
    %v3087 = vadd.f32 %v2957, %v3086
    %3088 = vmatprep.mubr.f32.mxu0 0.0
    %v3089 = vand.u32 %v1843, 4294901760
    %v3090 = vsub.f32 %v1843, %v3089
    %3091 = vmatmul.mubr.f32.gmra.mrb[0].mxu0 %v3090
    %v3092 = vpop.f32.mrb[0].mxu0
    %v3093 = vadd.f32 %v2962, %v3092
    %v3094 = vpop.f32.mrb[0].mxu0
    %v3095 = vadd.f32 %v2964, %v3094
    %3096 = vmatprep.mubr.f32.mxu0 0.0
    %v3097 = vand.u32 %v1846, 4294901760
    %v3098 = vsub.f32 %v1846, %v3097
    %3099 = vmatmul.mubr.f32.gmra.mrb[0].mxu0 %v3098
    %v3100 = vpop.f32.mrb[0].mxu0
    %v3101 = vadd.f32 %v2969, %v3100
    %v3102 = vpop.f32.mrb[0].mxu0
    %v3103 = vadd.f32 %v2971, %v3102
    %3104 = vmatprep.mubr.f32.mxu0 0.0
    %v3105 = vand.u32 %v1849, 4294901760
    %v3106 = vsub.f32 %v1849, %v3105
    %3107 = vmatmul.mubr.f32.gmra.mrb[0].mxu0 %v3106
    %v3108 = vpop.f32.mrb[0].mxu0
    %v3109 = vadd.f32 %v2976, %v3108
    %v3110 = vpop.f32.mrb[0].mxu0
    %v3111 = vadd.f32 %v2978, %v3110
    %3112 = vmatprep.mubr.f32.mxu0 0.0
    %v3113 = vand.u32 %v1852, 4294901760
    %v3114 = vsub.f32 %v1852, %v3113
    %3115 = vmatmul.mubr.f32.gmra.mrb[0].mxu0 %v3114
    %v3116 = vpop.f32.mrb[0].mxu0
    %v3117 = vadd.f32 %v2983, %v3116
    %v3118 = vpop.f32.mrb[0].mxu0
    %v3119 = vadd.f32 %v2985, %v3118
    %3120 = vmatprep.mubr.f32.mxu0 0.0
    %v3121 = vand.u32 %v1855, 4294901760
    %v3122 = vsub.f32 %v1855, %v3121
    %3123 = vmatmul.mubr.f32.gmra.mrb[0].mxu0 %v3122
    %v3124 = vpop.f32.mrb[0].mxu0
    %v3125 = vadd.f32 %v2990, %v3124
    %v3126 = vpop.f32.mrb[0].mxu0
    %v3127 = vadd.f32 %v2992, %v3126
    %3128 = vmatprep.mubr.f32.mxu0 0.0
    %v3129 = vand.u32 %v1858, 4294901760
    %v3130 = vsub.f32 %v1858, %v3129
    %3131 = vmatmul.mubr.f32.gmra.mrb[0].mxu0 %v3130
    %v3132 = vpop.f32.mrb[0].mxu0
    %v3133 = vadd.f32 %v2997, %v3132
    %v3134 = vpop.f32.mrb[0].mxu0
    %v3135 = vadd.f32 %v2999, %v3134
    %3136 = vmatprep.mubr.f32.mxu0 0.0
    %v3137 = vand.u32 %v1861, 4294901760
    %v3138 = vsub.f32 %v1861, %v3137
    %3139 = vmatmul.mubr.f32.gmra.mrb[0].mxu0 %v3138
    %v3140 = vpop.f32.mrb[0].mxu0
    %v3141 = vadd.f32 %v3004, %v3140
    %v3142 = vpop.f32.mrb[0].mxu0
    %v3143 = vadd.f32 %v3006, %v3142
    %3144 = vdwg.mxu0
    %v3145 = vand.u32 %v1412, 4294901760
    %3146 = vmatprep.subr.mxu0 %v3145
    %v3147 = vand.u32 %v1308, 4294901760
    %3148 = vmatpush1.msra.mxu0 %v3147
    %v3149 = vand.u32 %v1874, 4294901760
    %3150 = vmatprep.subr.mxu0 %v3149
    %v3151 = vand.u32 %v1871, 4294901760
    %3152 = vmatpush1.msra.mxu0 %v3151
    %3153 = vmatprep.subr.mxu0 0.0
    %3154 = vmatpush1.msra.mxu0 0.0
    %3155 = vmatprep.subr.mxu0 0.0
    %3156 = vmatpush1.msra.mxu0 0.0
    %3157 = vmatprep.subr.mxu0 0.0
    %3158 = vmatpush1.msra.mxu0 0.0
    %3159 = vmatprep.subr.mxu0 0.0
    %3160 = vmatpush1.msra.mxu0 0.0
    %3161 = vmatprep.subr.mxu0 0.0
    %3162 = vmatpush1.msra.mxu0 0.0
    %3163 = vmatprep.subr.mxu0 0.0
    %3164 = vmatpush1.msra.mxu0 0.0
    %3165 = vmatprep.subr.mxu0 0.0
    %3166 = vmatpush1.msra.mxu0 0.0
    %3167 = vmatprep.subr.mxu0 0.0
    %3168 = vmatpush1.msra.mxu0 0.0
    %3169 = vmatprep.subr.mxu0 0.0
    %3170 = vmatpush1.msra.mxu0 0.0
    %3171 = vmatprep.subr.mxu0 0.0
    %3172 = vmatpush1.msra.mxu0 0.0
    %3173 = vmatprep.subr.mxu0 0.0
    %3174 = vmatpush1.msra.mxu0 0.0
    %3175 = vmatprep.subr.mxu0 0.0
    %3176 = vmatpush1.msra.mxu0 0.0
    %3177 = vmatprep.subr.mxu0 0.0
    %3178 = vmatpush1.msra.mxu0 0.0
    %3179 = vmatprep.subr.mxu0 0.0
    %3180 = vmatpush1.msra.mxu0 0.0
    %3181 = vmatprep.subr.mxu0 0.0
    %3182 = vmatpush1.msra.mxu0 0.0
    %3183 = vmatprep.subr.mxu0 0.0
    %3184 = vmatpush1.msra.mxu0 0.0
    %3185 = vmatprep.subr.mxu0 0.0
    %3186 = vmatpush1.msra.mxu0 0.0
    %3187 = vmatprep.subr.mxu0 0.0
    %3188 = vmatpush1.msra.mxu0 0.0
    %3189 = vmatprep.subr.mxu0 0.0
    %3190 = vmatpush1.msra.mxu0 0.0
    %3191 = vmatprep.subr.mxu0 0.0
    %3192 = vmatpush1.msra.mxu0 0.0
    %3193 = vmatprep.subr.mxu0 0.0
    %3194 = vmatpush1.msra.mxu0 0.0
    %3195 = vmatprep.subr.mxu0 0.0
    %3196 = vmatpush1.msra.mxu0 0.0
    %3197 = vmatprep.subr.mxu0 0.0
    %3198 = vmatpush1.msra.mxu0 0.0
    %3199 = vmatprep.subr.mxu0 0.0
    %3200 = vmatpush1.msra.mxu0 0.0
    %3201 = vmatprep.subr.mxu0 0.0
    %3202 = vmatpush1.msra.mxu0 0.0
    %3203 = vmatprep.subr.mxu0 0.0
    %3204 = vmatpush1.msra.mxu0 0.0
    %3205 = vmatprep.subr.mxu0 0.0
    %3206 = vmatpush1.msra.mxu0 0.0
    %3207 = vmatprep.subr.mxu0 0.0
    %3208 = vmatpush1.msra.mxu0 0.0
    %3209 = vmatprep.subr.mxu0 0.0
    %3210 = vmatpush1.msra.mxu0 0.0
    %3211 = vmatprep.subr.mxu0 0.0
    %3212 = vmatpush1.msra.mxu0 0.0
    %3213 = vmatprep.mubr.f32.mxu0 0.0
    %v3214 = vand.u32 %v1840, 4294901760
    %v3215 = vsub.f32 %v1840, %v3214
    %v3216 = vand.u32 %v3215, 4294901760
    %3217 = vmatmul.mubr.f32.gmra.mrb[0].mxu0 %v3216
    %v3218 = vpop.f32.mrb[0].mxu0
    %v3219 = vadd.f32 %v3085, %v3218
    %v3220 = vpop.f32.mrb[0].mxu0
    %v3221 = vadd.f32 %v3087, %v3220
    %3222 = vmatprep.mubr.f32.mxu0 0.0
    %v3223 = vand.u32 %v1843, 4294901760
    %v3224 = vsub.f32 %v1843, %v3223
    %v3225 = vand.u32 %v3224, 4294901760
    %3226 = vmatmul.mubr.f32.gmra.mrb[0].mxu0 %v3225
    %v3227 = vpop.f32.mrb[0].mxu0
    %v3228 = vadd.f32 %v3093, %v3227
    %v3229 = vpop.f32.mrb[0].mxu0
    %v3230 = vadd.f32 %v3095, %v3229
    %3231 = vmatprep.mubr.f32.mxu0 0.0
    %v3232 = vand.u32 %v1846, 4294901760
    %v3233 = vsub.f32 %v1846, %v3232
    %v3234 = vand.u32 %v3233, 4294901760
    %3235 = vmatmul.mubr.f32.gmra.mrb[0].mxu0 %v3234
    %v3236 = vpop.f32.mrb[0].mxu0
    %v3237 = vadd.f32 %v3101, %v3236
    %v3238 = vpop.f32.mrb[0].mxu0
    %v3239 = vadd.f32 %v3103, %v3238
    %3240 = vmatprep.mubr.f32.mxu0 0.0
    %v3241 = vand.u32 %v1849, 4294901760
    %v3242 = vsub.f32 %v1849, %v3241
    %v3243 = vand.u32 %v3242, 4294901760
    %3244 = vmatmul.mubr.f32.gmra.mrb[0].mxu0 %v3243
    %v3245 = vpop.f32.mrb[0].mxu0
    %v3246 = vadd.f32 %v3109, %v3245
    %v3247 = vpop.f32.mrb[0].mxu0
    %v3248 = vadd.f32 %v3111, %v3247
    %3249 = vmatprep.mubr.f32.mxu0 0.0
    %v3250 = vand.u32 %v1852, 4294901760
    %v3251 = vsub.f32 %v1852, %v3250
    %v3252 = vand.u32 %v3251, 4294901760
    %3253 = vmatmul.mubr.f32.gmra.mrb[0].mxu0 %v3252
    %v3254 = vpop.f32.mrb[0].mxu0
    %v3255 = vadd.f32 %v3117, %v3254
    %v3256 = vpop.f32.mrb[0].mxu0
    %v3257 = vadd.f32 %v3119, %v3256
    %3258 = vmatprep.mubr.f32.mxu0 0.0
    %v3259 = vand.u32 %v1855, 4294901760
    %v3260 = vsub.f32 %v1855, %v3259
    %v3261 = vand.u32 %v3260, 4294901760
    %3262 = vmatmul.mubr.f32.gmra.mrb[0].mxu0 %v3261
    %v3263 = vpop.f32.mrb[0].mxu0
    %v3264 = vadd.f32 %v3125, %v3263
    %v3265 = vpop.f32.mrb[0].mxu0
    %v3266 = vadd.f32 %v3127, %v3265
    %3267 = vmatprep.mubr.f32.mxu0 0.0
    %v3268 = vand.u32 %v1858, 4294901760
    %v3269 = vsub.f32 %v1858, %v3268
    %v3270 = vand.u32 %v3269, 4294901760
    %3271 = vmatmul.mubr.f32.gmra.mrb[0].mxu0 %v3270
    %v3272 = vpop.f32.mrb[0].mxu0
    %v3273 = vadd.f32 %v3133, %v3272
    %v3274 = vpop.f32.mrb[0].mxu0
    %v3275 = vadd.f32 %v3135, %v3274
    %3276 = vmatprep.mubr.f32.mxu0 0.0
    %v3277 = vand.u32 %v1861, 4294901760
    %v3278 = vsub.f32 %v1861, %v3277
    %v3279 = vand.u32 %v3278, 4294901760
    %3280 = vmatmul.mubr.f32.gmra.mrb[0].mxu0 %v3279
    %v3281 = vpop.f32.mrb[0].mxu0
    %v3282 = vadd.f32 %v3141, %v3281
    %v3283 = vpop.f32.mrb[0].mxu0
    %v3284 = vadd.f32 %v3143, %v3283
    %3285 = vdwg.mxu0
    %v3286 = vand.u32 %v1412, 4294901760
    %v3287 = vsub.f32 %v1412, %v3286
    %v3288 = vand.u32 %v3287, 4294901760
    %3289 = vmatprep.subr.mxu0 %v3288
    %v3290 = vand.u32 %v1308, 4294901760
    %v3291 = vsub.f32 %v1308, %v3290
    %v3292 = vand.u32 %v3291, 4294901760
    %3293 = vmatpush1.msra.mxu0 %v3292
    %v3294 = vand.u32 %v1874, 4294901760
    %v3295 = vsub.f32 %v1874, %v3294
    %v3296 = vand.u32 %v3295, 4294901760
    %3297 = vmatprep.subr.mxu0 %v3296
    %v3298 = vand.u32 %v1871, 4294901760
    %v3299 = vsub.f32 %v1871, %v3298
    %v3300 = vand.u32 %v3299, 4294901760
    %3301 = vmatpush1.msra.mxu0 %v3300
    %3302 = vmatprep.subr.mxu0 0.0
    %3303 = vmatpush1.msra.mxu0 0.0
    %3304 = vmatprep.subr.mxu0 0.0
    %3305 = vmatpush1.msra.mxu0 0.0
    %3306 = vmatprep.subr.mxu0 0.0
    %3307 = vmatpush1.msra.mxu0 0.0
    %3308 = vmatprep.subr.mxu0 0.0
    %3309 = vmatpush1.msra.mxu0 0.0
    %3310 = vmatprep.subr.mxu0 0.0
    %3311 = vmatpush1.msra.mxu0 0.0
    %3312 = vmatprep.subr.mxu0 0.0
    %3313 = vmatpush1.msra.mxu0 0.0
    %3314 = vmatprep.subr.mxu0 0.0
    %3315 = vmatpush1.msra.mxu0 0.0
    %3316 = vmatprep.subr.mxu0 0.0
    %3317 = vmatpush1.msra.mxu0 0.0
    %3318 = vmatprep.subr.mxu0 0.0
    %3319 = vmatpush1.msra.mxu0 0.0
    %3320 = vmatprep.subr.mxu0 0.0
    %3321 = vmatpush1.msra.mxu0 0.0
    %3322 = vmatprep.subr.mxu0 0.0
    %3323 = vmatpush1.msra.mxu0 0.0
    %3324 = vmatprep.subr.mxu0 0.0
    %3325 = vmatpush1.msra.mxu0 0.0
    %3326 = vmatprep.subr.mxu0 0.0
    %3327 = vmatpush1.msra.mxu0 0.0
    %3328 = vmatprep.subr.mxu0 0.0
    %3329 = vmatpush1.msra.mxu0 0.0
    %3330 = vmatprep.subr.mxu0 0.0
    %3331 = vmatpush1.msra.mxu0 0.0
    %3332 = vmatprep.subr.mxu0 0.0
    %3333 = vmatpush1.msra.mxu0 0.0
    %3334 = vmatprep.subr.mxu0 0.0
    %3335 = vmatpush1.msra.mxu0 0.0
    %3336 = vmatprep.subr.mxu0 0.0
    %3337 = vmatpush1.msra.mxu0 0.0
    %3338 = vmatprep.subr.mxu0 0.0
    %3339 = vmatpush1.msra.mxu0 0.0
    %3340 = vmatprep.subr.mxu0 0.0
    %3341 = vmatpush1.msra.mxu0 0.0
    %3342 = vmatprep.subr.mxu0 0.0
    %3343 = vmatpush1.msra.mxu0 0.0
    %3344 = vmatprep.subr.mxu0 0.0
    %3345 = vmatpush1.msra.mxu0 0.0
    %3346 = vmatprep.subr.mxu0 0.0
    %3347 = vmatpush1.msra.mxu0 0.0
    %3348 = vmatprep.subr.mxu0 0.0
    %3349 = vmatpush1.msra.mxu0 0.0
    %3350 = vmatprep.subr.mxu0 0.0
    %3351 = vmatpush1.msra.mxu0 0.0
    %3352 = vmatprep.subr.mxu0 0.0
    %3353 = vmatpush1.msra.mxu0 0.0
    %3354 = vmatprep.subr.mxu0 0.0
    %3355 = vmatpush1.msra.mxu0 0.0
    %3356 = vmatprep.subr.mxu0 0.0
    %3357 = vmatpush1.msra.mxu0 0.0
    %3358 = vmatprep.subr.mxu0 0.0
    %3359 = vmatpush1.msra.mxu0 0.0
    %3360 = vmatprep.subr.mxu0 0.0
    %3361 = vmatpush1.msra.mxu0 0.0
    %3362 = vmatprep.mubr.f32.mxu0 0.0
    %v3363 = vand.u32 %v1840, 4294901760
    %3364 = vmatmul.mubr.f32.gmra.mrb[0].mxu0 %v3363
    %v3365 = vpop.f32.mrb[0].mxu0
    %v3366 = vadd.f32 %v3219, %v3365
    %v3367 = vpop.f32.mrb[0].mxu0
    %v3368 = vadd.f32 %v3221, %v3367
    %3369 = vmatprep.mubr.f32.mxu0 0.0
    %v3370 = vand.u32 %v1843, 4294901760
    %3371 = vmatmul.mubr.f32.gmra.mrb[0].mxu0 %v3370
    %v3372 = vpop.f32.mrb[0].mxu0
    %v3373 = vadd.f32 %v3228, %v3372
    %v3374 = vpop.f32.mrb[0].mxu0
    %v3375 = vadd.f32 %v3230, %v3374
    %3376 = vmatprep.mubr.f32.mxu0 0.0
    %v3377 = vand.u32 %v1846, 4294901760
    %3378 = vmatmul.mubr.f32.gmra.mrb[0].mxu0 %v3377
    %v3379 = vpop.f32.mrb[0].mxu0
    %v3380 = vadd.f32 %v3237, %v3379
    %v3381 = vpop.f32.mrb[0].mxu0
    %v3382 = vadd.f32 %v3239, %v3381
    %3383 = vmatprep.mubr.f32.mxu0 0.0
    %v3384 = vand.u32 %v1849, 4294901760
    %3385 = vmatmul.mubr.f32.gmra.mrb[0].mxu0 %v3384
    %v3386 = vpop.f32.mrb[0].mxu0
    %v3387 = vadd.f32 %v3246, %v3386
    %v3388 = vpop.f32.mrb[0].mxu0
    %v3389 = vadd.f32 %v3248, %v3388
    %3390 = vmatprep.mubr.f32.mxu0 0.0
    %v3391 = vand.u32 %v1852, 4294901760
    %3392 = vmatmul.mubr.f32.gmra.mrb[0].mxu0 %v3391
    %v3393 = vpop.f32.mrb[0].mxu0
    %v3394 = vadd.f32 %v3255, %v3393
    %v3395 = vpop.f32.mrb[0].mxu0
    %v3396 = vadd.f32 %v3257, %v3395
    %3397 = vmatprep.mubr.f32.mxu0 0.0
    %v3398 = vand.u32 %v1855, 4294901760
    %3399 = vmatmul.mubr.f32.gmra.mrb[0].mxu0 %v3398
    %v3400 = vpop.f32.mrb[0].mxu0
    %v3401 = vadd.f32 %v3264, %v3400
    %v3402 = vpop.f32.mrb[0].mxu0
    %v3403 = vadd.f32 %v3266, %v3402
    %3404 = vmatprep.mubr.f32.mxu0 0.0
    %v3405 = vand.u32 %v1858, 4294901760
    %3406 = vmatmul.mubr.f32.gmra.mrb[0].mxu0 %v3405
    %v3407 = vpop.f32.mrb[0].mxu0
    %v3408 = vadd.f32 %v3273, %v3407
    %v3409 = vpop.f32.mrb[0].mxu0
    %v3410 = vadd.f32 %v3275, %v3409
    %3411 = vmatprep.mubr.f32.mxu0 0.0
    %v3412 = vand.u32 %v1861, 4294901760
    %3413 = vmatmul.mubr.f32.gmra.mrb[0].mxu0 %v3412
    %v3414 = vpop.f32.mrb[0].mxu0
    %v3415 = vadd.f32 %v3282, %v3414
    %v3416 = vpop.f32.mrb[0].mxu0
    %v3417 = vadd.f32 %v3284, %v3416
    %3418 = vdwg.mxu0
    %v3419 = vand.u32 %v1412, 4294901760
    %3420 = vmatprep.subr.mxu0 %v3419
    %v3421 = vand.u32 %v1308, 4294901760
    %3422 = vmatpush1.msra.mxu0 %v3421
    %v3423 = vand.u32 %v1874, 4294901760
    %3424 = vmatprep.subr.mxu0 %v3423
    %v3425 = vand.u32 %v1871, 4294901760
    %3426 = vmatpush1.msra.mxu0 %v3425
    %3427 = vmatprep.subr.mxu0 0.0
    %3428 = vmatpush1.msra.mxu0 0.0
    %3429 = vmatprep.subr.mxu0 0.0
    %3430 = vmatpush1.msra.mxu0 0.0
    %3431 = vmatprep.subr.mxu0 0.0
    %3432 = vmatpush1.msra.mxu0 0.0
    %3433 = vmatprep.subr.mxu0 0.0
    %3434 = vmatpush1.msra.mxu0 0.0
    %3435 = vmatprep.subr.mxu0 0.0
    %3436 = vmatpush1.msra.mxu0 0.0
    %3437 = vmatprep.subr.mxu0 0.0
    %3438 = vmatpush1.msra.mxu0 0.0
    %3439 = vmatprep.subr.mxu0 0.0
    %3440 = vmatpush1.msra.mxu0 0.0
    %3441 = vmatprep.subr.mxu0 0.0
    %3442 = vmatpush1.msra.mxu0 0.0
    %3443 = vmatprep.subr.mxu0 0.0
    %3444 = vmatpush1.msra.mxu0 0.0
    %3445 = vmatprep.subr.mxu0 0.0
    %3446 = vmatpush1.msra.mxu0 0.0
    %3447 = vmatprep.subr.mxu0 0.0
    %3448 = vmatpush1.msra.mxu0 0.0
    %3449 = vmatprep.subr.mxu0 0.0
    %3450 = vmatpush1.msra.mxu0 0.0
    %3451 = vmatprep.subr.mxu0 0.0
    %3452 = vmatpush1.msra.mxu0 0.0
    %3453 = vmatprep.subr.mxu0 0.0
    %3454 = vmatpush1.msra.mxu0 0.0
    %3455 = vmatprep.subr.mxu0 0.0
    %3456 = vmatpush1.msra.mxu0 0.0
    %3457 = vmatprep.subr.mxu0 0.0
    %3458 = vmatpush1.msra.mxu0 0.0
    %3459 = vmatprep.subr.mxu0 0.0
    %3460 = vmatpush1.msra.mxu0 0.0
    %3461 = vmatprep.subr.mxu0 0.0
    %3462 = vmatpush1.msra.mxu0 0.0
    %3463 = vmatprep.subr.mxu0 0.0
    %3464 = vmatpush1.msra.mxu0 0.0
    %3465 = vmatprep.subr.mxu0 0.0
    %3466 = vmatpush1.msra.mxu0 0.0
    %3467 = vmatprep.subr.mxu0 0.0
    %3468 = vmatpush1.msra.mxu0 0.0
    %3469 = vmatprep.subr.mxu0 0.0
    %3470 = vmatpush1.msra.mxu0 0.0
    %3471 = vmatprep.subr.mxu0 0.0
    %3472 = vmatpush1.msra.mxu0 0.0
    %3473 = vmatprep.subr.mxu0 0.0
    %3474 = vmatpush1.msra.mxu0 0.0
    %3475 = vmatprep.subr.mxu0 0.0
    %3476 = vmatpush1.msra.mxu0 0.0
    %3477 = vmatprep.subr.mxu0 0.0
    %3478 = vmatpush1.msra.mxu0 0.0
    %3479 = vmatprep.subr.mxu0 0.0
    %3480 = vmatpush1.msra.mxu0 0.0
    %3481 = vmatprep.subr.mxu0 0.0
    %3482 = vmatpush1.msra.mxu0 0.0
    %3483 = vmatprep.subr.mxu0 0.0
    %3484 = vmatpush1.msra.mxu0 0.0
    %3485 = vmatprep.subr.mxu0 0.0
    %3486 = vmatpush1.msra.mxu0 0.0
    %3487 = vmatprep.mubr.f32.mxu0 0.0
    %v3488 = vand.u32 %v1840, 4294901760
    %3489 = vmatmul.mubr.f32.gmra.mrb[0].mxu0 %v3488
    %v3490 = vpop.f32.mrb[0].mxu0
    %v3491 = vadd.f32 %v3366, %v3490
    %v3492 = vpop.f32.mrb[0].mxu0
    %v3493 = vadd.f32 %v3368, %v3492
    %3494 = vmatprep.mubr.f32.mxu0 0.0
    %v3495 = vand.u32 %v1843, 4294901760
    %3496 = vmatmul.mubr.f32.gmra.mrb[0].mxu0 %v3495
    %v3497 = vpop.f32.mrb[0].mxu0
    %v3498 = vadd.f32 %v3373, %v3497
    %v3499 = vpop.f32.mrb[0].mxu0
    %v3500 = vadd.f32 %v3375, %v3499
    %3501 = vmatprep.mubr.f32.mxu0 0.0
    %v3502 = vand.u32 %v1846, 4294901760
    %3503 = vmatmul.mubr.f32.gmra.mrb[0].mxu0 %v3502
    %v3504 = vpop.f32.mrb[0].mxu0
    %v3505 = vadd.f32 %v3380, %v3504
    %v3506 = vpop.f32.mrb[0].mxu0
    %v3507 = vadd.f32 %v3382, %v3506
    %3508 = vmatprep.mubr.f32.mxu0 0.0
    %v3509 = vand.u32 %v1849, 4294901760
    %3510 = vmatmul.mubr.f32.gmra.mrb[0].mxu0 %v3509
    %v3511 = vpop.f32.mrb[0].mxu0
    %v3512 = vadd.f32 %v3387, %v3511
    %v3513 = vpop.f32.mrb[0].mxu0
    %v3514 = vadd.f32 %v3389, %v3513
    %3515 = vmatprep.mubr.f32.mxu0 0.0
    %v3516 = vand.u32 %v1852, 4294901760
    %3517 = vmatmul.mubr.f32.gmra.mrb[0].mxu0 %v3516
    %v3518 = vpop.f32.mrb[0].mxu0
    %v3519 = vadd.f32 %v3394, %v3518
    %v3520 = vpop.f32.mrb[0].mxu0
    %v3521 = vadd.f32 %v3396, %v3520
    %3522 = vmatprep.mubr.f32.mxu0 0.0
    %v3523 = vand.u32 %v1855, 4294901760
    %3524 = vmatmul.mubr.f32.gmra.mrb[0].mxu0 %v3523
    %v3525 = vpop.f32.mrb[0].mxu0
    %v3526 = vadd.f32 %v3401, %v3525
    %v3527 = vpop.f32.mrb[0].mxu0
    %v3528 = vadd.f32 %v3403, %v3527
    %3529 = vmatprep.mubr.f32.mxu0 0.0
    %v3530 = vand.u32 %v1858, 4294901760
    %3531 = vmatmul.mubr.f32.gmra.mrb[0].mxu0 %v3530
    %v3532 = vpop.f32.mrb[0].mxu0
    %v3533 = vadd.f32 %v3408, %v3532
    %v3534 = vpop.f32.mrb[0].mxu0
    %v3535 = vadd.f32 %v3410, %v3534
    %3536 = vmatprep.mubr.f32.mxu0 0.0
    %v3537 = vand.u32 %v1861, 4294901760
    %3538 = vmatmul.mubr.f32.gmra.mrb[0].mxu0 %v3537
    %v3539 = vpop.f32.mrb[0].mxu0
    %v3540 = vadd.f32 %v3415, %v3539
    %v3541 = vpop.f32.mrb[0].mxu0
    %v3542 = vadd.f32 %v3417, %v3541
    %3543 = vdwg.mxu0
    %v3545 = vsel %vm1838, %v937, 0
    %v3548 = vsel %vm1838, %v938, 0
    %v3551 = vsel %vm1838, %v939, 0
    %v3554 = vsel %vm1838, %v940, 0
    %v3557 = vsel %vm1838, %v941, 0
    %v3560 = vsel %vm1838, %v942, 0
    %v3563 = vsel %vm1838, %v943, 0
    %v3566 = vsel %vm1838, %v944, 0
    %v3569 = vsel %vm1863, %v624, 0
    %v3572 = vsel %vm1863, %v728, 0
    %v3575 = vsel %vm1863, %v832, 0
    %v3578 = vsel %vm1863, %v936, 0
    %v3580 = vand.u32 %v312, 4294901760
    %3581 = vmatprep.subr.mxu0 %v3580
    %v3582 = vand.u32 %v208, 4294901760
    %3583 = vmatpush1.msra.mxu0 %v3582
    %v3584 = vand.u32 %v3572, 4294901760
    %3585 = vmatprep.subr.mxu0 %v3584
    %v3586 = vand.u32 %v3569, 4294901760
    %3587 = vmatpush1.msra.mxu0 %v3586
    %3588 = vmatprep.subr.mxu0 0.0
    %3589 = vmatpush1.msra.mxu0 0.0
    %3590 = vmatprep.subr.mxu0 0.0
    %3591 = vmatpush1.msra.mxu0 0.0
    %3592 = vmatprep.subr.mxu0 0.0
    %3593 = vmatpush1.msra.mxu0 0.0
    %3594 = vmatprep.subr.mxu0 0.0
    %3595 = vmatpush1.msra.mxu0 0.0
    %3596 = vmatprep.subr.mxu0 0.0
    %3597 = vmatpush1.msra.mxu0 0.0
    %3598 = vmatprep.subr.mxu0 0.0
    %3599 = vmatpush1.msra.mxu0 0.0
    %3600 = vmatprep.subr.mxu0 0.0
    %3601 = vmatpush1.msra.mxu0 0.0
    %3602 = vmatprep.subr.mxu0 0.0
    %3603 = vmatpush1.msra.mxu0 0.0
    %3604 = vmatprep.subr.mxu0 0.0
    %3605 = vmatpush1.msra.mxu0 0.0
    %3606 = vmatprep.subr.mxu0 0.0
    %3607 = vmatpush1.msra.mxu0 0.0
    %3608 = vmatprep.subr.mxu0 0.0
    %3609 = vmatpush1.msra.mxu0 0.0
    %3610 = vmatprep.subr.mxu0 0.0
    %3611 = vmatpush1.msra.mxu0 0.0
    %3612 = vmatprep.subr.mxu0 0.0
    %3613 = vmatpush1.msra.mxu0 0.0
    %3614 = vmatprep.subr.mxu0 0.0
    %3615 = vmatpush1.msra.mxu0 0.0
    %3616 = vmatprep.subr.mxu0 0.0
    %3617 = vmatpush1.msra.mxu0 0.0
    %3618 = vmatprep.subr.mxu0 0.0
    %3619 = vmatpush1.msra.mxu0 0.0
    %3620 = vmatprep.subr.mxu0 0.0
    %3621 = vmatpush1.msra.mxu0 0.0
    %3622 = vmatprep.subr.mxu0 0.0
    %3623 = vmatpush1.msra.mxu0 0.0
    %3624 = vmatprep.subr.mxu0 0.0
    %3625 = vmatpush1.msra.mxu0 0.0
    %3626 = vmatprep.subr.mxu0 0.0
    %3627 = vmatpush1.msra.mxu0 0.0
    %3628 = vmatprep.subr.mxu0 0.0
    %3629 = vmatpush1.msra.mxu0 0.0
    %3630 = vmatprep.subr.mxu0 0.0
    %3631 = vmatpush1.msra.mxu0 0.0
    %3632 = vmatprep.subr.mxu0 0.0
    %3633 = vmatpush1.msra.mxu0 0.0
    %3634 = vmatprep.subr.mxu0 0.0
    %3635 = vmatpush1.msra.mxu0 0.0
    %3636 = vmatprep.subr.mxu0 0.0
    %3637 = vmatpush1.msra.mxu0 0.0
    %3638 = vmatprep.subr.mxu0 0.0
    %3639 = vmatpush1.msra.mxu0 0.0
    %3640 = vmatprep.subr.mxu0 0.0
    %3641 = vmatpush1.msra.mxu0 0.0
    %3642 = vmatprep.subr.mxu0 0.0
    %3643 = vmatpush1.msra.mxu0 0.0
    %3644 = vmatprep.subr.mxu0 0.0
    %3645 = vmatpush1.msra.mxu0 0.0
    %3646 = vmatprep.subr.mxu0 0.0
    %3647 = vmatpush1.msra.mxu0 0.0
    %3648 = vmatprep.mubr.f32.mxu0 0.0
    %v3649 = vand.u32 %v3545, 4294901760
    %v3650 = vsub.f32 %v3545, %v3649
    %v3651 = vand.u32 %v3650, 4294901760
    %v3652 = vsub.f32 %v3650, %v3651
    %v3653 = vand.u32 %v3652, 4294901760
    %3654 = vmatmul.mubr.f32.gmra.mrb[0].mxu0 %v3653
    %v3655 = vpop.f32.mrb[0].mxu0
    %v3656 = vadd.f32 %v2657, %v3655
    %v3657 = vpop.f32.mrb[0].mxu0
    %v3658 = vadd.f32 %v2659, %v3657
    %3659 = vmatprep.mubr.f32.mxu0 0.0
    %v3660 = vand.u32 %v3548, 4294901760
    %v3661 = vsub.f32 %v3548, %v3660
    %v3662 = vand.u32 %v3661, 4294901760
    %v3663 = vsub.f32 %v3661, %v3662
    %v3664 = vand.u32 %v3663, 4294901760
    %3665 = vmatmul.mubr.f32.gmra.mrb[0].mxu0 %v3664
    %v3666 = vpop.f32.mrb[0].mxu0
    %v3667 = vadd.f32 %v2664, %v3666
    %v3668 = vpop.f32.mrb[0].mxu0
    %v3669 = vadd.f32 %v2666, %v3668
    %3670 = vmatprep.mubr.f32.mxu0 0.0
    %v3671 = vand.u32 %v3551, 4294901760
    %v3672 = vsub.f32 %v3551, %v3671
    %v3673 = vand.u32 %v3672, 4294901760
    %v3674 = vsub.f32 %v3672, %v3673
    %v3675 = vand.u32 %v3674, 4294901760
    %3676 = vmatmul.mubr.f32.gmra.mrb[0].mxu0 %v3675
    %v3677 = vpop.f32.mrb[0].mxu0
    %v3678 = vadd.f32 %v2671, %v3677
    %v3679 = vpop.f32.mrb[0].mxu0
    %v3680 = vadd.f32 %v2673, %v3679
    %3681 = vmatprep.mubr.f32.mxu0 0.0
    %v3682 = vand.u32 %v3554, 4294901760
    %v3683 = vsub.f32 %v3554, %v3682
    %v3684 = vand.u32 %v3683, 4294901760
    %v3685 = vsub.f32 %v3683, %v3684
    %v3686 = vand.u32 %v3685, 4294901760
    %3687 = vmatmul.mubr.f32.gmra.mrb[0].mxu0 %v3686
    %v3688 = vpop.f32.mrb[0].mxu0
    %v3689 = vadd.f32 %v2678, %v3688
    %v3690 = vpop.f32.mrb[0].mxu0
    %v3691 = vadd.f32 %v2680, %v3690
    %3692 = vmatprep.mubr.f32.mxu0 0.0
    %v3693 = vand.u32 %v3557, 4294901760
    %v3694 = vsub.f32 %v3557, %v3693
    %v3695 = vand.u32 %v3694, 4294901760
    %v3696 = vsub.f32 %v3694, %v3695
    %v3697 = vand.u32 %v3696, 4294901760
    %3698 = vmatmul.mubr.f32.gmra.mrb[0].mxu0 %v3697
    %v3699 = vpop.f32.mrb[0].mxu0
    %v3700 = vadd.f32 %v2685, %v3699
    %v3701 = vpop.f32.mrb[0].mxu0
    %v3702 = vadd.f32 %v2687, %v3701
    %3703 = vmatprep.mubr.f32.mxu0 0.0
    %v3704 = vand.u32 %v3560, 4294901760
    %v3705 = vsub.f32 %v3560, %v3704
    %v3706 = vand.u32 %v3705, 4294901760
    %v3707 = vsub.f32 %v3705, %v3706
    %v3708 = vand.u32 %v3707, 4294901760
    %3709 = vmatmul.mubr.f32.gmra.mrb[0].mxu0 %v3708
    %v3710 = vpop.f32.mrb[0].mxu0
    %v3711 = vadd.f32 %v2692, %v3710
    %v3712 = vpop.f32.mrb[0].mxu0
    %v3713 = vadd.f32 %v2694, %v3712
    %3714 = vmatprep.mubr.f32.mxu0 0.0
    %v3715 = vand.u32 %v3563, 4294901760
    %v3716 = vsub.f32 %v3563, %v3715
    %v3717 = vand.u32 %v3716, 4294901760
    %v3718 = vsub.f32 %v3716, %v3717
    %v3719 = vand.u32 %v3718, 4294901760
    %3720 = vmatmul.mubr.f32.gmra.mrb[0].mxu0 %v3719
    %v3721 = vpop.f32.mrb[0].mxu0
    %v3722 = vadd.f32 %v2699, %v3721
    %v3723 = vpop.f32.mrb[0].mxu0
    %v3724 = vadd.f32 %v2701, %v3723
    %3725 = vmatprep.mubr.f32.mxu0 0.0
    %v3726 = vand.u32 %v3566, 4294901760
    %v3727 = vsub.f32 %v3566, %v3726
    %v3728 = vand.u32 %v3727, 4294901760
    %v3729 = vsub.f32 %v3727, %v3728
    %v3730 = vand.u32 %v3729, 4294901760
    %3731 = vmatmul.mubr.f32.gmra.mrb[0].mxu0 %v3730
    %v3732 = vpop.f32.mrb[0].mxu0
    %v3733 = vadd.f32 %v2706, %v3732
    %v3734 = vpop.f32.mrb[0].mxu0
    %v3735 = vadd.f32 %v2708, %v3734
    %3736 = vdwg.mxu0
    %v3737 = vand.u32 %v312, 4294901760
    %v3738 = vsub.f32 %v312, %v3737
    %v3739 = vand.u32 %v3738, 4294901760
    %v3740 = vsub.f32 %v3738, %v3739
    %v3741 = vand.u32 %v3740, 4294901760
    %3742 = vmatprep.subr.mxu0 %v3741
    %v3743 = vand.u32 %v208, 4294901760
    %v3744 = vsub.f32 %v208, %v3743
    %v3745 = vand.u32 %v3744, 4294901760
    %v3746 = vsub.f32 %v3744, %v3745
    %v3747 = vand.u32 %v3746, 4294901760
    %3748 = vmatpush1.msra.mxu0 %v3747
    %v3749 = vand.u32 %v3572, 4294901760
    %v3750 = vsub.f32 %v3572, %v3749
    %v3751 = vand.u32 %v3750, 4294901760
    %v3752 = vsub.f32 %v3750, %v3751
    %v3753 = vand.u32 %v3752, 4294901760
    %3754 = vmatprep.subr.mxu0 %v3753
    %v3755 = vand.u32 %v3569, 4294901760
    %v3756 = vsub.f32 %v3569, %v3755
    %v3757 = vand.u32 %v3756, 4294901760
    %v3758 = vsub.f32 %v3756, %v3757
    %v3759 = vand.u32 %v3758, 4294901760
    %3760 = vmatpush1.msra.mxu0 %v3759
    %3761 = vmatprep.subr.mxu0 0.0
    %3762 = vmatpush1.msra.mxu0 0.0
    %3763 = vmatprep.subr.mxu0 0.0
    %3764 = vmatpush1.msra.mxu0 0.0
    %3765 = vmatprep.subr.mxu0 0.0
    %3766 = vmatpush1.msra.mxu0 0.0
    %3767 = vmatprep.subr.mxu0 0.0
    %3768 = vmatpush1.msra.mxu0 0.0
    %3769 = vmatprep.subr.mxu0 0.0
    %3770 = vmatpush1.msra.mxu0 0.0
    %3771 = vmatprep.subr.mxu0 0.0
    %3772 = vmatpush1.msra.mxu0 0.0
    %3773 = vmatprep.subr.mxu0 0.0
    %3774 = vmatpush1.msra.mxu0 0.0
    %3775 = vmatprep.subr.mxu0 0.0
    %3776 = vmatpush1.msra.mxu0 0.0
    %3777 = vmatprep.subr.mxu0 0.0
    %3778 = vmatpush1.msra.mxu0 0.0
    %3779 = vmatprep.subr.mxu0 0.0
    %3780 = vmatpush1.msra.mxu0 0.0
    %3781 = vmatprep.subr.mxu0 0.0
    %3782 = vmatpush1.msra.mxu0 0.0
    %3783 = vmatprep.subr.mxu0 0.0
    %3784 = vmatpush1.msra.mxu0 0.0
    %3785 = vmatprep.subr.mxu0 0.0
    %3786 = vmatpush1.msra.mxu0 0.0
    %3787 = vmatprep.subr.mxu0 0.0
    %3788 = vmatpush1.msra.mxu0 0.0
    %3789 = vmatprep.subr.mxu0 0.0
    %3790 = vmatpush1.msra.mxu0 0.0
    %3791 = vmatprep.subr.mxu0 0.0
    %3792 = vmatpush1.msra.mxu0 0.0
    %3793 = vmatprep.subr.mxu0 0.0
    %3794 = vmatpush1.msra.mxu0 0.0
    %3795 = vmatprep.subr.mxu0 0.0
    %3796 = vmatpush1.msra.mxu0 0.0
    %3797 = vmatprep.subr.mxu0 0.0
    %3798 = vmatpush1.msra.mxu0 0.0
    %3799 = vmatprep.subr.mxu0 0.0
    %3800 = vmatpush1.msra.mxu0 0.0
    %3801 = vmatprep.subr.mxu0 0.0
    %3802 = vmatpush1.msra.mxu0 0.0
    %3803 = vmatprep.subr.mxu0 0.0
    %3804 = vmatpush1.msra.mxu0 0.0
    %3805 = vmatprep.subr.mxu0 0.0
    %3806 = vmatpush1.msra.mxu0 0.0
    %3807 = vmatprep.subr.mxu0 0.0
    %3808 = vmatpush1.msra.mxu0 0.0
    %3809 = vmatprep.subr.mxu0 0.0
    %3810 = vmatpush1.msra.mxu0 0.0
    %3811 = vmatprep.subr.mxu0 0.0
    %3812 = vmatpush1.msra.mxu0 0.0
    %3813 = vmatprep.subr.mxu0 0.0
    %3814 = vmatpush1.msra.mxu0 0.0
    %3815 = vmatprep.subr.mxu0 0.0
    %3816 = vmatpush1.msra.mxu0 0.0
    %3817 = vmatprep.subr.mxu0 0.0
    %3818 = vmatpush1.msra.mxu0 0.0
    %3819 = vmatprep.subr.mxu0 0.0
    %3820 = vmatpush1.msra.mxu0 0.0
    %3821 = vmatprep.mubr.f32.mxu0 0.0
    %v3822 = vand.u32 %v3545, 4294901760
    %3823 = vmatmul.mubr.f32.gmra.mrb[0].mxu0 %v3822
    %v3824 = vpop.f32.mrb[0].mxu0
    %v3825 = vadd.f32 %v3656, %v3824
    %v3826 = vpop.f32.mrb[0].mxu0
    %v3827 = vadd.f32 %v3658, %v3826
    %3828 = vmatprep.mubr.f32.mxu0 0.0
    %v3829 = vand.u32 %v3548, 4294901760
    %3830 = vmatmul.mubr.f32.gmra.mrb[0].mxu0 %v3829
    %v3831 = vpop.f32.mrb[0].mxu0
    %v3832 = vadd.f32 %v3667, %v3831
    %v3833 = vpop.f32.mrb[0].mxu0
    %v3834 = vadd.f32 %v3669, %v3833
    %3835 = vmatprep.mubr.f32.mxu0 0.0
    %v3836 = vand.u32 %v3551, 4294901760
    %3837 = vmatmul.mubr.f32.gmra.mrb[0].mxu0 %v3836
    %v3838 = vpop.f32.mrb[0].mxu0
    %v3839 = vadd.f32 %v3678, %v3838
    %v3840 = vpop.f32.mrb[0].mxu0
    %v3841 = vadd.f32 %v3680, %v3840
    %3842 = vmatprep.mubr.f32.mxu0 0.0
    %v3843 = vand.u32 %v3554, 4294901760
    %3844 = vmatmul.mubr.f32.gmra.mrb[0].mxu0 %v3843
    %v3845 = vpop.f32.mrb[0].mxu0
    %v3846 = vadd.f32 %v3689, %v3845
    %v3847 = vpop.f32.mrb[0].mxu0
    %v3848 = vadd.f32 %v3691, %v3847
    %3849 = vmatprep.mubr.f32.mxu0 0.0
    %v3850 = vand.u32 %v3557, 4294901760
    %3851 = vmatmul.mubr.f32.gmra.mrb[0].mxu0 %v3850
    %v3852 = vpop.f32.mrb[0].mxu0
    %v3853 = vadd.f32 %v3700, %v3852
    %v3854 = vpop.f32.mrb[0].mxu0
    %v3855 = vadd.f32 %v3702, %v3854
    %3856 = vmatprep.mubr.f32.mxu0 0.0
    %v3857 = vand.u32 %v3560, 4294901760
    %3858 = vmatmul.mubr.f32.gmra.mrb[0].mxu0 %v3857
    %v3859 = vpop.f32.mrb[0].mxu0
    %v3860 = vadd.f32 %v3711, %v3859
    %v3861 = vpop.f32.mrb[0].mxu0
    %v3862 = vadd.f32 %v3713, %v3861
    %3863 = vmatprep.mubr.f32.mxu0 0.0
    %v3864 = vand.u32 %v3563, 4294901760
    %3865 = vmatmul.mubr.f32.gmra.mrb[0].mxu0 %v3864
    %v3866 = vpop.f32.mrb[0].mxu0
    %v3867 = vadd.f32 %v3722, %v3866
    %v3868 = vpop.f32.mrb[0].mxu0
    %v3869 = vadd.f32 %v3724, %v3868
    %3870 = vmatprep.mubr.f32.mxu0 0.0
    %v3871 = vand.u32 %v3566, 4294901760
    %3872 = vmatmul.mubr.f32.gmra.mrb[0].mxu0 %v3871
    %v3873 = vpop.f32.mrb[0].mxu0
    %v3874 = vadd.f32 %v3733, %v3873
    %v3875 = vpop.f32.mrb[0].mxu0
    %v3876 = vadd.f32 %v3735, %v3875
    %3877 = vdwg.mxu0
    %v3878 = vand.u32 %v312, 4294901760
    %v3879 = vsub.f32 %v312, %v3878
    %3880 = vmatprep.subr.mxu0 %v3879
    %v3881 = vand.u32 %v208, 4294901760
    %v3882 = vsub.f32 %v208, %v3881
    %3883 = vmatpush1.msra.mxu0 %v3882
    %v3884 = vand.u32 %v3572, 4294901760
    %v3885 = vsub.f32 %v3572, %v3884
    %3886 = vmatprep.subr.mxu0 %v3885
    %v3887 = vand.u32 %v3569, 4294901760
    %v3888 = vsub.f32 %v3569, %v3887
    %3889 = vmatpush1.msra.mxu0 %v3888
    %3890 = vmatprep.subr.mxu0 0.0
    %3891 = vmatpush1.msra.mxu0 0.0
    %3892 = vmatprep.subr.mxu0 0.0
    %3893 = vmatpush1.msra.mxu0 0.0
    %3894 = vmatprep.subr.mxu0 0.0
    %3895 = vmatpush1.msra.mxu0 0.0
    %3896 = vmatprep.subr.mxu0 0.0
    %3897 = vmatpush1.msra.mxu0 0.0
    %3898 = vmatprep.subr.mxu0 0.0
    %3899 = vmatpush1.msra.mxu0 0.0
    %3900 = vmatprep.subr.mxu0 0.0
    %3901 = vmatpush1.msra.mxu0 0.0
    %3902 = vmatprep.subr.mxu0 0.0
    %3903 = vmatpush1.msra.mxu0 0.0
    %3904 = vmatprep.subr.mxu0 0.0
    %3905 = vmatpush1.msra.mxu0 0.0
    %3906 = vmatprep.subr.mxu0 0.0
    %3907 = vmatpush1.msra.mxu0 0.0
    %3908 = vmatprep.subr.mxu0 0.0
    %3909 = vmatpush1.msra.mxu0 0.0
    %3910 = vmatprep.subr.mxu0 0.0
    %3911 = vmatpush1.msra.mxu0 0.0
    %3912 = vmatprep.subr.mxu0 0.0
    %3913 = vmatpush1.msra.mxu0 0.0
    %3914 = vmatprep.subr.mxu0 0.0
    %3915 = vmatpush1.msra.mxu0 0.0
    %3916 = vmatprep.subr.mxu0 0.0
    %3917 = vmatpush1.msra.mxu0 0.0
    %3918 = vmatprep.subr.mxu0 0.0
    %3919 = vmatpush1.msra.mxu0 0.0
    %3920 = vmatprep.subr.mxu0 0.0
    %3921 = vmatpush1.msra.mxu0 0.0
    %3922 = vmatprep.subr.mxu0 0.0
    %3923 = vmatpush1.msra.mxu0 0.0
    %3924 = vmatprep.subr.mxu0 0.0
    %3925 = vmatpush1.msra.mxu0 0.0
    %3926 = vmatprep.subr.mxu0 0.0
    %3927 = vmatpush1.msra.mxu0 0.0
    %3928 = vmatprep.subr.mxu0 0.0
    %3929 = vmatpush1.msra.mxu0 0.0
    %3930 = vmatprep.subr.mxu0 0.0
    %3931 = vmatpush1.msra.mxu0 0.0
    %3932 = vmatprep.subr.mxu0 0.0
    %3933 = vmatpush1.msra.mxu0 0.0
    %3934 = vmatprep.subr.mxu0 0.0
    %3935 = vmatpush1.msra.mxu0 0.0
    %3936 = vmatprep.subr.mxu0 0.0
    %3937 = vmatpush1.msra.mxu0 0.0
    %3938 = vmatprep.subr.mxu0 0.0
    %3939 = vmatpush1.msra.mxu0 0.0
    %3940 = vmatprep.subr.mxu0 0.0
    %3941 = vmatpush1.msra.mxu0 0.0
    %3942 = vmatprep.subr.mxu0 0.0
    %3943 = vmatpush1.msra.mxu0 0.0
    %3944 = vmatprep.subr.mxu0 0.0
    %3945 = vmatpush1.msra.mxu0 0.0
    %3946 = vmatprep.subr.mxu0 0.0
    %3947 = vmatpush1.msra.mxu0 0.0
    %3948 = vmatprep.subr.mxu0 0.0
    %3949 = vmatpush1.msra.mxu0 0.0
    %3950 = vmatprep.mubr.f32.mxu0 0.0
    %v3951 = vand.u32 %v3545, 4294901760
    %v3952 = vsub.f32 %v3545, %v3951
    %3953 = vmatmul.mubr.f32.gmra.mrb[0].mxu0 %v3952
    %v3954 = vpop.f32.mrb[0].mxu0
    %v3955 = vadd.f32 %v3825, %v3954
    %v3956 = vpop.f32.mrb[0].mxu0
    %v3957 = vadd.f32 %v3827, %v3956
    %3958 = vmatprep.mubr.f32.mxu0 0.0
    %v3959 = vand.u32 %v3548, 4294901760
    %v3960 = vsub.f32 %v3548, %v3959
    %3961 = vmatmul.mubr.f32.gmra.mrb[0].mxu0 %v3960
    %v3962 = vpop.f32.mrb[0].mxu0
    %v3963 = vadd.f32 %v3832, %v3962
    %v3964 = vpop.f32.mrb[0].mxu0
    %v3965 = vadd.f32 %v3834, %v3964
    %3966 = vmatprep.mubr.f32.mxu0 0.0
    %v3967 = vand.u32 %v3551, 4294901760
    %v3968 = vsub.f32 %v3551, %v3967
    %3969 = vmatmul.mubr.f32.gmra.mrb[0].mxu0 %v3968
    %v3970 = vpop.f32.mrb[0].mxu0
    %v3971 = vadd.f32 %v3839, %v3970
    %v3972 = vpop.f32.mrb[0].mxu0
    %v3973 = vadd.f32 %v3841, %v3972
    %3974 = vmatprep.mubr.f32.mxu0 0.0
    %v3975 = vand.u32 %v3554, 4294901760
    %v3976 = vsub.f32 %v3554, %v3975
    %3977 = vmatmul.mubr.f32.gmra.mrb[0].mxu0 %v3976
    %v3978 = vpop.f32.mrb[0].mxu0
    %v3979 = vadd.f32 %v3846, %v3978
    %v3980 = vpop.f32.mrb[0].mxu0
    %v3981 = vadd.f32 %v3848, %v3980
    %3982 = vmatprep.mubr.f32.mxu0 0.0
    %v3983 = vand.u32 %v3557, 4294901760
    %v3984 = vsub.f32 %v3557, %v3983
    %3985 = vmatmul.mubr.f32.gmra.mrb[0].mxu0 %v3984
    %v3986 = vpop.f32.mrb[0].mxu0
    %v3987 = vadd.f32 %v3853, %v3986
    %v3988 = vpop.f32.mrb[0].mxu0
    %v3989 = vadd.f32 %v3855, %v3988
    %3990 = vmatprep.mubr.f32.mxu0 0.0
    %v3991 = vand.u32 %v3560, 4294901760
    %v3992 = vsub.f32 %v3560, %v3991
    %3993 = vmatmul.mubr.f32.gmra.mrb[0].mxu0 %v3992
    %v3994 = vpop.f32.mrb[0].mxu0
    %v3995 = vadd.f32 %v3860, %v3994
    %v3996 = vpop.f32.mrb[0].mxu0
    %v3997 = vadd.f32 %v3862, %v3996
    %3998 = vmatprep.mubr.f32.mxu0 0.0
    %v3999 = vand.u32 %v3563, 4294901760
    %v4000 = vsub.f32 %v3563, %v3999
    %4001 = vmatmul.mubr.f32.gmra.mrb[0].mxu0 %v4000
    %v4002 = vpop.f32.mrb[0].mxu0
    %v4003 = vadd.f32 %v3867, %v4002
    %v4004 = vpop.f32.mrb[0].mxu0
    %v4005 = vadd.f32 %v3869, %v4004
    %4006 = vmatprep.mubr.f32.mxu0 0.0
    %v4007 = vand.u32 %v3566, 4294901760
    %v4008 = vsub.f32 %v3566, %v4007
    %4009 = vmatmul.mubr.f32.gmra.mrb[0].mxu0 %v4008
    %v4010 = vpop.f32.mrb[0].mxu0
    %v4011 = vadd.f32 %v3874, %v4010
    %v4012 = vpop.f32.mrb[0].mxu0
    %v4013 = vadd.f32 %v3876, %v4012
    %4014 = vdwg.mxu0
    %v4015 = vand.u32 %v312, 4294901760
    %4016 = vmatprep.subr.mxu0 %v4015
    %v4017 = vand.u32 %v208, 4294901760
    %4018 = vmatpush1.msra.mxu0 %v4017
    %v4019 = vand.u32 %v3572, 4294901760
    %4020 = vmatprep.subr.mxu0 %v4019
    %v4021 = vand.u32 %v3569, 4294901760
    %4022 = vmatpush1.msra.mxu0 %v4021
    %4023 = vmatprep.subr.mxu0 0.0
    %4024 = vmatpush1.msra.mxu0 0.0
    %4025 = vmatprep.subr.mxu0 0.0
    %4026 = vmatpush1.msra.mxu0 0.0
    %4027 = vmatprep.subr.mxu0 0.0
    %4028 = vmatpush1.msra.mxu0 0.0
    %4029 = vmatprep.subr.mxu0 0.0
    %4030 = vmatpush1.msra.mxu0 0.0
    %4031 = vmatprep.subr.mxu0 0.0
    %4032 = vmatpush1.msra.mxu0 0.0
    %4033 = vmatprep.subr.mxu0 0.0
    %4034 = vmatpush1.msra.mxu0 0.0
    %4035 = vmatprep.subr.mxu0 0.0
    %4036 = vmatpush1.msra.mxu0 0.0
    %4037 = vmatprep.subr.mxu0 0.0
    %4038 = vmatpush1.msra.mxu0 0.0
    %4039 = vmatprep.subr.mxu0 0.0
    %4040 = vmatpush1.msra.mxu0 0.0
    %4041 = vmatprep.subr.mxu0 0.0
    %4042 = vmatpush1.msra.mxu0 0.0
    %4043 = vmatprep.subr.mxu0 0.0
    %4044 = vmatpush1.msra.mxu0 0.0
    %4045 = vmatprep.subr.mxu0 0.0
    %4046 = vmatpush1.msra.mxu0 0.0
    %4047 = vmatprep.subr.mxu0 0.0
    %4048 = vmatpush1.msra.mxu0 0.0
    %4049 = vmatprep.subr.mxu0 0.0
    %4050 = vmatpush1.msra.mxu0 0.0
    %4051 = vmatprep.subr.mxu0 0.0
    %4052 = vmatpush1.msra.mxu0 0.0
    %4053 = vmatprep.subr.mxu0 0.0
    %4054 = vmatpush1.msra.mxu0 0.0
    %4055 = vmatprep.subr.mxu0 0.0
    %4056 = vmatpush1.msra.mxu0 0.0
    %4057 = vmatprep.subr.mxu0 0.0
    %4058 = vmatpush1.msra.mxu0 0.0
    %4059 = vmatprep.subr.mxu0 0.0
    %4060 = vmatpush1.msra.mxu0 0.0
    %4061 = vmatprep.subr.mxu0 0.0
    %4062 = vmatpush1.msra.mxu0 0.0
    %4063 = vmatprep.subr.mxu0 0.0
    %4064 = vmatpush1.msra.mxu0 0.0
    %4065 = vmatprep.subr.mxu0 0.0
    %4066 = vmatpush1.msra.mxu0 0.0
    %4067 = vmatprep.subr.mxu0 0.0
    %4068 = vmatpush1.msra.mxu0 0.0
    %4069 = vmatprep.subr.mxu0 0.0
    %4070 = vmatpush1.msra.mxu0 0.0
    %4071 = vmatprep.subr.mxu0 0.0
    %4072 = vmatpush1.msra.mxu0 0.0
    %4073 = vmatprep.subr.mxu0 0.0
    %4074 = vmatpush1.msra.mxu0 0.0
    %4075 = vmatprep.subr.mxu0 0.0
    %4076 = vmatpush1.msra.mxu0 0.0
    %4077 = vmatprep.subr.mxu0 0.0
    %4078 = vmatpush1.msra.mxu0 0.0
    %4079 = vmatprep.subr.mxu0 0.0
    %4080 = vmatpush1.msra.mxu0 0.0
    %4081 = vmatprep.subr.mxu0 0.0
    %4082 = vmatpush1.msra.mxu0 0.0
    %4083 = vmatprep.mubr.f32.mxu0 0.0
    %v4084 = vand.u32 %v3545, 4294901760
    %v4085 = vsub.f32 %v3545, %v4084
    %v4086 = vand.u32 %v4085, 4294901760
    %4087 = vmatmul.mubr.f32.gmra.mrb[0].mxu0 %v4086
    %v4088 = vpop.f32.mrb[0].mxu0
    %v4089 = vadd.f32 %v3955, %v4088
    %v4090 = vpop.f32.mrb[0].mxu0
    %v4091 = vadd.f32 %v3957, %v4090
    %4092 = vmatprep.mubr.f32.mxu0 0.0
    %v4093 = vand.u32 %v3548, 4294901760
    %v4094 = vsub.f32 %v3548, %v4093
    %v4095 = vand.u32 %v4094, 4294901760
    %4096 = vmatmul.mubr.f32.gmra.mrb[0].mxu0 %v4095
    %v4097 = vpop.f32.mrb[0].mxu0
    %v4098 = vadd.f32 %v3963, %v4097
    %v4099 = vpop.f32.mrb[0].mxu0
    %v4100 = vadd.f32 %v3965, %v4099
    %4101 = vmatprep.mubr.f32.mxu0 0.0
    %v4102 = vand.u32 %v3551, 4294901760
    %v4103 = vsub.f32 %v3551, %v4102
    %v4104 = vand.u32 %v4103, 4294901760
    %4105 = vmatmul.mubr.f32.gmra.mrb[0].mxu0 %v4104
    %v4106 = vpop.f32.mrb[0].mxu0
    %v4107 = vadd.f32 %v3971, %v4106
    %v4108 = vpop.f32.mrb[0].mxu0
    %v4109 = vadd.f32 %v3973, %v4108
    %4110 = vmatprep.mubr.f32.mxu0 0.0
    %v4111 = vand.u32 %v3554, 4294901760
    %v4112 = vsub.f32 %v3554, %v4111
    %v4113 = vand.u32 %v4112, 4294901760
    %4114 = vmatmul.mubr.f32.gmra.mrb[0].mxu0 %v4113
    %v4115 = vpop.f32.mrb[0].mxu0
    %v4116 = vadd.f32 %v3979, %v4115
    %v4117 = vpop.f32.mrb[0].mxu0
    %v4118 = vadd.f32 %v3981, %v4117
    %4119 = vmatprep.mubr.f32.mxu0 0.0
    %v4120 = vand.u32 %v3557, 4294901760
    %v4121 = vsub.f32 %v3557, %v4120
    %v4122 = vand.u32 %v4121, 4294901760
    %4123 = vmatmul.mubr.f32.gmra.mrb[0].mxu0 %v4122
    %v4124 = vpop.f32.mrb[0].mxu0
    %v4125 = vadd.f32 %v3987, %v4124
    %v4126 = vpop.f32.mrb[0].mxu0
    %v4127 = vadd.f32 %v3989, %v4126
    %4128 = vmatprep.mubr.f32.mxu0 0.0
    %v4129 = vand.u32 %v3560, 4294901760
    %v4130 = vsub.f32 %v3560, %v4129
    %v4131 = vand.u32 %v4130, 4294901760
    %4132 = vmatmul.mubr.f32.gmra.mrb[0].mxu0 %v4131
    %v4133 = vpop.f32.mrb[0].mxu0
    %v4134 = vadd.f32 %v3995, %v4133
    %v4135 = vpop.f32.mrb[0].mxu0
    %v4136 = vadd.f32 %v3997, %v4135
    %4137 = vmatprep.mubr.f32.mxu0 0.0
    %v4138 = vand.u32 %v3563, 4294901760
    %v4139 = vsub.f32 %v3563, %v4138
    %v4140 = vand.u32 %v4139, 4294901760
    %4141 = vmatmul.mubr.f32.gmra.mrb[0].mxu0 %v4140
    %v4142 = vpop.f32.mrb[0].mxu0
    %v4143 = vadd.f32 %v4003, %v4142
    %v4144 = vpop.f32.mrb[0].mxu0
    %v4145 = vadd.f32 %v4005, %v4144
    %4146 = vmatprep.mubr.f32.mxu0 0.0
    %v4147 = vand.u32 %v3566, 4294901760
    %v4148 = vsub.f32 %v3566, %v4147
    %v4149 = vand.u32 %v4148, 4294901760
    %4150 = vmatmul.mubr.f32.gmra.mrb[0].mxu0 %v4149
    %v4151 = vpop.f32.mrb[0].mxu0
    %v4152 = vadd.f32 %v4011, %v4151
    %v4153 = vpop.f32.mrb[0].mxu0
    %v4154 = vadd.f32 %v4013, %v4153
    %4155 = vdwg.mxu0
    %v4156 = vand.u32 %v312, 4294901760
    %v4157 = vsub.f32 %v312, %v4156
    %v4158 = vand.u32 %v4157, 4294901760
    %4159 = vmatprep.subr.mxu0 %v4158
    %v4160 = vand.u32 %v208, 4294901760
    %v4161 = vsub.f32 %v208, %v4160
    %v4162 = vand.u32 %v4161, 4294901760
    %4163 = vmatpush1.msra.mxu0 %v4162
    %v4164 = vand.u32 %v3572, 4294901760
    %v4165 = vsub.f32 %v3572, %v4164
    %v4166 = vand.u32 %v4165, 4294901760
    %4167 = vmatprep.subr.mxu0 %v4166
    %v4168 = vand.u32 %v3569, 4294901760
    %v4169 = vsub.f32 %v3569, %v4168
    %v4170 = vand.u32 %v4169, 4294901760
    %4171 = vmatpush1.msra.mxu0 %v4170
    %4172 = vmatprep.subr.mxu0 0.0
    %4173 = vmatpush1.msra.mxu0 0.0
    %4174 = vmatprep.subr.mxu0 0.0
    %4175 = vmatpush1.msra.mxu0 0.0
    %4176 = vmatprep.subr.mxu0 0.0
    %4177 = vmatpush1.msra.mxu0 0.0
    %4178 = vmatprep.subr.mxu0 0.0
    %4179 = vmatpush1.msra.mxu0 0.0
    %4180 = vmatprep.subr.mxu0 0.0
    %4181 = vmatpush1.msra.mxu0 0.0
    %4182 = vmatprep.subr.mxu0 0.0
    %4183 = vmatpush1.msra.mxu0 0.0
    %4184 = vmatprep.subr.mxu0 0.0
    %4185 = vmatpush1.msra.mxu0 0.0
    %4186 = vmatprep.subr.mxu0 0.0
    %4187 = vmatpush1.msra.mxu0 0.0
    %4188 = vmatprep.subr.mxu0 0.0
    %4189 = vmatpush1.msra.mxu0 0.0
    %4190 = vmatprep.subr.mxu0 0.0
    %4191 = vmatpush1.msra.mxu0 0.0
    %4192 = vmatprep.subr.mxu0 0.0
    %4193 = vmatpush1.msra.mxu0 0.0
    %4194 = vmatprep.subr.mxu0 0.0
    %4195 = vmatpush1.msra.mxu0 0.0
    %4196 = vmatprep.subr.mxu0 0.0
    %4197 = vmatpush1.msra.mxu0 0.0
    %4198 = vmatprep.subr.mxu0 0.0
    %4199 = vmatpush1.msra.mxu0 0.0
    %4200 = vmatprep.subr.mxu0 0.0
    %4201 = vmatpush1.msra.mxu0 0.0
    %4202 = vmatprep.subr.mxu0 0.0
    %4203 = vmatpush1.msra.mxu0 0.0
    %4204 = vmatprep.subr.mxu0 0.0
    %4205 = vmatpush1.msra.mxu0 0.0
    %4206 = vmatprep.subr.mxu0 0.0
    %4207 = vmatpush1.msra.mxu0 0.0
    %4208 = vmatprep.subr.mxu0 0.0
    %4209 = vmatpush1.msra.mxu0 0.0
    %4210 = vmatprep.subr.mxu0 0.0
    %4211 = vmatpush1.msra.mxu0 0.0
    %4212 = vmatprep.subr.mxu0 0.0
    %4213 = vmatpush1.msra.mxu0 0.0
    %4214 = vmatprep.subr.mxu0 0.0
    %4215 = vmatpush1.msra.mxu0 0.0
    %4216 = vmatprep.subr.mxu0 0.0
    %4217 = vmatpush1.msra.mxu0 0.0
    %4218 = vmatprep.subr.mxu0 0.0
    %4219 = vmatpush1.msra.mxu0 0.0
    %4220 = vmatprep.subr.mxu0 0.0
    %4221 = vmatpush1.msra.mxu0 0.0
    %4222 = vmatprep.subr.mxu0 0.0
    %4223 = vmatpush1.msra.mxu0 0.0
    %4224 = vmatprep.subr.mxu0 0.0
    %4225 = vmatpush1.msra.mxu0 0.0
    %4226 = vmatprep.subr.mxu0 0.0
    %4227 = vmatpush1.msra.mxu0 0.0
    %4228 = vmatprep.subr.mxu0 0.0
    %4229 = vmatpush1.msra.mxu0 0.0
    %4230 = vmatprep.subr.mxu0 0.0
    %4231 = vmatpush1.msra.mxu0 0.0
    %4232 = vmatprep.mubr.f32.mxu0 0.0
    %v4233 = vand.u32 %v3545, 4294901760
    %4234 = vmatmul.mubr.f32.gmra.mrb[0].mxu0 %v4233
    %v4235 = vpop.f32.mrb[0].mxu0
    %v4236 = vadd.f32 %v4089, %v4235
    %v4237 = vpop.f32.mrb[0].mxu0
    %v4238 = vadd.f32 %v4091, %v4237
    %4239 = vmatprep.mubr.f32.mxu0 0.0
    %v4240 = vand.u32 %v3548, 4294901760
    %4241 = vmatmul.mubr.f32.gmra.mrb[0].mxu0 %v4240
    %v4242 = vpop.f32.mrb[0].mxu0
    %v4243 = vadd.f32 %v4098, %v4242
    %v4244 = vpop.f32.mrb[0].mxu0
    %v4245 = vadd.f32 %v4100, %v4244
    %4246 = vmatprep.mubr.f32.mxu0 0.0
    %v4247 = vand.u32 %v3551, 4294901760
    %4248 = vmatmul.mubr.f32.gmra.mrb[0].mxu0 %v4247
    %v4249 = vpop.f32.mrb[0].mxu0
    %v4250 = vadd.f32 %v4107, %v4249
    %v4251 = vpop.f32.mrb[0].mxu0
    %v4252 = vadd.f32 %v4109, %v4251
    %4253 = vmatprep.mubr.f32.mxu0 0.0
    %v4254 = vand.u32 %v3554, 4294901760
    %4255 = vmatmul.mubr.f32.gmra.mrb[0].mxu0 %v4254
    %v4256 = vpop.f32.mrb[0].mxu0
    %v4257 = vadd.f32 %v4116, %v4256
    %v4258 = vpop.f32.mrb[0].mxu0
    %v4259 = vadd.f32 %v4118, %v4258
    %4260 = vmatprep.mubr.f32.mxu0 0.0
    %v4261 = vand.u32 %v3557, 4294901760
    %4262 = vmatmul.mubr.f32.gmra.mrb[0].mxu0 %v4261
    %v4263 = vpop.f32.mrb[0].mxu0
    %v4264 = vadd.f32 %v4125, %v4263
    %v4265 = vpop.f32.mrb[0].mxu0
    %v4266 = vadd.f32 %v4127, %v4265
    %4267 = vmatprep.mubr.f32.mxu0 0.0
    %v4268 = vand.u32 %v3560, 4294901760
    %4269 = vmatmul.mubr.f32.gmra.mrb[0].mxu0 %v4268
    %v4270 = vpop.f32.mrb[0].mxu0
    %v4271 = vadd.f32 %v4134, %v4270
    %v4272 = vpop.f32.mrb[0].mxu0
    %v4273 = vadd.f32 %v4136, %v4272
    %4274 = vmatprep.mubr.f32.mxu0 0.0
    %v4275 = vand.u32 %v3563, 4294901760
    %4276 = vmatmul.mubr.f32.gmra.mrb[0].mxu0 %v4275
    %v4277 = vpop.f32.mrb[0].mxu0
    %v4278 = vadd.f32 %v4143, %v4277
    %v4279 = vpop.f32.mrb[0].mxu0
    %v4280 = vadd.f32 %v4145, %v4279
    %4281 = vmatprep.mubr.f32.mxu0 0.0
    %v4282 = vand.u32 %v3566, 4294901760
    %4283 = vmatmul.mubr.f32.gmra.mrb[0].mxu0 %v4282
    %v4284 = vpop.f32.mrb[0].mxu0
    %v4285 = vadd.f32 %v4152, %v4284
    %v4286 = vpop.f32.mrb[0].mxu0
    %v4287 = vadd.f32 %v4154, %v4286
    %4288 = vdwg.mxu0
    %v4289 = vand.u32 %v312, 4294901760
    %4290 = vmatprep.subr.mxu0 %v4289
    %v4291 = vand.u32 %v208, 4294901760
    %4292 = vmatpush1.msra.mxu0 %v4291
    %v4293 = vand.u32 %v3572, 4294901760
    %4294 = vmatprep.subr.mxu0 %v4293
    %v4295 = vand.u32 %v3569, 4294901760
    %4296 = vmatpush1.msra.mxu0 %v4295
    %4297 = vmatprep.subr.mxu0 0.0
    %4298 = vmatpush1.msra.mxu0 0.0
    %4299 = vmatprep.subr.mxu0 0.0
    %4300 = vmatpush1.msra.mxu0 0.0
    %4301 = vmatprep.subr.mxu0 0.0
    %4302 = vmatpush1.msra.mxu0 0.0
    %4303 = vmatprep.subr.mxu0 0.0
    %4304 = vmatpush1.msra.mxu0 0.0
    %4305 = vmatprep.subr.mxu0 0.0
    %4306 = vmatpush1.msra.mxu0 0.0
    %4307 = vmatprep.subr.mxu0 0.0
    %4308 = vmatpush1.msra.mxu0 0.0
    %4309 = vmatprep.subr.mxu0 0.0
    %4310 = vmatpush1.msra.mxu0 0.0
    %4311 = vmatprep.subr.mxu0 0.0
    %4312 = vmatpush1.msra.mxu0 0.0
    %4313 = vmatprep.subr.mxu0 0.0
    %4314 = vmatpush1.msra.mxu0 0.0
    %4315 = vmatprep.subr.mxu0 0.0
    %4316 = vmatpush1.msra.mxu0 0.0
    %4317 = vmatprep.subr.mxu0 0.0
    %4318 = vmatpush1.msra.mxu0 0.0
    %4319 = vmatprep.subr.mxu0 0.0
    %4320 = vmatpush1.msra.mxu0 0.0
    %4321 = vmatprep.subr.mxu0 0.0
    %4322 = vmatpush1.msra.mxu0 0.0
    %4323 = vmatprep.subr.mxu0 0.0
    %4324 = vmatpush1.msra.mxu0 0.0
    %4325 = vmatprep.subr.mxu0 0.0
    %4326 = vmatpush1.msra.mxu0 0.0
    %4327 = vmatprep.subr.mxu0 0.0
    %4328 = vmatpush1.msra.mxu0 0.0
    %4329 = vmatprep.subr.mxu0 0.0
    %4330 = vmatpush1.msra.mxu0 0.0
    %4331 = vmatprep.subr.mxu0 0.0
    %4332 = vmatpush1.msra.mxu0 0.0
    %4333 = vmatprep.subr.mxu0 0.0
    %4334 = vmatpush1.msra.mxu0 0.0
    %4335 = vmatprep.subr.mxu0 0.0
    %4336 = vmatpush1.msra.mxu0 0.0
    %4337 = vmatprep.subr.mxu0 0.0
    %4338 = vmatpush1.msra.mxu0 0.0
    %4339 = vmatprep.subr.mxu0 0.0
    %4340 = vmatpush1.msra.mxu0 0.0
    %4341 = vmatprep.subr.mxu0 0.0
    %4342 = vmatpush1.msra.mxu0 0.0
    %4343 = vmatprep.subr.mxu0 0.0
    %4344 = vmatpush1.msra.mxu0 0.0
    %4345 = vmatprep.subr.mxu0 0.0
    %4346 = vmatpush1.msra.mxu0 0.0
    %4347 = vmatprep.subr.mxu0 0.0
    %4348 = vmatpush1.msra.mxu0 0.0
    %4349 = vmatprep.subr.mxu0 0.0
    %4350 = vmatpush1.msra.mxu0 0.0
    %4351 = vmatprep.subr.mxu0 0.0
    %4352 = vmatpush1.msra.mxu0 0.0
    %4353 = vmatprep.subr.mxu0 0.0
    %4354 = vmatpush1.msra.mxu0 0.0
    %4355 = vmatprep.subr.mxu0 0.0
    %4356 = vmatpush1.msra.mxu0 0.0
    %4357 = vmatprep.mubr.f32.mxu0 0.0
    %v4358 = vand.u32 %v3545, 4294901760
    %4359 = vmatmul.mubr.f32.gmra.mrb[0].mxu0 %v4358
    %v4360 = vpop.f32.mrb[0].mxu0
    %v4361 = vadd.f32 %v4236, %v4360
    %v4362 = vpop.f32.mrb[0].mxu0
    %v4363 = vadd.f32 %v4238, %v4362
    %4364 = vmatprep.mubr.f32.mxu0 0.0
    %v4365 = vand.u32 %v3548, 4294901760
    %4366 = vmatmul.mubr.f32.gmra.mrb[0].mxu0 %v4365
    %v4367 = vpop.f32.mrb[0].mxu0
    %v4368 = vadd.f32 %v4243, %v4367
    %v4369 = vpop.f32.mrb[0].mxu0
    %v4370 = vadd.f32 %v4245, %v4369
    %4371 = vmatprep.mubr.f32.mxu0 0.0
    %v4372 = vand.u32 %v3551, 4294901760
    %4373 = vmatmul.mubr.f32.gmra.mrb[0].mxu0 %v4372
    %v4374 = vpop.f32.mrb[0].mxu0
    %v4375 = vadd.f32 %v4250, %v4374
    %v4376 = vpop.f32.mrb[0].mxu0
    %v4377 = vadd.f32 %v4252, %v4376
    %4378 = vmatprep.mubr.f32.mxu0 0.0
    %v4379 = vand.u32 %v3554, 4294901760
    %4380 = vmatmul.mubr.f32.gmra.mrb[0].mxu0 %v4379
    %v4381 = vpop.f32.mrb[0].mxu0
    %v4382 = vadd.f32 %v4257, %v4381
    %v4383 = vpop.f32.mrb[0].mxu0
    %v4384 = vadd.f32 %v4259, %v4383
    %4385 = vmatprep.mubr.f32.mxu0 0.0
    %v4386 = vand.u32 %v3557, 4294901760
    %4387 = vmatmul.mubr.f32.gmra.mrb[0].mxu0 %v4386
    %v4388 = vpop.f32.mrb[0].mxu0
    %v4389 = vadd.f32 %v4264, %v4388
    %v4390 = vpop.f32.mrb[0].mxu0
    %v4391 = vadd.f32 %v4266, %v4390
    %4392 = vmatprep.mubr.f32.mxu0 0.0
    %v4393 = vand.u32 %v3560, 4294901760
    %4394 = vmatmul.mubr.f32.gmra.mrb[0].mxu0 %v4393
    %v4395 = vpop.f32.mrb[0].mxu0
    %v4396 = vadd.f32 %v4271, %v4395
    %v4397 = vpop.f32.mrb[0].mxu0
    %v4398 = vadd.f32 %v4273, %v4397
    %4399 = vmatprep.mubr.f32.mxu0 0.0
    %v4400 = vand.u32 %v3563, 4294901760
    %4401 = vmatmul.mubr.f32.gmra.mrb[0].mxu0 %v4400
    %v4402 = vpop.f32.mrb[0].mxu0
    %v4403 = vadd.f32 %v4278, %v4402
    %v4404 = vpop.f32.mrb[0].mxu0
    %v4405 = vadd.f32 %v4280, %v4404
    %4406 = vmatprep.mubr.f32.mxu0 0.0
    %v4407 = vand.u32 %v3566, 4294901760
    %4408 = vmatmul.mubr.f32.gmra.mrb[0].mxu0 %v4407
    %v4409 = vpop.f32.mrb[0].mxu0
    %v4410 = vadd.f32 %v4285, %v4409
    %v4411 = vpop.f32.mrb[0].mxu0
    %v4412 = vadd.f32 %v4287, %v4411
    %4413 = vdwg.mxu0
    %v4414 = vand.u32 %v520, 4294901760
    %4415 = vmatprep.subr.mxu0 %v4414
    %v4416 = vand.u32 %v416, 4294901760
    %4417 = vmatpush1.msra.mxu0 %v4416
    %v4418 = vand.u32 %v3578, 4294901760
    %4419 = vmatprep.subr.mxu0 %v4418
    %v4420 = vand.u32 %v3575, 4294901760
    %4421 = vmatpush1.msra.mxu0 %v4420
    %4422 = vmatprep.subr.mxu0 0.0
    %4423 = vmatpush1.msra.mxu0 0.0
    %4424 = vmatprep.subr.mxu0 0.0
    %4425 = vmatpush1.msra.mxu0 0.0
    %4426 = vmatprep.subr.mxu0 0.0
    %4427 = vmatpush1.msra.mxu0 0.0
    %4428 = vmatprep.subr.mxu0 0.0
    %4429 = vmatpush1.msra.mxu0 0.0
    %4430 = vmatprep.subr.mxu0 0.0
    %4431 = vmatpush1.msra.mxu0 0.0
    %4432 = vmatprep.subr.mxu0 0.0
    %4433 = vmatpush1.msra.mxu0 0.0
    %4434 = vmatprep.subr.mxu0 0.0
    %4435 = vmatpush1.msra.mxu0 0.0
    %4436 = vmatprep.subr.mxu0 0.0
    %4437 = vmatpush1.msra.mxu0 0.0
    %4438 = vmatprep.subr.mxu0 0.0
    %4439 = vmatpush1.msra.mxu0 0.0
    %4440 = vmatprep.subr.mxu0 0.0
    %4441 = vmatpush1.msra.mxu0 0.0
    %4442 = vmatprep.subr.mxu0 0.0
    %4443 = vmatpush1.msra.mxu0 0.0
    %4444 = vmatprep.subr.mxu0 0.0
    %4445 = vmatpush1.msra.mxu0 0.0
    %4446 = vmatprep.subr.mxu0 0.0
    %4447 = vmatpush1.msra.mxu0 0.0
    %4448 = vmatprep.subr.mxu0 0.0
    %4449 = vmatpush1.msra.mxu0 0.0
    %4450 = vmatprep.subr.mxu0 0.0
    %4451 = vmatpush1.msra.mxu0 0.0
    %4452 = vmatprep.subr.mxu0 0.0
    %4453 = vmatpush1.msra.mxu0 0.0
    %4454 = vmatprep.subr.mxu0 0.0
    %4455 = vmatpush1.msra.mxu0 0.0
    %4456 = vmatprep.subr.mxu0 0.0
    %4457 = vmatpush1.msra.mxu0 0.0
    %4458 = vmatprep.subr.mxu0 0.0
    %4459 = vmatpush1.msra.mxu0 0.0
    %4460 = vmatprep.subr.mxu0 0.0
    %4461 = vmatpush1.msra.mxu0 0.0
    %4462 = vmatprep.subr.mxu0 0.0
    %4463 = vmatpush1.msra.mxu0 0.0
    %4464 = vmatprep.subr.mxu0 0.0
    %4465 = vmatpush1.msra.mxu0 0.0
    %4466 = vmatprep.subr.mxu0 0.0
    %4467 = vmatpush1.msra.mxu0 0.0
    %4468 = vmatprep.subr.mxu0 0.0
    %4469 = vmatpush1.msra.mxu0 0.0
    %4470 = vmatprep.subr.mxu0 0.0
    %4471 = vmatpush1.msra.mxu0 0.0
    %4472 = vmatprep.subr.mxu0 0.0
    %4473 = vmatpush1.msra.mxu0 0.0
    %4474 = vmatprep.subr.mxu0 0.0
    %4475 = vmatpush1.msra.mxu0 0.0
    %4476 = vmatprep.subr.mxu0 0.0
    %4477 = vmatpush1.msra.mxu0 0.0
    %4478 = vmatprep.subr.mxu0 0.0
    %4479 = vmatpush1.msra.mxu0 0.0
    %4480 = vmatprep.subr.mxu0 0.0
    %4481 = vmatpush1.msra.mxu0 0.0
    %4482 = vmatprep.mubr.f32.mxu0 0.0
    %v4483 = vand.u32 %v3545, 4294901760
    %v4484 = vsub.f32 %v3545, %v4483
    %v4485 = vand.u32 %v4484, 4294901760
    %v4486 = vsub.f32 %v4484, %v4485
    %v4487 = vand.u32 %v4486, 4294901760
    %4488 = vmatmul.mubr.f32.gmra.mrb[0].mxu0 %v4487
    %v4489 = vpop.f32.mrb[0].mxu0
    %v4490 = vadd.f32 %v3491, %v4489
    %v4491 = vpop.f32.mrb[0].mxu0
    %v4492 = vadd.f32 %v3493, %v4491
    %4493 = vmatprep.mubr.f32.mxu0 0.0
    %v4494 = vand.u32 %v3548, 4294901760
    %v4495 = vsub.f32 %v3548, %v4494
    %v4496 = vand.u32 %v4495, 4294901760
    %v4497 = vsub.f32 %v4495, %v4496
    %v4498 = vand.u32 %v4497, 4294901760
    %4499 = vmatmul.mubr.f32.gmra.mrb[0].mxu0 %v4498
    %v4500 = vpop.f32.mrb[0].mxu0
    %v4501 = vadd.f32 %v3498, %v4500
    %v4502 = vpop.f32.mrb[0].mxu0
    %v4503 = vadd.f32 %v3500, %v4502
    %4504 = vmatprep.mubr.f32.mxu0 0.0
    %v4505 = vand.u32 %v3551, 4294901760
    %v4506 = vsub.f32 %v3551, %v4505
    %v4507 = vand.u32 %v4506, 4294901760
    %v4508 = vsub.f32 %v4506, %v4507
    %v4509 = vand.u32 %v4508, 4294901760
    %4510 = vmatmul.mubr.f32.gmra.mrb[0].mxu0 %v4509
    %v4511 = vpop.f32.mrb[0].mxu0
    %v4512 = vadd.f32 %v3505, %v4511
    %v4513 = vpop.f32.mrb[0].mxu0
    %v4514 = vadd.f32 %v3507, %v4513
    %4515 = vmatprep.mubr.f32.mxu0 0.0
    %v4516 = vand.u32 %v3554, 4294901760
    %v4517 = vsub.f32 %v3554, %v4516
    %v4518 = vand.u32 %v4517, 4294901760
    %v4519 = vsub.f32 %v4517, %v4518
    %v4520 = vand.u32 %v4519, 4294901760
    %4521 = vmatmul.mubr.f32.gmra.mrb[0].mxu0 %v4520
    %v4522 = vpop.f32.mrb[0].mxu0
    %v4523 = vadd.f32 %v3512, %v4522
    %v4524 = vpop.f32.mrb[0].mxu0
    %v4525 = vadd.f32 %v3514, %v4524
    %4526 = vmatprep.mubr.f32.mxu0 0.0
    %v4527 = vand.u32 %v3557, 4294901760
    %v4528 = vsub.f32 %v3557, %v4527
    %v4529 = vand.u32 %v4528, 4294901760
    %v4530 = vsub.f32 %v4528, %v4529
    %v4531 = vand.u32 %v4530, 4294901760
    %4532 = vmatmul.mubr.f32.gmra.mrb[0].mxu0 %v4531
    %v4533 = vpop.f32.mrb[0].mxu0
    %v4534 = vadd.f32 %v3519, %v4533
    %v4535 = vpop.f32.mrb[0].mxu0
    %v4536 = vadd.f32 %v3521, %v4535
    %4537 = vmatprep.mubr.f32.mxu0 0.0
    %v4538 = vand.u32 %v3560, 4294901760
    %v4539 = vsub.f32 %v3560, %v4538
    %v4540 = vand.u32 %v4539, 4294901760
    %v4541 = vsub.f32 %v4539, %v4540
    %v4542 = vand.u32 %v4541, 4294901760
    %4543 = vmatmul.mubr.f32.gmra.mrb[0].mxu0 %v4542
    %v4544 = vpop.f32.mrb[0].mxu0
    %v4545 = vadd.f32 %v3526, %v4544
    %v4546 = vpop.f32.mrb[0].mxu0
    %v4547 = vadd.f32 %v3528, %v4546
    %4548 = vmatprep.mubr.f32.mxu0 0.0
    %v4549 = vand.u32 %v3563, 4294901760
    %v4550 = vsub.f32 %v3563, %v4549
    %v4551 = vand.u32 %v4550, 4294901760
    %v4552 = vsub.f32 %v4550, %v4551
    %v4553 = vand.u32 %v4552, 4294901760
    %4554 = vmatmul.mubr.f32.gmra.mrb[0].mxu0 %v4553
    %v4555 = vpop.f32.mrb[0].mxu0
    %v4556 = vadd.f32 %v3533, %v4555
    %v4557 = vpop.f32.mrb[0].mxu0
    %v4558 = vadd.f32 %v3535, %v4557
    %4559 = vmatprep.mubr.f32.mxu0 0.0
    %v4560 = vand.u32 %v3566, 4294901760
    %v4561 = vsub.f32 %v3566, %v4560
    %v4562 = vand.u32 %v4561, 4294901760
    %v4563 = vsub.f32 %v4561, %v4562
    %v4564 = vand.u32 %v4563, 4294901760
    %4565 = vmatmul.mubr.f32.gmra.mrb[0].mxu0 %v4564
    %v4566 = vpop.f32.mrb[0].mxu0
    %v4567 = vadd.f32 %v3540, %v4566
    %v4568 = vpop.f32.mrb[0].mxu0
    %v4569 = vadd.f32 %v3542, %v4568
    %4570 = vdwg.mxu0
    %v4571 = vand.u32 %v520, 4294901760
    %v4572 = vsub.f32 %v520, %v4571
    %v4573 = vand.u32 %v4572, 4294901760
    %v4574 = vsub.f32 %v4572, %v4573
    %v4575 = vand.u32 %v4574, 4294901760
    %4576 = vmatprep.subr.mxu0 %v4575
    %v4577 = vand.u32 %v416, 4294901760
    %v4578 = vsub.f32 %v416, %v4577
    %v4579 = vand.u32 %v4578, 4294901760
    %v4580 = vsub.f32 %v4578, %v4579
    %v4581 = vand.u32 %v4580, 4294901760
    %4582 = vmatpush1.msra.mxu0 %v4581
    %v4583 = vand.u32 %v3578, 4294901760
    %v4584 = vsub.f32 %v3578, %v4583
    %v4585 = vand.u32 %v4584, 4294901760
    %v4586 = vsub.f32 %v4584, %v4585
    %v4587 = vand.u32 %v4586, 4294901760
    %4588 = vmatprep.subr.mxu0 %v4587
    %v4589 = vand.u32 %v3575, 4294901760
    %v4590 = vsub.f32 %v3575, %v4589
    %v4591 = vand.u32 %v4590, 4294901760
    %v4592 = vsub.f32 %v4590, %v4591
    %v4593 = vand.u32 %v4592, 4294901760
    %4594 = vmatpush1.msra.mxu0 %v4593
    %4595 = vmatprep.subr.mxu0 0.0
    %4596 = vmatpush1.msra.mxu0 0.0
    %4597 = vmatprep.subr.mxu0 0.0
    %4598 = vmatpush1.msra.mxu0 0.0
    %4599 = vmatprep.subr.mxu0 0.0
    %4600 = vmatpush1.msra.mxu0 0.0
    %4601 = vmatprep.subr.mxu0 0.0
    %4602 = vmatpush1.msra.mxu0 0.0
    %4603 = vmatprep.subr.mxu0 0.0
    %4604 = vmatpush1.msra.mxu0 0.0
    %4605 = vmatprep.subr.mxu0 0.0
    %4606 = vmatpush1.msra.mxu0 0.0
    %4607 = vmatprep.subr.mxu0 0.0
    %4608 = vmatpush1.msra.mxu0 0.0
    %4609 = vmatprep.subr.mxu0 0.0
    %4610 = vmatpush1.msra.mxu0 0.0
    %4611 = vmatprep.subr.mxu0 0.0
    %4612 = vmatpush1.msra.mxu0 0.0
    %4613 = vmatprep.subr.mxu0 0.0
    %4614 = vmatpush1.msra.mxu0 0.0
    %4615 = vmatprep.subr.mxu0 0.0
    %4616 = vmatpush1.msra.mxu0 0.0
    %4617 = vmatprep.subr.mxu0 0.0
    %4618 = vmatpush1.msra.mxu0 0.0
    %4619 = vmatprep.subr.mxu0 0.0
    %4620 = vmatpush1.msra.mxu0 0.0
    %4621 = vmatprep.subr.mxu0 0.0
    %4622 = vmatpush1.msra.mxu0 0.0
    %4623 = vmatprep.subr.mxu0 0.0
    %4624 = vmatpush1.msra.mxu0 0.0
    %4625 = vmatprep.subr.mxu0 0.0
    %4626 = vmatpush1.msra.mxu0 0.0
    %4627 = vmatprep.subr.mxu0 0.0
    %4628 = vmatpush1.msra.mxu0 0.0
    %4629 = vmatprep.subr.mxu0 0.0
    %4630 = vmatpush1.msra.mxu0 0.0
    %4631 = vmatprep.subr.mxu0 0.0
    %4632 = vmatpush1.msra.mxu0 0.0
    %4633 = vmatprep.subr.mxu0 0.0
    %4634 = vmatpush1.msra.mxu0 0.0
    %4635 = vmatprep.subr.mxu0 0.0
    %4636 = vmatpush1.msra.mxu0 0.0
    %4637 = vmatprep.subr.mxu0 0.0
    %4638 = vmatpush1.msra.mxu0 0.0
    %4639 = vmatprep.subr.mxu0 0.0
    %4640 = vmatpush1.msra.mxu0 0.0
    %4641 = vmatprep.subr.mxu0 0.0
    %4642 = vmatpush1.msra.mxu0 0.0
    %4643 = vmatprep.subr.mxu0 0.0
    %4644 = vmatpush1.msra.mxu0 0.0
    %4645 = vmatprep.subr.mxu0 0.0
    %4646 = vmatpush1.msra.mxu0 0.0
    %4647 = vmatprep.subr.mxu0 0.0
    %4648 = vmatpush1.msra.mxu0 0.0
    %4649 = vmatprep.subr.mxu0 0.0
    %4650 = vmatpush1.msra.mxu0 0.0
    %4651 = vmatprep.subr.mxu0 0.0
    %4652 = vmatpush1.msra.mxu0 0.0
    %4653 = vmatprep.subr.mxu0 0.0
    %4654 = vmatpush1.msra.mxu0 0.0
    %4655 = vmatprep.mubr.f32.mxu0 0.0
    %v4656 = vand.u32 %v3545, 4294901760
    %4657 = vmatmul.mubr.f32.gmra.mrb[0].mxu0 %v4656
    %v4658 = vpop.f32.mrb[0].mxu0
    %v4659 = vadd.f32 %v4490, %v4658
    %v4660 = vpop.f32.mrb[0].mxu0
    %v4661 = vadd.f32 %v4492, %v4660
    %4662 = vmatprep.mubr.f32.mxu0 0.0
    %v4663 = vand.u32 %v3548, 4294901760
    %4664 = vmatmul.mubr.f32.gmra.mrb[0].mxu0 %v4663
    %v4665 = vpop.f32.mrb[0].mxu0
    %v4666 = vadd.f32 %v4501, %v4665
    %v4667 = vpop.f32.mrb[0].mxu0
    %v4668 = vadd.f32 %v4503, %v4667
    %4669 = vmatprep.mubr.f32.mxu0 0.0
    %v4670 = vand.u32 %v3551, 4294901760
    %4671 = vmatmul.mubr.f32.gmra.mrb[0].mxu0 %v4670
    %v4672 = vpop.f32.mrb[0].mxu0
    %v4673 = vadd.f32 %v4512, %v4672
    %v4674 = vpop.f32.mrb[0].mxu0
    %v4675 = vadd.f32 %v4514, %v4674
    %4676 = vmatprep.mubr.f32.mxu0 0.0
    %v4677 = vand.u32 %v3554, 4294901760
    %4678 = vmatmul.mubr.f32.gmra.mrb[0].mxu0 %v4677
    %v4679 = vpop.f32.mrb[0].mxu0
    %v4680 = vadd.f32 %v4523, %v4679
    %v4681 = vpop.f32.mrb[0].mxu0
    %v4682 = vadd.f32 %v4525, %v4681
    %4683 = vmatprep.mubr.f32.mxu0 0.0
    %v4684 = vand.u32 %v3557, 4294901760
    %4685 = vmatmul.mubr.f32.gmra.mrb[0].mxu0 %v4684
    %v4686 = vpop.f32.mrb[0].mxu0
    %v4687 = vadd.f32 %v4534, %v4686
    %v4688 = vpop.f32.mrb[0].mxu0
    %v4689 = vadd.f32 %v4536, %v4688
    %4690 = vmatprep.mubr.f32.mxu0 0.0
    %v4691 = vand.u32 %v3560, 4294901760
    %4692 = vmatmul.mubr.f32.gmra.mrb[0].mxu0 %v4691
    %v4693 = vpop.f32.mrb[0].mxu0
    %v4694 = vadd.f32 %v4545, %v4693
    %v4695 = vpop.f32.mrb[0].mxu0
    %v4696 = vadd.f32 %v4547, %v4695
    %4697 = vmatprep.mubr.f32.mxu0 0.0
    %v4698 = vand.u32 %v3563, 4294901760
    %4699 = vmatmul.mubr.f32.gmra.mrb[0].mxu0 %v4698
    %v4700 = vpop.f32.mrb[0].mxu0
    %v4701 = vadd.f32 %v4556, %v4700
    %v4702 = vpop.f32.mrb[0].mxu0
    %v4703 = vadd.f32 %v4558, %v4702
    %4704 = vmatprep.mubr.f32.mxu0 0.0
    %v4705 = vand.u32 %v3566, 4294901760
    %4706 = vmatmul.mubr.f32.gmra.mrb[0].mxu0 %v4705
    %v4707 = vpop.f32.mrb[0].mxu0
    %v4708 = vadd.f32 %v4567, %v4707
    %v4709 = vpop.f32.mrb[0].mxu0
    %v4710 = vadd.f32 %v4569, %v4709
    %4711 = vdwg.mxu0
    %v4712 = vand.u32 %v520, 4294901760
    %v4713 = vsub.f32 %v520, %v4712
    %4714 = vmatprep.subr.mxu0 %v4713
    %v4715 = vand.u32 %v416, 4294901760
    %v4716 = vsub.f32 %v416, %v4715
    %4717 = vmatpush1.msra.mxu0 %v4716
    %v4718 = vand.u32 %v3578, 4294901760
    %v4719 = vsub.f32 %v3578, %v4718
    %4720 = vmatprep.subr.mxu0 %v4719
    %v4721 = vand.u32 %v3575, 4294901760
    %v4722 = vsub.f32 %v3575, %v4721
    %4723 = vmatpush1.msra.mxu0 %v4722
    %4724 = vmatprep.subr.mxu0 0.0
    %4725 = vmatpush1.msra.mxu0 0.0
    %4726 = vmatprep.subr.mxu0 0.0
    %4727 = vmatpush1.msra.mxu0 0.0
    %4728 = vmatprep.subr.mxu0 0.0
    %4729 = vmatpush1.msra.mxu0 0.0
    %4730 = vmatprep.subr.mxu0 0.0
    %4731 = vmatpush1.msra.mxu0 0.0
    %4732 = vmatprep.subr.mxu0 0.0
    %4733 = vmatpush1.msra.mxu0 0.0
    %4734 = vmatprep.subr.mxu0 0.0
    %4735 = vmatpush1.msra.mxu0 0.0
    %4736 = vmatprep.subr.mxu0 0.0
    %4737 = vmatpush1.msra.mxu0 0.0
    %4738 = vmatprep.subr.mxu0 0.0
    %4739 = vmatpush1.msra.mxu0 0.0
    %4740 = vmatprep.subr.mxu0 0.0
    %4741 = vmatpush1.msra.mxu0 0.0
    %4742 = vmatprep.subr.mxu0 0.0
    %4743 = vmatpush1.msra.mxu0 0.0
    %4744 = vmatprep.subr.mxu0 0.0
    %4745 = vmatpush1.msra.mxu0 0.0
    %4746 = vmatprep.subr.mxu0 0.0
    %4747 = vmatpush1.msra.mxu0 0.0
    %4748 = vmatprep.subr.mxu0 0.0
    %4749 = vmatpush1.msra.mxu0 0.0
    %4750 = vmatprep.subr.mxu0 0.0
    %4751 = vmatpush1.msra.mxu0 0.0
    %4752 = vmatprep.subr.mxu0 0.0
    %4753 = vmatpush1.msra.mxu0 0.0
    %4754 = vmatprep.subr.mxu0 0.0
    %4755 = vmatpush1.msra.mxu0 0.0
    %4756 = vmatprep.subr.mxu0 0.0
    %4757 = vmatpush1.msra.mxu0 0.0
    %4758 = vmatprep.subr.mxu0 0.0
    %4759 = vmatpush1.msra.mxu0 0.0
    %4760 = vmatprep.subr.mxu0 0.0
    %4761 = vmatpush1.msra.mxu0 0.0
    %4762 = vmatprep.subr.mxu0 0.0
    %4763 = vmatpush1.msra.mxu0 0.0
    %4764 = vmatprep.subr.mxu0 0.0
    %4765 = vmatpush1.msra.mxu0 0.0
    %4766 = vmatprep.subr.mxu0 0.0
    %4767 = vmatpush1.msra.mxu0 0.0
    %4768 = vmatprep.subr.mxu0 0.0
    %4769 = vmatpush1.msra.mxu0 0.0
    %4770 = vmatprep.subr.mxu0 0.0
    %4771 = vmatpush1.msra.mxu0 0.0
    %4772 = vmatprep.subr.mxu0 0.0
    %4773 = vmatpush1.msra.mxu0 0.0
    %4774 = vmatprep.subr.mxu0 0.0
    %4775 = vmatpush1.msra.mxu0 0.0
    %4776 = vmatprep.subr.mxu0 0.0
    %4777 = vmatpush1.msra.mxu0 0.0
    %4778 = vmatprep.subr.mxu0 0.0
    %4779 = vmatpush1.msra.mxu0 0.0
    %4780 = vmatprep.subr.mxu0 0.0
    %4781 = vmatpush1.msra.mxu0 0.0
    %4782 = vmatprep.subr.mxu0 0.0
    %4783 = vmatpush1.msra.mxu0 0.0
    %4784 = vmatprep.mubr.f32.mxu0 0.0
    %v4785 = vand.u32 %v3545, 4294901760
    %v4786 = vsub.f32 %v3545, %v4785
    %4787 = vmatmul.mubr.f32.gmra.mrb[0].mxu0 %v4786
    %v4788 = vpop.f32.mrb[0].mxu0
    %v4789 = vadd.f32 %v4659, %v4788
    %v4790 = vpop.f32.mrb[0].mxu0
    %v4791 = vadd.f32 %v4661, %v4790
    %4792 = vmatprep.mubr.f32.mxu0 0.0
    %v4793 = vand.u32 %v3548, 4294901760
    %v4794 = vsub.f32 %v3548, %v4793
    %4795 = vmatmul.mubr.f32.gmra.mrb[0].mxu0 %v4794
    %v4796 = vpop.f32.mrb[0].mxu0
    %v4797 = vadd.f32 %v4666, %v4796
    %v4798 = vpop.f32.mrb[0].mxu0
    %v4799 = vadd.f32 %v4668, %v4798
    %4800 = vmatprep.mubr.f32.mxu0 0.0
    %v4801 = vand.u32 %v3551, 4294901760
    %v4802 = vsub.f32 %v3551, %v4801
    %4803 = vmatmul.mubr.f32.gmra.mrb[0].mxu0 %v4802
    %v4804 = vpop.f32.mrb[0].mxu0
    %v4805 = vadd.f32 %v4673, %v4804
    %v4806 = vpop.f32.mrb[0].mxu0
    %v4807 = vadd.f32 %v4675, %v4806
    %4808 = vmatprep.mubr.f32.mxu0 0.0
    %v4809 = vand.u32 %v3554, 4294901760
    %v4810 = vsub.f32 %v3554, %v4809
    %4811 = vmatmul.mubr.f32.gmra.mrb[0].mxu0 %v4810
    %v4812 = vpop.f32.mrb[0].mxu0
    %v4813 = vadd.f32 %v4680, %v4812
    %v4814 = vpop.f32.mrb[0].mxu0
    %v4815 = vadd.f32 %v4682, %v4814
    %4816 = vmatprep.mubr.f32.mxu0 0.0
    %v4817 = vand.u32 %v3557, 4294901760
    %v4818 = vsub.f32 %v3557, %v4817
    %4819 = vmatmul.mubr.f32.gmra.mrb[0].mxu0 %v4818
    %v4820 = vpop.f32.mrb[0].mxu0
    %v4821 = vadd.f32 %v4687, %v4820
    %v4822 = vpop.f32.mrb[0].mxu0
    %v4823 = vadd.f32 %v4689, %v4822
    %4824 = vmatprep.mubr.f32.mxu0 0.0
    %v4825 = vand.u32 %v3560, 4294901760
    %v4826 = vsub.f32 %v3560, %v4825
    %4827 = vmatmul.mubr.f32.gmra.mrb[0].mxu0 %v4826
    %v4828 = vpop.f32.mrb[0].mxu0
    %v4829 = vadd.f32 %v4694, %v4828
    %v4830 = vpop.f32.mrb[0].mxu0
    %v4831 = vadd.f32 %v4696, %v4830
    %4832 = vmatprep.mubr.f32.mxu0 0.0
    %v4833 = vand.u32 %v3563, 4294901760
    %v4834 = vsub.f32 %v3563, %v4833
    %4835 = vmatmul.mubr.f32.gmra.mrb[0].mxu0 %v4834
    %v4836 = vpop.f32.mrb[0].mxu0
    %v4837 = vadd.f32 %v4701, %v4836
    %v4838 = vpop.f32.mrb[0].mxu0
    %v4839 = vadd.f32 %v4703, %v4838
    %4840 = vmatprep.mubr.f32.mxu0 0.0
    %v4841 = vand.u32 %v3566, 4294901760
    %v4842 = vsub.f32 %v3566, %v4841
    %4843 = vmatmul.mubr.f32.gmra.mrb[0].mxu0 %v4842
    %v4844 = vpop.f32.mrb[0].mxu0
    %v4845 = vadd.f32 %v4708, %v4844
    %v4846 = vpop.f32.mrb[0].mxu0
    %v4847 = vadd.f32 %v4710, %v4846
    %4848 = vdwg.mxu0
    %v4849 = vand.u32 %v520, 4294901760
    %4850 = vmatprep.subr.mxu0 %v4849
    %v4851 = vand.u32 %v416, 4294901760
    %4852 = vmatpush1.msra.mxu0 %v4851
    %v4853 = vand.u32 %v3578, 4294901760
    %4854 = vmatprep.subr.mxu0 %v4853
    %v4855 = vand.u32 %v3575, 4294901760
    %4856 = vmatpush1.msra.mxu0 %v4855
    %4857 = vmatprep.subr.mxu0 0.0
    %4858 = vmatpush1.msra.mxu0 0.0
    %4859 = vmatprep.subr.mxu0 0.0
    %4860 = vmatpush1.msra.mxu0 0.0
    %4861 = vmatprep.subr.mxu0 0.0
    %4862 = vmatpush1.msra.mxu0 0.0
    %4863 = vmatprep.subr.mxu0 0.0
    %4864 = vmatpush1.msra.mxu0 0.0
    %4865 = vmatprep.subr.mxu0 0.0
    %4866 = vmatpush1.msra.mxu0 0.0
    %4867 = vmatprep.subr.mxu0 0.0
    %4868 = vmatpush1.msra.mxu0 0.0
    %4869 = vmatprep.subr.mxu0 0.0
    %4870 = vmatpush1.msra.mxu0 0.0
    %4871 = vmatprep.subr.mxu0 0.0
    %4872 = vmatpush1.msra.mxu0 0.0
    %4873 = vmatprep.subr.mxu0 0.0
    %4874 = vmatpush1.msra.mxu0 0.0
    %4875 = vmatprep.subr.mxu0 0.0
    %4876 = vmatpush1.msra.mxu0 0.0
    %4877 = vmatprep.subr.mxu0 0.0
    %4878 = vmatpush1.msra.mxu0 0.0
    %4879 = vmatprep.subr.mxu0 0.0
    %4880 = vmatpush1.msra.mxu0 0.0
    %4881 = vmatprep.subr.mxu0 0.0
    %4882 = vmatpush1.msra.mxu0 0.0
    %4883 = vmatprep.subr.mxu0 0.0
    %4884 = vmatpush1.msra.mxu0 0.0
    %4885 = vmatprep.subr.mxu0 0.0
    %4886 = vmatpush1.msra.mxu0 0.0
    %4887 = vmatprep.subr.mxu0 0.0
    %4888 = vmatpush1.msra.mxu0 0.0
    %4889 = vmatprep.subr.mxu0 0.0
    %4890 = vmatpush1.msra.mxu0 0.0
    %4891 = vmatprep.subr.mxu0 0.0
    %4892 = vmatpush1.msra.mxu0 0.0
    %4893 = vmatprep.subr.mxu0 0.0
    %4894 = vmatpush1.msra.mxu0 0.0
    %4895 = vmatprep.subr.mxu0 0.0
    %4896 = vmatpush1.msra.mxu0 0.0
    %4897 = vmatprep.subr.mxu0 0.0
    %4898 = vmatpush1.msra.mxu0 0.0
    %4899 = vmatprep.subr.mxu0 0.0
    %4900 = vmatpush1.msra.mxu0 0.0
    %4901 = vmatprep.subr.mxu0 0.0
    %4902 = vmatpush1.msra.mxu0 0.0
    %4903 = vmatprep.subr.mxu0 0.0
    %4904 = vmatpush1.msra.mxu0 0.0
    %4905 = vmatprep.subr.mxu0 0.0
    %4906 = vmatpush1.msra.mxu0 0.0
    %4907 = vmatprep.subr.mxu0 0.0
    %4908 = vmatpush1.msra.mxu0 0.0
    %4909 = vmatprep.subr.mxu0 0.0
    %4910 = vmatpush1.msra.mxu0 0.0
    %4911 = vmatprep.subr.mxu0 0.0
    %4912 = vmatpush1.msra.mxu0 0.0
    %4913 = vmatprep.subr.mxu0 0.0
    %4914 = vmatpush1.msra.mxu0 0.0
    %4915 = vmatprep.subr.mxu0 0.0
    %4916 = vmatpush1.msra.mxu0 0.0
    %4917 = vmatprep.mubr.f32.mxu0 0.0
    %v4918 = vand.u32 %v3545, 4294901760
    %v4919 = vsub.f32 %v3545, %v4918
    %v4920 = vand.u32 %v4919, 4294901760
    %4921 = vmatmul.mubr.f32.gmra.mrb[0].mxu0 %v4920
    %v4922 = vpop.f32.mrb[0].mxu0
    %v4923 = vadd.f32 %v4789, %v4922
    %v4924 = vpop.f32.mrb[0].mxu0
    %v4925 = vadd.f32 %v4791, %v4924
    %4926 = vmatprep.mubr.f32.mxu0 0.0
    %v4927 = vand.u32 %v3548, 4294901760
    %v4928 = vsub.f32 %v3548, %v4927
    %v4929 = vand.u32 %v4928, 4294901760
    %4930 = vmatmul.mubr.f32.gmra.mrb[0].mxu0 %v4929
    %v4931 = vpop.f32.mrb[0].mxu0
    %v4932 = vadd.f32 %v4797, %v4931
    %v4933 = vpop.f32.mrb[0].mxu0
    %v4934 = vadd.f32 %v4799, %v4933
    %4935 = vmatprep.mubr.f32.mxu0 0.0
    %v4936 = vand.u32 %v3551, 4294901760
    %v4937 = vsub.f32 %v3551, %v4936
    %v4938 = vand.u32 %v4937, 4294901760
    %4939 = vmatmul.mubr.f32.gmra.mrb[0].mxu0 %v4938
    %v4940 = vpop.f32.mrb[0].mxu0
    %v4941 = vadd.f32 %v4805, %v4940
    %v4942 = vpop.f32.mrb[0].mxu0
    %v4943 = vadd.f32 %v4807, %v4942
    %4944 = vmatprep.mubr.f32.mxu0 0.0
    %v4945 = vand.u32 %v3554, 4294901760
    %v4946 = vsub.f32 %v3554, %v4945
    %v4947 = vand.u32 %v4946, 4294901760
    %4948 = vmatmul.mubr.f32.gmra.mrb[0].mxu0 %v4947
    %v4949 = vpop.f32.mrb[0].mxu0
    %v4950 = vadd.f32 %v4813, %v4949
    %v4951 = vpop.f32.mrb[0].mxu0
    %v4952 = vadd.f32 %v4815, %v4951
    %4953 = vmatprep.mubr.f32.mxu0 0.0
    %v4954 = vand.u32 %v3557, 4294901760
    %v4955 = vsub.f32 %v3557, %v4954
    %v4956 = vand.u32 %v4955, 4294901760
    %4957 = vmatmul.mubr.f32.gmra.mrb[0].mxu0 %v4956
    %v4958 = vpop.f32.mrb[0].mxu0
    %v4959 = vadd.f32 %v4821, %v4958
    %v4960 = vpop.f32.mrb[0].mxu0
    %v4961 = vadd.f32 %v4823, %v4960
    %4962 = vmatprep.mubr.f32.mxu0 0.0
    %v4963 = vand.u32 %v3560, 4294901760
    %v4964 = vsub.f32 %v3560, %v4963
    %v4965 = vand.u32 %v4964, 4294901760
    %4966 = vmatmul.mubr.f32.gmra.mrb[0].mxu0 %v4965
    %v4967 = vpop.f32.mrb[0].mxu0
    %v4968 = vadd.f32 %v4829, %v4967
    %v4969 = vpop.f32.mrb[0].mxu0
    %v4970 = vadd.f32 %v4831, %v4969
    %4971 = vmatprep.mubr.f32.mxu0 0.0
    %v4972 = vand.u32 %v3563, 4294901760
    %v4973 = vsub.f32 %v3563, %v4972
    %v4974 = vand.u32 %v4973, 4294901760
    %4975 = vmatmul.mubr.f32.gmra.mrb[0].mxu0 %v4974
    %v4976 = vpop.f32.mrb[0].mxu0
    %v4977 = vadd.f32 %v4837, %v4976
    %v4978 = vpop.f32.mrb[0].mxu0
    %v4979 = vadd.f32 %v4839, %v4978
    %4980 = vmatprep.mubr.f32.mxu0 0.0
    %v4981 = vand.u32 %v3566, 4294901760
    %v4982 = vsub.f32 %v3566, %v4981
    %v4983 = vand.u32 %v4982, 4294901760
    %4984 = vmatmul.mubr.f32.gmra.mrb[0].mxu0 %v4983
    %v4985 = vpop.f32.mrb[0].mxu0
    %v4986 = vadd.f32 %v4845, %v4985
    %v4987 = vpop.f32.mrb[0].mxu0
    %v4988 = vadd.f32 %v4847, %v4987
    %4989 = vdwg.mxu0
    %v4990 = vand.u32 %v520, 4294901760
    %v4991 = vsub.f32 %v520, %v4990
    %v4992 = vand.u32 %v4991, 4294901760
    %4993 = vmatprep.subr.mxu0 %v4992
    %v4994 = vand.u32 %v416, 4294901760
    %v4995 = vsub.f32 %v416, %v4994
    %v4996 = vand.u32 %v4995, 4294901760
    %4997 = vmatpush1.msra.mxu0 %v4996
    %v4998 = vand.u32 %v3578, 4294901760
    %v4999 = vsub.f32 %v3578, %v4998
    %v5000 = vand.u32 %v4999, 4294901760
    %5001 = vmatprep.subr.mxu0 %v5000
    %v5002 = vand.u32 %v3575, 4294901760
    %v5003 = vsub.f32 %v3575, %v5002
    %v5004 = vand.u32 %v5003, 4294901760
    %5005 = vmatpush1.msra.mxu0 %v5004
    %5006 = vmatprep.subr.mxu0 0.0
    %5007 = vmatpush1.msra.mxu0 0.0
    %5008 = vmatprep.subr.mxu0 0.0
    %5009 = vmatpush1.msra.mxu0 0.0
    %5010 = vmatprep.subr.mxu0 0.0
    %5011 = vmatpush1.msra.mxu0 0.0
    %5012 = vmatprep.subr.mxu0 0.0
    %5013 = vmatpush1.msra.mxu0 0.0
    %5014 = vmatprep.subr.mxu0 0.0
    %5015 = vmatpush1.msra.mxu0 0.0
    %5016 = vmatprep.subr.mxu0 0.0
    %5017 = vmatpush1.msra.mxu0 0.0
    %5018 = vmatprep.subr.mxu0 0.0
    %5019 = vmatpush1.msra.mxu0 0.0
    %5020 = vmatprep.subr.mxu0 0.0
    %5021 = vmatpush1.msra.mxu0 0.0
    %5022 = vmatprep.subr.mxu0 0.0
    %5023 = vmatpush1.msra.mxu0 0.0
    %5024 = vmatprep.subr.mxu0 0.0
    %5025 = vmatpush1.msra.mxu0 0.0
    %5026 = vmatprep.subr.mxu0 0.0
    %5027 = vmatpush1.msra.mxu0 0.0
    %5028 = vmatprep.subr.mxu0 0.0
    %5029 = vmatpush1.msra.mxu0 0.0
    %5030 = vmatprep.subr.mxu0 0.0
    %5031 = vmatpush1.msra.mxu0 0.0
    %5032 = vmatprep.subr.mxu0 0.0
    %5033 = vmatpush1.msra.mxu0 0.0
    %5034 = vmatprep.subr.mxu0 0.0
    %5035 = vmatpush1.msra.mxu0 0.0
    %5036 = vmatprep.subr.mxu0 0.0
    %5037 = vmatpush1.msra.mxu0 0.0
    %5038 = vmatprep.subr.mxu0 0.0
    %5039 = vmatpush1.msra.mxu0 0.0
    %5040 = vmatprep.subr.mxu0 0.0
    %5041 = vmatpush1.msra.mxu0 0.0
    %5042 = vmatprep.subr.mxu0 0.0
    %5043 = vmatpush1.msra.mxu0 0.0
    %5044 = vmatprep.subr.mxu0 0.0
    %5045 = vmatpush1.msra.mxu0 0.0
    %5046 = vmatprep.subr.mxu0 0.0
    %5047 = vmatpush1.msra.mxu0 0.0
    %5048 = vmatprep.subr.mxu0 0.0
    %5049 = vmatpush1.msra.mxu0 0.0
    %5050 = vmatprep.subr.mxu0 0.0
    %5051 = vmatpush1.msra.mxu0 0.0
    %5052 = vmatprep.subr.mxu0 0.0
    %5053 = vmatpush1.msra.mxu0 0.0
    %5054 = vmatprep.subr.mxu0 0.0
    %5055 = vmatpush1.msra.mxu0 0.0
    %5056 = vmatprep.subr.mxu0 0.0
    %5057 = vmatpush1.msra.mxu0 0.0
    %5058 = vmatprep.subr.mxu0 0.0
    %5059 = vmatpush1.msra.mxu0 0.0
    %5060 = vmatprep.subr.mxu0 0.0
    %5061 = vmatpush1.msra.mxu0 0.0
    %5062 = vmatprep.subr.mxu0 0.0
    %5063 = vmatpush1.msra.mxu0 0.0
    %5064 = vmatprep.subr.mxu0 0.0
    %5065 = vmatpush1.msra.mxu0 0.0
    %5066 = vmatprep.mubr.f32.mxu0 0.0
    %v5067 = vand.u32 %v3545, 4294901760
    %5068 = vmatmul.mubr.f32.gmra.mrb[0].mxu0 %v5067
    %v5069 = vpop.f32.mrb[0].mxu0
    %v5070 = vadd.f32 %v4923, %v5069
    %v5071 = vpop.f32.mrb[0].mxu0
    %v5072 = vadd.f32 %v4925, %v5071
    %5073 = vmatprep.mubr.f32.mxu0 0.0
    %v5074 = vand.u32 %v3548, 4294901760
    %5075 = vmatmul.mubr.f32.gmra.mrb[0].mxu0 %v5074
    %v5076 = vpop.f32.mrb[0].mxu0
    %v5077 = vadd.f32 %v4932, %v5076
    %v5078 = vpop.f32.mrb[0].mxu0
    %v5079 = vadd.f32 %v4934, %v5078
    %5080 = vmatprep.mubr.f32.mxu0 0.0
    %v5081 = vand.u32 %v3551, 4294901760
    %5082 = vmatmul.mubr.f32.gmra.mrb[0].mxu0 %v5081
    %v5083 = vpop.f32.mrb[0].mxu0
    %v5084 = vadd.f32 %v4941, %v5083
    %v5085 = vpop.f32.mrb[0].mxu0
    %v5086 = vadd.f32 %v4943, %v5085
    %5087 = vmatprep.mubr.f32.mxu0 0.0
    %v5088 = vand.u32 %v3554, 4294901760
    %5089 = vmatmul.mubr.f32.gmra.mrb[0].mxu0 %v5088
    %v5090 = vpop.f32.mrb[0].mxu0
    %v5091 = vadd.f32 %v4950, %v5090
    %v5092 = vpop.f32.mrb[0].mxu0
    %v5093 = vadd.f32 %v4952, %v5092
    %5094 = vmatprep.mubr.f32.mxu0 0.0
    %v5095 = vand.u32 %v3557, 4294901760
    %5096 = vmatmul.mubr.f32.gmra.mrb[0].mxu0 %v5095
    %v5097 = vpop.f32.mrb[0].mxu0
    %v5098 = vadd.f32 %v4959, %v5097
    %v5099 = vpop.f32.mrb[0].mxu0
    %v5100 = vadd.f32 %v4961, %v5099
    %5101 = vmatprep.mubr.f32.mxu0 0.0
    %v5102 = vand.u32 %v3560, 4294901760
    %5103 = vmatmul.mubr.f32.gmra.mrb[0].mxu0 %v5102
    %v5104 = vpop.f32.mrb[0].mxu0
    %v5105 = vadd.f32 %v4968, %v5104
    %v5106 = vpop.f32.mrb[0].mxu0
    %v5107 = vadd.f32 %v4970, %v5106
    %5108 = vmatprep.mubr.f32.mxu0 0.0
    %v5109 = vand.u32 %v3563, 4294901760
    %5110 = vmatmul.mubr.f32.gmra.mrb[0].mxu0 %v5109
    %v5111 = vpop.f32.mrb[0].mxu0
    %v5112 = vadd.f32 %v4977, %v5111
    %v5113 = vpop.f32.mrb[0].mxu0
    %v5114 = vadd.f32 %v4979, %v5113
    %5115 = vmatprep.mubr.f32.mxu0 0.0
    %v5116 = vand.u32 %v3566, 4294901760
    %5117 = vmatmul.mubr.f32.gmra.mrb[0].mxu0 %v5116
    %v5118 = vpop.f32.mrb[0].mxu0
    %v5119 = vadd.f32 %v4986, %v5118
    %v5120 = vpop.f32.mrb[0].mxu0
    %v5121 = vadd.f32 %v4988, %v5120
    %5122 = vdwg.mxu0
    %v5123 = vand.u32 %v520, 4294901760
    %5124 = vmatprep.subr.mxu0 %v5123
    %v5125 = vand.u32 %v416, 4294901760
    %5126 = vmatpush1.msra.mxu0 %v5125
    %v5127 = vand.u32 %v3578, 4294901760
    %5128 = vmatprep.subr.mxu0 %v5127
    %v5129 = vand.u32 %v3575, 4294901760
    %5130 = vmatpush1.msra.mxu0 %v5129
    %5131 = vmatprep.subr.mxu0 0.0
    %5132 = vmatpush1.msra.mxu0 0.0
    %5133 = vmatprep.subr.mxu0 0.0
    %5134 = vmatpush1.msra.mxu0 0.0
    %5135 = vmatprep.subr.mxu0 0.0
    %5136 = vmatpush1.msra.mxu0 0.0
    %5137 = vmatprep.subr.mxu0 0.0
    %5138 = vmatpush1.msra.mxu0 0.0
    %5139 = vmatprep.subr.mxu0 0.0
    %5140 = vmatpush1.msra.mxu0 0.0
    %5141 = vmatprep.subr.mxu0 0.0
    %5142 = vmatpush1.msra.mxu0 0.0
    %5143 = vmatprep.subr.mxu0 0.0
    %5144 = vmatpush1.msra.mxu0 0.0
    %5145 = vmatprep.subr.mxu0 0.0
    %5146 = vmatpush1.msra.mxu0 0.0
    %5147 = vmatprep.subr.mxu0 0.0
    %5148 = vmatpush1.msra.mxu0 0.0
    %5149 = vmatprep.subr.mxu0 0.0
    %5150 = vmatpush1.msra.mxu0 0.0
    %5151 = vmatprep.subr.mxu0 0.0
    %5152 = vmatpush1.msra.mxu0 0.0
    %5153 = vmatprep.subr.mxu0 0.0
    %5154 = vmatpush1.msra.mxu0 0.0
    %5155 = vmatprep.subr.mxu0 0.0
    %5156 = vmatpush1.msra.mxu0 0.0
    %5157 = vmatprep.subr.mxu0 0.0
    %5158 = vmatpush1.msra.mxu0 0.0
    %5159 = vmatprep.subr.mxu0 0.0
    %5160 = vmatpush1.msra.mxu0 0.0
    %5161 = vmatprep.subr.mxu0 0.0
    %5162 = vmatpush1.msra.mxu0 0.0
    %5163 = vmatprep.subr.mxu0 0.0
    %5164 = vmatpush1.msra.mxu0 0.0
    %5165 = vmatprep.subr.mxu0 0.0
    %5166 = vmatpush1.msra.mxu0 0.0
    %5167 = vmatprep.subr.mxu0 0.0
    %5168 = vmatpush1.msra.mxu0 0.0
    %5169 = vmatprep.subr.mxu0 0.0
    %5170 = vmatpush1.msra.mxu0 0.0
    %5171 = vmatprep.subr.mxu0 0.0
    %5172 = vmatpush1.msra.mxu0 0.0
    %5173 = vmatprep.subr.mxu0 0.0
    %5174 = vmatpush1.msra.mxu0 0.0
    %5175 = vmatprep.subr.mxu0 0.0
    %5176 = vmatpush1.msra.mxu0 0.0
    %5177 = vmatprep.subr.mxu0 0.0
    %5178 = vmatpush1.msra.mxu0 0.0
    %5179 = vmatprep.subr.mxu0 0.0
    %5180 = vmatpush1.msra.mxu0 0.0
    %5181 = vmatprep.subr.mxu0 0.0
    %5182 = vmatpush1.msra.mxu0 0.0
    %5183 = vmatprep.subr.mxu0 0.0
    %5184 = vmatpush1.msra.mxu0 0.0
    %5185 = vmatprep.subr.mxu0 0.0
    %5186 = vmatpush1.msra.mxu0 0.0
    %5187 = vmatprep.subr.mxu0 0.0
    %5188 = vmatpush1.msra.mxu0 0.0
    %5189 = vmatprep.subr.mxu0 0.0
    %5190 = vmatpush1.msra.mxu0 0.0
    %5191 = vmatprep.mubr.f32.mxu0 0.0
    %v5192 = vand.u32 %v3545, 4294901760
    %5193 = vmatmul.mubr.f32.gmra.mrb[0].mxu0 %v5192
    %v5194 = vpop.f32.mrb[0].mxu0
    %v5195 = vadd.f32 %v5070, %v5194
    %v5196 = vpop.f32.mrb[0].mxu0
    %v5197 = vadd.f32 %v5072, %v5196
    %5198 = vmatprep.mubr.f32.mxu0 0.0
    %v5199 = vand.u32 %v3548, 4294901760
    %5200 = vmatmul.mubr.f32.gmra.mrb[0].mxu0 %v5199
    %v5201 = vpop.f32.mrb[0].mxu0
    %v5202 = vadd.f32 %v5077, %v5201
    %v5203 = vpop.f32.mrb[0].mxu0
    %v5204 = vadd.f32 %v5079, %v5203
    %5205 = vmatprep.mubr.f32.mxu0 0.0
    %v5206 = vand.u32 %v3551, 4294901760
    %5207 = vmatmul.mubr.f32.gmra.mrb[0].mxu0 %v5206
    %v5208 = vpop.f32.mrb[0].mxu0
    %v5209 = vadd.f32 %v5084, %v5208
    %v5210 = vpop.f32.mrb[0].mxu0
    %v5211 = vadd.f32 %v5086, %v5210
    %5212 = vmatprep.mubr.f32.mxu0 0.0
    %v5213 = vand.u32 %v3554, 4294901760
    %5214 = vmatmul.mubr.f32.gmra.mrb[0].mxu0 %v5213
    %v5215 = vpop.f32.mrb[0].mxu0
    %v5216 = vadd.f32 %v5091, %v5215
    %v5217 = vpop.f32.mrb[0].mxu0
    %v5218 = vadd.f32 %v5093, %v5217
    %5219 = vmatprep.mubr.f32.mxu0 0.0
    %v5220 = vand.u32 %v3557, 4294901760
    %5221 = vmatmul.mubr.f32.gmra.mrb[0].mxu0 %v5220
    %v5222 = vpop.f32.mrb[0].mxu0
    %v5223 = vadd.f32 %v5098, %v5222
    %v5224 = vpop.f32.mrb[0].mxu0
    %v5225 = vadd.f32 %v5100, %v5224
    %5226 = vmatprep.mubr.f32.mxu0 0.0
    %v5227 = vand.u32 %v3560, 4294901760
    %5228 = vmatmul.mubr.f32.gmra.mrb[0].mxu0 %v5227
    %v5229 = vpop.f32.mrb[0].mxu0
    %v5230 = vadd.f32 %v5105, %v5229
    %v5231 = vpop.f32.mrb[0].mxu0
    %v5232 = vadd.f32 %v5107, %v5231
    %5233 = vmatprep.mubr.f32.mxu0 0.0
    %v5234 = vand.u32 %v3563, 4294901760
    %5235 = vmatmul.mubr.f32.gmra.mrb[0].mxu0 %v5234
    %v5236 = vpop.f32.mrb[0].mxu0
    %v5237 = vadd.f32 %v5112, %v5236
    %v5238 = vpop.f32.mrb[0].mxu0
    %v5239 = vadd.f32 %v5114, %v5238
    %5240 = vmatprep.mubr.f32.mxu0 0.0
    %v5241 = vand.u32 %v3566, 4294901760
    %5242 = vmatmul.mubr.f32.gmra.mrb[0].mxu0 %v5241
    %v5243 = vpop.f32.mrb[0].mxu0
    %v5244 = vadd.f32 %v5119, %v5243
    %v5245 = vpop.f32.mrb[0].mxu0
    %v5246 = vadd.f32 %v5121, %v5245
    %5247 = vdwg.mxu0
    %v5248 = vld [vmem:[%s4] sm:$0xff]
    %v5249 = vld [vmem:[%s4 + $0x8] sm:$0xff]
    %v5250 = vld [vmem:[%s4 + $0x10] sm:$0xff]
    %v5251 = vld [vmem:[%s4 + $0x18] sm:$0xff]
    %v5252 = vld [vmem:[%s4 + $0x20] sm:$0xff]
    %v5253 = vld [vmem:[%s4 + $0x28] sm:$0xff]
    %v5254 = vld [vmem:[%s4 + $0x30] sm:$0xff]
    %v5255 = vld [vmem:[%s4 + $0x38] sm:$0xff]
    %5257 = vset.pattern.permute.xlu0 0
    %5258 = vperm.xlu0 %5257, %v5248
    %v5259 = vpop.permute.xlu0 %5258
    %5262 = vset.pattern.permute.xlu0 0
    %5263 = vperm.xlu0 %5262, %v5249
    %v5264 = vpop.permute.xlu0 %5263
    %5267 = vset.pattern.permute.xlu0 0
    %5268 = vperm.xlu0 %5267, %v5250
    %v5269 = vpop.permute.xlu0 %5268
    %5272 = vset.pattern.permute.xlu0 0
    %5273 = vperm.xlu0 %5272, %v5251
    %v5274 = vpop.permute.xlu0 %5273
    %5277 = vset.pattern.permute.xlu0 0
    %5278 = vperm.xlu0 %5277, %v5252
    %v5279 = vpop.permute.xlu0 %5278
    %5282 = vset.pattern.permute.xlu0 0
    %5283 = vperm.xlu0 %5282, %v5253
    %v5284 = vpop.permute.xlu0 %5283
    %5287 = vset.pattern.permute.xlu0 0
    %5288 = vperm.xlu0 %5287, %v5254
    %v5289 = vpop.permute.xlu0 %5288
    %5292 = vset.pattern.permute.xlu0 0
    %5293 = vperm.xlu0 %5292, %v5255
    %v5294 = vpop.permute.xlu0 %5293
    %v5296 = vadd.f32 %v4361, %v5259
    %v5297 = vadd.f32 %v4363, %v5259
    %v5298 = vadd.f32 %v5195, %v5259
    %v5299 = vadd.f32 %v5197, %v5259
    %v5300 = vadd.f32 %v4368, %v5264
    %v5301 = vadd.f32 %v4370, %v5264
    %v5302 = vadd.f32 %v5202, %v5264
    %v5303 = vadd.f32 %v5204, %v5264
    %v5304 = vadd.f32 %v4375, %v5269
    %v5305 = vadd.f32 %v4377, %v5269
    %v5306 = vadd.f32 %v5209, %v5269
    %v5307 = vadd.f32 %v5211, %v5269
    %v5308 = vadd.f32 %v4382, %v5274
    %v5309 = vadd.f32 %v4384, %v5274
    %v5310 = vadd.f32 %v5216, %v5274
    %v5311 = vadd.f32 %v5218, %v5274
    %v5312 = vadd.f32 %v4389, %v5279
    %v5313 = vadd.f32 %v4391, %v5279
    %v5314 = vadd.f32 %v5223, %v5279
    %v5315 = vadd.f32 %v5225, %v5279
    %v5316 = vadd.f32 %v4396, %v5284
    %v5317 = vadd.f32 %v4398, %v5284
    %v5318 = vadd.f32 %v5230, %v5284
    %v5319 = vadd.f32 %v5232, %v5284
    %v5320 = vadd.f32 %v4403, %v5289
    %v5321 = vadd.f32 %v4405, %v5289
    %v5322 = vadd.f32 %v5237, %v5289
    %v5323 = vadd.f32 %v5239, %v5289
    %v5324 = vadd.f32 %v4410, %v5294
    %v5325 = vadd.f32 %v4412, %v5294
    %v5326 = vadd.f32 %v5244, %v5294
    %v5327 = vadd.f32 %v5246, %v5294
    %v5328 = vmul.f32 %v5296, 0.5
    %v5329 = vmul.f32 %v5297, 0.5
    %v5330 = vmul.f32 %v5298, 0.5
    %v5331 = vmul.f32 %v5299, 0.5
    %v5332 = vmul.f32 %v5300, 0.5
    %v5333 = vmul.f32 %v5301, 0.5
    %v5334 = vmul.f32 %v5302, 0.5
    %v5335 = vmul.f32 %v5303, 0.5
    %v5336 = vmul.f32 %v5304, 0.5
    %v5337 = vmul.f32 %v5305, 0.5
    %v5338 = vmul.f32 %v5306, 0.5
    %v5339 = vmul.f32 %v5307, 0.5
    %v5340 = vmul.f32 %v5308, 0.5
    %v5341 = vmul.f32 %v5309, 0.5
    %v5342 = vmul.f32 %v5310, 0.5
    %v5343 = vmul.f32 %v5311, 0.5
    %v5344 = vmul.f32 %v5312, 0.5
    %v5345 = vmul.f32 %v5313, 0.5
    %v5346 = vmul.f32 %v5314, 0.5
    %v5347 = vmul.f32 %v5315, 0.5
    %v5348 = vmul.f32 %v5316, 0.5
    %v5349 = vmul.f32 %v5317, 0.5
    %v5350 = vmul.f32 %v5318, 0.5
    %v5351 = vmul.f32 %v5319, 0.5
    %v5352 = vmul.f32 %v5320, 0.5
    %v5353 = vmul.f32 %v5321, 0.5
    %v5354 = vmul.f32 %v5322, 0.5
    %v5355 = vmul.f32 %v5323, 0.5
    %v5356 = vmul.f32 %v5324, 0.5
    %v5357 = vmul.f32 %v5325, 0.5
    %v5358 = vmul.f32 %v5326, 0.5
    %v5359 = vmul.f32 %v5327, 0.5
    %v5360 = vmul.f32 %v5296, 0.70710677
    %v5361 = vmul.f32 %v5297, 0.70710677
    %v5362 = vmul.f32 %v5298, 0.70710677
    %v5363 = vmul.f32 %v5299, 0.70710677
    %v5364 = vmul.f32 %v5300, 0.70710677
    %v5365 = vmul.f32 %v5301, 0.70710677
    %v5366 = vmul.f32 %v5302, 0.70710677
    %v5367 = vmul.f32 %v5303, 0.70710677
    %v5368 = vmul.f32 %v5304, 0.70710677
    %v5369 = vmul.f32 %v5305, 0.70710677
    %v5370 = vmul.f32 %v5306, 0.70710677
    %v5371 = vmul.f32 %v5307, 0.70710677
    %v5372 = vmul.f32 %v5308, 0.70710677
    %v5373 = vmul.f32 %v5309, 0.70710677
    %v5374 = vmul.f32 %v5310, 0.70710677
    %v5375 = vmul.f32 %v5311, 0.70710677
    %v5376 = vmul.f32 %v5312, 0.70710677
    %v5377 = vmul.f32 %v5313, 0.70710677
    %v5378 = vmul.f32 %v5314, 0.70710677
    %v5379 = vmul.f32 %v5315, 0.70710677
    %v5380 = vmul.f32 %v5316, 0.70710677
    %v5381 = vmul.f32 %v5317, 0.70710677
    %v5382 = vmul.f32 %v5318, 0.70710677
    %v5383 = vmul.f32 %v5319, 0.70710677
    %v5384 = vmul.f32 %v5320, 0.70710677
    %v5385 = vmul.f32 %v5321, 0.70710677
    %v5386 = vmul.f32 %v5322, 0.70710677
    %v5387 = vmul.f32 %v5323, 0.70710677
    %v5388 = vmul.f32 %v5324, 0.70710677
    %v5389 = vmul.f32 %v5325, 0.70710677
    %v5390 = vmul.f32 %v5326, 0.70710677
    %v5391 = vmul.f32 %v5327, 0.70710677
    %v5392 = vand.u32 2147483647, %v5360
    %v5393 = vand.u32 2147483647, %v5361
    %v5394 = vand.u32 2147483647, %v5362
    %v5395 = vand.u32 2147483647, %v5363
    %v5396 = vand.u32 2147483647, %v5364
    %v5397 = vand.u32 2147483647, %v5365
    %v5398 = vand.u32 2147483647, %v5366
    %v5399 = vand.u32 2147483647, %v5367
    %v5400 = vand.u32 2147483647, %v5368
    %v5401 = vand.u32 2147483647, %v5369
    %v5402 = vand.u32 2147483647, %v5370
    %v5403 = vand.u32 2147483647, %v5371
    %v5404 = vand.u32 2147483647, %v5372
    %v5405 = vand.u32 2147483647, %v5373
    %v5406 = vand.u32 2147483647, %v5374
    %v5407 = vand.u32 2147483647, %v5375
    %v5408 = vand.u32 2147483647, %v5376
    %v5409 = vand.u32 2147483647, %v5377
    %v5410 = vand.u32 2147483647, %v5378
    %v5411 = vand.u32 2147483647, %v5379
    %v5412 = vand.u32 2147483647, %v5380
    %v5413 = vand.u32 2147483647, %v5381
    %v5414 = vand.u32 2147483647, %v5382
    %v5415 = vand.u32 2147483647, %v5383
    %v5416 = vand.u32 2147483647, %v5384
    %v5417 = vand.u32 2147483647, %v5385
    %v5418 = vand.u32 2147483647, %v5386
    %v5419 = vand.u32 2147483647, %v5387
    %v5420 = vand.u32 2147483647, %v5388
    %v5421 = vand.u32 2147483647, %v5389
    %v5422 = vand.u32 2147483647, %v5390
    %v5423 = vand.u32 2147483647, %v5391
    %v5424 = vmul.f32 %v5392, 0.3275911
    %v5425 = vmul.f32 %v5393, 0.3275911
    %v5426 = vmul.f32 %v5394, 0.3275911
    %v5427 = vmul.f32 %v5395, 0.3275911
    %v5428 = vmul.f32 %v5396, 0.3275911
    %v5429 = vmul.f32 %v5397, 0.3275911
    %v5430 = vmul.f32 %v5398, 0.3275911
    %v5431 = vmul.f32 %v5399, 0.3275911
    %v5432 = vmul.f32 %v5400, 0.3275911
    %v5433 = vmul.f32 %v5401, 0.3275911
    %v5434 = vmul.f32 %v5402, 0.3275911
    %v5435 = vmul.f32 %v5403, 0.3275911
    %v5436 = vmul.f32 %v5404, 0.3275911
    %v5437 = vmul.f32 %v5405, 0.3275911
    %v5438 = vmul.f32 %v5406, 0.3275911
    %v5439 = vmul.f32 %v5407, 0.3275911
    %v5440 = vmul.f32 %v5408, 0.3275911
    %v5441 = vmul.f32 %v5409, 0.3275911
    %v5442 = vmul.f32 %v5410, 0.3275911
    %v5443 = vmul.f32 %v5411, 0.3275911
    %v5444 = vmul.f32 %v5412, 0.3275911
    %v5445 = vmul.f32 %v5413, 0.3275911
    %v5446 = vmul.f32 %v5414, 0.3275911
    %v5447 = vmul.f32 %v5415, 0.3275911
    %v5448 = vmul.f32 %v5416, 0.3275911
    %v5449 = vmul.f32 %v5417, 0.3275911
    %v5450 = vmul.f32 %v5418, 0.3275911
    %v5451 = vmul.f32 %v5419, 0.3275911
    %v5452 = vmul.f32 %v5420, 0.3275911
    %v5453 = vmul.f32 %v5421, 0.3275911
    %v5454 = vmul.f32 %v5422, 0.3275911
    %v5455 = vmul.f32 %v5423, 0.3275911
    %v5456 = vadd.f32 %v5424, 1.0
    %v5457 = vadd.f32 %v5425, 1.0
    %v5458 = vadd.f32 %v5426, 1.0
    %v5459 = vadd.f32 %v5427, 1.0
    %v5460 = vadd.f32 %v5428, 1.0
    %v5461 = vadd.f32 %v5429, 1.0
    %v5462 = vadd.f32 %v5430, 1.0
    %v5463 = vadd.f32 %v5431, 1.0
    %v5464 = vadd.f32 %v5432, 1.0
    %v5465 = vadd.f32 %v5433, 1.0
    %v5466 = vadd.f32 %v5434, 1.0
    %v5467 = vadd.f32 %v5435, 1.0
    %v5468 = vadd.f32 %v5436, 1.0
    %v5469 = vadd.f32 %v5437, 1.0
    %v5470 = vadd.f32 %v5438, 1.0
    %v5471 = vadd.f32 %v5439, 1.0
    %v5472 = vadd.f32 %v5440, 1.0
    %v5473 = vadd.f32 %v5441, 1.0
    %v5474 = vadd.f32 %v5442, 1.0
    %v5475 = vadd.f32 %v5443, 1.0
    %v5476 = vadd.f32 %v5444, 1.0
    %v5477 = vadd.f32 %v5445, 1.0
    %v5478 = vadd.f32 %v5446, 1.0
    %v5479 = vadd.f32 %v5447, 1.0
    %v5480 = vadd.f32 %v5448, 1.0
    %v5481 = vadd.f32 %v5449, 1.0
    %v5482 = vadd.f32 %v5450, 1.0
    %v5483 = vadd.f32 %v5451, 1.0
    %v5484 = vadd.f32 %v5452, 1.0
    %v5485 = vadd.f32 %v5453, 1.0
    %v5486 = vadd.f32 %v5454, 1.0
    %v5487 = vadd.f32 %v5455, 1.0
    %v5488 = vrcp.pop %v5456
    %v5489 = vrcp.pop %v5457
    %v5490 = vrcp.pop %v5458
    %v5491 = vrcp.pop %v5459
    %v5492 = vrcp.pop %v5460
    %v5493 = vrcp.pop %v5461
    %v5494 = vrcp.pop %v5462
    %v5495 = vrcp.pop %v5463
    %v5496 = vrcp.pop %v5464
    %v5497 = vrcp.pop %v5465
    %v5498 = vrcp.pop %v5466
    %v5499 = vrcp.pop %v5467
    %v5500 = vrcp.pop %v5468
    %v5501 = vrcp.pop %v5469
    %v5502 = vrcp.pop %v5470
    %v5503 = vrcp.pop %v5471
    %v5504 = vrcp.pop %v5472
    %v5505 = vrcp.pop %v5473
    %v5506 = vrcp.pop %v5474
    %v5507 = vrcp.pop %v5475
    %v5508 = vrcp.pop %v5476
    %v5509 = vrcp.pop %v5477
    %v5510 = vrcp.pop %v5478
    %v5511 = vrcp.pop %v5479
    %v5512 = vrcp.pop %v5480
    %v5513 = vrcp.pop %v5481
    %v5514 = vrcp.pop %v5482
    %v5515 = vrcp.pop %v5483
    %v5516 = vrcp.pop %v5484
    %v5517 = vrcp.pop %v5485
    %v5518 = vrcp.pop %v5486
    %v5519 = vrcp.pop %v5487
    %v5520 = vmul.f32 %v5488, 1.0614054
    %v5521 = vmul.f32 %v5489, 1.0614054
    %v5522 = vmul.f32 %v5490, 1.0614054
    %v5523 = vmul.f32 %v5491, 1.0614054
    %v5524 = vmul.f32 %v5492, 1.0614054
    %v5525 = vmul.f32 %v5493, 1.0614054
    %v5526 = vmul.f32 %v5494, 1.0614054
    %v5527 = vmul.f32 %v5495, 1.0614054
    %v5528 = vmul.f32 %v5496, 1.0614054
    %v5529 = vmul.f32 %v5497, 1.0614054
    %v5530 = vmul.f32 %v5498, 1.0614054
    %v5531 = vmul.f32 %v5499, 1.0614054
    %v5532 = vmul.f32 %v5500, 1.0614054
    %v5533 = vmul.f32 %v5501, 1.0614054
    %v5534 = vmul.f32 %v5502, 1.0614054
    %v5535 = vmul.f32 %v5503, 1.0614054
    %v5536 = vmul.f32 %v5504, 1.0614054
    %v5537 = vmul.f32 %v5505, 1.0614054
    %v5538 = vmul.f32 %v5506, 1.0614054
    %v5539 = vmul.f32 %v5507, 1.0614054
    %v5540 = vmul.f32 %v5508, 1.0614054
    %v5541 = vmul.f32 %v5509, 1.0614054
    %v5542 = vmul.f32 %v5510, 1.0614054
    %v5543 = vmul.f32 %v5511, 1.0614054
    %v5544 = vmul.f32 %v5512, 1.0614054
    %v5545 = vmul.f32 %v5513, 1.0614054
    %v5546 = vmul.f32 %v5514, 1.0614054
    %v5547 = vmul.f32 %v5515, 1.0614054
    %v5548 = vmul.f32 %v5516, 1.0614054
    %v5549 = vmul.f32 %v5517, 1.0614054
    %v5550 = vmul.f32 %v5518, 1.0614054
    %v5551 = vmul.f32 %v5519, 1.0614054
    %v5552 = vadd.f32 %v5520, -1.4531521
    %v5553 = vadd.f32 %v5521, -1.4531521
    %v5554 = vadd.f32 %v5522, -1.4531521
    %v5555 = vadd.f32 %v5523, -1.4531521
    %v5556 = vadd.f32 %v5524, -1.4531521
    %v5557 = vadd.f32 %v5525, -1.4531521
    %v5558 = vadd.f32 %v5526, -1.4531521
    %v5559 = vadd.f32 %v5527, -1.4531521
    %v5560 = vadd.f32 %v5528, -1.4531521
    %v5561 = vadd.f32 %v5529, -1.4531521
    %v5562 = vadd.f32 %v5530, -1.4531521
    %v5563 = vadd.f32 %v5531, -1.4531521
    %v5564 = vadd.f32 %v5532, -1.4531521
    %v5565 = vadd.f32 %v5533, -1.4531521
    %v5566 = vadd.f32 %v5534, -1.4531521
    %v5567 = vadd.f32 %v5535, -1.4531521
    %v5568 = vadd.f32 %v5536, -1.4531521
    %v5569 = vadd.f32 %v5537, -1.4531521
    %v5570 = vadd.f32 %v5538, -1.4531521
    %v5571 = vadd.f32 %v5539, -1.4531521
    %v5572 = vadd.f32 %v5540, -1.4531521
    %v5573 = vadd.f32 %v5541, -1.4531521
    %v5574 = vadd.f32 %v5542, -1.4531521
    %v5575 = vadd.f32 %v5543, -1.4531521
    %v5576 = vadd.f32 %v5544, -1.4531521
    %v5577 = vadd.f32 %v5545, -1.4531521
    %v5578 = vadd.f32 %v5546, -1.4531521
    %v5579 = vadd.f32 %v5547, -1.4531521
    %v5580 = vadd.f32 %v5548, -1.4531521
    %v5581 = vadd.f32 %v5549, -1.4531521
    %v5582 = vadd.f32 %v5550, -1.4531521
    %v5583 = vadd.f32 %v5551, -1.4531521
    %v5584 = vmul.f32 %v5488, %v5552
    %v5585 = vmul.f32 %v5489, %v5553
    %v5586 = vmul.f32 %v5490, %v5554
    %v5587 = vmul.f32 %v5491, %v5555
    %v5588 = vmul.f32 %v5492, %v5556
    %v5589 = vmul.f32 %v5493, %v5557
    %v5590 = vmul.f32 %v5494, %v5558
    %v5591 = vmul.f32 %v5495, %v5559
    %v5592 = vmul.f32 %v5496, %v5560
    %v5593 = vmul.f32 %v5497, %v5561
    %v5594 = vmul.f32 %v5498, %v5562
    %v5595 = vmul.f32 %v5499, %v5563
    %v5596 = vmul.f32 %v5500, %v5564
    %v5597 = vmul.f32 %v5501, %v5565
    %v5598 = vmul.f32 %v5502, %v5566
    %v5599 = vmul.f32 %v5503, %v5567
    %v5600 = vmul.f32 %v5504, %v5568
    %v5601 = vmul.f32 %v5505, %v5569
    %v5602 = vmul.f32 %v5506, %v5570
    %v5603 = vmul.f32 %v5507, %v5571
    %v5604 = vmul.f32 %v5508, %v5572
    %v5605 = vmul.f32 %v5509, %v5573
    %v5606 = vmul.f32 %v5510, %v5574
    %v5607 = vmul.f32 %v5511, %v5575
    %v5608 = vmul.f32 %v5512, %v5576
    %v5609 = vmul.f32 %v5513, %v5577
    %v5610 = vmul.f32 %v5514, %v5578
    %v5611 = vmul.f32 %v5515, %v5579
    %v5612 = vmul.f32 %v5516, %v5580
    %v5613 = vmul.f32 %v5517, %v5581
    %v5614 = vmul.f32 %v5518, %v5582
    %v5615 = vmul.f32 %v5519, %v5583
    %v5616 = vadd.f32 %v5584, 1.4214138
    %v5617 = vadd.f32 %v5585, 1.4214138
    %v5618 = vadd.f32 %v5586, 1.4214138
    %v5619 = vadd.f32 %v5587, 1.4214138
    %v5620 = vadd.f32 %v5588, 1.4214138
    %v5621 = vadd.f32 %v5589, 1.4214138
    %v5622 = vadd.f32 %v5590, 1.4214138
    %v5623 = vadd.f32 %v5591, 1.4214138
    %v5624 = vadd.f32 %v5592, 1.4214138
    %v5625 = vadd.f32 %v5593, 1.4214138
    %v5626 = vadd.f32 %v5594, 1.4214138
    %v5627 = vadd.f32 %v5595, 1.4214138
    %v5628 = vadd.f32 %v5596, 1.4214138
    %v5629 = vadd.f32 %v5597, 1.4214138
    %v5630 = vadd.f32 %v5598, 1.4214138
    %v5631 = vadd.f32 %v5599, 1.4214138
    %v5632 = vadd.f32 %v5600, 1.4214138
    %v5633 = vadd.f32 %v5601, 1.4214138
    %v5634 = vadd.f32 %v5602, 1.4214138
    %v5635 = vadd.f32 %v5603, 1.4214138
    %v5636 = vadd.f32 %v5604, 1.4214138
    %v5637 = vadd.f32 %v5605, 1.4214138
    %v5638 = vadd.f32 %v5606, 1.4214138
    %v5639 = vadd.f32 %v5607, 1.4214138
    %v5640 = vadd.f32 %v5608, 1.4214138
    %v5641 = vadd.f32 %v5609, 1.4214138
    %v5642 = vadd.f32 %v5610, 1.4214138
    %v5643 = vadd.f32 %v5611, 1.4214138
    %v5644 = vadd.f32 %v5612, 1.4214138
    %v5645 = vadd.f32 %v5613, 1.4214138
    %v5646 = vadd.f32 %v5614, 1.4214138
    %v5647 = vadd.f32 %v5615, 1.4214138
    %v5648 = vmul.f32 %v5488, %v5616
    %v5649 = vmul.f32 %v5489, %v5617
    %v5650 = vmul.f32 %v5490, %v5618
    %v5651 = vmul.f32 %v5491, %v5619
    %v5652 = vmul.f32 %v5492, %v5620
    %v5653 = vmul.f32 %v5493, %v5621
    %v5654 = vmul.f32 %v5494, %v5622
    %v5655 = vmul.f32 %v5495, %v5623
    %v5656 = vmul.f32 %v5496, %v5624
    %v5657 = vmul.f32 %v5497, %v5625
    %v5658 = vmul.f32 %v5498, %v5626
    %v5659 = vmul.f32 %v5499, %v5627
    %v5660 = vmul.f32 %v5500, %v5628
    %v5661 = vmul.f32 %v5501, %v5629
    %v5662 = vmul.f32 %v5502, %v5630
    %v5663 = vmul.f32 %v5503, %v5631
    %v5664 = vmul.f32 %v5504, %v5632
    %v5665 = vmul.f32 %v5505, %v5633
    %v5666 = vmul.f32 %v5506, %v5634
    %v5667 = vmul.f32 %v5507, %v5635
    %v5668 = vmul.f32 %v5508, %v5636
    %v5669 = vmul.f32 %v5509, %v5637
    %v5670 = vmul.f32 %v5510, %v5638
    %v5671 = vmul.f32 %v5511, %v5639
    %v5672 = vmul.f32 %v5512, %v5640
    %v5673 = vmul.f32 %v5513, %v5641
    %v5674 = vmul.f32 %v5514, %v5642
    %v5675 = vmul.f32 %v5515, %v5643
    %v5676 = vmul.f32 %v5516, %v5644
    %v5677 = vmul.f32 %v5517, %v5645
    %v5678 = vmul.f32 %v5518, %v5646
    %v5679 = vmul.f32 %v5519, %v5647
    %v5680 = vadd.f32 %v5648, -0.28449672
    %v5681 = vadd.f32 %v5649, -0.28449672
    %v5682 = vadd.f32 %v5650, -0.28449672
    %v5683 = vadd.f32 %v5651, -0.28449672
    %v5684 = vadd.f32 %v5652, -0.28449672
    %v5685 = vadd.f32 %v5653, -0.28449672
    %v5686 = vadd.f32 %v5654, -0.28449672
    %v5687 = vadd.f32 %v5655, -0.28449672
    %v5688 = vadd.f32 %v5656, -0.28449672
    %v5689 = vadd.f32 %v5657, -0.28449672
    %v5690 = vadd.f32 %v5658, -0.28449672
    %v5691 = vadd.f32 %v5659, -0.28449672
    %v5692 = vadd.f32 %v5660, -0.28449672
    %v5693 = vadd.f32 %v5661, -0.28449672
    %v5694 = vadd.f32 %v5662, -0.28449672
    %v5695 = vadd.f32 %v5663, -0.28449672
    %v5696 = vadd.f32 %v5664, -0.28449672
    %v5697 = vadd.f32 %v5665, -0.28449672
    %v5698 = vadd.f32 %v5666, -0.28449672
    %v5699 = vadd.f32 %v5667, -0.28449672
    %v5700 = vadd.f32 %v5668, -0.28449672
    %v5701 = vadd.f32 %v5669, -0.28449672
    %v5702 = vadd.f32 %v5670, -0.28449672
    %v5703 = vadd.f32 %v5671, -0.28449672
    %v5704 = vadd.f32 %v5672, -0.28449672
    %v5705 = vadd.f32 %v5673, -0.28449672
    %v5706 = vadd.f32 %v5674, -0.28449672
    %v5707 = vadd.f32 %v5675, -0.28449672
    %v5708 = vadd.f32 %v5676, -0.28449672
    %v5709 = vadd.f32 %v5677, -0.28449672
    %v5710 = vadd.f32 %v5678, -0.28449672
    %v5711 = vadd.f32 %v5679, -0.28449672
    %v5712 = vmul.f32 %v5488, %v5680
    %v5713 = vmul.f32 %v5489, %v5681
    %v5714 = vmul.f32 %v5490, %v5682
    %v5715 = vmul.f32 %v5491, %v5683
    %v5716 = vmul.f32 %v5492, %v5684
    %v5717 = vmul.f32 %v5493, %v5685
    %v5718 = vmul.f32 %v5494, %v5686
    %v5719 = vmul.f32 %v5495, %v5687
    %v5720 = vmul.f32 %v5496, %v5688
    %v5721 = vmul.f32 %v5497, %v5689
    %v5722 = vmul.f32 %v5498, %v5690
    %v5723 = vmul.f32 %v5499, %v5691
    %v5724 = vmul.f32 %v5500, %v5692
    %v5725 = vmul.f32 %v5501, %v5693
    %v5726 = vmul.f32 %v5502, %v5694
    %v5727 = vmul.f32 %v5503, %v5695
    %v5728 = vmul.f32 %v5504, %v5696
    %v5729 = vmul.f32 %v5505, %v5697
    %v5730 = vmul.f32 %v5506, %v5698
    %v5731 = vmul.f32 %v5507, %v5699
    %v5732 = vmul.f32 %v5508, %v5700
    %v5733 = vmul.f32 %v5509, %v5701
    %v5734 = vmul.f32 %v5510, %v5702
    %v5735 = vmul.f32 %v5511, %v5703
    %v5736 = vmul.f32 %v5512, %v5704
    %v5737 = vmul.f32 %v5513, %v5705
    %v5738 = vmul.f32 %v5514, %v5706
    %v5739 = vmul.f32 %v5515, %v5707
    %v5740 = vmul.f32 %v5516, %v5708
    %v5741 = vmul.f32 %v5517, %v5709
    %v5742 = vmul.f32 %v5518, %v5710
    %v5743 = vmul.f32 %v5519, %v5711
    %v5744 = vadd.f32 %v5712, 0.2548296
    %v5745 = vadd.f32 %v5713, 0.2548296
    %v5746 = vadd.f32 %v5714, 0.2548296
    %v5747 = vadd.f32 %v5715, 0.2548296
    %v5748 = vadd.f32 %v5716, 0.2548296
    %v5749 = vadd.f32 %v5717, 0.2548296
    %v5750 = vadd.f32 %v5718, 0.2548296
    %v5751 = vadd.f32 %v5719, 0.2548296
    %v5752 = vadd.f32 %v5720, 0.2548296
    %v5753 = vadd.f32 %v5721, 0.2548296
    %v5754 = vadd.f32 %v5722, 0.2548296
    %v5755 = vadd.f32 %v5723, 0.2548296
    %v5756 = vadd.f32 %v5724, 0.2548296
    %v5757 = vadd.f32 %v5725, 0.2548296
    %v5758 = vadd.f32 %v5726, 0.2548296
    %v5759 = vadd.f32 %v5727, 0.2548296
    %v5760 = vadd.f32 %v5728, 0.2548296
    %v5761 = vadd.f32 %v5729, 0.2548296
    %v5762 = vadd.f32 %v5730, 0.2548296
    %v5763 = vadd.f32 %v5731, 0.2548296
    %v5764 = vadd.f32 %v5732, 0.2548296
    %v5765 = vadd.f32 %v5733, 0.2548296
    %v5766 = vadd.f32 %v5734, 0.2548296
    %v5767 = vadd.f32 %v5735, 0.2548296
    %v5768 = vadd.f32 %v5736, 0.2548296
    %v5769 = vadd.f32 %v5737, 0.2548296
    %v5770 = vadd.f32 %v5738, 0.2548296
    %v5771 = vadd.f32 %v5739, 0.2548296
    %v5772 = vadd.f32 %v5740, 0.2548296
    %v5773 = vadd.f32 %v5741, 0.2548296
    %v5774 = vadd.f32 %v5742, 0.2548296
    %v5775 = vadd.f32 %v5743, 0.2548296
    %v5776 = vmul.f32 %v5488, %v5744
    %v5777 = vmul.f32 %v5489, %v5745
    %v5778 = vmul.f32 %v5490, %v5746
    %v5779 = vmul.f32 %v5491, %v5747
    %v5780 = vmul.f32 %v5492, %v5748
    %v5781 = vmul.f32 %v5493, %v5749
    %v5782 = vmul.f32 %v5494, %v5750
    %v5783 = vmul.f32 %v5495, %v5751
    %v5784 = vmul.f32 %v5496, %v5752
    %v5785 = vmul.f32 %v5497, %v5753
    %v5786 = vmul.f32 %v5498, %v5754
    %v5787 = vmul.f32 %v5499, %v5755
    %v5788 = vmul.f32 %v5500, %v5756
    %v5789 = vmul.f32 %v5501, %v5757
    %v5790 = vmul.f32 %v5502, %v5758
    %v5791 = vmul.f32 %v5503, %v5759
    %v5792 = vmul.f32 %v5504, %v5760
    %v5793 = vmul.f32 %v5505, %v5761
    %v5794 = vmul.f32 %v5506, %v5762
    %v5795 = vmul.f32 %v5507, %v5763
    %v5796 = vmul.f32 %v5508, %v5764
    %v5797 = vmul.f32 %v5509, %v5765
    %v5798 = vmul.f32 %v5510, %v5766
    %v5799 = vmul.f32 %v5511, %v5767
    %v5800 = vmul.f32 %v5512, %v5768
    %v5801 = vmul.f32 %v5513, %v5769
    %v5802 = vmul.f32 %v5514, %v5770
    %v5803 = vmul.f32 %v5515, %v5771
    %v5804 = vmul.f32 %v5516, %v5772
    %v5805 = vmul.f32 %v5517, %v5773
    %v5806 = vmul.f32 %v5518, %v5774
    %v5807 = vmul.f32 %v5519, %v5775
    %v5808 = vmul.f32 %v5360, %v5360
    %v5809 = vmul.f32 %v5361, %v5361
    %v5810 = vmul.f32 %v5362, %v5362
    %v5811 = vmul.f32 %v5363, %v5363
    %v5812 = vmul.f32 %v5364, %v5364
    %v5813 = vmul.f32 %v5365, %v5365
    %v5814 = vmul.f32 %v5366, %v5366
    %v5815 = vmul.f32 %v5367, %v5367
    %v5816 = vmul.f32 %v5368, %v5368
    %v5817 = vmul.f32 %v5369, %v5369
    %v5818 = vmul.f32 %v5370, %v5370
    %v5819 = vmul.f32 %v5371, %v5371
    %v5820 = vmul.f32 %v5372, %v5372
    %v5821 = vmul.f32 %v5373, %v5373
    %v5822 = vmul.f32 %v5374, %v5374
    %v5823 = vmul.f32 %v5375, %v5375
    %v5824 = vmul.f32 %v5376, %v5376
    %v5825 = vmul.f32 %v5377, %v5377
    %v5826 = vmul.f32 %v5378, %v5378
    %v5827 = vmul.f32 %v5379, %v5379
    %v5828 = vmul.f32 %v5380, %v5380
    %v5829 = vmul.f32 %v5381, %v5381
    %v5830 = vmul.f32 %v5382, %v5382
    %v5831 = vmul.f32 %v5383, %v5383
    %v5832 = vmul.f32 %v5384, %v5384
    %v5833 = vmul.f32 %v5385, %v5385
    %v5834 = vmul.f32 %v5386, %v5386
    %v5835 = vmul.f32 %v5387, %v5387
    %v5836 = vmul.f32 %v5388, %v5388
    %v5837 = vmul.f32 %v5389, %v5389
    %v5838 = vmul.f32 %v5390, %v5390
    %v5839 = vmul.f32 %v5391, %v5391
    %v5840 = vsub.f32 0.0, %v5808
    %v5841 = vsub.f32 0.0, %v5809
    %v5842 = vsub.f32 0.0, %v5810
    %v5843 = vsub.f32 0.0, %v5811
    %v5844 = vsub.f32 0.0, %v5812
    %v5845 = vsub.f32 0.0, %v5813
    %v5846 = vsub.f32 0.0, %v5814
    %v5847 = vsub.f32 0.0, %v5815
    %v5848 = vsub.f32 0.0, %v5816
    %v5849 = vsub.f32 0.0, %v5817
    %v5850 = vsub.f32 0.0, %v5818
    %v5851 = vsub.f32 0.0, %v5819
    %v5852 = vsub.f32 0.0, %v5820
    %v5853 = vsub.f32 0.0, %v5821
    %v5854 = vsub.f32 0.0, %v5822
    %v5855 = vsub.f32 0.0, %v5823
    %v5856 = vsub.f32 0.0, %v5824
    %v5857 = vsub.f32 0.0, %v5825
    %v5858 = vsub.f32 0.0, %v5826
    %v5859 = vsub.f32 0.0, %v5827
    %v5860 = vsub.f32 0.0, %v5828
    %v5861 = vsub.f32 0.0, %v5829
    %v5862 = vsub.f32 0.0, %v5830
    %v5863 = vsub.f32 0.0, %v5831
    %v5864 = vsub.f32 0.0, %v5832
    %v5865 = vsub.f32 0.0, %v5833
    %v5866 = vsub.f32 0.0, %v5834
    %v5867 = vsub.f32 0.0, %v5835
    %v5868 = vsub.f32 0.0, %v5836
    %v5869 = vsub.f32 0.0, %v5837
    %v5870 = vsub.f32 0.0, %v5838
    %v5871 = vsub.f32 0.0, %v5839
    %v5872 = vmul.f32 %v5840, 1.442695
    %v5873 = vpow.pop %v5872
    %v5874 = vmul.f32 %v5841, 1.442695
    %v5875 = vpow.pop %v5874
    %v5876 = vmul.f32 %v5842, 1.442695
    %v5877 = vpow.pop %v5876
    %v5878 = vmul.f32 %v5843, 1.442695
    %v5879 = vpow.pop %v5878
    %v5880 = vmul.f32 %v5844, 1.442695
    %v5881 = vpow.pop %v5880
    %v5882 = vmul.f32 %v5845, 1.442695
    %v5883 = vpow.pop %v5882
    %v5884 = vmul.f32 %v5846, 1.442695
    %v5885 = vpow.pop %v5884
    %v5886 = vmul.f32 %v5847, 1.442695
    %v5887 = vpow.pop %v5886
    %v5888 = vmul.f32 %v5848, 1.442695
    %v5889 = vpow.pop %v5888
    %v5890 = vmul.f32 %v5849, 1.442695
    %v5891 = vpow.pop %v5890
    %v5892 = vmul.f32 %v5850, 1.442695
    %v5893 = vpow.pop %v5892
    %v5894 = vmul.f32 %v5851, 1.442695
    %v5895 = vpow.pop %v5894
    %v5896 = vmul.f32 %v5852, 1.442695
    %v5897 = vpow.pop %v5896
    %v5898 = vmul.f32 %v5853, 1.442695
    %v5899 = vpow.pop %v5898
    %v5900 = vmul.f32 %v5854, 1.442695
    %v5901 = vpow.pop %v5900
    %v5902 = vmul.f32 %v5855, 1.442695
    %v5903 = vpow.pop %v5902
    %v5904 = vmul.f32 %v5856, 1.442695
    %v5905 = vpow.pop %v5904
    %v5906 = vmul.f32 %v5857, 1.442695
    %v5907 = vpow.pop %v5906
    %v5908 = vmul.f32 %v5858, 1.442695
    %v5909 = vpow.pop %v5908
    %v5910 = vmul.f32 %v5859, 1.442695
    %v5911 = vpow.pop %v5910
    %v5912 = vmul.f32 %v5860, 1.442695
    %v5913 = vpow.pop %v5912
    %v5914 = vmul.f32 %v5861, 1.442695
    %v5915 = vpow.pop %v5914
    %v5916 = vmul.f32 %v5862, 1.442695
    %v5917 = vpow.pop %v5916
    %v5918 = vmul.f32 %v5863, 1.442695
    %v5919 = vpow.pop %v5918
    %v5920 = vmul.f32 %v5864, 1.442695
    %v5921 = vpow.pop %v5920
    %v5922 = vmul.f32 %v5865, 1.442695
    %v5923 = vpow.pop %v5922
    %v5924 = vmul.f32 %v5866, 1.442695
    %v5925 = vpow.pop %v5924
    %v5926 = vmul.f32 %v5867, 1.442695
    %v5927 = vpow.pop %v5926
    %v5928 = vmul.f32 %v5868, 1.442695
    %v5929 = vpow.pop %v5928
    %v5930 = vmul.f32 %v5869, 1.442695
    %v5931 = vpow.pop %v5930
    %v5932 = vmul.f32 %v5870, 1.442695
    %v5933 = vpow.pop %v5932
    %v5934 = vmul.f32 %v5871, 1.442695
    %v5935 = vpow.pop %v5934
    %v5936 = vmul.f32 %v5776, %v5873
    %v5937 = vmul.f32 %v5777, %v5875
    %v5938 = vmul.f32 %v5778, %v5877
    %v5939 = vmul.f32 %v5779, %v5879
    %v5940 = vmul.f32 %v5780, %v5881
    %v5941 = vmul.f32 %v5781, %v5883
    %v5942 = vmul.f32 %v5782, %v5885
    %v5943 = vmul.f32 %v5783, %v5887
    %v5944 = vmul.f32 %v5784, %v5889
    %v5945 = vmul.f32 %v5785, %v5891
    %v5946 = vmul.f32 %v5786, %v5893
    %v5947 = vmul.f32 %v5787, %v5895
    %v5948 = vmul.f32 %v5788, %v5897
    %v5949 = vmul.f32 %v5789, %v5899
    %v5950 = vmul.f32 %v5790, %v5901
    %v5951 = vmul.f32 %v5791, %v5903
    %v5952 = vmul.f32 %v5792, %v5905
    %v5953 = vmul.f32 %v5793, %v5907
    %v5954 = vmul.f32 %v5794, %v5909
    %v5955 = vmul.f32 %v5795, %v5911
    %v5956 = vmul.f32 %v5796, %v5913
    %v5957 = vmul.f32 %v5797, %v5915
    %v5958 = vmul.f32 %v5798, %v5917
    %v5959 = vmul.f32 %v5799, %v5919
    %v5960 = vmul.f32 %v5800, %v5921
    %v5961 = vmul.f32 %v5801, %v5923
    %v5962 = vmul.f32 %v5802, %v5925
    %v5963 = vmul.f32 %v5803, %v5927
    %v5964 = vmul.f32 %v5804, %v5929
    %v5965 = vmul.f32 %v5805, %v5931
    %v5966 = vmul.f32 %v5806, %v5933
    %v5967 = vmul.f32 %v5807, %v5935
    %v5968 = vsub.f32 1.0, %v5936
    %v5969 = vsub.f32 1.0, %v5937
    %v5970 = vsub.f32 1.0, %v5938
    %v5971 = vsub.f32 1.0, %v5939
    %v5972 = vsub.f32 1.0, %v5940
    %v5973 = vsub.f32 1.0, %v5941
    %v5974 = vsub.f32 1.0, %v5942
    %v5975 = vsub.f32 1.0, %v5943
    %v5976 = vsub.f32 1.0, %v5944
    %v5977 = vsub.f32 1.0, %v5945
    %v5978 = vsub.f32 1.0, %v5946
    %v5979 = vsub.f32 1.0, %v5947
    %v5980 = vsub.f32 1.0, %v5948
    %v5981 = vsub.f32 1.0, %v5949
    %v5982 = vsub.f32 1.0, %v5950
    %v5983 = vsub.f32 1.0, %v5951
    %v5984 = vsub.f32 1.0, %v5952
    %v5985 = vsub.f32 1.0, %v5953
    %v5986 = vsub.f32 1.0, %v5954
    %v5987 = vsub.f32 1.0, %v5955
    %v5988 = vsub.f32 1.0, %v5956
    %v5989 = vsub.f32 1.0, %v5957
    %v5990 = vsub.f32 1.0, %v5958
    %v5991 = vsub.f32 1.0, %v5959
    %v5992 = vsub.f32 1.0, %v5960
    %v5993 = vsub.f32 1.0, %v5961
    %v5994 = vsub.f32 1.0, %v5962
    %v5995 = vsub.f32 1.0, %v5963
    %v5996 = vsub.f32 1.0, %v5964
    %v5997 = vsub.f32 1.0, %v5965
    %v5998 = vsub.f32 1.0, %v5966
    %v5999 = vsub.f32 1.0, %v5967
    %vm6000 = vcmp.ge.f32.partialorder %v5360, 0.0
    %vm6001 = vcmp.ge.f32.partialorder %v5361, 0.0
    %vm6002 = vcmp.ge.f32.partialorder %v5362, 0.0
    %vm6003 = vcmp.ge.f32.partialorder %v5363, 0.0
    %vm6004 = vcmp.ge.f32.partialorder %v5364, 0.0
    %vm6005 = vcmp.ge.f32.partialorder %v5365, 0.0
    %vm6006 = vcmp.ge.f32.partialorder %v5366, 0.0
    %vm6007 = vcmp.ge.f32.partialorder %v5367, 0.0
    %vm6008 = vcmp.ge.f32.partialorder %v5368, 0.0
    %vm6009 = vcmp.ge.f32.partialorder %v5369, 0.0
    %vm6010 = vcmp.ge.f32.partialorder %v5370, 0.0
    %vm6011 = vcmp.ge.f32.partialorder %v5371, 0.0
    %vm6012 = vcmp.ge.f32.partialorder %v5372, 0.0
    %vm6013 = vcmp.ge.f32.partialorder %v5373, 0.0
    %vm6014 = vcmp.ge.f32.partialorder %v5374, 0.0
    %vm6015 = vcmp.ge.f32.partialorder %v5375, 0.0
    %vm6016 = vcmp.ge.f32.partialorder %v5376, 0.0
    %vm6017 = vcmp.ge.f32.partialorder %v5377, 0.0
    %vm6018 = vcmp.ge.f32.partialorder %v5378, 0.0
    %vm6019 = vcmp.ge.f32.partialorder %v5379, 0.0
    %vm6020 = vcmp.ge.f32.partialorder %v5380, 0.0
    %vm6021 = vcmp.ge.f32.partialorder %v5381, 0.0
    %vm6022 = vcmp.ge.f32.partialorder %v5382, 0.0
    %vm6023 = vcmp.ge.f32.partialorder %v5383, 0.0
    %vm6024 = vcmp.ge.f32.partialorder %v5384, 0.0
    %vm6025 = vcmp.ge.f32.partialorder %v5385, 0.0
    %vm6026 = vcmp.ge.f32.partialorder %v5386, 0.0
    %vm6027 = vcmp.ge.f32.partialorder %v5387, 0.0
    %vm6028 = vcmp.ge.f32.partialorder %v5388, 0.0
    %vm6029 = vcmp.ge.f32.partialorder %v5389, 0.0
    %vm6030 = vcmp.ge.f32.partialorder %v5390, 0.0
    %vm6031 = vcmp.ge.f32.partialorder %v5391, 0.0
    %v6032 = vsub.f32 0.0, %v5968
    %v6033 = vsub.f32 0.0, %v5969
    %v6034 = vsub.f32 0.0, %v5970
    %v6035 = vsub.f32 0.0, %v5971
    %v6036 = vsub.f32 0.0, %v5972
    %v6037 = vsub.f32 0.0, %v5973
    %v6038 = vsub.f32 0.0, %v5974
    %v6039 = vsub.f32 0.0, %v5975
    %v6040 = vsub.f32 0.0, %v5976
    %v6041 = vsub.f32 0.0, %v5977
    %v6042 = vsub.f32 0.0, %v5978
    %v6043 = vsub.f32 0.0, %v5979
    %v6044 = vsub.f32 0.0, %v5980
    %v6045 = vsub.f32 0.0, %v5981
    %v6046 = vsub.f32 0.0, %v5982
    %v6047 = vsub.f32 0.0, %v5983
    %v6048 = vsub.f32 0.0, %v5984
    %v6049 = vsub.f32 0.0, %v5985
    %v6050 = vsub.f32 0.0, %v5986
    %v6051 = vsub.f32 0.0, %v5987
    %v6052 = vsub.f32 0.0, %v5988
    %v6053 = vsub.f32 0.0, %v5989
    %v6054 = vsub.f32 0.0, %v5990
    %v6055 = vsub.f32 0.0, %v5991
    %v6056 = vsub.f32 0.0, %v5992
    %v6057 = vsub.f32 0.0, %v5993
    %v6058 = vsub.f32 0.0, %v5994
    %v6059 = vsub.f32 0.0, %v5995
    %v6060 = vsub.f32 0.0, %v5996
    %v6061 = vsub.f32 0.0, %v5997
    %v6062 = vsub.f32 0.0, %v5998
    %v6063 = vsub.f32 0.0, %v5999
    %v6064 = vsel %vm6000, %v5968, %v6032
    %v6065 = vsel %vm6001, %v5969, %v6033
    %v6066 = vsel %vm6002, %v5970, %v6034
    %v6067 = vsel %vm6003, %v5971, %v6035
    %v6068 = vsel %vm6004, %v5972, %v6036
    %v6069 = vsel %vm6005, %v5973, %v6037
    %v6070 = vsel %vm6006, %v5974, %v6038
    %v6071 = vsel %vm6007, %v5975, %v6039
    %v6072 = vsel %vm6008, %v5976, %v6040
    %v6073 = vsel %vm6009, %v5977, %v6041
    %v6074 = vsel %vm6010, %v5978, %v6042
    %v6075 = vsel %vm6011, %v5979, %v6043
    %v6076 = vsel %vm6012, %v5980, %v6044
    %v6077 = vsel %vm6013, %v5981, %v6045
    %v6078 = vsel %vm6014, %v5982, %v6046
    %v6079 = vsel %vm6015, %v5983, %v6047
    %v6080 = vsel %vm6016, %v5984, %v6048
    %v6081 = vsel %vm6017, %v5985, %v6049
    %v6082 = vsel %vm6018, %v5986, %v6050
    %v6083 = vsel %vm6019, %v5987, %v6051
    %v6084 = vsel %vm6020, %v5988, %v6052
    %v6085 = vsel %vm6021, %v5989, %v6053
    %v6086 = vsel %vm6022, %v5990, %v6054
    %v6087 = vsel %vm6023, %v5991, %v6055
    %v6088 = vsel %vm6024, %v5992, %v6056
    %v6089 = vsel %vm6025, %v5993, %v6057
    %v6090 = vsel %vm6026, %v5994, %v6058
    %v6091 = vsel %vm6027, %v5995, %v6059
    %v6092 = vsel %vm6028, %v5996, %v6060
    %v6093 = vsel %vm6029, %v5997, %v6061
    %v6094 = vsel %vm6030, %v5998, %v6062
    %v6095 = vsel %vm6031, %v5999, %v6063
    %v6096 = vadd.f32 %v6064, 1.0
    %v6097 = vadd.f32 %v6065, 1.0
    %v6098 = vadd.f32 %v6066, 1.0
    %v6099 = vadd.f32 %v6067, 1.0
    %v6100 = vadd.f32 %v6068, 1.0
    %v6101 = vadd.f32 %v6069, 1.0
    %v6102 = vadd.f32 %v6070, 1.0
    %v6103 = vadd.f32 %v6071, 1.0
    %v6104 = vadd.f32 %v6072, 1.0
    %v6105 = vadd.f32 %v6073, 1.0
    %v6106 = vadd.f32 %v6074, 1.0
    %v6107 = vadd.f32 %v6075, 1.0
    %v6108 = vadd.f32 %v6076, 1.0
    %v6109 = vadd.f32 %v6077, 1.0
    %v6110 = vadd.f32 %v6078, 1.0
    %v6111 = vadd.f32 %v6079, 1.0
    %v6112 = vadd.f32 %v6080, 1.0
    %v6113 = vadd.f32 %v6081, 1.0
    %v6114 = vadd.f32 %v6082, 1.0
    %v6115 = vadd.f32 %v6083, 1.0
    %v6116 = vadd.f32 %v6084, 1.0
    %v6117 = vadd.f32 %v6085, 1.0
    %v6118 = vadd.f32 %v6086, 1.0
    %v6119 = vadd.f32 %v6087, 1.0
    %v6120 = vadd.f32 %v6088, 1.0
    %v6121 = vadd.f32 %v6089, 1.0
    %v6122 = vadd.f32 %v6090, 1.0
    %v6123 = vadd.f32 %v6091, 1.0
    %v6124 = vadd.f32 %v6092, 1.0
    %v6125 = vadd.f32 %v6093, 1.0
    %v6126 = vadd.f32 %v6094, 1.0
    %v6127 = vadd.f32 %v6095, 1.0
    %v6128 = vmul.f32 %v5328, %v6096
    %v6129 = vmul.f32 %v5329, %v6097
    %v6130 = vmul.f32 %v5330, %v6098
    %v6131 = vmul.f32 %v5331, %v6099
    %v6132 = vmul.f32 %v5332, %v6100
    %v6133 = vmul.f32 %v5333, %v6101
    %v6134 = vmul.f32 %v5334, %v6102
    %v6135 = vmul.f32 %v5335, %v6103
    %v6136 = vmul.f32 %v5336, %v6104
    %v6137 = vmul.f32 %v5337, %v6105
    %v6138 = vmul.f32 %v5338, %v6106
    %v6139 = vmul.f32 %v5339, %v6107
    %v6140 = vmul.f32 %v5340, %v6108
    %v6141 = vmul.f32 %v5341, %v6109
    %v6142 = vmul.f32 %v5342, %v6110
    %v6143 = vmul.f32 %v5343, %v6111
    %v6144 = vmul.f32 %v5344, %v6112
    %v6145 = vmul.f32 %v5345, %v6113
    %v6146 = vmul.f32 %v5346, %v6114
    %v6147 = vmul.f32 %v5347, %v6115
    %v6148 = vmul.f32 %v5348, %v6116
    %v6149 = vmul.f32 %v5349, %v6117
    %v6150 = vmul.f32 %v5350, %v6118
    %v6151 = vmul.f32 %v5351, %v6119
    %v6152 = vmul.f32 %v5352, %v6120
    %v6153 = vmul.f32 %v5353, %v6121
    %v6154 = vmul.f32 %v5354, %v6122
    %v6155 = vmul.f32 %v5355, %v6123
    %v6156 = vmul.f32 %v5356, %v6124
    %v6157 = vmul.f32 %v5357, %v6125
    %v6158 = vmul.f32 %v5358, %v6126
    %v6159 = vmul.f32 %v5359, %v6127
    %v6160 = vld [vmem:[%s5] sm:$0xff]
    %v6161 = vld [vmem:[%s5 + $0x8] sm:$0xff]
    %v6162 = vld [vmem:[%s5 + $0x10] sm:$0xff]
    %v6163 = vld [vmem:[%s5 + $0x18] sm:$0xff]
    %v6164 = vld [vmem:[%s5 + $0x20] sm:$0xff]
    %v6165 = vld [vmem:[%s5 + $0x28] sm:$0xff]
    %v6166 = vld [vmem:[%s5 + $0x30] sm:$0xff]
    %v6167 = vld [vmem:[%s5 + $0x38] sm:$0xff]
    %v6168 = vld [vmem:[%s6] sm:$0xff]
    %v6169 = vld [vmem:[%s6 + $0x8] sm:$0xff]
    %v6170 = vld [vmem:[%s6 + $0x10] sm:$0xff]
    %v6171 = vld [vmem:[%s6 + $0x18] sm:$0xff]
    %v6172 = vld [vmem:[%s6 + $0x20] sm:$0xff]
    %v6173 = vld [vmem:[%s6 + $0x28] sm:$0xff]
    %v6174 = vld [vmem:[%s6 + $0x30] sm:$0xff]
    %v6175 = vld [vmem:[%s6 + $0x38] sm:$0xff]
    %6177 = vset.pattern.permute.xlu0 0
    %6178 = vperm.xlu0 %6177, %v6168
    %v6179 = vpop.permute.xlu0 %6178
    %6182 = vset.pattern.permute.xlu0 0
    %6183 = vperm.xlu0 %6182, %v6169
    %v6184 = vpop.permute.xlu0 %6183
    %6187 = vset.pattern.permute.xlu0 0
    %6188 = vperm.xlu0 %6187, %v6170
    %v6189 = vpop.permute.xlu0 %6188
    %6192 = vset.pattern.permute.xlu0 0
    %6193 = vperm.xlu0 %6192, %v6171
    %v6194 = vpop.permute.xlu0 %6193
    %6197 = vset.pattern.permute.xlu0 0
    %6198 = vperm.xlu0 %6197, %v6172
    %v6199 = vpop.permute.xlu0 %6198
    %6202 = vset.pattern.permute.xlu0 0
    %6203 = vperm.xlu0 %6202, %v6173
    %v6204 = vpop.permute.xlu0 %6203
    %6207 = vset.pattern.permute.xlu0 0
    %6208 = vperm.xlu0 %6207, %v6174
    %v6209 = vpop.permute.xlu0 %6208
    %6212 = vset.pattern.permute.xlu0 0
    %6213 = vperm.xlu0 %6212, %v6175
    %v6214 = vpop.permute.xlu0 %6213
    %vm6216 = vcmask 523264
    %v6218 = vsel %vm6216, %v6160, 0
    %v6221 = vsel %vm6216, %v6161, 0
    %v6224 = vsel %vm6216, %v6162, 0
    %v6227 = vsel %vm6216, %v6163, 0
    %v6230 = vsel %vm6216, %v6164, 0
    %v6233 = vsel %vm6216, %v6165, 0
    %v6236 = vsel %vm6216, %v6166, 0
    %v6239 = vsel %vm6216, %v6167, 0
    %v6241 = vand.u32 %v6129, 4294901760
    %6242 = vmatprep.subr.mxu0 %v6241
    %v6243 = vand.u32 %v6128, 4294901760
    %6244 = vmatpush1.msra.mxu0 %v6243
    %v6245 = vand.u32 %v6133, 4294901760
    %6246 = vmatprep.subr.mxu0 %v6245
    %v6247 = vand.u32 %v6132, 4294901760
    %6248 = vmatpush1.msra.mxu0 %v6247
    %v6249 = vand.u32 %v6137, 4294901760
    %6250 = vmatprep.subr.mxu0 %v6249
    %v6251 = vand.u32 %v6136, 4294901760
    %6252 = vmatpush1.msra.mxu0 %v6251
    %v6253 = vand.u32 %v6141, 4294901760
    %6254 = vmatprep.subr.mxu0 %v6253
    %v6255 = vand.u32 %v6140, 4294901760
    %6256 = vmatpush1.msra.mxu0 %v6255
    %v6257 = vand.u32 %v6145, 4294901760
    %6258 = vmatprep.subr.mxu0 %v6257
    %v6259 = vand.u32 %v6144, 4294901760
    %6260 = vmatpush1.msra.mxu0 %v6259
    %v6261 = vand.u32 %v6149, 4294901760
    %6262 = vmatprep.subr.mxu0 %v6261
    %v6263 = vand.u32 %v6148, 4294901760
    %6264 = vmatpush1.msra.mxu0 %v6263
    %v6265 = vand.u32 %v6153, 4294901760
    %6266 = vmatprep.subr.mxu0 %v6265
    %v6267 = vand.u32 %v6152, 4294901760
    %6268 = vmatpush1.msra.mxu0 %v6267
    %v6269 = vand.u32 %v6157, 4294901760
    %6270 = vmatprep.subr.mxu0 %v6269
    %v6271 = vand.u32 %v6156, 4294901760
    %6272 = vmatpush1.msra.mxu0 %v6271
    %6273 = vmatprep.subr.mxu0 0.0
    %6274 = vmatpush1.msra.mxu0 0.0
    %6275 = vmatprep.subr.mxu0 0.0
    %6276 = vmatpush1.msra.mxu0 0.0
    %6277 = vmatprep.subr.mxu0 0.0
    %6278 = vmatpush1.msra.mxu0 0.0
    %6279 = vmatprep.subr.mxu0 0.0
    %6280 = vmatpush1.msra.mxu0 0.0
    %6281 = vmatprep.subr.mxu0 0.0
    %6282 = vmatpush1.msra.mxu0 0.0
    %6283 = vmatprep.subr.mxu0 0.0
    %6284 = vmatpush1.msra.mxu0 0.0
    %6285 = vmatprep.subr.mxu0 0.0
    %6286 = vmatpush1.msra.mxu0 0.0
    %6287 = vmatprep.subr.mxu0 0.0
    %6288 = vmatpush1.msra.mxu0 0.0
    %6289 = vmatprep.subr.mxu0 0.0
    %6290 = vmatpush1.msra.mxu0 0.0
    %6291 = vmatprep.subr.mxu0 0.0
    %6292 = vmatpush1.msra.mxu0 0.0
    %6293 = vmatprep.subr.mxu0 0.0
    %6294 = vmatpush1.msra.mxu0 0.0
    %6295 = vmatprep.subr.mxu0 0.0
    %6296 = vmatpush1.msra.mxu0 0.0
    %6297 = vmatprep.subr.mxu0 0.0
    %6298 = vmatpush1.msra.mxu0 0.0
    %6299 = vmatprep.subr.mxu0 0.0
    %6300 = vmatpush1.msra.mxu0 0.0
    %6301 = vmatprep.subr.mxu0 0.0
    %6302 = vmatpush1.msra.mxu0 0.0
    %6303 = vmatprep.subr.mxu0 0.0
    %6304 = vmatpush1.msra.mxu0 0.0
    %6305 = vmatprep.subr.mxu0 0.0
    %6306 = vmatpush1.msra.mxu0 0.0
    %6307 = vmatprep.subr.mxu0 0.0
    %6308 = vmatpush1.msra.mxu0 0.0
    %6309 = vmatprep.subr.mxu0 0.0
    %6310 = vmatpush1.msra.mxu0 0.0
    %6311 = vmatprep.subr.mxu0 0.0
    %6312 = vmatpush1.msra.mxu0 0.0
    %6313 = vmatprep.subr.mxu0 0.0
    %6314 = vmatpush1.msra.mxu0 0.0
    %6315 = vmatprep.subr.mxu0 0.0
    %6316 = vmatpush1.msra.mxu0 0.0
    %6317 = vmatprep.subr.mxu0 0.0
    %6318 = vmatpush1.msra.mxu0 0.0
    %6319 = vmatprep.subr.mxu0 0.0
    %6320 = vmatpush1.msra.mxu0 0.0
    %6321 = vmatprep.mubr.f32.mxu0 0.0
    %v6322 = vand.u32 %v6218, 4294901760
    %v6323 = vsub.f32 %v6218, %v6322
    %v6324 = vand.u32 %v6323, 4294901760
    %v6325 = vsub.f32 %v6323, %v6324
    %v6326 = vand.u32 %v6325, 4294901760
    %6327 = vmatmul.mubr.f32.gmra.mrb[0].mxu0 %v6326
    %v6328 = vpop.f32.mrb[0].mxu0
    %v6329 = vadd.f32 %v6179, %v6328
    %v6330 = vpop.f32.mrb[0].mxu0
    %v6331 = vadd.f32 %v6179, %v6330
    %6332 = vmatprep.mubr.f32.mxu0 0.0
    %v6333 = vand.u32 %v6221, 4294901760
    %v6334 = vsub.f32 %v6221, %v6333
    %v6335 = vand.u32 %v6334, 4294901760
    %v6336 = vsub.f32 %v6334, %v6335
    %v6337 = vand.u32 %v6336, 4294901760
    %6338 = vmatmul.mubr.f32.gmra.mrb[0].mxu0 %v6337
    %v6339 = vpop.f32.mrb[0].mxu0
    %v6340 = vadd.f32 %v6184, %v6339
    %v6341 = vpop.f32.mrb[0].mxu0
    %v6342 = vadd.f32 %v6184, %v6341
    %6343 = vmatprep.mubr.f32.mxu0 0.0
    %v6344 = vand.u32 %v6224, 4294901760
    %v6345 = vsub.f32 %v6224, %v6344
    %v6346 = vand.u32 %v6345, 4294901760
    %v6347 = vsub.f32 %v6345, %v6346
    %v6348 = vand.u32 %v6347, 4294901760
    %6349 = vmatmul.mubr.f32.gmra.mrb[0].mxu0 %v6348
    %v6350 = vpop.f32.mrb[0].mxu0
    %v6351 = vadd.f32 %v6189, %v6350
    %v6352 = vpop.f32.mrb[0].mxu0
    %v6353 = vadd.f32 %v6189, %v6352
    %6354 = vmatprep.mubr.f32.mxu0 0.0
    %v6355 = vand.u32 %v6227, 4294901760
    %v6356 = vsub.f32 %v6227, %v6355
    %v6357 = vand.u32 %v6356, 4294901760
    %v6358 = vsub.f32 %v6356, %v6357
    %v6359 = vand.u32 %v6358, 4294901760
    %6360 = vmatmul.mubr.f32.gmra.mrb[0].mxu0 %v6359
    %v6361 = vpop.f32.mrb[0].mxu0
    %v6362 = vadd.f32 %v6194, %v6361
    %v6363 = vpop.f32.mrb[0].mxu0
    %v6364 = vadd.f32 %v6194, %v6363
    %6365 = vmatprep.mubr.f32.mxu0 0.0
    %v6366 = vand.u32 %v6230, 4294901760
    %v6367 = vsub.f32 %v6230, %v6366
    %v6368 = vand.u32 %v6367, 4294901760
    %v6369 = vsub.f32 %v6367, %v6368
    %v6370 = vand.u32 %v6369, 4294901760
    %6371 = vmatmul.mubr.f32.gmra.mrb[0].mxu0 %v6370
    %v6372 = vpop.f32.mrb[0].mxu0
    %v6373 = vadd.f32 %v6199, %v6372
    %v6374 = vpop.f32.mrb[0].mxu0
    %v6375 = vadd.f32 %v6199, %v6374
    %6376 = vmatprep.mubr.f32.mxu0 0.0
    %v6377 = vand.u32 %v6233, 4294901760
    %v6378 = vsub.f32 %v6233, %v6377
    %v6379 = vand.u32 %v6378, 4294901760
    %v6380 = vsub.f32 %v6378, %v6379
    %v6381 = vand.u32 %v6380, 4294901760
    %6382 = vmatmul.mubr.f32.gmra.mrb[0].mxu0 %v6381
    %v6383 = vpop.f32.mrb[0].mxu0
    %v6384 = vadd.f32 %v6204, %v6383
    %v6385 = vpop.f32.mrb[0].mxu0
    %v6386 = vadd.f32 %v6204, %v6385
    %6387 = vmatprep.mubr.f32.mxu0 0.0
    %v6388 = vand.u32 %v6236, 4294901760
    %v6389 = vsub.f32 %v6236, %v6388
    %v6390 = vand.u32 %v6389, 4294901760
    %v6391 = vsub.f32 %v6389, %v6390
    %v6392 = vand.u32 %v6391, 4294901760
    %6393 = vmatmul.mubr.f32.gmra.mrb[0].mxu0 %v6392
    %v6394 = vpop.f32.mrb[0].mxu0
    %v6395 = vadd.f32 %v6209, %v6394
    %v6396 = vpop.f32.mrb[0].mxu0
    %v6397 = vadd.f32 %v6209, %v6396
    %6398 = vmatprep.mubr.f32.mxu0 0.0
    %v6399 = vand.u32 %v6239, 4294901760
    %v6400 = vsub.f32 %v6239, %v6399
    %v6401 = vand.u32 %v6400, 4294901760
    %v6402 = vsub.f32 %v6400, %v6401
    %v6403 = vand.u32 %v6402, 4294901760
    %6404 = vmatmul.mubr.f32.gmra.mrb[0].mxu0 %v6403
    %v6405 = vpop.f32.mrb[0].mxu0
    %v6406 = vadd.f32 %v6214, %v6405
    %v6407 = vpop.f32.mrb[0].mxu0
    %v6408 = vadd.f32 %v6214, %v6407
    %6409 = vdwg.mxu0
    %v6410 = vand.u32 %v6129, 4294901760
    %v6411 = vsub.f32 %v6129, %v6410
    %v6412 = vand.u32 %v6411, 4294901760
    %v6413 = vsub.f32 %v6411, %v6412
    %v6414 = vand.u32 %v6413, 4294901760
    %6415 = vmatprep.subr.mxu0 %v6414
    %v6416 = vand.u32 %v6128, 4294901760
    %v6417 = vsub.f32 %v6128, %v6416
    %v6418 = vand.u32 %v6417, 4294901760
    %v6419 = vsub.f32 %v6417, %v6418
    %v6420 = vand.u32 %v6419, 4294901760
    %6421 = vmatpush1.msra.mxu0 %v6420
    %v6422 = vand.u32 %v6133, 4294901760
    %v6423 = vsub.f32 %v6133, %v6422
    %v6424 = vand.u32 %v6423, 4294901760
    %v6425 = vsub.f32 %v6423, %v6424
    %v6426 = vand.u32 %v6425, 4294901760
    %6427 = vmatprep.subr.mxu0 %v6426
    %v6428 = vand.u32 %v6132, 4294901760
    %v6429 = vsub.f32 %v6132, %v6428
    %v6430 = vand.u32 %v6429, 4294901760
    %v6431 = vsub.f32 %v6429, %v6430
    %v6432 = vand.u32 %v6431, 4294901760
    %6433 = vmatpush1.msra.mxu0 %v6432
    %v6434 = vand.u32 %v6137, 4294901760
    %v6435 = vsub.f32 %v6137, %v6434
    %v6436 = vand.u32 %v6435, 4294901760
    %v6437 = vsub.f32 %v6435, %v6436
    %v6438 = vand.u32 %v6437, 4294901760
    %6439 = vmatprep.subr.mxu0 %v6438
    %v6440 = vand.u32 %v6136, 4294901760
    %v6441 = vsub.f32 %v6136, %v6440
    %v6442 = vand.u32 %v6441, 4294901760
    %v6443 = vsub.f32 %v6441, %v6442
    %v6444 = vand.u32 %v6443, 4294901760
    %6445 = vmatpush1.msra.mxu0 %v6444
    %v6446 = vand.u32 %v6141, 4294901760
    %v6447 = vsub.f32 %v6141, %v6446
    %v6448 = vand.u32 %v6447, 4294901760
    %v6449 = vsub.f32 %v6447, %v6448
    %v6450 = vand.u32 %v6449, 4294901760
    %6451 = vmatprep.subr.mxu0 %v6450
    %v6452 = vand.u32 %v6140, 4294901760
    %v6453 = vsub.f32 %v6140, %v6452
    %v6454 = vand.u32 %v6453, 4294901760
    %v6455 = vsub.f32 %v6453, %v6454
    %v6456 = vand.u32 %v6455, 4294901760
    %6457 = vmatpush1.msra.mxu0 %v6456
    %v6458 = vand.u32 %v6145, 4294901760
    %v6459 = vsub.f32 %v6145, %v6458
    %v6460 = vand.u32 %v6459, 4294901760
    %v6461 = vsub.f32 %v6459, %v6460
    %v6462 = vand.u32 %v6461, 4294901760
    %6463 = vmatprep.subr.mxu0 %v6462
    %v6464 = vand.u32 %v6144, 4294901760
    %v6465 = vsub.f32 %v6144, %v6464
    %v6466 = vand.u32 %v6465, 4294901760
    %v6467 = vsub.f32 %v6465, %v6466
    %v6468 = vand.u32 %v6467, 4294901760
    %6469 = vmatpush1.msra.mxu0 %v6468
    %v6470 = vand.u32 %v6149, 4294901760
    %v6471 = vsub.f32 %v6149, %v6470
    %v6472 = vand.u32 %v6471, 4294901760
    %v6473 = vsub.f32 %v6471, %v6472
    %v6474 = vand.u32 %v6473, 4294901760
    %6475 = vmatprep.subr.mxu0 %v6474
    %v6476 = vand.u32 %v6148, 4294901760
    %v6477 = vsub.f32 %v6148, %v6476
    %v6478 = vand.u32 %v6477, 4294901760
    %v6479 = vsub.f32 %v6477, %v6478
    %v6480 = vand.u32 %v6479, 4294901760
    %6481 = vmatpush1.msra.mxu0 %v6480
    %v6482 = vand.u32 %v6153, 4294901760
    %v6483 = vsub.f32 %v6153, %v6482
    %v6484 = vand.u32 %v6483, 4294901760
    %v6485 = vsub.f32 %v6483, %v6484
    %v6486 = vand.u32 %v6485, 4294901760
    %6487 = vmatprep.subr.mxu0 %v6486
    %v6488 = vand.u32 %v6152, 4294901760
    %v6489 = vsub.f32 %v6152, %v6488
    %v6490 = vand.u32 %v6489, 4294901760
    %v6491 = vsub.f32 %v6489, %v6490
    %v6492 = vand.u32 %v6491, 4294901760
    %6493 = vmatpush1.msra.mxu0 %v6492
    %v6494 = vand.u32 %v6157, 4294901760
    %v6495 = vsub.f32 %v6157, %v6494
    %v6496 = vand.u32 %v6495, 4294901760
    %v6497 = vsub.f32 %v6495, %v6496
    %v6498 = vand.u32 %v6497, 4294901760
    %6499 = vmatprep.subr.mxu0 %v6498
    %v6500 = vand.u32 %v6156, 4294901760
    %v6501 = vsub.f32 %v6156, %v6500
    %v6502 = vand.u32 %v6501, 4294901760
    %v6503 = vsub.f32 %v6501, %v6502
    %v6504 = vand.u32 %v6503, 4294901760
    %6505 = vmatpush1.msra.mxu0 %v6504
    %6506 = vmatprep.subr.mxu0 0.0
    %6507 = vmatpush1.msra.mxu0 0.0
    %6508 = vmatprep.subr.mxu0 0.0
    %6509 = vmatpush1.msra.mxu0 0.0
    %6510 = vmatprep.subr.mxu0 0.0
    %6511 = vmatpush1.msra.mxu0 0.0
    %6512 = vmatprep.subr.mxu0 0.0
    %6513 = vmatpush1.msra.mxu0 0.0
    %6514 = vmatprep.subr.mxu0 0.0
    %6515 = vmatpush1.msra.mxu0 0.0
    %6516 = vmatprep.subr.mxu0 0.0
    %6517 = vmatpush1.msra.mxu0 0.0
    %6518 = vmatprep.subr.mxu0 0.0
    %6519 = vmatpush1.msra.mxu0 0.0
    %6520 = vmatprep.subr.mxu0 0.0
    %6521 = vmatpush1.msra.mxu0 0.0
    %6522 = vmatprep.subr.mxu0 0.0
    %6523 = vmatpush1.msra.mxu0 0.0
    %6524 = vmatprep.subr.mxu0 0.0
    %6525 = vmatpush1.msra.mxu0 0.0
    %6526 = vmatprep.subr.mxu0 0.0
    %6527 = vmatpush1.msra.mxu0 0.0
    %6528 = vmatprep.subr.mxu0 0.0
    %6529 = vmatpush1.msra.mxu0 0.0
    %6530 = vmatprep.subr.mxu0 0.0
    %6531 = vmatpush1.msra.mxu0 0.0
    %6532 = vmatprep.subr.mxu0 0.0
    %6533 = vmatpush1.msra.mxu0 0.0
    %6534 = vmatprep.subr.mxu0 0.0
    %6535 = vmatpush1.msra.mxu0 0.0
    %6536 = vmatprep.subr.mxu0 0.0
    %6537 = vmatpush1.msra.mxu0 0.0
    %6538 = vmatprep.subr.mxu0 0.0
    %6539 = vmatpush1.msra.mxu0 0.0
    %6540 = vmatprep.subr.mxu0 0.0
    %6541 = vmatpush1.msra.mxu0 0.0
    %6542 = vmatprep.subr.mxu0 0.0
    %6543 = vmatpush1.msra.mxu0 0.0
    %6544 = vmatprep.subr.mxu0 0.0
    %6545 = vmatpush1.msra.mxu0 0.0
    %6546 = vmatprep.subr.mxu0 0.0
    %6547 = vmatpush1.msra.mxu0 0.0
    %6548 = vmatprep.subr.mxu0 0.0
    %6549 = vmatpush1.msra.mxu0 0.0
    %6550 = vmatprep.subr.mxu0 0.0
    %6551 = vmatpush1.msra.mxu0 0.0
    %6552 = vmatprep.subr.mxu0 0.0
    %6553 = vmatpush1.msra.mxu0 0.0
    %6554 = vmatprep.mubr.f32.mxu0 0.0
    %v6555 = vand.u32 %v6218, 4294901760
    %6556 = vmatmul.mubr.f32.gmra.mrb[0].mxu0 %v6555
    %v6557 = vpop.f32.mrb[0].mxu0
    %v6558 = vadd.f32 %v6329, %v6557
    %v6559 = vpop.f32.mrb[0].mxu0
    %v6560 = vadd.f32 %v6331, %v6559
    %6561 = vmatprep.mubr.f32.mxu0 0.0
    %v6562 = vand.u32 %v6221, 4294901760
    %6563 = vmatmul.mubr.f32.gmra.mrb[0].mxu0 %v6562
    %v6564 = vpop.f32.mrb[0].mxu0
    %v6565 = vadd.f32 %v6340, %v6564
    %v6566 = vpop.f32.mrb[0].mxu0
    %v6567 = vadd.f32 %v6342, %v6566
    %6568 = vmatprep.mubr.f32.mxu0 0.0
    %v6569 = vand.u32 %v6224, 4294901760
    %6570 = vmatmul.mubr.f32.gmra.mrb[0].mxu0 %v6569
    %v6571 = vpop.f32.mrb[0].mxu0
    %v6572 = vadd.f32 %v6351, %v6571
    %v6573 = vpop.f32.mrb[0].mxu0
    %v6574 = vadd.f32 %v6353, %v6573
    %6575 = vmatprep.mubr.f32.mxu0 0.0
    %v6576 = vand.u32 %v6227, 4294901760
    %6577 = vmatmul.mubr.f32.gmra.mrb[0].mxu0 %v6576
    %v6578 = vpop.f32.mrb[0].mxu0
    %v6579 = vadd.f32 %v6362, %v6578
    %v6580 = vpop.f32.mrb[0].mxu0
    %v6581 = vadd.f32 %v6364, %v6580
    %6582 = vmatprep.mubr.f32.mxu0 0.0
    %v6583 = vand.u32 %v6230, 4294901760
    %6584 = vmatmul.mubr.f32.gmra.mrb[0].mxu0 %v6583
    %v6585 = vpop.f32.mrb[0].mxu0
    %v6586 = vadd.f32 %v6373, %v6585
    %v6587 = vpop.f32.mrb[0].mxu0
    %v6588 = vadd.f32 %v6375, %v6587
    %6589 = vmatprep.mubr.f32.mxu0 0.0
    %v6590 = vand.u32 %v6233, 4294901760
    %6591 = vmatmul.mubr.f32.gmra.mrb[0].mxu0 %v6590
    %v6592 = vpop.f32.mrb[0].mxu0
    %v6593 = vadd.f32 %v6384, %v6592
    %v6594 = vpop.f32.mrb[0].mxu0
    %v6595 = vadd.f32 %v6386, %v6594
    %6596 = vmatprep.mubr.f32.mxu0 0.0
    %v6597 = vand.u32 %v6236, 4294901760
    %6598 = vmatmul.mubr.f32.gmra.mrb[0].mxu0 %v6597
    %v6599 = vpop.f32.mrb[0].mxu0
    %v6600 = vadd.f32 %v6395, %v6599
    %v6601 = vpop.f32.mrb[0].mxu0
    %v6602 = vadd.f32 %v6397, %v6601
    %6603 = vmatprep.mubr.f32.mxu0 0.0
    %v6604 = vand.u32 %v6239, 4294901760
    %6605 = vmatmul.mubr.f32.gmra.mrb[0].mxu0 %v6604
    %v6606 = vpop.f32.mrb[0].mxu0
    %v6607 = vadd.f32 %v6406, %v6606
    %v6608 = vpop.f32.mrb[0].mxu0
    %v6609 = vadd.f32 %v6408, %v6608
    %6610 = vdwg.mxu0
    %v6611 = vand.u32 %v6129, 4294901760
    %v6612 = vsub.f32 %v6129, %v6611
    %6613 = vmatprep.subr.mxu0 %v6612
    %v6614 = vand.u32 %v6128, 4294901760
    %v6615 = vsub.f32 %v6128, %v6614
    %6616 = vmatpush1.msra.mxu0 %v6615
    %v6617 = vand.u32 %v6133, 4294901760
    %v6618 = vsub.f32 %v6133, %v6617
    %6619 = vmatprep.subr.mxu0 %v6618
    %v6620 = vand.u32 %v6132, 4294901760
    %v6621 = vsub.f32 %v6132, %v6620
    %6622 = vmatpush1.msra.mxu0 %v6621
    %v6623 = vand.u32 %v6137, 4294901760
    %v6624 = vsub.f32 %v6137, %v6623
    %6625 = vmatprep.subr.mxu0 %v6624
    %v6626 = vand.u32 %v6136, 4294901760
    %v6627 = vsub.f32 %v6136, %v6626
    %6628 = vmatpush1.msra.mxu0 %v6627
    %v6629 = vand.u32 %v6141, 4294901760
    %v6630 = vsub.f32 %v6141, %v6629
    %6631 = vmatprep.subr.mxu0 %v6630
    %v6632 = vand.u32 %v6140, 4294901760
    %v6633 = vsub.f32 %v6140, %v6632
    %6634 = vmatpush1.msra.mxu0 %v6633
    %v6635 = vand.u32 %v6145, 4294901760
    %v6636 = vsub.f32 %v6145, %v6635
    %6637 = vmatprep.subr.mxu0 %v6636
    %v6638 = vand.u32 %v6144, 4294901760
    %v6639 = vsub.f32 %v6144, %v6638
    %6640 = vmatpush1.msra.mxu0 %v6639
    %v6641 = vand.u32 %v6149, 4294901760
    %v6642 = vsub.f32 %v6149, %v6641
    %6643 = vmatprep.subr.mxu0 %v6642
    %v6644 = vand.u32 %v6148, 4294901760
    %v6645 = vsub.f32 %v6148, %v6644
    %6646 = vmatpush1.msra.mxu0 %v6645
    %v6647 = vand.u32 %v6153, 4294901760
    %v6648 = vsub.f32 %v6153, %v6647
    %6649 = vmatprep.subr.mxu0 %v6648
    %v6650 = vand.u32 %v6152, 4294901760
    %v6651 = vsub.f32 %v6152, %v6650
    %6652 = vmatpush1.msra.mxu0 %v6651
    %v6653 = vand.u32 %v6157, 4294901760
    %v6654 = vsub.f32 %v6157, %v6653
    %6655 = vmatprep.subr.mxu0 %v6654
    %v6656 = vand.u32 %v6156, 4294901760
    %v6657 = vsub.f32 %v6156, %v6656
    %6658 = vmatpush1.msra.mxu0 %v6657
    %6659 = vmatprep.subr.mxu0 0.0
    %6660 = vmatpush1.msra.mxu0 0.0
    %6661 = vmatprep.subr.mxu0 0.0
    %6662 = vmatpush1.msra.mxu0 0.0
    %6663 = vmatprep.subr.mxu0 0.0
    %6664 = vmatpush1.msra.mxu0 0.0
    %6665 = vmatprep.subr.mxu0 0.0
    %6666 = vmatpush1.msra.mxu0 0.0
    %6667 = vmatprep.subr.mxu0 0.0
    %6668 = vmatpush1.msra.mxu0 0.0
    %6669 = vmatprep.subr.mxu0 0.0
    %6670 = vmatpush1.msra.mxu0 0.0
    %6671 = vmatprep.subr.mxu0 0.0
    %6672 = vmatpush1.msra.mxu0 0.0
    %6673 = vmatprep.subr.mxu0 0.0
    %6674 = vmatpush1.msra.mxu0 0.0
    %6675 = vmatprep.subr.mxu0 0.0
    %6676 = vmatpush1.msra.mxu0 0.0
    %6677 = vmatprep.subr.mxu0 0.0
    %6678 = vmatpush1.msra.mxu0 0.0
    %6679 = vmatprep.subr.mxu0 0.0
    %6680 = vmatpush1.msra.mxu0 0.0
    %6681 = vmatprep.subr.mxu0 0.0
    %6682 = vmatpush1.msra.mxu0 0.0
    %6683 = vmatprep.subr.mxu0 0.0
    %6684 = vmatpush1.msra.mxu0 0.0
    %6685 = vmatprep.subr.mxu0 0.0
    %6686 = vmatpush1.msra.mxu0 0.0
    %6687 = vmatprep.subr.mxu0 0.0
    %6688 = vmatpush1.msra.mxu0 0.0
    %6689 = vmatprep.subr.mxu0 0.0
    %6690 = vmatpush1.msra.mxu0 0.0
    %6691 = vmatprep.subr.mxu0 0.0
    %6692 = vmatpush1.msra.mxu0 0.0
    %6693 = vmatprep.subr.mxu0 0.0
    %6694 = vmatpush1.msra.mxu0 0.0
    %6695 = vmatprep.subr.mxu0 0.0
    %6696 = vmatpush1.msra.mxu0 0.0
    %6697 = vmatprep.subr.mxu0 0.0
    %6698 = vmatpush1.msra.mxu0 0.0
    %6699 = vmatprep.subr.mxu0 0.0
    %6700 = vmatpush1.msra.mxu0 0.0
    %6701 = vmatprep.subr.mxu0 0.0
    %6702 = vmatpush1.msra.mxu0 0.0
    %6703 = vmatprep.subr.mxu0 0.0
    %6704 = vmatpush1.msra.mxu0 0.0
    %6705 = vmatprep.subr.mxu0 0.0
    %6706 = vmatpush1.msra.mxu0 0.0
    %6707 = vmatprep.mubr.f32.mxu0 0.0
    %v6708 = vand.u32 %v6218, 4294901760
    %v6709 = vsub.f32 %v6218, %v6708
    %6710 = vmatmul.mubr.f32.gmra.mrb[0].mxu0 %v6709
    %v6711 = vpop.f32.mrb[0].mxu0
    %v6712 = vadd.f32 %v6558, %v6711
    %v6713 = vpop.f32.mrb[0].mxu0
    %v6714 = vadd.f32 %v6560, %v6713
    %6715 = vmatprep.mubr.f32.mxu0 0.0
    %v6716 = vand.u32 %v6221, 4294901760
    %v6717 = vsub.f32 %v6221, %v6716
    %6718 = vmatmul.mubr.f32.gmra.mrb[0].mxu0 %v6717
    %v6719 = vpop.f32.mrb[0].mxu0
    %v6720 = vadd.f32 %v6565, %v6719
    %v6721 = vpop.f32.mrb[0].mxu0
    %v6722 = vadd.f32 %v6567, %v6721
    %6723 = vmatprep.mubr.f32.mxu0 0.0
    %v6724 = vand.u32 %v6224, 4294901760
    %v6725 = vsub.f32 %v6224, %v6724
    %6726 = vmatmul.mubr.f32.gmra.mrb[0].mxu0 %v6725
    %v6727 = vpop.f32.mrb[0].mxu0
    %v6728 = vadd.f32 %v6572, %v6727
    %v6729 = vpop.f32.mrb[0].mxu0
    %v6730 = vadd.f32 %v6574, %v6729
    %6731 = vmatprep.mubr.f32.mxu0 0.0
    %v6732 = vand.u32 %v6227, 4294901760
    %v6733 = vsub.f32 %v6227, %v6732
    %6734 = vmatmul.mubr.f32.gmra.mrb[0].mxu0 %v6733
    %v6735 = vpop.f32.mrb[0].mxu0
    %v6736 = vadd.f32 %v6579, %v6735
    %v6737 = vpop.f32.mrb[0].mxu0
    %v6738 = vadd.f32 %v6581, %v6737
    %6739 = vmatprep.mubr.f32.mxu0 0.0
    %v6740 = vand.u32 %v6230, 4294901760
    %v6741 = vsub.f32 %v6230, %v6740
    %6742 = vmatmul.mubr.f32.gmra.mrb[0].mxu0 %v6741
    %v6743 = vpop.f32.mrb[0].mxu0
    %v6744 = vadd.f32 %v6586, %v6743
    %v6745 = vpop.f32.mrb[0].mxu0
    %v6746 = vadd.f32 %v6588, %v6745
    %6747 = vmatprep.mubr.f32.mxu0 0.0
    %v6748 = vand.u32 %v6233, 4294901760
    %v6749 = vsub.f32 %v6233, %v6748
    %6750 = vmatmul.mubr.f32.gmra.mrb[0].mxu0 %v6749
    %v6751 = vpop.f32.mrb[0].mxu0
    %v6752 = vadd.f32 %v6593, %v6751
    %v6753 = vpop.f32.mrb[0].mxu0
    %v6754 = vadd.f32 %v6595, %v6753
    %6755 = vmatprep.mubr.f32.mxu0 0.0
    %v6756 = vand.u32 %v6236, 4294901760
    %v6757 = vsub.f32 %v6236, %v6756
    %6758 = vmatmul.mubr.f32.gmra.mrb[0].mxu0 %v6757
    %v6759 = vpop.f32.mrb[0].mxu0
    %v6760 = vadd.f32 %v6600, %v6759
    %v6761 = vpop.f32.mrb[0].mxu0
    %v6762 = vadd.f32 %v6602, %v6761
    %6763 = vmatprep.mubr.f32.mxu0 0.0
    %v6764 = vand.u32 %v6239, 4294901760
    %v6765 = vsub.f32 %v6239, %v6764
    %6766 = vmatmul.mubr.f32.gmra.mrb[0].mxu0 %v6765
    %v6767 = vpop.f32.mrb[0].mxu0
    %v6768 = vadd.f32 %v6607, %v6767
    %v6769 = vpop.f32.mrb[0].mxu0
    %v6770 = vadd.f32 %v6609, %v6769
    %6771 = vdwg.mxu0
    %v6772 = vand.u32 %v6129, 4294901760
    %6773 = vmatprep.subr.mxu0 %v6772
    %v6774 = vand.u32 %v6128, 4294901760
    %6775 = vmatpush1.msra.mxu0 %v6774
    %v6776 = vand.u32 %v6133, 4294901760
    %6777 = vmatprep.subr.mxu0 %v6776
    %v6778 = vand.u32 %v6132, 4294901760
    %6779 = vmatpush1.msra.mxu0 %v6778
    %v6780 = vand.u32 %v6137, 4294901760
    %6781 = vmatprep.subr.mxu0 %v6780
    %v6782 = vand.u32 %v6136, 4294901760
    %6783 = vmatpush1.msra.mxu0 %v6782
    %v6784 = vand.u32 %v6141, 4294901760
    %6785 = vmatprep.subr.mxu0 %v6784
    %v6786 = vand.u32 %v6140, 4294901760
    %6787 = vmatpush1.msra.mxu0 %v6786
    %v6788 = vand.u32 %v6145, 4294901760
    %6789 = vmatprep.subr.mxu0 %v6788
    %v6790 = vand.u32 %v6144, 4294901760
    %6791 = vmatpush1.msra.mxu0 %v6790
    %v6792 = vand.u32 %v6149, 4294901760
    %6793 = vmatprep.subr.mxu0 %v6792
    %v6794 = vand.u32 %v6148, 4294901760
    %6795 = vmatpush1.msra.mxu0 %v6794
    %v6796 = vand.u32 %v6153, 4294901760
    %6797 = vmatprep.subr.mxu0 %v6796
    %v6798 = vand.u32 %v6152, 4294901760
    %6799 = vmatpush1.msra.mxu0 %v6798
    %v6800 = vand.u32 %v6157, 4294901760
    %6801 = vmatprep.subr.mxu0 %v6800
    %v6802 = vand.u32 %v6156, 4294901760
    %6803 = vmatpush1.msra.mxu0 %v6802
    %6804 = vmatprep.subr.mxu0 0.0
    %6805 = vmatpush1.msra.mxu0 0.0
    %6806 = vmatprep.subr.mxu0 0.0
    %6807 = vmatpush1.msra.mxu0 0.0
    %6808 = vmatprep.subr.mxu0 0.0
    %6809 = vmatpush1.msra.mxu0 0.0
    %6810 = vmatprep.subr.mxu0 0.0
    %6811 = vmatpush1.msra.mxu0 0.0
    %6812 = vmatprep.subr.mxu0 0.0
    %6813 = vmatpush1.msra.mxu0 0.0
    %6814 = vmatprep.subr.mxu0 0.0
    %6815 = vmatpush1.msra.mxu0 0.0
    %6816 = vmatprep.subr.mxu0 0.0
    %6817 = vmatpush1.msra.mxu0 0.0
    %6818 = vmatprep.subr.mxu0 0.0
    %6819 = vmatpush1.msra.mxu0 0.0
    %6820 = vmatprep.subr.mxu0 0.0
    %6821 = vmatpush1.msra.mxu0 0.0
    %6822 = vmatprep.subr.mxu0 0.0
    %6823 = vmatpush1.msra.mxu0 0.0
    %6824 = vmatprep.subr.mxu0 0.0
    %6825 = vmatpush1.msra.mxu0 0.0
    %6826 = vmatprep.subr.mxu0 0.0
    %6827 = vmatpush1.msra.mxu0 0.0
    %6828 = vmatprep.subr.mxu0 0.0
    %6829 = vmatpush1.msra.mxu0 0.0
    %6830 = vmatprep.subr.mxu0 0.0
    %6831 = vmatpush1.msra.mxu0 0.0
    %6832 = vmatprep.subr.mxu0 0.0
    %6833 = vmatpush1.msra.mxu0 0.0
    %6834 = vmatprep.subr.mxu0 0.0
    %6835 = vmatpush1.msra.mxu0 0.0
    %6836 = vmatprep.subr.mxu0 0.0
    %6837 = vmatpush1.msra.mxu0 0.0
    %6838 = vmatprep.subr.mxu0 0.0
    %6839 = vmatpush1.msra.mxu0 0.0
    %6840 = vmatprep.subr.mxu0 0.0
    %6841 = vmatpush1.msra.mxu0 0.0
    %6842 = vmatprep.subr.mxu0 0.0
    %6843 = vmatpush1.msra.mxu0 0.0
    %6844 = vmatprep.subr.mxu0 0.0
    %6845 = vmatpush1.msra.mxu0 0.0
    %6846 = vmatprep.subr.mxu0 0.0
    %6847 = vmatpush1.msra.mxu0 0.0
    %6848 = vmatprep.subr.mxu0 0.0
    %6849 = vmatpush1.msra.mxu0 0.0
    %6850 = vmatprep.subr.mxu0 0.0
    %6851 = vmatpush1.msra.mxu0 0.0
    %6852 = vmatprep.mubr.f32.mxu0 0.0
    %v6853 = vand.u32 %v6218, 4294901760
    %v6854 = vsub.f32 %v6218, %v6853
    %v6855 = vand.u32 %v6854, 4294901760
    %6856 = vmatmul.mubr.f32.gmra.mrb[0].mxu0 %v6855
    %v6857 = vpop.f32.mrb[0].mxu0
    %v6858 = vadd.f32 %v6712, %v6857
    %v6859 = vpop.f32.mrb[0].mxu0
    %v6860 = vadd.f32 %v6714, %v6859
    %6861 = vmatprep.mubr.f32.mxu0 0.0
    %v6862 = vand.u32 %v6221, 4294901760
    %v6863 = vsub.f32 %v6221, %v6862
    %v6864 = vand.u32 %v6863, 4294901760
    %6865 = vmatmul.mubr.f32.gmra.mrb[0].mxu0 %v6864
    %v6866 = vpop.f32.mrb[0].mxu0
    %v6867 = vadd.f32 %v6720, %v6866
    %v6868 = vpop.f32.mrb[0].mxu0
    %v6869 = vadd.f32 %v6722, %v6868
    %6870 = vmatprep.mubr.f32.mxu0 0.0
    %v6871 = vand.u32 %v6224, 4294901760
    %v6872 = vsub.f32 %v6224, %v6871
    %v6873 = vand.u32 %v6872, 4294901760
    %6874 = vmatmul.mubr.f32.gmra.mrb[0].mxu0 %v6873
    %v6875 = vpop.f32.mrb[0].mxu0
    %v6876 = vadd.f32 %v6728, %v6875
    %v6877 = vpop.f32.mrb[0].mxu0
    %v6878 = vadd.f32 %v6730, %v6877
    %6879 = vmatprep.mubr.f32.mxu0 0.0
    %v6880 = vand.u32 %v6227, 4294901760
    %v6881 = vsub.f32 %v6227, %v6880
    %v6882 = vand.u32 %v6881, 4294901760
    %6883 = vmatmul.mubr.f32.gmra.mrb[0].mxu0 %v6882
    %v6884 = vpop.f32.mrb[0].mxu0
    %v6885 = vadd.f32 %v6736, %v6884
    %v6886 = vpop.f32.mrb[0].mxu0
    %v6887 = vadd.f32 %v6738, %v6886
    %6888 = vmatprep.mubr.f32.mxu0 0.0
    %v6889 = vand.u32 %v6230, 4294901760
    %v6890 = vsub.f32 %v6230, %v6889
    %v6891 = vand.u32 %v6890, 4294901760
    %6892 = vmatmul.mubr.f32.gmra.mrb[0].mxu0 %v6891
    %v6893 = vpop.f32.mrb[0].mxu0
    %v6894 = vadd.f32 %v6744, %v6893
    %v6895 = vpop.f32.mrb[0].mxu0
    %v6896 = vadd.f32 %v6746, %v6895
    %6897 = vmatprep.mubr.f32.mxu0 0.0
    %v6898 = vand.u32 %v6233, 4294901760
    %v6899 = vsub.f32 %v6233, %v6898
    %v6900 = vand.u32 %v6899, 4294901760
    %6901 = vmatmul.mubr.f32.gmra.mrb[0].mxu0 %v6900
    %v6902 = vpop.f32.mrb[0].mxu0
    %v6903 = vadd.f32 %v6752, %v6902
    %v6904 = vpop.f32.mrb[0].mxu0
    %v6905 = vadd.f32 %v6754, %v6904
    %6906 = vmatprep.mubr.f32.mxu0 0.0
    %v6907 = vand.u32 %v6236, 4294901760
    %v6908 = vsub.f32 %v6236, %v6907
    %v6909 = vand.u32 %v6908, 4294901760
    %6910 = vmatmul.mubr.f32.gmra.mrb[0].mxu0 %v6909
    %v6911 = vpop.f32.mrb[0].mxu0
    %v6912 = vadd.f32 %v6760, %v6911
    %v6913 = vpop.f32.mrb[0].mxu0
    %v6914 = vadd.f32 %v6762, %v6913
    %6915 = vmatprep.mubr.f32.mxu0 0.0
    %v6916 = vand.u32 %v6239, 4294901760
    %v6917 = vsub.f32 %v6239, %v6916
    %v6918 = vand.u32 %v6917, 4294901760
    %6919 = vmatmul.mubr.f32.gmra.mrb[0].mxu0 %v6918
    %v6920 = vpop.f32.mrb[0].mxu0
    %v6921 = vadd.f32 %v6768, %v6920
    %v6922 = vpop.f32.mrb[0].mxu0
    %v6923 = vadd.f32 %v6770, %v6922
    %6924 = vdwg.mxu0
    %v6925 = vand.u32 %v6129, 4294901760
    %v6926 = vsub.f32 %v6129, %v6925
    %v6927 = vand.u32 %v6926, 4294901760
    %6928 = vmatprep.subr.mxu0 %v6927
    %v6929 = vand.u32 %v6128, 4294901760
    %v6930 = vsub.f32 %v6128, %v6929
    %v6931 = vand.u32 %v6930, 4294901760
    %6932 = vmatpush1.msra.mxu0 %v6931
    %v6933 = vand.u32 %v6133, 4294901760
    %v6934 = vsub.f32 %v6133, %v6933
    %v6935 = vand.u32 %v6934, 4294901760
    %6936 = vmatprep.subr.mxu0 %v6935
    %v6937 = vand.u32 %v6132, 4294901760
    %v6938 = vsub.f32 %v6132, %v6937
    %v6939 = vand.u32 %v6938, 4294901760
    %6940 = vmatpush1.msra.mxu0 %v6939
    %v6941 = vand.u32 %v6137, 4294901760
    %v6942 = vsub.f32 %v6137, %v6941
    %v6943 = vand.u32 %v6942, 4294901760
    %6944 = vmatprep.subr.mxu0 %v6943
    %v6945 = vand.u32 %v6136, 4294901760
    %v6946 = vsub.f32 %v6136, %v6945
    %v6947 = vand.u32 %v6946, 4294901760
    %6948 = vmatpush1.msra.mxu0 %v6947
    %v6949 = vand.u32 %v6141, 4294901760
    %v6950 = vsub.f32 %v6141, %v6949
    %v6951 = vand.u32 %v6950, 4294901760
    %6952 = vmatprep.subr.mxu0 %v6951
    %v6953 = vand.u32 %v6140, 4294901760
    %v6954 = vsub.f32 %v6140, %v6953
    %v6955 = vand.u32 %v6954, 4294901760
    %6956 = vmatpush1.msra.mxu0 %v6955
    %v6957 = vand.u32 %v6145, 4294901760
    %v6958 = vsub.f32 %v6145, %v6957
    %v6959 = vand.u32 %v6958, 4294901760
    %6960 = vmatprep.subr.mxu0 %v6959
    %v6961 = vand.u32 %v6144, 4294901760
    %v6962 = vsub.f32 %v6144, %v6961
    %v6963 = vand.u32 %v6962, 4294901760
    %6964 = vmatpush1.msra.mxu0 %v6963
    %v6965 = vand.u32 %v6149, 4294901760
    %v6966 = vsub.f32 %v6149, %v6965
    %v6967 = vand.u32 %v6966, 4294901760
    %6968 = vmatprep.subr.mxu0 %v6967
    %v6969 = vand.u32 %v6148, 4294901760
    %v6970 = vsub.f32 %v6148, %v6969
    %v6971 = vand.u32 %v6970, 4294901760
    %6972 = vmatpush1.msra.mxu0 %v6971
    %v6973 = vand.u32 %v6153, 4294901760
    %v6974 = vsub.f32 %v6153, %v6973
    %v6975 = vand.u32 %v6974, 4294901760
    %6976 = vmatprep.subr.mxu0 %v6975
    %v6977 = vand.u32 %v6152, 4294901760
    %v6978 = vsub.f32 %v6152, %v6977
    %v6979 = vand.u32 %v6978, 4294901760
    %6980 = vmatpush1.msra.mxu0 %v6979
    %v6981 = vand.u32 %v6157, 4294901760
    %v6982 = vsub.f32 %v6157, %v6981
    %v6983 = vand.u32 %v6982, 4294901760
    %6984 = vmatprep.subr.mxu0 %v6983
    %v6985 = vand.u32 %v6156, 4294901760
    %v6986 = vsub.f32 %v6156, %v6985
    %v6987 = vand.u32 %v6986, 4294901760
    %6988 = vmatpush1.msra.mxu0 %v6987
    %6989 = vmatprep.subr.mxu0 0.0
    %6990 = vmatpush1.msra.mxu0 0.0
    %6991 = vmatprep.subr.mxu0 0.0
    %6992 = vmatpush1.msra.mxu0 0.0
    %6993 = vmatprep.subr.mxu0 0.0
    %6994 = vmatpush1.msra.mxu0 0.0
    %6995 = vmatprep.subr.mxu0 0.0
    %6996 = vmatpush1.msra.mxu0 0.0
    %6997 = vmatprep.subr.mxu0 0.0
    %6998 = vmatpush1.msra.mxu0 0.0
    %6999 = vmatprep.subr.mxu0 0.0
    %7000 = vmatpush1.msra.mxu0 0.0
    %7001 = vmatprep.subr.mxu0 0.0
    %7002 = vmatpush1.msra.mxu0 0.0
    %7003 = vmatprep.subr.mxu0 0.0
    %7004 = vmatpush1.msra.mxu0 0.0
    %7005 = vmatprep.subr.mxu0 0.0
    %7006 = vmatpush1.msra.mxu0 0.0
    %7007 = vmatprep.subr.mxu0 0.0
    %7008 = vmatpush1.msra.mxu0 0.0
    %7009 = vmatprep.subr.mxu0 0.0
    %7010 = vmatpush1.msra.mxu0 0.0
    %7011 = vmatprep.subr.mxu0 0.0
    %7012 = vmatpush1.msra.mxu0 0.0
    %7013 = vmatprep.subr.mxu0 0.0
    %7014 = vmatpush1.msra.mxu0 0.0
    %7015 = vmatprep.subr.mxu0 0.0
    %7016 = vmatpush1.msra.mxu0 0.0
    %7017 = vmatprep.subr.mxu0 0.0
    %7018 = vmatpush1.msra.mxu0 0.0
    %7019 = vmatprep.subr.mxu0 0.0
    %7020 = vmatpush1.msra.mxu0 0.0
    %7021 = vmatprep.subr.mxu0 0.0
    %7022 = vmatpush1.msra.mxu0 0.0
    %7023 = vmatprep.subr.mxu0 0.0
    %7024 = vmatpush1.msra.mxu0 0.0
    %7025 = vmatprep.subr.mxu0 0.0
    %7026 = vmatpush1.msra.mxu0 0.0
    %7027 = vmatprep.subr.mxu0 0.0
    %7028 = vmatpush1.msra.mxu0 0.0
    %7029 = vmatprep.subr.mxu0 0.0
    %7030 = vmatpush1.msra.mxu0 0.0
    %7031 = vmatprep.subr.mxu0 0.0
    %7032 = vmatpush1.msra.mxu0 0.0
    %7033 = vmatprep.subr.mxu0 0.0
    %7034 = vmatpush1.msra.mxu0 0.0
    %7035 = vmatprep.subr.mxu0 0.0
    %7036 = vmatpush1.msra.mxu0 0.0
    %7037 = vmatprep.mubr.f32.mxu0 0.0
    %v7038 = vand.u32 %v6218, 4294901760
    %7039 = vmatmul.mubr.f32.gmra.mrb[0].mxu0 %v7038
    %v7040 = vpop.f32.mrb[0].mxu0
    %v7041 = vadd.f32 %v6858, %v7040
    %v7042 = vpop.f32.mrb[0].mxu0
    %v7043 = vadd.f32 %v6860, %v7042
    %7044 = vmatprep.mubr.f32.mxu0 0.0
    %v7045 = vand.u32 %v6221, 4294901760
    %7046 = vmatmul.mubr.f32.gmra.mrb[0].mxu0 %v7045
    %v7047 = vpop.f32.mrb[0].mxu0
    %v7048 = vadd.f32 %v6867, %v7047
    %v7049 = vpop.f32.mrb[0].mxu0
    %v7050 = vadd.f32 %v6869, %v7049
    %7051 = vmatprep.mubr.f32.mxu0 0.0
    %v7052 = vand.u32 %v6224, 4294901760
    %7053 = vmatmul.mubr.f32.gmra.mrb[0].mxu0 %v7052
    %v7054 = vpop.f32.mrb[0].mxu0
    %v7055 = vadd.f32 %v6876, %v7054
    %v7056 = vpop.f32.mrb[0].mxu0
    %v7057 = vadd.f32 %v6878, %v7056
    %7058 = vmatprep.mubr.f32.mxu0 0.0
    %v7059 = vand.u32 %v6227, 4294901760
    %7060 = vmatmul.mubr.f32.gmra.mrb[0].mxu0 %v7059
    %v7061 = vpop.f32.mrb[0].mxu0
    %v7062 = vadd.f32 %v6885, %v7061
    %v7063 = vpop.f32.mrb[0].mxu0
    %v7064 = vadd.f32 %v6887, %v7063
    %7065 = vmatprep.mubr.f32.mxu0 0.0
    %v7066 = vand.u32 %v6230, 4294901760
    %7067 = vmatmul.mubr.f32.gmra.mrb[0].mxu0 %v7066
    %v7068 = vpop.f32.mrb[0].mxu0
    %v7069 = vadd.f32 %v6894, %v7068
    %v7070 = vpop.f32.mrb[0].mxu0
    %v7071 = vadd.f32 %v6896, %v7070
    %7072 = vmatprep.mubr.f32.mxu0 0.0
    %v7073 = vand.u32 %v6233, 4294901760
    %7074 = vmatmul.mubr.f32.gmra.mrb[0].mxu0 %v7073
    %v7075 = vpop.f32.mrb[0].mxu0
    %v7076 = vadd.f32 %v6903, %v7075
    %v7077 = vpop.f32.mrb[0].mxu0
    %v7078 = vadd.f32 %v6905, %v7077
    %7079 = vmatprep.mubr.f32.mxu0 0.0
    %v7080 = vand.u32 %v6236, 4294901760
    %7081 = vmatmul.mubr.f32.gmra.mrb[0].mxu0 %v7080
    %v7082 = vpop.f32.mrb[0].mxu0
    %v7083 = vadd.f32 %v6912, %v7082
    %v7084 = vpop.f32.mrb[0].mxu0
    %v7085 = vadd.f32 %v6914, %v7084
    %7086 = vmatprep.mubr.f32.mxu0 0.0
    %v7087 = vand.u32 %v6239, 4294901760
    %7088 = vmatmul.mubr.f32.gmra.mrb[0].mxu0 %v7087
    %v7089 = vpop.f32.mrb[0].mxu0
    %v7090 = vadd.f32 %v6921, %v7089
    %v7091 = vpop.f32.mrb[0].mxu0
    %v7092 = vadd.f32 %v6923, %v7091
    %7093 = vdwg.mxu0
    %v7094 = vand.u32 %v6129, 4294901760
    %7095 = vmatprep.subr.mxu0 %v7094
    %v7096 = vand.u32 %v6128, 4294901760
    %7097 = vmatpush1.msra.mxu0 %v7096
    %v7098 = vand.u32 %v6133, 4294901760
    %7099 = vmatprep.subr.mxu0 %v7098
    %v7100 = vand.u32 %v6132, 4294901760
    %7101 = vmatpush1.msra.mxu0 %v7100
    %v7102 = vand.u32 %v6137, 4294901760
    %7103 = vmatprep.subr.mxu0 %v7102
    %v7104 = vand.u32 %v6136, 4294901760
    %7105 = vmatpush1.msra.mxu0 %v7104
    %v7106 = vand.u32 %v6141, 4294901760
    %7107 = vmatprep.subr.mxu0 %v7106
    %v7108 = vand.u32 %v6140, 4294901760
    %7109 = vmatpush1.msra.mxu0 %v7108
    %v7110 = vand.u32 %v6145, 4294901760
    %7111 = vmatprep.subr.mxu0 %v7110
    %v7112 = vand.u32 %v6144, 4294901760
    %7113 = vmatpush1.msra.mxu0 %v7112
    %v7114 = vand.u32 %v6149, 4294901760
    %7115 = vmatprep.subr.mxu0 %v7114
    %v7116 = vand.u32 %v6148, 4294901760
    %7117 = vmatpush1.msra.mxu0 %v7116
    %v7118 = vand.u32 %v6153, 4294901760
    %7119 = vmatprep.subr.mxu0 %v7118
    %v7120 = vand.u32 %v6152, 4294901760
    %7121 = vmatpush1.msra.mxu0 %v7120
    %v7122 = vand.u32 %v6157, 4294901760
    %7123 = vmatprep.subr.mxu0 %v7122
    %v7124 = vand.u32 %v6156, 4294901760
    %7125 = vmatpush1.msra.mxu0 %v7124
    %7126 = vmatprep.subr.mxu0 0.0
    %7127 = vmatpush1.msra.mxu0 0.0
    %7128 = vmatprep.subr.mxu0 0.0
    %7129 = vmatpush1.msra.mxu0 0.0
    %7130 = vmatprep.subr.mxu0 0.0
    %7131 = vmatpush1.msra.mxu0 0.0
    %7132 = vmatprep.subr.mxu0 0.0
    %7133 = vmatpush1.msra.mxu0 0.0
    %7134 = vmatprep.subr.mxu0 0.0
    %7135 = vmatpush1.msra.mxu0 0.0
    %7136 = vmatprep.subr.mxu0 0.0
    %7137 = vmatpush1.msra.mxu0 0.0
    %7138 = vmatprep.subr.mxu0 0.0
    %7139 = vmatpush1.msra.mxu0 0.0
    %7140 = vmatprep.subr.mxu0 0.0
    %7141 = vmatpush1.msra.mxu0 0.0
    %7142 = vmatprep.subr.mxu0 0.0
    %7143 = vmatpush1.msra.mxu0 0.0
    %7144 = vmatprep.subr.mxu0 0.0
    %7145 = vmatpush1.msra.mxu0 0.0
    %7146 = vmatprep.subr.mxu0 0.0
    %7147 = vmatpush1.msra.mxu0 0.0
    %7148 = vmatprep.subr.mxu0 0.0
    %7149 = vmatpush1.msra.mxu0 0.0
    %7150 = vmatprep.subr.mxu0 0.0
    %7151 = vmatpush1.msra.mxu0 0.0
    %7152 = vmatprep.subr.mxu0 0.0
    %7153 = vmatpush1.msra.mxu0 0.0
    %7154 = vmatprep.subr.mxu0 0.0
    %7155 = vmatpush1.msra.mxu0 0.0
    %7156 = vmatprep.subr.mxu0 0.0
    %7157 = vmatpush1.msra.mxu0 0.0
    %7158 = vmatprep.subr.mxu0 0.0
    %7159 = vmatpush1.msra.mxu0 0.0
    %7160 = vmatprep.subr.mxu0 0.0
    %7161 = vmatpush1.msra.mxu0 0.0
    %7162 = vmatprep.subr.mxu0 0.0
    %7163 = vmatpush1.msra.mxu0 0.0
    %7164 = vmatprep.subr.mxu0 0.0
    %7165 = vmatpush1.msra.mxu0 0.0
    %7166 = vmatprep.subr.mxu0 0.0
    %7167 = vmatpush1.msra.mxu0 0.0
    %7168 = vmatprep.subr.mxu0 0.0
    %7169 = vmatpush1.msra.mxu0 0.0
    %7170 = vmatprep.subr.mxu0 0.0
    %7171 = vmatpush1.msra.mxu0 0.0
    %7172 = vmatprep.subr.mxu0 0.0
    %7173 = vmatpush1.msra.mxu0 0.0
    %7174 = vmatprep.mubr.f32.mxu0 0.0
    %v7175 = vand.u32 %v6218, 4294901760
    %7176 = vmatmul.mubr.f32.gmra.mrb[0].mxu0 %v7175
    %v7177 = vpop.f32.mrb[0].mxu0
    %v7178 = vadd.f32 %v7041, %v7177
    %v7179 = vpop.f32.mrb[0].mxu0
    %v7180 = vadd.f32 %v7043, %v7179
    %7181 = vmatprep.mubr.f32.mxu0 0.0
    %v7182 = vand.u32 %v6221, 4294901760
    %7183 = vmatmul.mubr.f32.gmra.mrb[0].mxu0 %v7182
    %v7184 = vpop.f32.mrb[0].mxu0
    %v7185 = vadd.f32 %v7048, %v7184
    %v7186 = vpop.f32.mrb[0].mxu0
    %v7187 = vadd.f32 %v7050, %v7186
    %7188 = vmatprep.mubr.f32.mxu0 0.0
    %v7189 = vand.u32 %v6224, 4294901760
    %7190 = vmatmul.mubr.f32.gmra.mrb[0].mxu0 %v7189
    %v7191 = vpop.f32.mrb[0].mxu0
    %v7192 = vadd.f32 %v7055, %v7191
    %v7193 = vpop.f32.mrb[0].mxu0
    %v7194 = vadd.f32 %v7057, %v7193
    %7195 = vmatprep.mubr.f32.mxu0 0.0
    %v7196 = vand.u32 %v6227, 4294901760
    %7197 = vmatmul.mubr.f32.gmra.mrb[0].mxu0 %v7196
    %v7198 = vpop.f32.mrb[0].mxu0
    %v7199 = vadd.f32 %v7062, %v7198
    %v7200 = vpop.f32.mrb[0].mxu0
    %v7201 = vadd.f32 %v7064, %v7200
    %7202 = vmatprep.mubr.f32.mxu0 0.0
    %v7203 = vand.u32 %v6230, 4294901760
    %7204 = vmatmul.mubr.f32.gmra.mrb[0].mxu0 %v7203
    %v7205 = vpop.f32.mrb[0].mxu0
    %v7206 = vadd.f32 %v7069, %v7205
    %v7207 = vpop.f32.mrb[0].mxu0
    %v7208 = vadd.f32 %v7071, %v7207
    %7209 = vmatprep.mubr.f32.mxu0 0.0
    %v7210 = vand.u32 %v6233, 4294901760
    %7211 = vmatmul.mubr.f32.gmra.mrb[0].mxu0 %v7210
    %v7212 = vpop.f32.mrb[0].mxu0
    %v7213 = vadd.f32 %v7076, %v7212
    %v7214 = vpop.f32.mrb[0].mxu0
    %v7215 = vadd.f32 %v7078, %v7214
    %7216 = vmatprep.mubr.f32.mxu0 0.0
    %v7217 = vand.u32 %v6236, 4294901760
    %7218 = vmatmul.mubr.f32.gmra.mrb[0].mxu0 %v7217
    %v7219 = vpop.f32.mrb[0].mxu0
    %v7220 = vadd.f32 %v7083, %v7219
    %v7221 = vpop.f32.mrb[0].mxu0
    %v7222 = vadd.f32 %v7085, %v7221
    %7223 = vmatprep.mubr.f32.mxu0 0.0
    %v7224 = vand.u32 %v6239, 4294901760
    %7225 = vmatmul.mubr.f32.gmra.mrb[0].mxu0 %v7224
    %v7226 = vpop.f32.mrb[0].mxu0
    %v7227 = vadd.f32 %v7090, %v7226
    %v7228 = vpop.f32.mrb[0].mxu0
    %v7229 = vadd.f32 %v7092, %v7228
    %7230 = vdwg.mxu0
    %v7231 = vand.u32 %v6131, 4294901760
    %7232 = vmatprep.subr.mxu0 %v7231
    %v7233 = vand.u32 %v6130, 4294901760
    %7234 = vmatpush1.msra.mxu0 %v7233
    %v7235 = vand.u32 %v6135, 4294901760
    %7236 = vmatprep.subr.mxu0 %v7235
    %v7237 = vand.u32 %v6134, 4294901760
    %7238 = vmatpush1.msra.mxu0 %v7237
    %v7239 = vand.u32 %v6139, 4294901760
    %7240 = vmatprep.subr.mxu0 %v7239
    %v7241 = vand.u32 %v6138, 4294901760
    %7242 = vmatpush1.msra.mxu0 %v7241
    %v7243 = vand.u32 %v6143, 4294901760
    %7244 = vmatprep.subr.mxu0 %v7243
    %v7245 = vand.u32 %v6142, 4294901760
    %7246 = vmatpush1.msra.mxu0 %v7245
    %v7247 = vand.u32 %v6147, 4294901760
    %7248 = vmatprep.subr.mxu0 %v7247
    %v7249 = vand.u32 %v6146, 4294901760
    %7250 = vmatpush1.msra.mxu0 %v7249
    %v7251 = vand.u32 %v6151, 4294901760
    %7252 = vmatprep.subr.mxu0 %v7251
    %v7253 = vand.u32 %v6150, 4294901760
    %7254 = vmatpush1.msra.mxu0 %v7253
    %v7255 = vand.u32 %v6155, 4294901760
    %7256 = vmatprep.subr.mxu0 %v7255
    %v7257 = vand.u32 %v6154, 4294901760
    %7258 = vmatpush1.msra.mxu0 %v7257
    %v7259 = vand.u32 %v6159, 4294901760
    %7260 = vmatprep.subr.mxu0 %v7259
    %v7261 = vand.u32 %v6158, 4294901760
    %7262 = vmatpush1.msra.mxu0 %v7261
    %7263 = vmatprep.subr.mxu0 0.0
    %7264 = vmatpush1.msra.mxu0 0.0
    %7265 = vmatprep.subr.mxu0 0.0
    %7266 = vmatpush1.msra.mxu0 0.0
    %7267 = vmatprep.subr.mxu0 0.0
    %7268 = vmatpush1.msra.mxu0 0.0
    %7269 = vmatprep.subr.mxu0 0.0
    %7270 = vmatpush1.msra.mxu0 0.0
    %7271 = vmatprep.subr.mxu0 0.0
    %7272 = vmatpush1.msra.mxu0 0.0
    %7273 = vmatprep.subr.mxu0 0.0
    %7274 = vmatpush1.msra.mxu0 0.0
    %7275 = vmatprep.subr.mxu0 0.0
    %7276 = vmatpush1.msra.mxu0 0.0
    %7277 = vmatprep.subr.mxu0 0.0
    %7278 = vmatpush1.msra.mxu0 0.0
    %7279 = vmatprep.subr.mxu0 0.0
    %7280 = vmatpush1.msra.mxu0 0.0
    %7281 = vmatprep.subr.mxu0 0.0
    %7282 = vmatpush1.msra.mxu0 0.0
    %7283 = vmatprep.subr.mxu0 0.0
    %7284 = vmatpush1.msra.mxu0 0.0
    %7285 = vmatprep.subr.mxu0 0.0
    %7286 = vmatpush1.msra.mxu0 0.0
    %7287 = vmatprep.subr.mxu0 0.0
    %7288 = vmatpush1.msra.mxu0 0.0
    %7289 = vmatprep.subr.mxu0 0.0
    %7290 = vmatpush1.msra.mxu0 0.0
    %7291 = vmatprep.subr.mxu0 0.0
    %7292 = vmatpush1.msra.mxu0 0.0
    %7293 = vmatprep.subr.mxu0 0.0
    %7294 = vmatpush1.msra.mxu0 0.0
    %7295 = vmatprep.subr.mxu0 0.0
    %7296 = vmatpush1.msra.mxu0 0.0
    %7297 = vmatprep.subr.mxu0 0.0
    %7298 = vmatpush1.msra.mxu0 0.0
    %7299 = vmatprep.subr.mxu0 0.0
    %7300 = vmatpush1.msra.mxu0 0.0
    %7301 = vmatprep.subr.mxu0 0.0
    %7302 = vmatpush1.msra.mxu0 0.0
    %7303 = vmatprep.subr.mxu0 0.0
    %7304 = vmatpush1.msra.mxu0 0.0
    %7305 = vmatprep.subr.mxu0 0.0
    %7306 = vmatpush1.msra.mxu0 0.0
    %7307 = vmatprep.subr.mxu0 0.0
    %7308 = vmatpush1.msra.mxu0 0.0
    %7309 = vmatprep.subr.mxu0 0.0
    %7310 = vmatpush1.msra.mxu0 0.0
    %7311 = vmatprep.mubr.f32.mxu0 0.0
    %v7312 = vand.u32 %v6218, 4294901760
    %v7313 = vsub.f32 %v6218, %v7312
    %v7314 = vand.u32 %v7313, 4294901760
    %v7315 = vsub.f32 %v7313, %v7314
    %v7316 = vand.u32 %v7315, 4294901760
    %7317 = vmatmul.mubr.f32.gmra.mrb[0].mxu0 %v7316
    %v7318 = vpop.f32.mrb[0].mxu0
    %v7319 = vadd.f32 %v6179, %v7318
    %v7320 = vpop.f32.mrb[0].mxu0
    %v7321 = vadd.f32 %v6179, %v7320
    %7322 = vmatprep.mubr.f32.mxu0 0.0
    %v7323 = vand.u32 %v6221, 4294901760
    %v7324 = vsub.f32 %v6221, %v7323
    %v7325 = vand.u32 %v7324, 4294901760
    %v7326 = vsub.f32 %v7324, %v7325
    %v7327 = vand.u32 %v7326, 4294901760
    %7328 = vmatmul.mubr.f32.gmra.mrb[0].mxu0 %v7327
    %v7329 = vpop.f32.mrb[0].mxu0
    %v7330 = vadd.f32 %v6184, %v7329
    %v7331 = vpop.f32.mrb[0].mxu0
    %v7332 = vadd.f32 %v6184, %v7331
    %7333 = vmatprep.mubr.f32.mxu0 0.0
    %v7334 = vand.u32 %v6224, 4294901760
    %v7335 = vsub.f32 %v6224, %v7334
    %v7336 = vand.u32 %v7335, 4294901760
    %v7337 = vsub.f32 %v7335, %v7336
    %v7338 = vand.u32 %v7337, 4294901760
    %7339 = vmatmul.mubr.f32.gmra.mrb[0].mxu0 %v7338
    %v7340 = vpop.f32.mrb[0].mxu0
    %v7341 = vadd.f32 %v6189, %v7340
    %v7342 = vpop.f32.mrb[0].mxu0
    %v7343 = vadd.f32 %v6189, %v7342
    %7344 = vmatprep.mubr.f32.mxu0 0.0
    %v7345 = vand.u32 %v6227, 4294901760
    %v7346 = vsub.f32 %v6227, %v7345
    %v7347 = vand.u32 %v7346, 4294901760
    %v7348 = vsub.f32 %v7346, %v7347
    %v7349 = vand.u32 %v7348, 4294901760
    %7350 = vmatmul.mubr.f32.gmra.mrb[0].mxu0 %v7349
    %v7351 = vpop.f32.mrb[0].mxu0
    %v7352 = vadd.f32 %v6194, %v7351
    %v7353 = vpop.f32.mrb[0].mxu0
    %v7354 = vadd.f32 %v6194, %v7353
    %7355 = vmatprep.mubr.f32.mxu0 0.0
    %v7356 = vand.u32 %v6230, 4294901760
    %v7357 = vsub.f32 %v6230, %v7356
    %v7358 = vand.u32 %v7357, 4294901760
    %v7359 = vsub.f32 %v7357, %v7358
    %v7360 = vand.u32 %v7359, 4294901760
    %7361 = vmatmul.mubr.f32.gmra.mrb[0].mxu0 %v7360
    %v7362 = vpop.f32.mrb[0].mxu0
    %v7363 = vadd.f32 %v6199, %v7362
    %v7364 = vpop.f32.mrb[0].mxu0
    %v7365 = vadd.f32 %v6199, %v7364
    %7366 = vmatprep.mubr.f32.mxu0 0.0
    %v7367 = vand.u32 %v6233, 4294901760
    %v7368 = vsub.f32 %v6233, %v7367
    %v7369 = vand.u32 %v7368, 4294901760
    %v7370 = vsub.f32 %v7368, %v7369
    %v7371 = vand.u32 %v7370, 4294901760
    %7372 = vmatmul.mubr.f32.gmra.mrb[0].mxu0 %v7371
    %v7373 = vpop.f32.mrb[0].mxu0
    %v7374 = vadd.f32 %v6204, %v7373
    %v7375 = vpop.f32.mrb[0].mxu0
    %v7376 = vadd.f32 %v6204, %v7375
    %7377 = vmatprep.mubr.f32.mxu0 0.0
    %v7378 = vand.u32 %v6236, 4294901760
    %v7379 = vsub.f32 %v6236, %v7378
    %v7380 = vand.u32 %v7379, 4294901760
    %v7381 = vsub.f32 %v7379, %v7380
    %v7382 = vand.u32 %v7381, 4294901760
    %7383 = vmatmul.mubr.f32.gmra.mrb[0].mxu0 %v7382
    %v7384 = vpop.f32.mrb[0].mxu0
    %v7385 = vadd.f32 %v6209, %v7384
    %v7386 = vpop.f32.mrb[0].mxu0
    %v7387 = vadd.f32 %v6209, %v7386
    %7388 = vmatprep.mubr.f32.mxu0 0.0
    %v7389 = vand.u32 %v6239, 4294901760
    %v7390 = vsub.f32 %v6239, %v7389
    %v7391 = vand.u32 %v7390, 4294901760
    %v7392 = vsub.f32 %v7390, %v7391
    %v7393 = vand.u32 %v7392, 4294901760
    %7394 = vmatmul.mubr.f32.gmra.mrb[0].mxu0 %v7393
    %v7395 = vpop.f32.mrb[0].mxu0
    %v7396 = vadd.f32 %v6214, %v7395
    %v7397 = vpop.f32.mrb[0].mxu0
    %v7398 = vadd.f32 %v6214, %v7397
    %7399 = vdwg.mxu0
    %v7400 = vand.u32 %v6131, 4294901760
    %v7401 = vsub.f32 %v6131, %v7400
    %v7402 = vand.u32 %v7401, 4294901760
    %v7403 = vsub.f32 %v7401, %v7402
    %v7404 = vand.u32 %v7403, 4294901760
    %7405 = vmatprep.subr.mxu0 %v7404
    %v7406 = vand.u32 %v6130, 4294901760
    %v7407 = vsub.f32 %v6130, %v7406
    %v7408 = vand.u32 %v7407, 4294901760
    %v7409 = vsub.f32 %v7407, %v7408
    %v7410 = vand.u32 %v7409, 4294901760
    %7411 = vmatpush1.msra.mxu0 %v7410
    %v7412 = vand.u32 %v6135, 4294901760
    %v7413 = vsub.f32 %v6135, %v7412
    %v7414 = vand.u32 %v7413, 4294901760
    %v7415 = vsub.f32 %v7413, %v7414
    %v7416 = vand.u32 %v7415, 4294901760
    %7417 = vmatprep.subr.mxu0 %v7416
    %v7418 = vand.u32 %v6134, 4294901760
    %v7419 = vsub.f32 %v6134, %v7418
    %v7420 = vand.u32 %v7419, 4294901760
    %v7421 = vsub.f32 %v7419, %v7420
    %v7422 = vand.u32 %v7421, 4294901760
    %7423 = vmatpush1.msra.mxu0 %v7422
    %v7424 = vand.u32 %v6139, 4294901760
    %v7425 = vsub.f32 %v6139, %v7424
    %v7426 = vand.u32 %v7425, 4294901760
    %v7427 = vsub.f32 %v7425, %v7426
    %v7428 = vand.u32 %v7427, 4294901760
    %7429 = vmatprep.subr.mxu0 %v7428
    %v7430 = vand.u32 %v6138, 4294901760
    %v7431 = vsub.f32 %v6138, %v7430
    %v7432 = vand.u32 %v7431, 4294901760
    %v7433 = vsub.f32 %v7431, %v7432
    %v7434 = vand.u32 %v7433, 4294901760
    %7435 = vmatpush1.msra.mxu0 %v7434
    %v7436 = vand.u32 %v6143, 4294901760
    %v7437 = vsub.f32 %v6143, %v7436
    %v7438 = vand.u32 %v7437, 4294901760
    %v7439 = vsub.f32 %v7437, %v7438
    %v7440 = vand.u32 %v7439, 4294901760
    %7441 = vmatprep.subr.mxu0 %v7440
    %v7442 = vand.u32 %v6142, 4294901760
    %v7443 = vsub.f32 %v6142, %v7442
    %v7444 = vand.u32 %v7443, 4294901760
    %v7445 = vsub.f32 %v7443, %v7444
    %v7446 = vand.u32 %v7445, 4294901760
    %7447 = vmatpush1.msra.mxu0 %v7446
    %v7448 = vand.u32 %v6147, 4294901760
    %v7449 = vsub.f32 %v6147, %v7448
    %v7450 = vand.u32 %v7449, 4294901760
    %v7451 = vsub.f32 %v7449, %v7450
    %v7452 = vand.u32 %v7451, 4294901760
    %7453 = vmatprep.subr.mxu0 %v7452
    %v7454 = vand.u32 %v6146, 4294901760
    %v7455 = vsub.f32 %v6146, %v7454
    %v7456 = vand.u32 %v7455, 4294901760
    %v7457 = vsub.f32 %v7455, %v7456
    %v7458 = vand.u32 %v7457, 4294901760
    %7459 = vmatpush1.msra.mxu0 %v7458
    %v7460 = vand.u32 %v6151, 4294901760
    %v7461 = vsub.f32 %v6151, %v7460
    %v7462 = vand.u32 %v7461, 4294901760
    %v7463 = vsub.f32 %v7461, %v7462
    %v7464 = vand.u32 %v7463, 4294901760
    %7465 = vmatprep.subr.mxu0 %v7464
    %v7466 = vand.u32 %v6150, 4294901760
    %v7467 = vsub.f32 %v6150, %v7466
    %v7468 = vand.u32 %v7467, 4294901760
    %v7469 = vsub.f32 %v7467, %v7468
    %v7470 = vand.u32 %v7469, 4294901760
    %7471 = vmatpush1.msra.mxu0 %v7470
    %v7472 = vand.u32 %v6155, 4294901760
    %v7473 = vsub.f32 %v6155, %v7472
    %v7474 = vand.u32 %v7473, 4294901760
    %v7475 = vsub.f32 %v7473, %v7474
    %v7476 = vand.u32 %v7475, 4294901760
    %7477 = vmatprep.subr.mxu0 %v7476
    %v7478 = vand.u32 %v6154, 4294901760
    %v7479 = vsub.f32 %v6154, %v7478
    %v7480 = vand.u32 %v7479, 4294901760
    %v7481 = vsub.f32 %v7479, %v7480
    %v7482 = vand.u32 %v7481, 4294901760
    %7483 = vmatpush1.msra.mxu0 %v7482
    %v7484 = vand.u32 %v6159, 4294901760
    %v7485 = vsub.f32 %v6159, %v7484
    %v7486 = vand.u32 %v7485, 4294901760
    %v7487 = vsub.f32 %v7485, %v7486
    %v7488 = vand.u32 %v7487, 4294901760
    %7489 = vmatprep.subr.mxu0 %v7488
    %v7490 = vand.u32 %v6158, 4294901760
    %v7491 = vsub.f32 %v6158, %v7490
    %v7492 = vand.u32 %v7491, 4294901760
    %v7493 = vsub.f32 %v7491, %v7492
    %v7494 = vand.u32 %v7493, 4294901760
    %7495 = vmatpush1.msra.mxu0 %v7494
    %7496 = vmatprep.subr.mxu0 0.0
    %7497 = vmatpush1.msra.mxu0 0.0
    %7498 = vmatprep.subr.mxu0 0.0
    %7499 = vmatpush1.msra.mxu0 0.0
    %7500 = vmatprep.subr.mxu0 0.0
    %7501 = vmatpush1.msra.mxu0 0.0
    %7502 = vmatprep.subr.mxu0 0.0
    %7503 = vmatpush1.msra.mxu0 0.0
    %7504 = vmatprep.subr.mxu0 0.0
    %7505 = vmatpush1.msra.mxu0 0.0
    %7506 = vmatprep.subr.mxu0 0.0
    %7507 = vmatpush1.msra.mxu0 0.0
    %7508 = vmatprep.subr.mxu0 0.0
    %7509 = vmatpush1.msra.mxu0 0.0
    %7510 = vmatprep.subr.mxu0 0.0
    %7511 = vmatpush1.msra.mxu0 0.0
    %7512 = vmatprep.subr.mxu0 0.0
    %7513 = vmatpush1.msra.mxu0 0.0
    %7514 = vmatprep.subr.mxu0 0.0
    %7515 = vmatpush1.msra.mxu0 0.0
    %7516 = vmatprep.subr.mxu0 0.0
    %7517 = vmatpush1.msra.mxu0 0.0
    %7518 = vmatprep.subr.mxu0 0.0
    %7519 = vmatpush1.msra.mxu0 0.0
    %7520 = vmatprep.subr.mxu0 0.0
    %7521 = vmatpush1.msra.mxu0 0.0
    %7522 = vmatprep.subr.mxu0 0.0
    %7523 = vmatpush1.msra.mxu0 0.0
    %7524 = vmatprep.subr.mxu0 0.0
    %7525 = vmatpush1.msra.mxu0 0.0
    %7526 = vmatprep.subr.mxu0 0.0
    %7527 = vmatpush1.msra.mxu0 0.0
    %7528 = vmatprep.subr.mxu0 0.0
    %7529 = vmatpush1.msra.mxu0 0.0
    %7530 = vmatprep.subr.mxu0 0.0
    %7531 = vmatpush1.msra.mxu0 0.0
    %7532 = vmatprep.subr.mxu0 0.0
    %7533 = vmatpush1.msra.mxu0 0.0
    %7534 = vmatprep.subr.mxu0 0.0
    %7535 = vmatpush1.msra.mxu0 0.0
    %7536 = vmatprep.subr.mxu0 0.0
    %7537 = vmatpush1.msra.mxu0 0.0
    %7538 = vmatprep.subr.mxu0 0.0
    %7539 = vmatpush1.msra.mxu0 0.0
    %7540 = vmatprep.subr.mxu0 0.0
    %7541 = vmatpush1.msra.mxu0 0.0
    %7542 = vmatprep.subr.mxu0 0.0
    %7543 = vmatpush1.msra.mxu0 0.0
    %7544 = vmatprep.mubr.f32.mxu0 0.0
    %v7545 = vand.u32 %v6218, 4294901760
    %7546 = vmatmul.mubr.f32.gmra.mrb[0].mxu0 %v7545
    %v7547 = vpop.f32.mrb[0].mxu0
    %v7548 = vadd.f32 %v7319, %v7547
    %v7549 = vpop.f32.mrb[0].mxu0
    %v7550 = vadd.f32 %v7321, %v7549
    %7551 = vmatprep.mubr.f32.mxu0 0.0
    %v7552 = vand.u32 %v6221, 4294901760
    %7553 = vmatmul.mubr.f32.gmra.mrb[0].mxu0 %v7552
    %v7554 = vpop.f32.mrb[0].mxu0
    %v7555 = vadd.f32 %v7330, %v7554
    %v7556 = vpop.f32.mrb[0].mxu0
    %v7557 = vadd.f32 %v7332, %v7556
    %7558 = vmatprep.mubr.f32.mxu0 0.0
    %v7559 = vand.u32 %v6224, 4294901760
    %7560 = vmatmul.mubr.f32.gmra.mrb[0].mxu0 %v7559
    %v7561 = vpop.f32.mrb[0].mxu0
    %v7562 = vadd.f32 %v7341, %v7561
    %v7563 = vpop.f32.mrb[0].mxu0
    %v7564 = vadd.f32 %v7343, %v7563
    %7565 = vmatprep.mubr.f32.mxu0 0.0
    %v7566 = vand.u32 %v6227, 4294901760
    %7567 = vmatmul.mubr.f32.gmra.mrb[0].mxu0 %v7566
    %v7568 = vpop.f32.mrb[0].mxu0
    %v7569 = vadd.f32 %v7352, %v7568
    %v7570 = vpop.f32.mrb[0].mxu0
    %v7571 = vadd.f32 %v7354, %v7570
    %7572 = vmatprep.mubr.f32.mxu0 0.0
    %v7573 = vand.u32 %v6230, 4294901760
    %7574 = vmatmul.mubr.f32.gmra.mrb[0].mxu0 %v7573
    %v7575 = vpop.f32.mrb[0].mxu0
    %v7576 = vadd.f32 %v7363, %v7575
    %v7577 = vpop.f32.mrb[0].mxu0
    %v7578 = vadd.f32 %v7365, %v7577
    %7579 = vmatprep.mubr.f32.mxu0 0.0
    %v7580 = vand.u32 %v6233, 4294901760
    %7581 = vmatmul.mubr.f32.gmra.mrb[0].mxu0 %v7580
    %v7582 = vpop.f32.mrb[0].mxu0
    %v7583 = vadd.f32 %v7374, %v7582
    %v7584 = vpop.f32.mrb[0].mxu0
    %v7585 = vadd.f32 %v7376, %v7584
    %7586 = vmatprep.mubr.f32.mxu0 0.0
    %v7587 = vand.u32 %v6236, 4294901760
    %7588 = vmatmul.mubr.f32.gmra.mrb[0].mxu0 %v7587
    %v7589 = vpop.f32.mrb[0].mxu0
    %v7590 = vadd.f32 %v7385, %v7589
    %v7591 = vpop.f32.mrb[0].mxu0
    %v7592 = vadd.f32 %v7387, %v7591
    %7593 = vmatprep.mubr.f32.mxu0 0.0
    %v7594 = vand.u32 %v6239, 4294901760
    %7595 = vmatmul.mubr.f32.gmra.mrb[0].mxu0 %v7594
    %v7596 = vpop.f32.mrb[0].mxu0
    %v7597 = vadd.f32 %v7396, %v7596
    %v7598 = vpop.f32.mrb[0].mxu0
    %v7599 = vadd.f32 %v7398, %v7598
    %7600 = vdwg.mxu0
    %v7601 = vand.u32 %v6131, 4294901760
    %v7602 = vsub.f32 %v6131, %v7601
    %7603 = vmatprep.subr.mxu0 %v7602
    %v7604 = vand.u32 %v6130, 4294901760
    %v7605 = vsub.f32 %v6130, %v7604
    %7606 = vmatpush1.msra.mxu0 %v7605
    %v7607 = vand.u32 %v6135, 4294901760
    %v7608 = vsub.f32 %v6135, %v7607
    %7609 = vmatprep.subr.mxu0 %v7608
    %v7610 = vand.u32 %v6134, 4294901760
    %v7611 = vsub.f32 %v6134, %v7610
    %7612 = vmatpush1.msra.mxu0 %v7611
    %v7613 = vand.u32 %v6139, 4294901760
    %v7614 = vsub.f32 %v6139, %v7613
    %7615 = vmatprep.subr.mxu0 %v7614
    %v7616 = vand.u32 %v6138, 4294901760
    %v7617 = vsub.f32 %v6138, %v7616
    %7618 = vmatpush1.msra.mxu0 %v7617
    %v7619 = vand.u32 %v6143, 4294901760
    %v7620 = vsub.f32 %v6143, %v7619
    %7621 = vmatprep.subr.mxu0 %v7620
    %v7622 = vand.u32 %v6142, 4294901760
    %v7623 = vsub.f32 %v6142, %v7622
    %7624 = vmatpush1.msra.mxu0 %v7623
    %v7625 = vand.u32 %v6147, 4294901760
    %v7626 = vsub.f32 %v6147, %v7625
    %7627 = vmatprep.subr.mxu0 %v7626
    %v7628 = vand.u32 %v6146, 4294901760
    %v7629 = vsub.f32 %v6146, %v7628
    %7630 = vmatpush1.msra.mxu0 %v7629
    %v7631 = vand.u32 %v6151, 4294901760
    %v7632 = vsub.f32 %v6151, %v7631
    %7633 = vmatprep.subr.mxu0 %v7632
    %v7634 = vand.u32 %v6150, 4294901760
    %v7635 = vsub.f32 %v6150, %v7634
    %7636 = vmatpush1.msra.mxu0 %v7635
    %v7637 = vand.u32 %v6155, 4294901760
    %v7638 = vsub.f32 %v6155, %v7637
    %7639 = vmatprep.subr.mxu0 %v7638
    %v7640 = vand.u32 %v6154, 4294901760
    %v7641 = vsub.f32 %v6154, %v7640
    %7642 = vmatpush1.msra.mxu0 %v7641
    %v7643 = vand.u32 %v6159, 4294901760
    %v7644 = vsub.f32 %v6159, %v7643
    %7645 = vmatprep.subr.mxu0 %v7644
    %v7646 = vand.u32 %v6158, 4294901760
    %v7647 = vsub.f32 %v6158, %v7646
    %7648 = vmatpush1.msra.mxu0 %v7647
    %7649 = vmatprep.subr.mxu0 0.0
    %7650 = vmatpush1.msra.mxu0 0.0
    %7651 = vmatprep.subr.mxu0 0.0
    %7652 = vmatpush1.msra.mxu0 0.0
    %7653 = vmatprep.subr.mxu0 0.0
    %7654 = vmatpush1.msra.mxu0 0.0
    %7655 = vmatprep.subr.mxu0 0.0
    %7656 = vmatpush1.msra.mxu0 0.0
    %7657 = vmatprep.subr.mxu0 0.0
    %7658 = vmatpush1.msra.mxu0 0.0
    %7659 = vmatprep.subr.mxu0 0.0
    %7660 = vmatpush1.msra.mxu0 0.0
    %7661 = vmatprep.subr.mxu0 0.0
    %7662 = vmatpush1.msra.mxu0 0.0
    %7663 = vmatprep.subr.mxu0 0.0
    %7664 = vmatpush1.msra.mxu0 0.0
    %7665 = vmatprep.subr.mxu0 0.0
    %7666 = vmatpush1.msra.mxu0 0.0
    %7667 = vmatprep.subr.mxu0 0.0
    %7668 = vmatpush1.msra.mxu0 0.0
    %7669 = vmatprep.subr.mxu0 0.0
    %7670 = vmatpush1.msra.mxu0 0.0
    %7671 = vmatprep.subr.mxu0 0.0
    %7672 = vmatpush1.msra.mxu0 0.0
    %7673 = vmatprep.subr.mxu0 0.0
    %7674 = vmatpush1.msra.mxu0 0.0
    %7675 = vmatprep.subr.mxu0 0.0
    %7676 = vmatpush1.msra.mxu0 0.0
    %7677 = vmatprep.subr.mxu0 0.0
    %7678 = vmatpush1.msra.mxu0 0.0
    %7679 = vmatprep.subr.mxu0 0.0
    %7680 = vmatpush1.msra.mxu0 0.0
    %7681 = vmatprep.subr.mxu0 0.0
    %7682 = vmatpush1.msra.mxu0 0.0
    %7683 = vmatprep.subr.mxu0 0.0
    %7684 = vmatpush1.msra.mxu0 0.0
    %7685 = vmatprep.subr.mxu0 0.0
    %7686 = vmatpush1.msra.mxu0 0.0
    %7687 = vmatprep.subr.mxu0 0.0
    %7688 = vmatpush1.msra.mxu0 0.0
    %7689 = vmatprep.subr.mxu0 0.0
    %7690 = vmatpush1.msra.mxu0 0.0
    %7691 = vmatprep.subr.mxu0 0.0
    %7692 = vmatpush1.msra.mxu0 0.0
    %7693 = vmatprep.subr.mxu0 0.0
    %7694 = vmatpush1.msra.mxu0 0.0
    %7695 = vmatprep.subr.mxu0 0.0
    %7696 = vmatpush1.msra.mxu0 0.0
    %7697 = vmatprep.mubr.f32.mxu0 0.0
    %v7698 = vand.u32 %v6218, 4294901760
    %v7699 = vsub.f32 %v6218, %v7698
    %7700 = vmatmul.mubr.f32.gmra.mrb[0].mxu0 %v7699
    %v7701 = vpop.f32.mrb[0].mxu0
    %v7702 = vadd.f32 %v7548, %v7701
    %v7703 = vpop.f32.mrb[0].mxu0
    %v7704 = vadd.f32 %v7550, %v7703
    %7705 = vmatprep.mubr.f32.mxu0 0.0
    %v7706 = vand.u32 %v6221, 4294901760
    %v7707 = vsub.f32 %v6221, %v7706
    %7708 = vmatmul.mubr.f32.gmra.mrb[0].mxu0 %v7707
    %v7709 = vpop.f32.mrb[0].mxu0
    %v7710 = vadd.f32 %v7555, %v7709
    %v7711 = vpop.f32.mrb[0].mxu0
    %v7712 = vadd.f32 %v7557, %v7711
    %7713 = vmatprep.mubr.f32.mxu0 0.0
    %v7714 = vand.u32 %v6224, 4294901760
    %v7715 = vsub.f32 %v6224, %v7714
    %7716 = vmatmul.mubr.f32.gmra.mrb[0].mxu0 %v7715
    %v7717 = vpop.f32.mrb[0].mxu0
    %v7718 = vadd.f32 %v7562, %v7717
    %v7719 = vpop.f32.mrb[0].mxu0
    %v7720 = vadd.f32 %v7564, %v7719
    %7721 = vmatprep.mubr.f32.mxu0 0.0
    %v7722 = vand.u32 %v6227, 4294901760
    %v7723 = vsub.f32 %v6227, %v7722
    %7724 = vmatmul.mubr.f32.gmra.mrb[0].mxu0 %v7723
    %v7725 = vpop.f32.mrb[0].mxu0
    %v7726 = vadd.f32 %v7569, %v7725
    %v7727 = vpop.f32.mrb[0].mxu0
    %v7728 = vadd.f32 %v7571, %v7727
    %7729 = vmatprep.mubr.f32.mxu0 0.0
    %v7730 = vand.u32 %v6230, 4294901760
    %v7731 = vsub.f32 %v6230, %v7730
    %7732 = vmatmul.mubr.f32.gmra.mrb[0].mxu0 %v7731
    %v7733 = vpop.f32.mrb[0].mxu0
    %v7734 = vadd.f32 %v7576, %v7733
    %v7735 = vpop.f32.mrb[0].mxu0
    %v7736 = vadd.f32 %v7578, %v7735
    %7737 = vmatprep.mubr.f32.mxu0 0.0
    %v7738 = vand.u32 %v6233, 4294901760
    %v7739 = vsub.f32 %v6233, %v7738
    %7740 = vmatmul.mubr.f32.gmra.mrb[0].mxu0 %v7739
    %v7741 = vpop.f32.mrb[0].mxu0
    %v7742 = vadd.f32 %v7583, %v7741
    %v7743 = vpop.f32.mrb[0].mxu0
    %v7744 = vadd.f32 %v7585, %v7743
    %7745 = vmatprep.mubr.f32.mxu0 0.0
    %v7746 = vand.u32 %v6236, 4294901760
    %v7747 = vsub.f32 %v6236, %v7746
    %7748 = vmatmul.mubr.f32.gmra.mrb[0].mxu0 %v7747
    %v7749 = vpop.f32.mrb[0].mxu0
    %v7750 = vadd.f32 %v7590, %v7749
    %v7751 = vpop.f32.mrb[0].mxu0
    %v7752 = vadd.f32 %v7592, %v7751
    %7753 = vmatprep.mubr.f32.mxu0 0.0
    %v7754 = vand.u32 %v6239, 4294901760
    %v7755 = vsub.f32 %v6239, %v7754
    %7756 = vmatmul.mubr.f32.gmra.mrb[0].mxu0 %v7755
    %v7757 = vpop.f32.mrb[0].mxu0
    %v7758 = vadd.f32 %v7597, %v7757
    %v7759 = vpop.f32.mrb[0].mxu0
    %v7760 = vadd.f32 %v7599, %v7759
    %7761 = vdwg.mxu0
    %v7762 = vand.u32 %v6131, 4294901760
    %7763 = vmatprep.subr.mxu0 %v7762
    %v7764 = vand.u32 %v6130, 4294901760
    %7765 = vmatpush1.msra.mxu0 %v7764
    %v7766 = vand.u32 %v6135, 4294901760
    %7767 = vmatprep.subr.mxu0 %v7766
    %v7768 = vand.u32 %v6134, 4294901760
    %7769 = vmatpush1.msra.mxu0 %v7768
    %v7770 = vand.u32 %v6139, 4294901760
    %7771 = vmatprep.subr.mxu0 %v7770
    %v7772 = vand.u32 %v6138, 4294901760
    %7773 = vmatpush1.msra.mxu0 %v7772
    %v7774 = vand.u32 %v6143, 4294901760
    %7775 = vmatprep.subr.mxu0 %v7774
    %v7776 = vand.u32 %v6142, 4294901760
    %7777 = vmatpush1.msra.mxu0 %v7776
    %v7778 = vand.u32 %v6147, 4294901760
    %7779 = vmatprep.subr.mxu0 %v7778
    %v7780 = vand.u32 %v6146, 4294901760
    %7781 = vmatpush1.msra.mxu0 %v7780
    %v7782 = vand.u32 %v6151, 4294901760
    %7783 = vmatprep.subr.mxu0 %v7782
    %v7784 = vand.u32 %v6150, 4294901760
    %7785 = vmatpush1.msra.mxu0 %v7784
    %v7786 = vand.u32 %v6155, 4294901760
    %7787 = vmatprep.subr.mxu0 %v7786
    %v7788 = vand.u32 %v6154, 4294901760
    %7789 = vmatpush1.msra.mxu0 %v7788
    %v7790 = vand.u32 %v6159, 4294901760
    %7791 = vmatprep.subr.mxu0 %v7790
    %v7792 = vand.u32 %v6158, 4294901760
    %7793 = vmatpush1.msra.mxu0 %v7792
    %7794 = vmatprep.subr.mxu0 0.0
    %7795 = vmatpush1.msra.mxu0 0.0
    %7796 = vmatprep.subr.mxu0 0.0
    %7797 = vmatpush1.msra.mxu0 0.0
    %7798 = vmatprep.subr.mxu0 0.0
    %7799 = vmatpush1.msra.mxu0 0.0
    %7800 = vmatprep.subr.mxu0 0.0
    %7801 = vmatpush1.msra.mxu0 0.0
    %7802 = vmatprep.subr.mxu0 0.0
    %7803 = vmatpush1.msra.mxu0 0.0
    %7804 = vmatprep.subr.mxu0 0.0
    %7805 = vmatpush1.msra.mxu0 0.0
    %7806 = vmatprep.subr.mxu0 0.0
    %7807 = vmatpush1.msra.mxu0 0.0
    %7808 = vmatprep.subr.mxu0 0.0
    %7809 = vmatpush1.msra.mxu0 0.0
    %7810 = vmatprep.subr.mxu0 0.0
    %7811 = vmatpush1.msra.mxu0 0.0
    %7812 = vmatprep.subr.mxu0 0.0
    %7813 = vmatpush1.msra.mxu0 0.0
    %7814 = vmatprep.subr.mxu0 0.0
    %7815 = vmatpush1.msra.mxu0 0.0
    %7816 = vmatprep.subr.mxu0 0.0
    %7817 = vmatpush1.msra.mxu0 0.0
    %7818 = vmatprep.subr.mxu0 0.0
    %7819 = vmatpush1.msra.mxu0 0.0
    %7820 = vmatprep.subr.mxu0 0.0
    %7821 = vmatpush1.msra.mxu0 0.0
    %7822 = vmatprep.subr.mxu0 0.0
    %7823 = vmatpush1.msra.mxu0 0.0
    %7824 = vmatprep.subr.mxu0 0.0
    %7825 = vmatpush1.msra.mxu0 0.0
    %7826 = vmatprep.subr.mxu0 0.0
    %7827 = vmatpush1.msra.mxu0 0.0
    %7828 = vmatprep.subr.mxu0 0.0
    %7829 = vmatpush1.msra.mxu0 0.0
    %7830 = vmatprep.subr.mxu0 0.0
    %7831 = vmatpush1.msra.mxu0 0.0
    %7832 = vmatprep.subr.mxu0 0.0
    %7833 = vmatpush1.msra.mxu0 0.0
    %7834 = vmatprep.subr.mxu0 0.0
    %7835 = vmatpush1.msra.mxu0 0.0
    %7836 = vmatprep.subr.mxu0 0.0
    %7837 = vmatpush1.msra.mxu0 0.0
    %7838 = vmatprep.subr.mxu0 0.0
    %7839 = vmatpush1.msra.mxu0 0.0
    %7840 = vmatprep.subr.mxu0 0.0
    %7841 = vmatpush1.msra.mxu0 0.0
    %7842 = vmatprep.mubr.f32.mxu0 0.0
    %v7843 = vand.u32 %v6218, 4294901760
    %v7844 = vsub.f32 %v6218, %v7843
    %v7845 = vand.u32 %v7844, 4294901760
    %7846 = vmatmul.mubr.f32.gmra.mrb[0].mxu0 %v7845
    %v7847 = vpop.f32.mrb[0].mxu0
    %v7848 = vadd.f32 %v7702, %v7847
    %v7849 = vpop.f32.mrb[0].mxu0
    %v7850 = vadd.f32 %v7704, %v7849
    %7851 = vmatprep.mubr.f32.mxu0 0.0
    %v7852 = vand.u32 %v6221, 4294901760
    %v7853 = vsub.f32 %v6221, %v7852
    %v7854 = vand.u32 %v7853, 4294901760
    %7855 = vmatmul.mubr.f32.gmra.mrb[0].mxu0 %v7854
    %v7856 = vpop.f32.mrb[0].mxu0
    %v7857 = vadd.f32 %v7710, %v7856
    %v7858 = vpop.f32.mrb[0].mxu0
    %v7859 = vadd.f32 %v7712, %v7858
    %7860 = vmatprep.mubr.f32.mxu0 0.0
    %v7861 = vand.u32 %v6224, 4294901760
    %v7862 = vsub.f32 %v6224, %v7861
    %v7863 = vand.u32 %v7862, 4294901760
    %7864 = vmatmul.mubr.f32.gmra.mrb[0].mxu0 %v7863
    %v7865 = vpop.f32.mrb[0].mxu0
    %v7866 = vadd.f32 %v7718, %v7865
    %v7867 = vpop.f32.mrb[0].mxu0
    %v7868 = vadd.f32 %v7720, %v7867
    %7869 = vmatprep.mubr.f32.mxu0 0.0
    %v7870 = vand.u32 %v6227, 4294901760
    %v7871 = vsub.f32 %v6227, %v7870
    %v7872 = vand.u32 %v7871, 4294901760
    %7873 = vmatmul.mubr.f32.gmra.mrb[0].mxu0 %v7872
    %v7874 = vpop.f32.mrb[0].mxu0
    %v7875 = vadd.f32 %v7726, %v7874
    %v7876 = vpop.f32.mrb[0].mxu0
    %v7877 = vadd.f32 %v7728, %v7876
    %7878 = vmatprep.mubr.f32.mxu0 0.0
    %v7879 = vand.u32 %v6230, 4294901760
    %v7880 = vsub.f32 %v6230, %v7879
    %v7881 = vand.u32 %v7880, 4294901760
    %7882 = vmatmul.mubr.f32.gmra.mrb[0].mxu0 %v7881
    %v7883 = vpop.f32.mrb[0].mxu0
    %v7884 = vadd.f32 %v7734, %v7883
    %v7885 = vpop.f32.mrb[0].mxu0
    %v7886 = vadd.f32 %v7736, %v7885
    %7887 = vmatprep.mubr.f32.mxu0 0.0
    %v7888 = vand.u32 %v6233, 4294901760
    %v7889 = vsub.f32 %v6233, %v7888
    %v7890 = vand.u32 %v7889, 4294901760
    %7891 = vmatmul.mubr.f32.gmra.mrb[0].mxu0 %v7890
    %v7892 = vpop.f32.mrb[0].mxu0
    %v7893 = vadd.f32 %v7742, %v7892
    %v7894 = vpop.f32.mrb[0].mxu0
    %v7895 = vadd.f32 %v7744, %v7894
    %7896 = vmatprep.mubr.f32.mxu0 0.0
    %v7897 = vand.u32 %v6236, 4294901760
    %v7898 = vsub.f32 %v6236, %v7897
    %v7899 = vand.u32 %v7898, 4294901760
    %7900 = vmatmul.mubr.f32.gmra.mrb[0].mxu0 %v7899
    %v7901 = vpop.f32.mrb[0].mxu0
    %v7902 = vadd.f32 %v7750, %v7901
    %v7903 = vpop.f32.mrb[0].mxu0
    %v7904 = vadd.f32 %v7752, %v7903
    %7905 = vmatprep.mubr.f32.mxu0 0.0
    %v7906 = vand.u32 %v6239, 4294901760
    %v7907 = vsub.f32 %v6239, %v7906
    %v7908 = vand.u32 %v7907, 4294901760
    %7909 = vmatmul.mubr.f32.gmra.mrb[0].mxu0 %v7908
    %v7910 = vpop.f32.mrb[0].mxu0
    %v7911 = vadd.f32 %v7758, %v7910
    %v7912 = vpop.f32.mrb[0].mxu0
    %v7913 = vadd.f32 %v7760, %v7912
    %7914 = vdwg.mxu0
    %v7915 = vand.u32 %v6131, 4294901760
    %v7916 = vsub.f32 %v6131, %v7915
    %v7917 = vand.u32 %v7916, 4294901760
    %7918 = vmatprep.subr.mxu0 %v7917
    %v7919 = vand.u32 %v6130, 4294901760
    %v7920 = vsub.f32 %v6130, %v7919
    %v7921 = vand.u32 %v7920, 4294901760
    %7922 = vmatpush1.msra.mxu0 %v7921
    %v7923 = vand.u32 %v6135, 4294901760
    %v7924 = vsub.f32 %v6135, %v7923
    %v7925 = vand.u32 %v7924, 4294901760
    %7926 = vmatprep.subr.mxu0 %v7925
    %v7927 = vand.u32 %v6134, 4294901760
    %v7928 = vsub.f32 %v6134, %v7927
    %v7929 = vand.u32 %v7928, 4294901760
    %7930 = vmatpush1.msra.mxu0 %v7929
    %v7931 = vand.u32 %v6139, 4294901760
    %v7932 = vsub.f32 %v6139, %v7931
    %v7933 = vand.u32 %v7932, 4294901760
    %7934 = vmatprep.subr.mxu0 %v7933
    %v7935 = vand.u32 %v6138, 4294901760
    %v7936 = vsub.f32 %v6138, %v7935
    %v7937 = vand.u32 %v7936, 4294901760
    %7938 = vmatpush1.msra.mxu0 %v7937
    %v7939 = vand.u32 %v6143, 4294901760
    %v7940 = vsub.f32 %v6143, %v7939
    %v7941 = vand.u32 %v7940, 4294901760
    %7942 = vmatprep.subr.mxu0 %v7941
    %v7943 = vand.u32 %v6142, 4294901760
    %v7944 = vsub.f32 %v6142, %v7943
    %v7945 = vand.u32 %v7944, 4294901760
    %7946 = vmatpush1.msra.mxu0 %v7945
    %v7947 = vand.u32 %v6147, 4294901760
    %v7948 = vsub.f32 %v6147, %v7947
    %v7949 = vand.u32 %v7948, 4294901760
    %7950 = vmatprep.subr.mxu0 %v7949
    %v7951 = vand.u32 %v6146, 4294901760
    %v7952 = vsub.f32 %v6146, %v7951
    %v7953 = vand.u32 %v7952, 4294901760
    %7954 = vmatpush1.msra.mxu0 %v7953
    %v7955 = vand.u32 %v6151, 4294901760
    %v7956 = vsub.f32 %v6151, %v7955
    %v7957 = vand.u32 %v7956, 4294901760
    %7958 = vmatprep.subr.mxu0 %v7957
    %v7959 = vand.u32 %v6150, 4294901760
    %v7960 = vsub.f32 %v6150, %v7959
    %v7961 = vand.u32 %v7960, 4294901760
    %7962 = vmatpush1.msra.mxu0 %v7961
    %v7963 = vand.u32 %v6155, 4294901760
    %v7964 = vsub.f32 %v6155, %v7963
    %v7965 = vand.u32 %v7964, 4294901760
    %7966 = vmatprep.subr.mxu0 %v7965
    %v7967 = vand.u32 %v6154, 4294901760
    %v7968 = vsub.f32 %v6154, %v7967
    %v7969 = vand.u32 %v7968, 4294901760
    %7970 = vmatpush1.msra.mxu0 %v7969
    %v7971 = vand.u32 %v6159, 4294901760
    %v7972 = vsub.f32 %v6159, %v7971
    %v7973 = vand.u32 %v7972, 4294901760
    %7974 = vmatprep.subr.mxu0 %v7973
    %v7975 = vand.u32 %v6158, 4294901760
    %v7976 = vsub.f32 %v6158, %v7975
    %v7977 = vand.u32 %v7976, 4294901760
    %7978 = vmatpush1.msra.mxu0 %v7977
    %7979 = vmatprep.subr.mxu0 0.0
    %7980 = vmatpush1.msra.mxu0 0.0
    %7981 = vmatprep.subr.mxu0 0.0
    %7982 = vmatpush1.msra.mxu0 0.0
    %7983 = vmatprep.subr.mxu0 0.0
    %7984 = vmatpush1.msra.mxu0 0.0
    %7985 = vmatprep.subr.mxu0 0.0
    %7986 = vmatpush1.msra.mxu0 0.0
    %7987 = vmatprep.subr.mxu0 0.0
    %7988 = vmatpush1.msra.mxu0 0.0
    %7989 = vmatprep.subr.mxu0 0.0
    %7990 = vmatpush1.msra.mxu0 0.0
    %7991 = vmatprep.subr.mxu0 0.0
    %7992 = vmatpush1.msra.mxu0 0.0
    %7993 = vmatprep.subr.mxu0 0.0
    %7994 = vmatpush1.msra.mxu0 0.0
    %7995 = vmatprep.subr.mxu0 0.0
    %7996 = vmatpush1.msra.mxu0 0.0
    %7997 = vmatprep.subr.mxu0 0.0
    %7998 = vmatpush1.msra.mxu0 0.0
    %7999 = vmatprep.subr.mxu0 0.0
    %8000 = vmatpush1.msra.mxu0 0.0
    %8001 = vmatprep.subr.mxu0 0.0
    %8002 = vmatpush1.msra.mxu0 0.0
    %8003 = vmatprep.subr.mxu0 0.0
    %8004 = vmatpush1.msra.mxu0 0.0
    %8005 = vmatprep.subr.mxu0 0.0
    %8006 = vmatpush1.msra.mxu0 0.0
    %8007 = vmatprep.subr.mxu0 0.0
    %8008 = vmatpush1.msra.mxu0 0.0
    %8009 = vmatprep.subr.mxu0 0.0
    %8010 = vmatpush1.msra.mxu0 0.0
    %8011 = vmatprep.subr.mxu0 0.0
    %8012 = vmatpush1.msra.mxu0 0.0
    %8013 = vmatprep.subr.mxu0 0.0
    %8014 = vmatpush1.msra.mxu0 0.0
    %8015 = vmatprep.subr.mxu0 0.0
    %8016 = vmatpush1.msra.mxu0 0.0
    %8017 = vmatprep.subr.mxu0 0.0
    %8018 = vmatpush1.msra.mxu0 0.0
    %8019 = vmatprep.subr.mxu0 0.0
    %8020 = vmatpush1.msra.mxu0 0.0
    %8021 = vmatprep.subr.mxu0 0.0
    %8022 = vmatpush1.msra.mxu0 0.0
    %8023 = vmatprep.subr.mxu0 0.0
    %8024 = vmatpush1.msra.mxu0 0.0
    %8025 = vmatprep.subr.mxu0 0.0
    %8026 = vmatpush1.msra.mxu0 0.0
    %8027 = vmatprep.mubr.f32.mxu0 0.0
    %v8028 = vand.u32 %v6218, 4294901760
    %8029 = vmatmul.mubr.f32.gmra.mrb[0].mxu0 %v8028
    %v8030 = vpop.f32.mrb[0].mxu0
    %v8031 = vadd.f32 %v7848, %v8030
    %v8032 = vpop.f32.mrb[0].mxu0
    %v8033 = vadd.f32 %v7850, %v8032
    %8034 = vmatprep.mubr.f32.mxu0 0.0
    %v8035 = vand.u32 %v6221, 4294901760
    %8036 = vmatmul.mubr.f32.gmra.mrb[0].mxu0 %v8035
    %v8037 = vpop.f32.mrb[0].mxu0
    %v8038 = vadd.f32 %v7857, %v8037
    %v8039 = vpop.f32.mrb[0].mxu0
    %v8040 = vadd.f32 %v7859, %v8039
    %8041 = vmatprep.mubr.f32.mxu0 0.0
    %v8042 = vand.u32 %v6224, 4294901760
    %8043 = vmatmul.mubr.f32.gmra.mrb[0].mxu0 %v8042
    %v8044 = vpop.f32.mrb[0].mxu0
    %v8045 = vadd.f32 %v7866, %v8044
    %v8046 = vpop.f32.mrb[0].mxu0
    %v8047 = vadd.f32 %v7868, %v8046
    %8048 = vmatprep.mubr.f32.mxu0 0.0
    %v8049 = vand.u32 %v6227, 4294901760
    %8050 = vmatmul.mubr.f32.gmra.mrb[0].mxu0 %v8049
    %v8051 = vpop.f32.mrb[0].mxu0
    %v8052 = vadd.f32 %v7875, %v8051
    %v8053 = vpop.f32.mrb[0].mxu0
    %v8054 = vadd.f32 %v7877, %v8053
    %8055 = vmatprep.mubr.f32.mxu0 0.0
    %v8056 = vand.u32 %v6230, 4294901760
    %8057 = vmatmul.mubr.f32.gmra.mrb[0].mxu0 %v8056
    %v8058 = vpop.f32.mrb[0].mxu0
    %v8059 = vadd.f32 %v7884, %v8058
    %v8060 = vpop.f32.mrb[0].mxu0
    %v8061 = vadd.f32 %v7886, %v8060
    %8062 = vmatprep.mubr.f32.mxu0 0.0
    %v8063 = vand.u32 %v6233, 4294901760
    %8064 = vmatmul.mubr.f32.gmra.mrb[0].mxu0 %v8063
    %v8065 = vpop.f32.mrb[0].mxu0
    %v8066 = vadd.f32 %v7893, %v8065
    %v8067 = vpop.f32.mrb[0].mxu0
    %v8068 = vadd.f32 %v7895, %v8067
    %8069 = vmatprep.mubr.f32.mxu0 0.0
    %v8070 = vand.u32 %v6236, 4294901760
    %8071 = vmatmul.mubr.f32.gmra.mrb[0].mxu0 %v8070
    %v8072 = vpop.f32.mrb[0].mxu0
    %v8073 = vadd.f32 %v7902, %v8072
    %v8074 = vpop.f32.mrb[0].mxu0
    %v8075 = vadd.f32 %v7904, %v8074
    %8076 = vmatprep.mubr.f32.mxu0 0.0
    %v8077 = vand.u32 %v6239, 4294901760
    %8078 = vmatmul.mubr.f32.gmra.mrb[0].mxu0 %v8077
    %v8079 = vpop.f32.mrb[0].mxu0
    %v8080 = vadd.f32 %v7911, %v8079
    %v8081 = vpop.f32.mrb[0].mxu0
    %v8082 = vadd.f32 %v7913, %v8081
    %8083 = vdwg.mxu0
    %v8084 = vand.u32 %v6131, 4294901760
    %8085 = vmatprep.subr.mxu0 %v8084
    %v8086 = vand.u32 %v6130, 4294901760
    %8087 = vmatpush1.msra.mxu0 %v8086
    %v8088 = vand.u32 %v6135, 4294901760
    %8089 = vmatprep.subr.mxu0 %v8088
    %v8090 = vand.u32 %v6134, 4294901760
    %8091 = vmatpush1.msra.mxu0 %v8090
    %v8092 = vand.u32 %v6139, 4294901760
    %8093 = vmatprep.subr.mxu0 %v8092
    %v8094 = vand.u32 %v6138, 4294901760
    %8095 = vmatpush1.msra.mxu0 %v8094
    %v8096 = vand.u32 %v6143, 4294901760
    %8097 = vmatprep.subr.mxu0 %v8096
    %v8098 = vand.u32 %v6142, 4294901760
    %8099 = vmatpush1.msra.mxu0 %v8098
    %v8100 = vand.u32 %v6147, 4294901760
    %8101 = vmatprep.subr.mxu0 %v8100
    %v8102 = vand.u32 %v6146, 4294901760
    %8103 = vmatpush1.msra.mxu0 %v8102
    %v8104 = vand.u32 %v6151, 4294901760
    %8105 = vmatprep.subr.mxu0 %v8104
    %v8106 = vand.u32 %v6150, 4294901760
    %8107 = vmatpush1.msra.mxu0 %v8106
    %v8108 = vand.u32 %v6155, 4294901760
    %8109 = vmatprep.subr.mxu0 %v8108
    %v8110 = vand.u32 %v6154, 4294901760
    %8111 = vmatpush1.msra.mxu0 %v8110
    %v8112 = vand.u32 %v6159, 4294901760
    %8113 = vmatprep.subr.mxu0 %v8112
    %v8114 = vand.u32 %v6158, 4294901760
    %8115 = vmatpush1.msra.mxu0 %v8114
    %8116 = vmatprep.subr.mxu0 0.0
    %8117 = vmatpush1.msra.mxu0 0.0
    %8118 = vmatprep.subr.mxu0 0.0
    %8119 = vmatpush1.msra.mxu0 0.0
    %8120 = vmatprep.subr.mxu0 0.0
    %8121 = vmatpush1.msra.mxu0 0.0
    %8122 = vmatprep.subr.mxu0 0.0
    %8123 = vmatpush1.msra.mxu0 0.0
    %8124 = vmatprep.subr.mxu0 0.0
    %8125 = vmatpush1.msra.mxu0 0.0
    %8126 = vmatprep.subr.mxu0 0.0
    %8127 = vmatpush1.msra.mxu0 0.0
    %8128 = vmatprep.subr.mxu0 0.0
    %8129 = vmatpush1.msra.mxu0 0.0
    %8130 = vmatprep.subr.mxu0 0.0
    %8131 = vmatpush1.msra.mxu0 0.0
    %8132 = vmatprep.subr.mxu0 0.0
    %8133 = vmatpush1.msra.mxu0 0.0
    %8134 = vmatprep.subr.mxu0 0.0
    %8135 = vmatpush1.msra.mxu0 0.0
    %8136 = vmatprep.subr.mxu0 0.0
    %8137 = vmatpush1.msra.mxu0 0.0
    %8138 = vmatprep.subr.mxu0 0.0
    %8139 = vmatpush1.msra.mxu0 0.0
    %8140 = vmatprep.subr.mxu0 0.0
    %8141 = vmatpush1.msra.mxu0 0.0
    %8142 = vmatprep.subr.mxu0 0.0
    %8143 = vmatpush1.msra.mxu0 0.0
    %8144 = vmatprep.subr.mxu0 0.0
    %8145 = vmatpush1.msra.mxu0 0.0
    %8146 = vmatprep.subr.mxu0 0.0
    %8147 = vmatpush1.msra.mxu0 0.0
    %8148 = vmatprep.subr.mxu0 0.0
    %8149 = vmatpush1.msra.mxu0 0.0
    %8150 = vmatprep.subr.mxu0 0.0
    %8151 = vmatpush1.msra.mxu0 0.0
    %8152 = vmatprep.subr.mxu0 0.0
    %8153 = vmatpush1.msra.mxu0 0.0
    %8154 = vmatprep.subr.mxu0 0.0
    %8155 = vmatpush1.msra.mxu0 0.0
    %8156 = vmatprep.subr.mxu0 0.0
    %8157 = vmatpush1.msra.mxu0 0.0
    %8158 = vmatprep.subr.mxu0 0.0
    %8159 = vmatpush1.msra.mxu0 0.0
    %8160 = vmatprep.subr.mxu0 0.0
    %8161 = vmatpush1.msra.mxu0 0.0
    %8162 = vmatprep.subr.mxu0 0.0
    %8163 = vmatpush1.msra.mxu0 0.0
    %8164 = vmatprep.mubr.f32.mxu0 0.0
    %v8165 = vand.u32 %v6218, 4294901760
    %8166 = vmatmul.mubr.f32.gmra.mrb[0].mxu0 %v8165
    %v8167 = vpop.f32.mrb[0].mxu0
    %v8168 = vadd.f32 %v8031, %v8167
    %v8169 = vpop.f32.mrb[0].mxu0
    %v8170 = vadd.f32 %v8033, %v8169
    %8171 = vmatprep.mubr.f32.mxu0 0.0
    %v8172 = vand.u32 %v6221, 4294901760
    %8173 = vmatmul.mubr.f32.gmra.mrb[0].mxu0 %v8172
    %v8174 = vpop.f32.mrb[0].mxu0
    %v8175 = vadd.f32 %v8038, %v8174
    %v8176 = vpop.f32.mrb[0].mxu0
    %v8177 = vadd.f32 %v8040, %v8176
    %8178 = vmatprep.mubr.f32.mxu0 0.0
    %v8179 = vand.u32 %v6224, 4294901760
    %8180 = vmatmul.mubr.f32.gmra.mrb[0].mxu0 %v8179
    %v8181 = vpop.f32.mrb[0].mxu0
    %v8182 = vadd.f32 %v8045, %v8181
    %v8183 = vpop.f32.mrb[0].mxu0
    %v8184 = vadd.f32 %v8047, %v8183
    %8185 = vmatprep.mubr.f32.mxu0 0.0
    %v8186 = vand.u32 %v6227, 4294901760
    %8187 = vmatmul.mubr.f32.gmra.mrb[0].mxu0 %v8186
    %v8188 = vpop.f32.mrb[0].mxu0
    %v8189 = vadd.f32 %v8052, %v8188
    %v8190 = vpop.f32.mrb[0].mxu0
    %v8191 = vadd.f32 %v8054, %v8190
    %8192 = vmatprep.mubr.f32.mxu0 0.0
    %v8193 = vand.u32 %v6230, 4294901760
    %8194 = vmatmul.mubr.f32.gmra.mrb[0].mxu0 %v8193
    %v8195 = vpop.f32.mrb[0].mxu0
    %v8196 = vadd.f32 %v8059, %v8195
    %v8197 = vpop.f32.mrb[0].mxu0
    %v8198 = vadd.f32 %v8061, %v8197
    %8199 = vmatprep.mubr.f32.mxu0 0.0
    %v8200 = vand.u32 %v6233, 4294901760
    %8201 = vmatmul.mubr.f32.gmra.mrb[0].mxu0 %v8200
    %v8202 = vpop.f32.mrb[0].mxu0
    %v8203 = vadd.f32 %v8066, %v8202
    %v8204 = vpop.f32.mrb[0].mxu0
    %v8205 = vadd.f32 %v8068, %v8204
    %8206 = vmatprep.mubr.f32.mxu0 0.0
    %v8207 = vand.u32 %v6236, 4294901760
    %8208 = vmatmul.mubr.f32.gmra.mrb[0].mxu0 %v8207
    %v8209 = vpop.f32.mrb[0].mxu0
    %v8210 = vadd.f32 %v8073, %v8209
    %v8211 = vpop.f32.mrb[0].mxu0
    %v8212 = vadd.f32 %v8075, %v8211
    %8213 = vmatprep.mubr.f32.mxu0 0.0
    %v8214 = vand.u32 %v6239, 4294901760
    %8215 = vmatmul.mubr.f32.gmra.mrb[0].mxu0 %v8214
    %v8216 = vpop.f32.mrb[0].mxu0
    %v8217 = vadd.f32 %v8080, %v8216
    %v8218 = vpop.f32.mrb[0].mxu0
    %v8219 = vadd.f32 %v8082, %v8218
    %8220 = vdwg.mxu0
    %8221 = vxpose.xlu0.b32.start [1/16] %v7178, 128
    %8222 = vxpose.xlu0.b32.cont [2/16] %v7185, 128
    %8223 = vxpose.xlu0.b32.cont [3/16] %v7192, 128
    %8224 = vxpose.xlu0.b32.cont [4/16] %v7199, 128
    %8225 = vxpose.xlu0.b32.cont [5/16] %v7206, 128
    %8226 = vxpose.xlu0.b32.cont [6/16] %v7213, 128
    %8227 = vxpose.xlu0.b32.cont [7/16] %v7220, 128
    %8228 = vxpose.xlu0.b32.cont [8/16] %v7227, 128
    %8229 = vxpose.xlu0.b32.cont [9/16] 0.0, 128
    %8230 = vxpose.xlu0.b32.cont [10/16] 0.0, 128
    %8231 = vxpose.xlu0.b32.cont [11/16] 0.0, 128
    %8232 = vxpose.xlu0.b32.cont [12/16] 0.0, 128
    %8233 = vxpose.xlu0.b32.cont [13/16] 0.0, 128
    %8234 = vxpose.xlu0.b32.cont [14/16] 0.0, 128
    %8235 = vxpose.xlu0.b32.cont [15/16] 0.0, 128
    %8236 = vxpose.xlu0.b32.end [16/16] 0.0, 128
    %v8237 = vpop.trf.xlu0
    %v8238 = vpop.trf.xlu0
    %v8239 = vpop.trf.xlu0
    %v8240 = vpop.trf.xlu0
    %v8241 = vpop.trf.xlu0
    %v8242 = vpop.trf.xlu0
    %v8243 = vpop.trf.xlu0
    %v8244 = vpop.trf.xlu0
    %v8245 = vpop.trf.xlu0
    %v8246 = vpop.trf.xlu0
    %v8247 = vpop.trf.xlu0
    %v8248 = vpop.trf.xlu0
    %v8249 = vpop.trf.xlu0
    %v8250 = vpop.trf.xlu0
    %v8251 = vpop.trf.xlu0
    %v8252 = vpop.trf.xlu0
    %8253 = vxpose.xlu0.b32.start [1/16] %v7180, 128
    %8254 = vxpose.xlu0.b32.cont [2/16] %v7187, 128
    %8255 = vxpose.xlu0.b32.cont [3/16] %v7194, 128
    %8256 = vxpose.xlu0.b32.cont [4/16] %v7201, 128
    %8257 = vxpose.xlu0.b32.cont [5/16] %v7208, 128
    %8258 = vxpose.xlu0.b32.cont [6/16] %v7215, 128
    %8259 = vxpose.xlu0.b32.cont [7/16] %v7222, 128
    %8260 = vxpose.xlu0.b32.cont [8/16] %v7229, 128
    %8261 = vxpose.xlu0.b32.cont [9/16] 0.0, 128
    %8262 = vxpose.xlu0.b32.cont [10/16] 0.0, 128
    %8263 = vxpose.xlu0.b32.cont [11/16] 0.0, 128
    %8264 = vxpose.xlu0.b32.cont [12/16] 0.0, 128
    %8265 = vxpose.xlu0.b32.cont [13/16] 0.0, 128
    %8266 = vxpose.xlu0.b32.cont [14/16] 0.0, 128
    %8267 = vxpose.xlu0.b32.cont [15/16] 0.0, 128
    %8268 = vxpose.xlu0.b32.end [16/16] 0.0, 128
    %v8269 = vpop.trf.xlu0
    %v8270 = vpop.trf.xlu0
    %v8271 = vpop.trf.xlu0
    %v8272 = vpop.trf.xlu0
    %v8273 = vpop.trf.xlu0
    %v8274 = vpop.trf.xlu0
    %v8275 = vpop.trf.xlu0
    %v8276 = vpop.trf.xlu0
    %v8277 = vpop.trf.xlu0
    %v8278 = vpop.trf.xlu0
    %v8279 = vpop.trf.xlu0
    %v8280 = vpop.trf.xlu0
    %v8281 = vpop.trf.xlu0
    %v8282 = vpop.trf.xlu0
    %v8283 = vpop.trf.xlu0
    %v8284 = vpop.trf.xlu0
    %8285 = vxpose.xlu0.b32.start [1/16] %v8168, 128
    %8286 = vxpose.xlu0.b32.cont [2/16] %v8175, 128
    %8287 = vxpose.xlu0.b32.cont [3/16] %v8182, 128
    %8288 = vxpose.xlu0.b32.cont [4/16] %v8189, 128
    %8289 = vxpose.xlu0.b32.cont [5/16] %v8196, 128
    %8290 = vxpose.xlu0.b32.cont [6/16] %v8203, 128
    %8291 = vxpose.xlu0.b32.cont [7/16] %v8210, 128
    %8292 = vxpose.xlu0.b32.cont [8/16] %v8217, 128
    %8293 = vxpose.xlu0.b32.cont [9/16] 0.0, 128
    %8294 = vxpose.xlu0.b32.cont [10/16] 0.0, 128
    %8295 = vxpose.xlu0.b32.cont [11/16] 0.0, 128
    %8296 = vxpose.xlu0.b32.cont [12/16] 0.0, 128
    %8297 = vxpose.xlu0.b32.cont [13/16] 0.0, 128
    %8298 = vxpose.xlu0.b32.cont [14/16] 0.0, 128
    %8299 = vxpose.xlu0.b32.cont [15/16] 0.0, 128
    %8300 = vxpose.xlu0.b32.end [16/16] 0.0, 128
    %v8301 = vpop.trf.xlu0
    %v8302 = vpop.trf.xlu0
    %v8303 = vpop.trf.xlu0
    %v8304 = vpop.trf.xlu0
    %v8305 = vpop.trf.xlu0
    %v8306 = vpop.trf.xlu0
    %v8307 = vpop.trf.xlu0
    %v8308 = vpop.trf.xlu0
    %v8309 = vpop.trf.xlu0
    %v8310 = vpop.trf.xlu0
    %v8311 = vpop.trf.xlu0
    %v8312 = vpop.trf.xlu0
    %v8313 = vpop.trf.xlu0
    %v8314 = vpop.trf.xlu0
    %v8315 = vpop.trf.xlu0
    %v8316 = vpop.trf.xlu0
    %8317 = vxpose.xlu0.b32.start [1/16] %v8170, 128
    %8318 = vxpose.xlu0.b32.cont [2/16] %v8177, 128
    %8319 = vxpose.xlu0.b32.cont [3/16] %v8184, 128
    %8320 = vxpose.xlu0.b32.cont [4/16] %v8191, 128
    %8321 = vxpose.xlu0.b32.cont [5/16] %v8198, 128
    %8322 = vxpose.xlu0.b32.cont [6/16] %v8205, 128
    %8323 = vxpose.xlu0.b32.cont [7/16] %v8212, 128
    %8324 = vxpose.xlu0.b32.cont [8/16] %v8219, 128
    %8325 = vxpose.xlu0.b32.cont [9/16] 0.0, 128
    %8326 = vxpose.xlu0.b32.cont [10/16] 0.0, 128
    %8327 = vxpose.xlu0.b32.cont [11/16] 0.0, 128
    %8328 = vxpose.xlu0.b32.cont [12/16] 0.0, 128
    %8329 = vxpose.xlu0.b32.cont [13/16] 0.0, 128
    %8330 = vxpose.xlu0.b32.cont [14/16] 0.0, 128
    %8331 = vxpose.xlu0.b32.cont [15/16] 0.0, 128
    %8332 = vxpose.xlu0.b32.end [16/16] 0.0, 128
    %v8333 = vpop.trf.xlu0
    %v8334 = vpop.trf.xlu0
    %v8335 = vpop.trf.xlu0
    %v8336 = vpop.trf.xlu0
    %v8337 = vpop.trf.xlu0
    %v8338 = vpop.trf.xlu0
    %v8339 = vpop.trf.xlu0
    %v8340 = vpop.trf.xlu0
    %v8341 = vpop.trf.xlu0
    %v8342 = vpop.trf.xlu0
    %v8343 = vpop.trf.xlu0
    %v8344 = vpop.trf.xlu0
    %v8345 = vpop.trf.xlu0
    %v8346 = vpop.trf.xlu0
    %v8347 = vpop.trf.xlu0
    %v8348 = vpop.trf.xlu0
    %8349 = vst.msk [vmem:[#allocation2] sm:$0xff] %vm6216, %v8237
    %8350 = vst.msk [vmem:[#allocation2 + $0x8] sm:$0xff] %vm6216, %v8238
    %8351 = vst.msk [vmem:[#allocation2 + $0x10] sm:$0xff] %vm6216, %v8239
    %8352 = vst.msk [vmem:[#allocation2 + $0x18] sm:$0xff] %vm6216, %v8240
    %8353 = vst.msk [vmem:[#allocation2 + $0x20] sm:$0xff] %vm6216, %v8241
    %8354 = vst.msk [vmem:[#allocation2 + $0x28] sm:$0xff] %vm6216, %v8242
    %8355 = vst.msk [vmem:[#allocation2 + $0x30] sm:$0xff] %vm6216, %v8243
    %8356 = vst.msk [vmem:[#allocation2 + $0x38] sm:$0xff] %vm6216, %v8244
    %8357 = vst.msk [vmem:[#allocation2 + $0x40] sm:$0xff] %vm6216, %v8245
    %8358 = vst.msk [vmem:[#allocation2 + $0x48] sm:$0xff] %vm6216, %v8246
    %8359 = vst.msk [vmem:[#allocation2 + $0x50] sm:$0xff] %vm6216, %v8247
    %8360 = vst.msk [vmem:[#allocation2 + $0x58] sm:$0xff] %vm6216, %v8248
    %8361 = vst.msk [vmem:[#allocation2 + $0x60] sm:$0xff] %vm6216, %v8249
    %8362 = vst.msk [vmem:[#allocation2 + $0x68] sm:$0xff] %vm6216, %v8250
    %8363 = vst.msk [vmem:[#allocation2 + $0x70] sm:$0xff] %vm6216, %v8251
    %8364 = vst.msk [vmem:[#allocation2 + $0x78] sm:$0xff] %vm6216, %v8252
    %8365 = vst.msk [vmem:[#allocation2 + $0x80] sm:$0xff] %vm6216, %v8269
    %8366 = vst.msk [vmem:[#allocation2 + $0x88] sm:$0xff] %vm6216, %v8270
    %8367 = vst.msk [vmem:[#allocation2 + $0x90] sm:$0xff] %vm6216, %v8271
    %8368 = vst.msk [vmem:[#allocation2 + $0x98] sm:$0xff] %vm6216, %v8272
    %8369 = vst.msk [vmem:[#allocation2 + $0xa0] sm:$0xff] %vm6216, %v8273
    %8370 = vst.msk [vmem:[#allocation2 + $0xa8] sm:$0xff] %vm6216, %v8274
    %8371 = vst.msk [vmem:[#allocation2 + $0xb0] sm:$0xff] %vm6216, %v8275
    %8372 = vst.msk [vmem:[#allocation2 + $0xb8] sm:$0xff] %vm6216, %v8276
    %8373 = vst.msk [vmem:[#allocation2 + $0xc0] sm:$0xff] %vm6216, %v8277
    %8374 = vst.msk [vmem:[#allocation2 + $0xc8] sm:$0xff] %vm6216, %v8278
    %8375 = vst.msk [vmem:[#allocation2 + $0xd0] sm:$0xff] %vm6216, %v8279
    %8376 = vst.msk [vmem:[#allocation2 + $0xd8] sm:$0xff] %vm6216, %v8280
    %8377 = vst.msk [vmem:[#allocation2 + $0xe0] sm:$0xff] %vm6216, %v8281
    %8378 = vst.msk [vmem:[#allocation2 + $0xe8] sm:$0xff] %vm6216, %v8282
    %8379 = vst.msk [vmem:[#allocation2 + $0xf0] sm:$0xff] %vm6216, %v8283
    %8380 = vst.msk [vmem:[#allocation2 + $0xf8] sm:$0xff] %vm6216, %v8284
    %8381 = vst.msk [vmem:[#allocation2 + $0x100] sm:$0xff] %vm6216, %v8301
    %8382 = vst.msk [vmem:[#allocation2 + $0x108] sm:$0xff] %vm6216, %v8302
    %8383 = vst.msk [vmem:[#allocation2 + $0x110] sm:$0xff] %vm6216, %v8303
    %8384 = vst.msk [vmem:[#allocation2 + $0x118] sm:$0xff] %vm6216, %v8304
    %8385 = vst.msk [vmem:[#allocation2 + $0x120] sm:$0xff] %vm6216, %v8305
    %8386 = vst.msk [vmem:[#allocation2 + $0x128] sm:$0xff] %vm6216, %v8306
    %8387 = vst.msk [vmem:[#allocation2 + $0x130] sm:$0xff] %vm6216, %v8307
    %8388 = vst.msk [vmem:[#allocation2 + $0x138] sm:$0xff] %vm6216, %v8308
    %8389 = vst.msk [vmem:[#allocation2 + $0x140] sm:$0xff] %vm6216, %v8309
    %8390 = vst.msk [vmem:[#allocation2 + $0x148] sm:$0xff] %vm6216, %v8310
    %8391 = vst.msk [vmem:[#allocation2 + $0x150] sm:$0xff] %vm6216, %v8311
    %8392 = vst.msk [vmem:[#allocation2 + $0x158] sm:$0xff] %vm6216, %v8312
    %8393 = vst.msk [vmem:[#allocation2 + $0x160] sm:$0xff] %vm6216, %v8313
    %8394 = vst.msk [vmem:[#allocation2 + $0x168] sm:$0xff] %vm6216, %v8314
    %8395 = vst.msk [vmem:[#allocation2 + $0x170] sm:$0xff] %vm6216, %v8315
    %8396 = vst.msk [vmem:[#allocation2 + $0x178] sm:$0xff] %vm6216, %v8316
    %8397 = vst.msk [vmem:[#allocation2 + $0x180] sm:$0xff] %vm6216, %v8333
    %8398 = vst.msk [vmem:[#allocation2 + $0x188] sm:$0xff] %vm6216, %v8334
    %8399 = vst.msk [vmem:[#allocation2 + $0x190] sm:$0xff] %vm6216, %v8335
    %8400 = vst.msk [vmem:[#allocation2 + $0x198] sm:$0xff] %vm6216, %v8336
    %8401 = vst.msk [vmem:[#allocation2 + $0x1a0] sm:$0xff] %vm6216, %v8337
    %8402 = vst.msk [vmem:[#allocation2 + $0x1a8] sm:$0xff] %vm6216, %v8338
    %8403 = vst.msk [vmem:[#allocation2 + $0x1b0] sm:$0xff] %vm6216, %v8339
    %8404 = vst.msk [vmem:[#allocation2 + $0x1b8] sm:$0xff] %vm6216, %v8340
    %8405 = vst.msk [vmem:[#allocation2 + $0x1c0] sm:$0xff] %vm6216, %v8341
    %8406 = vst.msk [vmem:[#allocation2 + $0x1c8] sm:$0xff] %vm6216, %v8342
    %8407 = vst.msk [vmem:[#allocation2 + $0x1d0] sm:$0xff] %vm6216, %v8343
    %8408 = vst.msk [vmem:[#allocation2 + $0x1d8] sm:$0xff] %vm6216, %v8344
    %8409 = vst.msk [vmem:[#allocation2 + $0x1e0] sm:$0xff] %vm6216, %v8345
    %8410 = vst.msk [vmem:[#allocation2 + $0x1e8] sm:$0xff] %vm6216, %v8346
    %8411 = vst.msk [vmem:[#allocation2 + $0x1f0] sm:$0xff] %vm6216, %v8347
    %8412 = vst.msk [vmem:[#allocation2 + $0x1f8] sm:$0xff] %vm6216, %v8348
    // Predicated region
    $region30: #{position_encoder_forward.1} parent=1 // pred_check
      _
    $region31: #{position_encoder_forward.1} parent=1 // pred_check_branch
      %8414 = sbr.rel (0) target = $region33
    $region32: #{position_encoder_forward.1} parent=1 // pred_region
      %s8416 = ssub.s32 8192, 8192
      %8417 = vsyncadd [#allocation3], %s8416
      %s8418 = sshll.u32 [#allocation2], 4
      %s8419 = int_to_ptr.vmem [resolvable:$true] %s8418
      %8424 = dma.vmem_to_hbm [thread:$0]  %s8419, 8192, %s7, [#allocation3], 128, 128, 8
    $region33: #{position_encoder_forward.1} parent=1 // pred_fallthru
      _
    // Predicated region
    $region34: #{position_encoder_forward.1} parent=1 // pred_check
      _
    $region35: #{position_encoder_forward.1} parent=1 // pred_check_branch
      %8426 = sbr.rel (0) target = $region37
    $region36: #{position_encoder_forward.1} parent=1 // pred_region
      %8427 = dma.done [#allocation3], 8192
    $region37: #{position_encoder_forward.1} parent=1 // pred_fallthru
      _
    %8428 = vsyncpa [#allocation3], 1

</llo_original>
